<compile_context>
chip_gen: v5e
topology: v5e:2x2
jax: 0.10.0
libtpu: 0.0.40
codegen_flags: <defaults>
</compile_context>

<pallas_src>
import numpy as np
import jax
import jax.numpy as jnp
from jax.experimental import pallas as pl
from jax.experimental.pallas import tpu as pltpu


# ----------------------------------------------------------------------------
# Bilinear (align_corners=False) interpolation matrix for one axis, scale x2.
# ----------------------------------------------------------------------------
def _bilinear_matrix(out_size, in_size):
    U = np.zeros((out_size, in_size), dtype=np.float32)
    scale = in_size / out_size
    for i in range(out_size):
        src = (i + 0.5) * scale - 0.5
        src = max(src, 0.0)
        i0 = min(int(np.floor(src)), in_size - 1)
        i1 = min(i0 + 1, in_size - 1)
        lam = src - i0
        U[i, i0] += 1.0 - lam
        U[i, i1] += lam
    return jnp.asarray(U)


# ----------------------------------------------------------------------------
# Fused kernel
# ----------------------------------------------------------------------------
def _im2col9(xp_ref, H, W, C):
    """Gather the 9 shifted taps of a zero-padded (H+2, W+2, C) VMEM scratch
    and concatenate them along lanes -> (H*W, 9*C) so the 3x3 conv becomes a
    single K=9*C MXU contraction."""
    cols = []
    for dh in range(3):
        for dw in range(3):
            cols.append(xp_ref[dh:dh + H, dw:dw + W, :].reshape(H * W, C))
    return jnp.concatenate(cols, axis=-1)


def _fused_upsample_skip_kernel(a_ref, b_ref, w1_ref, b1_ref, w3_ref, b3_ref,
                                uw_ref, w4a_ref, w4b_ref, b4_ref, w5_ref,
                                b5_ref, o_ref, u2p, u3p, u4p):
    _, H, W, Cs = a_ref.shape
    L = w1_ref.shape[1]
    H2, W2 = 2 * H, 2 * W
    M2 = H2 * W2
    Co = o_ref.shape[-1]

    # Zero the padded scratches (gives the conv3x3 zero halo for free).
    u2p[...] = jnp.zeros_like(u2p)
    u3p[...] = jnp.zeros_like(u3p)
    u4p[...] = jnp.zeros_like(u4p)

    # ---- u1 = conv1x1(a) -------------------------------------------------
    a0 = a_ref[0].reshape(H * W, Cs)
    u1 = (jnp.dot(a0, w1_ref[...], preferred_element_type=jnp.float32)
          + b1_ref[...]).reshape(H, W, L)

    # ---- u2 = bilinear x2 upsample (align_corners=False) ------------------
    # Rows: VPU shifted-add (even: 0.25*x[k-1]+0.75*x[k], odd: 0.75*x[k]+0.25*x[k+1],
    # edge-replicated), interleaved along the leading dim (layout-free).
    x_up = jnp.concatenate([u1[:1], u1[:-1]], axis=0)
    x_dn = jnp.concatenate([u1[1:], u1[-1:]], axis=0)
    even_r = 0.75 * u1 + 0.25 * x_up
    odd_r = 0.75 * u1 + 0.25 * x_dn
    t = jnp.stack([even_r, odd_r], axis=1).reshape(H2, W, L)
    # Columns: small (2W, W) interpolation-matrix contraction over the sublane axis.
    u2 = jnp.einsum("pw,hwc->hpc", uw_ref[...], t,
                    preferred_element_type=jnp.float32)          # (H2, W2, L)
    u2p[1:H2 + 1, 1:W2 + 1, :] = u2

    # ---- u3 = conv1x1(b) ---------------------------------------------------
    b0 = b_ref[0].reshape(M2, L)
    u3 = (jnp.dot(b0, w3_ref[...], preferred_element_type=jnp.float32)
          + b3_ref[...]).reshape(H2, W2, L)
    u3p[1:H2 + 1, 1:W2 + 1, :] = u3

    # ---- u4 = conv3x3(concat([u2, u3])) : concat fused via split weights ----
    imA = _im2col9(u2p, H2, W2, L)                               # (M2, 9L)
    imB = _im2col9(u3p, H2, W2, L)                               # (M2, 9L)
    u4 = (jnp.dot(imA, w4a_ref[...], preferred_element_type=jnp.float32)
          + jnp.dot(imB, w4b_ref[...], preferred_element_type=jnp.float32)
          + b4_ref[...])                                          # (M2, Co)
    u4p[1:H2 + 1, 1:W2 + 1, :] = u4.reshape(H2, W2, Co)

    # ---- u5 = conv3x3(u4) ----------------------------------------------------
    imC = _im2col9(u4p, H2, W2, Co)                              # (M2, 9*Co)
    u5 = (jnp.dot(imC, w5_ref[...], preferred_element_type=jnp.float32)
          + b5_ref[...])
    o_ref[0] = u5.reshape(H2, W2, Co).astype(o_ref.dtype)


# ----------------------------------------------------------------------------
# Wrapper (public interface keeps PyTorch NCHW semantics)
# ----------------------------------------------------------------------------
def upsample_skip_forward(a_nchw, b_nchw, params):
    a = jnp.transpose(a_nchw, (0, 2, 3, 1))        # NCHW -> NHWC (glue)
    b = jnp.transpose(b_nchw, (0, 2, 3, 1))
    N, H, W, Cs = a.shape
    L = params["w1"].shape[1]
    Co = params["b4"].shape[1]
    H2, W2 = 2 * H, 2 * W
    assert b.shape == (N, H2, W2, L), b.shape

    Uw = _bilinear_matrix(W2, W)

    out_nhwc = pl.pallas_call(
        _fused_upsample_skip_kernel,
        out_shape=jax.ShapeDtypeStruct((N, H2, W2, Co), a.dtype),
        grid=(N,),
        in_specs=[
            pl.BlockSpec((1, H, W, Cs), lambda n: (n, 0, 0, 0)),
            pl.BlockSpec((1, H2, W2, L), lambda n: (n, 0, 0, 0)),
            pl.BlockSpec((Cs, L), lambda n: (0, 0)),
            pl.BlockSpec((1, L), lambda n: (0, 0)),
            pl.BlockSpec((L, L), lambda n: (0, 0)),
            pl.BlockSpec((1, L), lambda n: (0, 0)),
            pl.BlockSpec((W2, W), lambda n: (0, 0)),
            pl.BlockSpec((9 * L, Co), lambda n: (0, 0)),
            pl.BlockSpec((9 * L, Co), lambda n: (0, 0)),
            pl.BlockSpec((1, Co), lambda n: (0, 0)),
            pl.BlockSpec((9 * Co, Co), lambda n: (0, 0)),
            pl.BlockSpec((1, Co), lambda n: (0, 0)),
        ],
        out_specs=pl.BlockSpec((1, H2, W2, Co), lambda n: (n, 0, 0, 0)),
        scratch_shapes=[
            pltpu.VMEM((H2 + 2, W2 + 2, L), jnp.float32),   # padded u2
            pltpu.VMEM((H2 + 2, W2 + 2, L), jnp.float32),   # padded u3
            pltpu.VMEM((H2 + 2, W2 + 2, Co), jnp.float32),  # padded u4
        ],
        compiler_params=pltpu.CompilerParams(
            dimension_semantics=("parallel",)),
    )(a, b, params["w1"], params["b1"], params["w3"], params["b3"], Uw,
      params["w4a"], params["w4b"], params["b4"], params["w5"], params["b5"])

    return jnp.transpose(out_nhwc, (0, 3, 1, 2))   # back to NCHW


# ----------------------------------------------------------------------------
# Parameter init (PyTorch Conv2d layout) + kernel-layout preparation
# ----------------------------------------------------------------------------
def _init_conv(key, cout, cin, k):
    kw, kb = jax.random.split(key)
    bound = 1.0 / np.sqrt(cin * k * k)
    w = jax.random.uniform(kw, (cout, cin, k, k), jnp.float32, -bound, bound)
    b = jax.random.uniform(kb, (cout,), jnp.float32, -bound, bound)
    return w, b


def init_upsample_skip_params(key, skip_channels, latent_channels, out_channels):
    k1, k3, k4, k5 = jax.random.split(key, 4)
    w1, b1 = _init_conv(k1, latent_channels, skip_channels, 1)
    w3, b3 = _init_conv(k3, latent_channels, latent_channels, 1)
    w4, b4 = _init_conv(k4, out_channels, 2 * latent_channels, 3)
    w5, b5 = _init_conv(k5, out_channels, out_channels, 3)
    return {"w1": w1, "b1": b1, "w3": w3, "b3": b3,
            "w4": w4, "b4": b4, "w5": w5, "b5": b5}


def prepare_kernel_params(raw, latent_channels):
    L = latent_channels
    w4_t = jnp.transpose(raw["w4"], (2, 3, 1, 0))       # (3, 3, 2L, Co)
    Co = w4_t.shape[-1]
    w5_t = jnp.transpose(raw["w5"], (2, 3, 1, 0))       # (3, 3, Co, Co)
    return {
        "w1": jnp.transpose(raw["w1"][:, :, 0, 0], (1, 0)),
        "b1": raw["b1"].reshape(1, -1),
        "w3": jnp.transpose(raw["w3"][:, :, 0, 0], (1, 0)),
        "b3": raw["b3"].reshape(1, -1),
        "w4a": w4_t[:, :, :L, :].reshape(9 * L, Co),     # taps (dh,dw) row-major
        "w4b": w4_t[:, :, L:, :].reshape(9 * L, Co),
        "b4": raw["b4"].reshape(1, -1),
        "w5": w5_t.reshape(9 * Co, Co),
        "b5": raw["b5"].reshape(1, -1),
    }


# ----------------------------------------------------------------------------
# Pure-JAX reference (matches the PyTorch module) for a numerical cross-check
# ----------------------------------------------------------------------------
def reference_forward(a_nchw, b_nchw, raw):
    def conv(x, w, b, pad):
        y = jax.lax.conv_general_dilated(
            x, w, window_strides=(1, 1), padding=[(pad, pad), (pad, pad)],
            dimension_numbers=("NCHW", "OIHW", "NCHW"))
        return y + b.reshape(1, -1, 1, 1)

    u1 = conv(a_nchw, raw["w1"], raw["b1"], 0)
    _, _, H, W = u1.shape
    Uh = _bilinear_matrix(2 * H, H)
    Uw = _bilinear_matrix(2 * W, W)
    t = jnp.einsum("oh,nlhw->nlow", Uh, u1)
    u2 = jnp.einsum("pw,nlow->nlop", Uw, t)
    u3 = conv(b_nchw, raw["w3"], raw["b3"], 0)
    cat = jnp.concatenate([u2, u3], axis=1)
    u4 = conv(cat, raw["w4"], raw["b4"], 1)
    return conv(u4, raw["w5"], raw["b5"], 1)


if __name__ == "__main__":
    skip_channels, latent_channels, out_channels = 4, 8, 8
    N, H, W = 2, 8, 8

    key = jax.random.PRNGKey(0)
    ka, kb, kp = jax.random.split(key, 3)
    a = jax.random.normal(ka, (N, skip_channels, H, W), jnp.float32)
    b = jax.random.normal(kb, (N, latent_channels, 2 * H, 2 * W), jnp.float32)

    raw = init_upsample_skip_params(kp, skip_channels, latent_channels,
                                    out_channels)
    params = prepare_kernel_params(raw, latent_channels)

    out = upsample_skip_forward(a, b, params)
    jax.block_until_ready(out)
    assert out.shape == (N, out_channels, 2 * H, 2 * W), out.shape

    ref = reference_forward(a, b, raw)
    np.testing.assert_allclose(np.asarray(out), np.asarray(ref),
                               rtol=2e-2, atol=2e-2)
    print("KERNEL_OK")
</pallas_src>

<mosaic_0001>
module attributes {stable_mosaic.version = 11 : i64} {
  func.func @_fused_upsample_skip_kernel(%arg0: i32, %arg1: memref<1x8x8x4xf32, #tpu.memory_space<vmem>>, %arg2: memref<1x16x16x8xf32, #tpu.memory_space<vmem>>, %arg3: memref<4x8xf32, #tpu.memory_space<vmem>>, %arg4: memref<1x8xf32, #tpu.memory_space<vmem>>, %arg5: memref<8x8xf32, #tpu.memory_space<vmem>>, %arg6: memref<1x8xf32, #tpu.memory_space<vmem>>, %arg7: memref<16x8xf32, #tpu.memory_space<vmem>>, %arg8: memref<72x8xf32, #tpu.memory_space<vmem>>, %arg9: memref<72x8xf32, #tpu.memory_space<vmem>>, %arg10: memref<1x8xf32, #tpu.memory_space<vmem>>, %arg11: memref<72x8xf32, #tpu.memory_space<vmem>>, %arg12: memref<1x8xf32, #tpu.memory_space<vmem>>, %arg13: memref<1x16x16x8xf32, #tpu.memory_space<vmem>>, %arg14: memref<18x18x8xf32, #tpu.memory_space<vmem>>, %arg15: memref<18x18x8xf32, #tpu.memory_space<vmem>>, %arg16: memref<18x18x8xf32, #tpu.memory_space<vmem>>) attributes {dimension_semantics = [#tpu.dimension_semantics<parallel>], iteration_bounds = array<i64: 2>, scalar_prefetch = 0 : i64, scratch_operands = 3 : i64, tpu.core_type = #tpu.core_type<tc>, window_params = [{transform_indices = @transform_0, window_bounds = array<i64: 1, 8, 8, 4>}, {transform_indices = @transform_1, window_bounds = array<i64: 1, 16, 16, 8>}, {pipeline_mode = #tpu.pipeline_mode<synchronous>, transform_indices = @transform_2, window_bounds = array<i64: 4, 8>}, {pipeline_mode = #tpu.pipeline_mode<synchronous>, transform_indices = @transform_3, window_bounds = array<i64: 1, 8>}, {pipeline_mode = #tpu.pipeline_mode<synchronous>, transform_indices = @transform_4, window_bounds = array<i64: 8, 8>}, {pipeline_mode = #tpu.pipeline_mode<synchronous>, transform_indices = @transform_5, window_bounds = array<i64: 1, 8>}, {pipeline_mode = #tpu.pipeline_mode<synchronous>, transform_indices = @transform_6, window_bounds = array<i64: 16, 8>}, {pipeline_mode = #tpu.pipeline_mode<synchronous>, transform_indices = @transform_7, window_bounds = array<i64: 72, 8>}, {pipeline_mode = #tpu.pipeline_mode<synchronous>, transform_indices = @transform_8, window_bounds = array<i64: 72, 8>}, {pipeline_mode = #tpu.pipeline_mode<synchronous>, transform_indices = @transform_9, window_bounds = array<i64: 1, 8>}, {pipeline_mode = #tpu.pipeline_mode<synchronous>, transform_indices = @transform_10, window_bounds = array<i64: 72, 8>}, {pipeline_mode = #tpu.pipeline_mode<synchronous>, transform_indices = @transform_11, window_bounds = array<i64: 1, 8>}, {transform_indices = @transform_12, window_bounds = array<i64: 1, 16, 16, 8>}]} {
    %cst = arith.constant 0.000000e+00 : f32
    %0 = vector.broadcast %cst : f32 to vector<18x18x8xf32>
    %c0 = arith.constant 0 : index
    %c0_0 = arith.constant 0 : index
    %c0_1 = arith.constant 0 : index
    %1 = vector.load %arg14[%c0, %c0_0, %c0_1] : memref<18x18x8xf32, #tpu.memory_space<vmem>>, vector<18x18x8xf32>
    tpu.vector_store %arg14[%c0, %c0_0, %c0_1], %0 {strides = array<i32>} : memref<18x18x8xf32, #tpu.memory_space<vmem>>, vector<18x18x8xf32>,
    %cst_2 = arith.constant 0.000000e+00 : f32
    %2 = vector.broadcast %cst_2 : f32 to vector<18x18x8xf32>
    %c0_3 = arith.constant 0 : index
    %c0_4 = arith.constant 0 : index
    %c0_5 = arith.constant 0 : index
    %3 = vector.load %arg15[%c0_3, %c0_4, %c0_5] : memref<18x18x8xf32, #tpu.memory_space<vmem>>, vector<18x18x8xf32>
    tpu.vector_store %arg15[%c0_3, %c0_4, %c0_5], %2 {strides = array<i32>} : memref<18x18x8xf32, #tpu.memory_space<vmem>>, vector<18x18x8xf32>,
    %cst_6 = arith.constant 0.000000e+00 : f32
    %4 = vector.broadcast %cst_6 : f32 to vector<18x18x8xf32>
    %c0_7 = arith.constant 0 : index
    %c0_8 = arith.constant 0 : index
    %c0_9 = arith.constant 0 : index
    %5 = vector.load %arg16[%c0_7, %c0_8, %c0_9] : memref<18x18x8xf32, #tpu.memory_space<vmem>>, vector<18x18x8xf32>
    tpu.vector_store %arg16[%c0_7, %c0_8, %c0_9], %4 {strides = array<i32>} : memref<18x18x8xf32, #tpu.memory_space<vmem>>, vector<18x18x8xf32>,
    %c0_10 = arith.constant 0 : index
    %c0_11 = arith.constant 0 : index
    %c0_12 = arith.constant 0 : index
    %c0_13 = arith.constant 0 : index
    %6 = vector.load %arg1[%c0_10, %c0_11, %c0_12, %c0_13] : memref<1x8x8x4xf32, #tpu.memory_space<vmem>>, vector<1x8x8x4xf32>
    %7 = vector.shape_cast %6 : vector<1x8x8x4xf32> to vector<8x8x4xf32>
    %8 = vector.shape_cast %7 : vector<8x8x4xf32> to vector<64x4xf32>
    %c0_14 = arith.constant 0 : index
    %c0_15 = arith.constant 0 : index
    %9 = vector.load %arg3[%c0_14, %c0_15] : memref<4x8xf32, #tpu.memory_space<vmem>>, vector<4x8xf32>
    %cst_16 = arith.constant dense<0.000000e+00> : vector<64x8xf32>
    %10 = tpu.matmul %8, %9, %cst_16 {dimension_numbers = #tpu.dot_dimension_numbers<[1], [0], [0], [1], [0, 0, 1, 1], [], []>} : vector<64x4xf32>, vector<4x8xf32>, vector<64x8xf32> -> vector<64x8xf32>
    %c0_17 = arith.constant 0 : index
    %c0_18 = arith.constant 0 : index
    %11 = vector.load %arg4[%c0_17, %c0_18] : memref<1x8xf32, #tpu.memory_space<vmem>>, vector<1x8xf32>
    %12 = vector.broadcast %11 : vector<1x8xf32> to vector<64x8xf32>
    %13 = arith.addf %10, %12 : vector<64x8xf32>
    %14 = vector.shape_cast %13 : vector<64x8xf32> to vector<8x8x8xf32>
    %15 = vector.extract_strided_slice %14 {offsets = [0, 0, 0], sizes = [1, 8, 8], strides = [1, 1, 1]} : vector<8x8x8xf32> to vector<1x8x8xf32>
    %16 = vector.extract_strided_slice %14 {offsets = [0, 0, 0], sizes = [7, 8, 8], strides = [1, 1, 1]} : vector<8x8x8xf32> to vector<7x8x8xf32>
    %17 = tpu.concatenate %15, %16 in 0 : vector<1x8x8xf32>, vector<7x8x8xf32> -> vector<8x8x8xf32>
    %18 = vector.extract_strided_slice %14 {offsets = [1, 0, 0], sizes = [7, 8, 8], strides = [1, 1, 1]} : vector<8x8x8xf32> to vector<7x8x8xf32>
    %19 = vector.extract_strided_slice %14 {offsets = [7, 0, 0], sizes = [1, 8, 8], strides = [1, 1, 1]} : vector<8x8x8xf32> to vector<1x8x8xf32>
    %20 = tpu.concatenate %18, %19 in 0 : vector<7x8x8xf32>, vector<1x8x8xf32> -> vector<8x8x8xf32>
    %cst_19 = arith.constant 7.500000e-01 : f32
    %21 = vector.broadcast %cst_19 : f32 to vector<8x8x8xf32>
    %22 = arith.mulf %21, %14 : vector<8x8x8xf32>
    %cst_20 = arith.constant 2.500000e-01 : f32
    %23 = vector.broadcast %cst_20 : f32 to vector<8x8x8xf32>
    %24 = arith.mulf %23, %17 : vector<8x8x8xf32>
    %25 = arith.addf %22, %24 : vector<8x8x8xf32>
    %cst_21 = arith.constant 7.500000e-01 : f32
    %26 = vector.broadcast %cst_21 : f32 to vector<8x8x8xf32>
    %27 = arith.mulf %26, %14 : vector<8x8x8xf32>
    %cst_22 = arith.constant 2.500000e-01 : f32
    %28 = vector.broadcast %cst_22 : f32 to vector<8x8x8xf32>
    %29 = arith.mulf %28, %20 : vector<8x8x8xf32>
    %30 = arith.addf %27, %29 : vector<8x8x8xf32>
    %31 = vector.shape_cast %25 : vector<8x8x8xf32> to vector<8x1x8x8xf32>
    %32 = vector.shape_cast %30 : vector<8x8x8xf32> to vector<8x1x8x8xf32>
    %33 = tpu.concatenate %31, %32 in 1 : vector<8x1x8x8xf32>, vector<8x1x8x8xf32> -> vector<8x2x8x8xf32>
    %34 = vector.shape_cast %33 : vector<8x2x8x8xf32> to vector<16x8x8xf32>
    %c0_23 = arith.constant 0 : index
    %c0_24 = arith.constant 0 : index
    %35 = vector.load %arg7[%c0_23, %c0_24] : memref<16x8xf32, #tpu.memory_space<vmem>>, vector<16x8xf32>
    "tpu.trace_start"() <{level = 10 : i32, message = "pw,hwc->hpc"}> : () -> ()
    %cst_25 = arith.constant dense<0.000000e+00> : vector<16x8x16xf32>
    %36 = tpu.matmul %34, %35, %cst_25 {dimension_numbers = #tpu.dot_dimension_numbers<[1], [1], [0, 2], [0], [0, 0, 0, 2, 1, 0], [], []>} : vector<16x8x8xf32>, vector<16x8xf32>, vector<16x8x16xf32> -> vector<16x8x16xf32>
    %37 = tpu.transpose %36, [0, 2, 1] : vector<16x8x16xf32> -> vector<16x16x8xf32>
    "tpu.trace_stop"() : () -> ()
    %c1 = arith.constant 1 : index
    %c1_26 = arith.constant 1 : index
    %c0_27 = arith.constant 0 : index
    %38 = vector.load %arg14[%c1, %c1_26, %c0_27] : memref<18x18x8xf32, #tpu.memory_space<vmem>>, vector<16x16x8xf32>
    tpu.vector_store %arg14[%c1, %c1_26, %c0_27], %37 {strides = array<i32>} : memref<18x18x8xf32, #tpu.memory_space<vmem>>, vector<16x16x8xf32>,
    %c0_28 = arith.constant 0 : index
    %c0_29 = arith.constant 0 : index
    %c0_30 = arith.constant 0 : index
    %c0_31 = arith.constant 0 : index
    %39 = vector.load %arg2[%c0_28, %c0_29, %c0_30, %c0_31] : memref<1x16x16x8xf32, #tpu.memory_space<vmem>>, vector<1x16x16x8xf32>
    %40 = vector.shape_cast %39 : vector<1x16x16x8xf32> to vector<16x16x8xf32>
    %41 = vector.shape_cast %40 : vector<16x16x8xf32> to vector<256x8xf32>
    %c0_32 = arith.constant 0 : index
    %c0_33 = arith.constant 0 : index
    %42 = vector.load %arg5[%c0_32, %c0_33] : memref<8x8xf32, #tpu.memory_space<vmem>>, vector<8x8xf32>
    %cst_34 = arith.constant dense<0.000000e+00> : vector<256x8xf32>
    %43 = tpu.matmul %41, %42, %cst_34 {dimension_numbers = #tpu.dot_dimension_numbers<[1], [0], [0], [1], [0, 0, 1, 1], [], []>} : vector<256x8xf32>, vector<8x8xf32>, vector<256x8xf32> -> vector<256x8xf32>
    %c0_35 = arith.constant 0 : index
    %c0_36 = arith.constant 0 : index
    %44 = vector.load %arg6[%c0_35, %c0_36] : memref<1x8xf32, #tpu.memory_space<vmem>>, vector<1x8xf32>
    %45 = vector.broadcast %44 : vector<1x8xf32> to vector<256x8xf32>
    %46 = arith.addf %43, %45 : vector<256x8xf32>
    %47 = vector.shape_cast %46 : vector<256x8xf32> to vector<16x16x8xf32>
    %c1_37 = arith.constant 1 : index
    %c1_38 = arith.constant 1 : index
    %c0_39 = arith.constant 0 : index
    %48 = vector.load %arg15[%c1_37, %c1_38, %c0_39] : memref<18x18x8xf32, #tpu.memory_space<vmem>>, vector<16x16x8xf32>
    tpu.vector_store %arg15[%c1_37, %c1_38, %c0_39], %47 {strides = array<i32>} : memref<18x18x8xf32, #tpu.memory_space<vmem>>, vector<16x16x8xf32>,
    %c0_40 = arith.constant 0 : index
    %c0_41 = arith.constant 0 : index
    %c0_42 = arith.constant 0 : index
    %49 = vector.load %arg14[%c0_40, %c0_41, %c0_42] : memref<18x18x8xf32, #tpu.memory_space<vmem>>, vector<16x16x8xf32>
    %50 = vector.shape_cast %49 : vector<16x16x8xf32> to vector<256x8xf32>
    %c0_43 = arith.constant 0 : index
    %c1_44 = arith.constant 1 : index
    %c0_45 = arith.constant 0 : index
    %51 = vector.load %arg14[%c0_43, %c1_44, %c0_45] : memref<18x18x8xf32, #tpu.memory_space<vmem>>, vector<16x16x8xf32>
    %52 = vector.shape_cast %51 : vector<16x16x8xf32> to vector<256x8xf32>
    %c0_46 = arith.constant 0 : index
    %c2 = arith.constant 2 : index
    %c0_47 = arith.constant 0 : index
    %53 = vector.load %arg14[%c0_46, %c2, %c0_47] : memref<18x18x8xf32, #tpu.memory_space<vmem>>, vector<16x16x8xf32>
    %54 = vector.shape_cast %53 : vector<16x16x8xf32> to vector<256x8xf32>
    %c1_48 = arith.constant 1 : index
    %c0_49 = arith.constant 0 : index
    %c0_50 = arith.constant 0 : index
    %55 = vector.load %arg14[%c1_48, %c0_49, %c0_50] : memref<18x18x8xf32, #tpu.memory_space<vmem>>, vector<16x16x8xf32>
    %56 = vector.shape_cast %55 : vector<16x16x8xf32> to vector<256x8xf32>
    %c1_51 = arith.constant 1 : index
    %c1_52 = arith.constant 1 : index
    %c0_53 = arith.constant 0 : index
    %57 = vector.load %arg14[%c1_51, %c1_52, %c0_53] : memref<18x18x8xf32, #tpu.memory_space<vmem>>, vector<16x16x8xf32>
    %58 = vector.shape_cast %57 : vector<16x16x8xf32> to vector<256x8xf32>
    %c1_54 = arith.constant 1 : index
    %c2_55 = arith.constant 2 : index
    %c0_56 = arith.constant 0 : index
    %59 = vector.load %arg14[%c1_54, %c2_55, %c0_56] : memref<18x18x8xf32, #tpu.memory_space<vmem>>, vector<16x16x8xf32>
    %60 = vector.shape_cast %59 : vector<16x16x8xf32> to vector<256x8xf32>
    %c2_57 = arith.constant 2 : index
    %c0_58 = arith.constant 0 : index
    %c0_59 = arith.constant 0 : index
    %61 = vector.load %arg14[%c2_57, %c0_58, %c0_59] : memref<18x18x8xf32, #tpu.memory_space<vmem>>, vector<16x16x8xf32>
    %62 = vector.shape_cast %61 : vector<16x16x8xf32> to vector<256x8xf32>
    %c2_60 = arith.constant 2 : index
    %c1_61 = arith.constant 1 : index
    %c0_62 = arith.constant 0 : index
    %63 = vector.load %arg14[%c2_60, %c1_61, %c0_62] : memref<18x18x8xf32, #tpu.memory_space<vmem>>, vector<16x16x8xf32>
    %64 = vector.shape_cast %63 : vector<16x16x8xf32> to vector<256x8xf32>
    %c2_63 = arith.constant 2 : index
    %c2_64 = arith.constant 2 : index
    %c0_65 = arith.constant 0 : index
    %65 = vector.load %arg14[%c2_63, %c2_64, %c0_65] : memref<18x18x8xf32, #tpu.memory_space<vmem>>, vector<16x16x8xf32>
    %66 = vector.shape_cast %65 : vector<16x16x8xf32> to vector<256x8xf32>
    %67 = tpu.concatenate %50, %52, %54, %56, %58, %60, %62, %64, %66 in 1 : vector<256x8xf32>, vector<256x8xf32>, vector<256x8xf32>, vector<256x8xf32>, vector<256x8xf32>, vector<256x8xf32>, vector<256x8xf32>, vector<256x8xf32>, vector<256x8xf32> -> vector<256x72xf32>
    %c0_66 = arith.constant 0 : index
    %c0_67 = arith.constant 0 : index
    %c0_68 = arith.constant 0 : index
    %68 = vector.load %arg15[%c0_66, %c0_67, %c0_68] : memref<18x18x8xf32, #tpu.memory_space<vmem>>, vector<16x16x8xf32>
    %69 = vector.shape_cast %68 : vector<16x16x8xf32> to vector<256x8xf32>
    %c0_69 = arith.constant 0 : index
    %c1_70 = arith.constant 1 : index
    %c0_71 = arith.constant 0 : index
    %70 = vector.load %arg15[%c0_69, %c1_70, %c0_71] : memref<18x18x8xf32, #tpu.memory_space<vmem>>, vector<16x16x8xf32>
    %71 = vector.shape_cast %70 : vector<16x16x8xf32> to vector<256x8xf32>
    %c0_72 = arith.constant 0 : index
    %c2_73 = arith.constant 2 : index
    %c0_74 = arith.constant 0 : index
    %72 = vector.load %arg15[%c0_72, %c2_73, %c0_74] : memref<18x18x8xf32, #tpu.memory_space<vmem>>, vector<16x16x8xf32>
    %73 = vector.shape_cast %72 : vector<16x16x8xf32> to vector<256x8xf32>
    %c1_75 = arith.constant 1 : index
    %c0_76 = arith.constant 0 : index
    %c0_77 = arith.constant 0 : index
    %74 = vector.load %arg15[%c1_75, %c0_76, %c0_77] : memref<18x18x8xf32, #tpu.memory_space<vmem>>, vector<16x16x8xf32>
    %75 = vector.shape_cast %74 : vector<16x16x8xf32> to vector<256x8xf32>
    %c1_78 = arith.constant 1 : index
    %c1_79 = arith.constant 1 : index
    %c0_80 = arith.constant 0 : index
    %76 = vector.load %arg15[%c1_78, %c1_79, %c0_80] : memref<18x18x8xf32, #tpu.memory_space<vmem>>, vector<16x16x8xf32>
    %77 = vector.shape_cast %76 : vector<16x16x8xf32> to vector<256x8xf32>
    %c1_81 = arith.constant 1 : index
    %c2_82 = arith.constant 2 : index
    %c0_83 = arith.constant 0 : index
    %78 = vector.load %arg15[%c1_81, %c2_82, %c0_83] : memref<18x18x8xf32, #tpu.memory_space<vmem>>, vector<16x16x8xf32>
    %79 = vector.shape_cast %78 : vector<16x16x8xf32> to vector<256x8xf32>
    %c2_84 = arith.constant 2 : index
    %c0_85 = arith.constant 0 : index
    %c0_86 = arith.constant 0 : index
    %80 = vector.load %arg15[%c2_84, %c0_85, %c0_86] : memref<18x18x8xf32, #tpu.memory_space<vmem>>, vector<16x16x8xf32>
    %81 = vector.shape_cast %80 : vector<16x16x8xf32> to vector<256x8xf32>
    %c2_87 = arith.constant 2 : index
    %c1_88 = arith.constant 1 : index
    %c0_89 = arith.constant 0 : index
    %82 = vector.load %arg15[%c2_87, %c1_88, %c0_89] : memref<18x18x8xf32, #tpu.memory_space<vmem>>, vector<16x16x8xf32>
    %83 = vector.shape_cast %82 : vector<16x16x8xf32> to vector<256x8xf32>
    %c2_90 = arith.constant 2 : index
    %c2_91 = arith.constant 2 : index
    %c0_92 = arith.constant 0 : index
    %84 = vector.load %arg15[%c2_90, %c2_91, %c0_92] : memref<18x18x8xf32, #tpu.memory_space<vmem>>, vector<16x16x8xf32>
    %85 = vector.shape_cast %84 : vector<16x16x8xf32> to vector<256x8xf32>
    %86 = tpu.concatenate %69, %71, %73, %75, %77, %79, %81, %83, %85 in 1 : vector<256x8xf32>, vector<256x8xf32>, vector<256x8xf32>, vector<256x8xf32>, vector<256x8xf32>, vector<256x8xf32>, vector<256x8xf32>, vector<256x8xf32>, vector<256x8xf32> -> vector<256x72xf32>
    %c0_93 = arith.constant 0 : index
    %c0_94 = arith.constant 0 : index
    %87 = vector.load %arg8[%c0_93, %c0_94] : memref<72x8xf32, #tpu.memory_space<vmem>>, vector<72x8xf32>
    %cst_95 = arith.constant dense<0.000000e+00> : vector<256x8xf32>
    %88 = tpu.matmul %67, %87, %cst_95 {dimension_numbers = #tpu.dot_dimension_numbers<[1], [0], [0], [1], [0, 0, 1, 1], [], []>} : vector<256x72xf32>, vector<72x8xf32>, vector<256x8xf32> -> vector<256x8xf32>
    %c0_96 = arith.constant 0 : index
    %c0_97 = arith.constant 0 : index
    %89 = vector.load %arg9[%c0_96, %c0_97] : memref<72x8xf32, #tpu.memory_space<vmem>>, vector<72x8xf32>
    %cst_98 = arith.constant dense<0.000000e+00> : vector<256x8xf32>
    %90 = tpu.matmul %86, %89, %cst_98 {dimension_numbers = #tpu.dot_dimension_numbers<[1], [0], [0], [1], [0, 0, 1, 1], [], []>} : vector<256x72xf32>, vector<72x8xf32>, vector<256x8xf32> -> vector<256x8xf32>
    %91 = arith.addf %88, %90 : vector<256x8xf32>
    %c0_99 = arith.constant 0 : index
    %c0_100 = arith.constant 0 : index
    %92 = vector.load %arg10[%c0_99, %c0_100] : memref<1x8xf32, #tpu.memory_space<vmem>>, vector<1x8xf32>
    %93 = vector.broadcast %92 : vector<1x8xf32> to vector<256x8xf32>
    %94 = arith.addf %91, %93 : vector<256x8xf32>
    %95 = vector.shape_cast %94 : vector<256x8xf32> to vector<16x16x8xf32>
    %c1_101 = arith.constant 1 : index
    %c1_102 = arith.constant 1 : index
    %c0_103 = arith.constant 0 : index
    %96 = vector.load %arg16[%c1_101, %c1_102, %c0_103] : memref<18x18x8xf32, #tpu.memory_space<vmem>>, vector<16x16x8xf32>
    tpu.vector_store %arg16[%c1_101, %c1_102, %c0_103], %95 {strides = array<i32>} : memref<18x18x8xf32, #tpu.memory_space<vmem>>, vector<16x16x8xf32>,
    %c0_104 = arith.constant 0 : index
    %c0_105 = arith.constant 0 : index
    %c0_106 = arith.constant 0 : index
    %97 = vector.load %arg16[%c0_104, %c0_105, %c0_106] : memref<18x18x8xf32, #tpu.memory_space<vmem>>, vector<16x16x8xf32>
    %98 = vector.shape_cast %97 : vector<16x16x8xf32> to vector<256x8xf32>
    %c0_107 = arith.constant 0 : index
    %c1_108 = arith.constant 1 : index
    %c0_109 = arith.constant 0 : index
    %99 = vector.load %arg16[%c0_107, %c1_108, %c0_109] : memref<18x18x8xf32, #tpu.memory_space<vmem>>, vector<16x16x8xf32>
    %100 = vector.shape_cast %99 : vector<16x16x8xf32> to vector<256x8xf32>
    %c0_110 = arith.constant 0 : index
    %c2_111 = arith.constant 2 : index
    %c0_112 = arith.constant 0 : index
    %101 = vector.load %arg16[%c0_110, %c2_111, %c0_112] : memref<18x18x8xf32, #tpu.memory_space<vmem>>, vector<16x16x8xf32>
    %102 = vector.shape_cast %101 : vector<16x16x8xf32> to vector<256x8xf32>
    %c1_113 = arith.constant 1 : index
    %c0_114 = arith.constant 0 : index
    %c0_115 = arith.constant 0 : index
    %103 = vector.load %arg16[%c1_113, %c0_114, %c0_115] : memref<18x18x8xf32, #tpu.memory_space<vmem>>, vector<16x16x8xf32>
    %104 = vector.shape_cast %103 : vector<16x16x8xf32> to vector<256x8xf32>
    %c1_116 = arith.constant 1 : index
    %c1_117 = arith.constant 1 : index
    %c0_118 = arith.constant 0 : index
    %105 = vector.load %arg16[%c1_116, %c1_117, %c0_118] : memref<18x18x8xf32, #tpu.memory_space<vmem>>, vector<16x16x8xf32>
    %106 = vector.shape_cast %105 : vector<16x16x8xf32> to vector<256x8xf32>
    %c1_119 = arith.constant 1 : index
    %c2_120 = arith.constant 2 : index
    %c0_121 = arith.constant 0 : index
    %107 = vector.load %arg16[%c1_119, %c2_120, %c0_121] : memref<18x18x8xf32, #tpu.memory_space<vmem>>, vector<16x16x8xf32>
    %108 = vector.shape_cast %107 : vector<16x16x8xf32> to vector<256x8xf32>
    %c2_122 = arith.constant 2 : index
    %c0_123 = arith.constant 0 : index
    %c0_124 = arith.constant 0 : index
    %109 = vector.load %arg16[%c2_122, %c0_123, %c0_124] : memref<18x18x8xf32, #tpu.memory_space<vmem>>, vector<16x16x8xf32>
    %110 = vector.shape_cast %109 : vector<16x16x8xf32> to vector<256x8xf32>
    %c2_125 = arith.constant 2 : index
    %c1_126 = arith.constant 1 : index
    %c0_127 = arith.constant 0 : index
    %111 = vector.load %arg16[%c2_125, %c1_126, %c0_127] : memref<18x18x8xf32, #tpu.memory_space<vmem>>, vector<16x16x8xf32>
    %112 = vector.shape_cast %111 : vector<16x16x8xf32> to vector<256x8xf32>
    %c2_128 = arith.constant 2 : index
    %c2_129 = arith.constant 2 : index
    %c0_130 = arith.constant 0 : index
    %113 = vector.load %arg16[%c2_128, %c2_129, %c0_130] : memref<18x18x8xf32, #tpu.memory_space<vmem>>, vector<16x16x8xf32>
    %114 = vector.shape_cast %113 : vector<16x16x8xf32> to vector<256x8xf32>
    %115 = tpu.concatenate %98, %100, %102, %104, %106, %108, %110, %112, %114 in 1 : vector<256x8xf32>, vector<256x8xf32>, vector<256x8xf32>, vector<256x8xf32>, vector<256x8xf32>, vector<256x8xf32>, vector<256x8xf32>, vector<256x8xf32>, vector<256x8xf32> -> vector<256x72xf32>
    %c0_131 = arith.constant 0 : index
    %c0_132 = arith.constant 0 : index
    %116 = vector.load %arg11[%c0_131, %c0_132] : memref<72x8xf32, #tpu.memory_space<vmem>>, vector<72x8xf32>
    %cst_133 = arith.constant dense<0.000000e+00> : vector<256x8xf32>
    %117 = tpu.matmul %115, %116, %cst_133 {dimension_numbers = #tpu.dot_dimension_numbers<[1], [0], [0], [1], [0, 0, 1, 1], [], []>} : vector<256x72xf32>, vector<72x8xf32>, vector<256x8xf32> -> vector<256x8xf32>
    %c0_134 = arith.constant 0 : index
    %c0_135 = arith.constant 0 : index
    %118 = vector.load %arg12[%c0_134, %c0_135] : memref<1x8xf32, #tpu.memory_space<vmem>>, vector<1x8xf32>
    %119 = vector.broadcast %118 : vector<1x8xf32> to vector<256x8xf32>
    %120 = arith.addf %117, %119 : vector<256x8xf32>
    %121 = vector.shape_cast %120 : vector<256x8xf32> to vector<16x16x8xf32>
    %c0_136 = arith.constant 0 : index
    %c0_137 = arith.constant 0 : index
    %c0_138 = arith.constant 0 : index
    %c0_139 = arith.constant 0 : index
    %122 = vector.load %arg13[%c0_136, %c0_137, %c0_138, %c0_139] : memref<1x16x16x8xf32, #tpu.memory_space<vmem>>, vector<1x16x16x8xf32>
    %123 = vector.shape_cast %122 : vector<1x16x16x8xf32> to vector<16x16x8xf32>
    %124 = vector.shape_cast %121 : vector<16x16x8xf32> to vector<1x16x16x8xf32>
    tpu.vector_store %arg13[%c0_136, %c0_137, %c0_138, %c0_139], %124 {strides = array<i32>} : memref<1x16x16x8xf32, #tpu.memory_space<vmem>>, vector<1x16x16x8xf32>,
    return
  }
  func.func @transform_0(%arg0: i32) -> (i32, i32, i32, i32) {
    %c0_i32 = arith.constant 0 : i32
    %c0_i32_0 = arith.constant 0 : i32
    %c0_i32_1 = arith.constant 0 : i32
    %c0_i32_2 = arith.constant 0 : i32
    return %arg0, %c0_i32, %c0_i32_0, %c0_i32_1 : i32, i32, i32, i32
  }
  func.func @transform_1(%arg0: i32) -> (i32, i32, i32, i32) {
    %c0_i32 = arith.constant 0 : i32
    %c0_i32_0 = arith.constant 0 : i32
    %c0_i32_1 = arith.constant 0 : i32
    %c0_i32_2 = arith.constant 0 : i32
    return %arg0, %c0_i32, %c0_i32_0, %c0_i32_1 : i32, i32, i32, i32
  }
  func.func @transform_2(%arg0: i32) -> (i32, i32) {
    %c0_i32 = arith.constant 0 : i32
    %c0_i32_0 = arith.constant 0 : i32
    %c0_i32_1 = arith.constant 0 : i32
    return %c0_i32, %c0_i32_0 : i32, i32
  }
  func.func @transform_3(%arg0: i32) -> (i32, i32) {
    %c0_i32 = arith.constant 0 : i32
    %c0_i32_0 = arith.constant 0 : i32
    %c0_i32_1 = arith.constant 0 : i32
    return %c0_i32, %c0_i32_0 : i32, i32
  }
  func.func @transform_4(%arg0: i32) -> (i32, i32) {
    %c0_i32 = arith.constant 0 : i32
    %c0_i32_0 = arith.constant 0 : i32
    %c0_i32_1 = arith.constant 0 : i32
    return %c0_i32, %c0_i32_0 : i32, i32
  }
  func.func @transform_5(%arg0: i32) -> (i32, i32) {
    %c0_i32 = arith.constant 0 : i32
    %c0_i32_0 = arith.constant 0 : i32
    %c0_i32_1 = arith.constant 0 : i32
    return %c0_i32, %c0_i32_0 : i32, i32
  }
  func.func @transform_6(%arg0: i32) -> (i32, i32) {
    %c0_i32 = arith.constant 0 : i32
    %c0_i32_0 = arith.constant 0 : i32
    %c0_i32_1 = arith.constant 0 : i32
    return %c0_i32, %c0_i32_0 : i32, i32
  }
  func.func @transform_7(%arg0: i32) -> (i32, i32) {
    %c0_i32 = arith.constant 0 : i32
    %c0_i32_0 = arith.constant 0 : i32
    %c0_i32_1 = arith.constant 0 : i32
    return %c0_i32, %c0_i32_0 : i32, i32
  }
  func.func @transform_8(%arg0: i32) -> (i32, i32) {
    %c0_i32 = arith.constant 0 : i32
    %c0_i32_0 = arith.constant 0 : i32
    %c0_i32_1 = arith.constant 0 : i32
    return %c0_i32, %c0_i32_0 : i32, i32
  }
  func.func @transform_9(%arg0: i32) -> (i32, i32) {
    %c0_i32 = arith.constant 0 : i32
    %c0_i32_0 = arith.constant 0 : i32
    %c0_i32_1 = arith.constant 0 : i32
    return %c0_i32, %c0_i32_0 : i32, i32
  }
  func.func @transform_10(%arg0: i32) -> (i32, i32) {
    %c0_i32 = arith.constant 0 : i32
    %c0_i32_0 = arith.constant 0 : i32
    %c0_i32_1 = arith.constant 0 : i32
    return %c0_i32, %c0_i32_0 : i32, i32
  }
  func.func @transform_11(%arg0: i32) -> (i32, i32) {
    %c0_i32 = arith.constant 0 : i32
    %c0_i32_0 = arith.constant 0 : i32
    %c0_i32_1 = arith.constant 0 : i32
    return %c0_i32, %c0_i32_0 : i32, i32
  }
  func.func @transform_12(%arg0: i32) -> (i32, i32, i32, i32) {
    %c0_i32 = arith.constant 0 : i32
    %c0_i32_0 = arith.constant 0 : i32
    %c0_i32_1 = arith.constant 0 : i32
    %c0_i32_2 = arith.constant 0 : i32
    return %arg0, %c0_i32, %c0_i32_0, %c0_i32_1 : i32, i32, i32, i32
  }
}

</mosaic_0001>

<llo_original>
// kernel: tpu_custom_call.1
$region0: #{tpu_custom_call.1}
  #allocation0 [shape = 'u32[]', space=smem, size = 0x4, offset = 0x4, fixed_abs, tag = 'smem constant byte address 0x4 - core index']
  #allocation1 [shape = 'u32[72,128]{1,0:T(1,128)}', space=vmem, size = 0x9000, scoped, tag = 'internal scratch']
  #allocation2 [shape = 'f32[18,18,8]{2,1,0:T(8,128)}', space=vmem, size = 0x36000, scoped, tag = 'scratch operand']
  #allocation3 [shape = 'f32[18,18,8]{2,1,0:T(8,128)}', space=vmem, size = 0x36000, scoped, tag = 'scratch operand']
  #allocation4 [shape = 'f32[18,18,8]{2,1,0:T(8,128)}', space=vmem, size = 0x36000, scoped, tag = 'scratch operand']
  %s0 = inlined_call_operand.vmem [shape: f32[2,8,8,4], index: 0, kind: input, shape index: {}]
  %s1 = inlined_call_operand.vmem [shape: f32[2,16,16,8], index: 1, kind: input, shape index: {}]
  %s2 = inlined_call_operand.vmem [shape: f32[4,8], index: 2, kind: input, shape index: {}]
  %s3 = inlined_call_operand.vmem [shape: f32[1,8], index: 3, kind: input, shape index: {}]
  %s4 = inlined_call_operand.vmem [shape: f32[8,8], index: 4, kind: input, shape index: {}]
  %s5 = inlined_call_operand.vmem [shape: f32[1,8], index: 5, kind: input, shape index: {}]
  %s6 = inlined_call_operand.vmem [shape: f32[16,8], index: 6, kind: input, shape index: {}]
  %s7 = inlined_call_operand.vmem [shape: f32[72,8], index: 7, kind: input, shape index: {}]
  %s8 = inlined_call_operand.vmem [shape: f32[72,8], index: 8, kind: input, shape index: {}]
  %s9 = inlined_call_operand.vmem [shape: f32[1,8], index: 9, kind: input, shape index: {}]
  %s10 = inlined_call_operand.vmem [shape: f32[72,8], index: 10, kind: input, shape index: {}]
  %s11 = inlined_call_operand.vmem [shape: f32[1,8], index: 11, kind: input, shape index: {}]
  %s12 = inlined_call_operand.vmem [shape: f32[2,16,16,8], index: 12, kind: output, shape index: {}]
  %s13 = sld [smem:[#allocation0]]
  $region81: #{tpu_custom_call.1} parent=0
    _
  %s15 = ssub.s32 1, %s13
  %s16 = scalar_select 0, %s15, %s13
  loop: start=0, step=1, limit=4
  $region2: #{tpu_custom_call.1} parent=0 // loop_pre_header
    _
  $region3: #{tpu_custom_call.1} parent=0 // loop_header
    %s18 = sphi 0, %s22
    %p19 = scmp.ge.s32.totalorder %s18, 4
    %s28 = sphi 0, %s30
    %s31 = sphi 0, %s28
    %s32 = sphi 0, %s31
    %s48 = sphi 0, %s32
    %s54 = sphi 0, %s56
    %s57 = sphi 0, %s54
    %s58 = sphi 0, %s57
    %s74 = sphi 0, %s58
    %s78 = sphi 0, %s78
    %s80 = sphi 0, %s78
    %s81 = sphi 0, %s80
    %s95 = sphi 0, %s81
    %s99 = sphi 0, %s99
    %s101 = sphi 0, %s99
    %s102 = sphi 0, %s101
    %s116 = sphi 0, %s102
    %s120 = sphi 0, %s120
    %s122 = sphi 0, %s120
    %s123 = sphi 0, %s122
    %s137 = sphi 0, %s123
    %s141 = sphi 0, %s141
    %s143 = sphi 0, %s141
    %s144 = sphi 0, %s143
    %s158 = sphi 0, %s144
    %s162 = sphi 0, %s162
    %s164 = sphi 0, %s162
    %s165 = sphi 0, %s164
    %s179 = sphi 0, %s165
    %s183 = sphi 0, %s183
    %s185 = sphi 0, %s183
    %s186 = sphi 0, %s185
    %s200 = sphi 0, %s186
    %s204 = sphi 0, %s204
    %s206 = sphi 0, %s204
    %s207 = sphi 0, %s206
    %s221 = sphi 0, %s207
    %s225 = sphi 0, %s225
    %s227 = sphi 0, %s225
    %s228 = sphi 0, %s227
    %s242 = sphi 0, %s228
    %s246 = sphi 0, %s246
    %s248 = sphi 0, %s246
    %s249 = sphi 0, %s248
    %s263 = sphi 0, %s249
    %s267 = sphi 0, %s267
    %s269 = sphi 0, %s267
    %s270 = sphi 0, %s269
    %s284 = sphi 0, %s270
    %s290 = sphi 0, %s292
    %s293 = sphi 0, %s290
    %s294 = sphi 0, %s293
    %s310 = sphi 0, %s294
  $region4: #{tpu_custom_call.1} parent=0 // loop_header_branch
    %21 = sbr.rel (%p19) target = $region8
  $region5: #{tpu_custom_call.1} parent=0 // loop_body
    %s23 = ssub.s32 %s18, 1
    %s24 = ssub.s32 %s18, 2
    %s25 = sadd.s32 %s18, 1
    %s26 = ssub.s32 %s18, %s25
    %p27 = scmp.eq.s32.totalorder %s26, 0
    %s29 = sadd.s32 %s28, 1
    %s30 = scalar_select %p27, %s28, %s29
    %p33 = pneg %p27
    %p34 = scmp.eq.s32.totalorder %s18, 1
    %p35 = por %p33, %p34
    %p36 = scmp.ne.s32.totalorder %s28, %s31
    %p37 = scmp.eq.s32.totalorder %s18, 0
    %p38 = por %p36, %p37
    %p39 = scmp.ne.s32.totalorder %s28, %s31
    %p40 = scmp.eq.s32.totalorder %s23, 1
    %p41 = por %p39, %p40
    %p42 = scmp.ne.s32.totalorder %s31, %s32
    %p43 = scmp.eq.s32.totalorder %s23, 0
    %p44 = por %p42, %p43
    %p45 = scmp.ne.s32.totalorder %s31, %s32
    %p46 = scmp.eq.s32.totalorder %s24, 1
    %p47 = por %p45, %p46
    %p49 = scmp.ne.s32.totalorder %s32, %s48
    %p50 = scmp.eq.s32.totalorder %s24, 0
    %p51 = por %p49, %p50
    %s52 = ssub.s32 %s18, %s25
    %p53 = scmp.eq.s32.totalorder %s52, 0
    %s55 = sadd.s32 %s54, 1
    %s56 = scalar_select %p53, %s54, %s55
    %p59 = pneg %p53
    %p60 = scmp.eq.s32.totalorder %s18, 1
    %p61 = por %p59, %p60
    %p62 = scmp.ne.s32.totalorder %s54, %s57
    %p63 = scmp.eq.s32.totalorder %s18, 0
    %p64 = por %p62, %p63
    %p65 = scmp.ne.s32.totalorder %s54, %s57
    %p66 = scmp.eq.s32.totalorder %s23, 1
    %p67 = por %p65, %p66
    %p68 = scmp.ne.s32.totalorder %s57, %s58
    %p69 = scmp.eq.s32.totalorder %s23, 0
    %p70 = por %p68, %p69
    %p71 = scmp.ne.s32.totalorder %s57, %s58
    %p72 = scmp.eq.s32.totalorder %s24, 1
    %p73 = por %p71, %p72
    %p75 = scmp.ne.s32.totalorder %s58, %s74
    %p76 = scmp.eq.s32.totalorder %s24, 0
    %p77 = por %p75, %p76
    %s79 = sadd.s32 %s78, 1
    %p82 = scmp.eq.s32.totalorder %s18, 1
    %p83 = scmp.ne.s32.totalorder %s78, %s80
    %p84 = scmp.eq.s32.totalorder %s18, 0
    %p85 = por %p83, %p84
    %p86 = scmp.ne.s32.totalorder %s78, %s80
    %p87 = scmp.eq.s32.totalorder %s23, 1
    %p88 = por %p86, %p87
    %p89 = scmp.ne.s32.totalorder %s80, %s81
    %p90 = scmp.eq.s32.totalorder %s23, 0
    %p91 = por %p89, %p90
    %p92 = scmp.ne.s32.totalorder %s80, %s81
    %p93 = scmp.eq.s32.totalorder %s24, 1
    %p94 = por %p92, %p93
    %p96 = scmp.ne.s32.totalorder %s81, %s95
    %p97 = scmp.eq.s32.totalorder %s24, 0
    %p98 = por %p96, %p97
    %s100 = sadd.s32 %s99, 1
    %p103 = scmp.eq.s32.totalorder %s18, 1
    %p104 = scmp.ne.s32.totalorder %s99, %s101
    %p105 = scmp.eq.s32.totalorder %s18, 0
    %p106 = por %p104, %p105
    %p107 = scmp.ne.s32.totalorder %s99, %s101
    %p108 = scmp.eq.s32.totalorder %s23, 1
    %p109 = por %p107, %p108
    %p110 = scmp.ne.s32.totalorder %s101, %s102
    %p111 = scmp.eq.s32.totalorder %s23, 0
    %p112 = por %p110, %p111
    %p113 = scmp.ne.s32.totalorder %s101, %s102
    %p114 = scmp.eq.s32.totalorder %s24, 1
    %p115 = por %p113, %p114
    %p117 = scmp.ne.s32.totalorder %s102, %s116
    %p118 = scmp.eq.s32.totalorder %s24, 0
    %p119 = por %p117, %p118
    %s121 = sadd.s32 %s120, 1
    %p124 = scmp.eq.s32.totalorder %s18, 1
    %p125 = scmp.ne.s32.totalorder %s120, %s122
    %p126 = scmp.eq.s32.totalorder %s18, 0
    %p127 = por %p125, %p126
    %p128 = scmp.ne.s32.totalorder %s120, %s122
    %p129 = scmp.eq.s32.totalorder %s23, 1
    %p130 = por %p128, %p129
    %p131 = scmp.ne.s32.totalorder %s122, %s123
    %p132 = scmp.eq.s32.totalorder %s23, 0
    %p133 = por %p131, %p132
    %p134 = scmp.ne.s32.totalorder %s122, %s123
    %p135 = scmp.eq.s32.totalorder %s24, 1
    %p136 = por %p134, %p135
    %p138 = scmp.ne.s32.totalorder %s123, %s137
    %p139 = scmp.eq.s32.totalorder %s24, 0
    %p140 = por %p138, %p139
    %s142 = sadd.s32 %s141, 1
    %p145 = scmp.eq.s32.totalorder %s18, 1
    %p146 = scmp.ne.s32.totalorder %s141, %s143
    %p147 = scmp.eq.s32.totalorder %s18, 0
    %p148 = por %p146, %p147
    %p149 = scmp.ne.s32.totalorder %s141, %s143
    %p150 = scmp.eq.s32.totalorder %s23, 1
    %p151 = por %p149, %p150
    %p152 = scmp.ne.s32.totalorder %s143, %s144
    %p153 = scmp.eq.s32.totalorder %s23, 0
    %p154 = por %p152, %p153
    %p155 = scmp.ne.s32.totalorder %s143, %s144
    %p156 = scmp.eq.s32.totalorder %s24, 1
    %p157 = por %p155, %p156
    %p159 = scmp.ne.s32.totalorder %s144, %s158
    %p160 = scmp.eq.s32.totalorder %s24, 0
    %p161 = por %p159, %p160
    %s163 = sadd.s32 %s162, 1
    %p166 = scmp.eq.s32.totalorder %s18, 1
    %p167 = scmp.ne.s32.totalorder %s162, %s164
    %p168 = scmp.eq.s32.totalorder %s18, 0
    %p169 = por %p167, %p168
    %p170 = scmp.ne.s32.totalorder %s162, %s164
    %p171 = scmp.eq.s32.totalorder %s23, 1
    %p172 = por %p170, %p171
    %p173 = scmp.ne.s32.totalorder %s164, %s165
    %p174 = scmp.eq.s32.totalorder %s23, 0
    %p175 = por %p173, %p174
    %p176 = scmp.ne.s32.totalorder %s164, %s165
    %p177 = scmp.eq.s32.totalorder %s24, 1
    %p178 = por %p176, %p177
    %p180 = scmp.ne.s32.totalorder %s165, %s179
    %p181 = scmp.eq.s32.totalorder %s24, 0
    %p182 = por %p180, %p181
    %s184 = sadd.s32 %s183, 1
    %p187 = scmp.eq.s32.totalorder %s18, 1
    %p188 = scmp.ne.s32.totalorder %s183, %s185
    %p189 = scmp.eq.s32.totalorder %s18, 0
    %p190 = por %p188, %p189
    %p191 = scmp.ne.s32.totalorder %s183, %s185
    %p192 = scmp.eq.s32.totalorder %s23, 1
    %p193 = por %p191, %p192
    %p194 = scmp.ne.s32.totalorder %s185, %s186
    %p195 = scmp.eq.s32.totalorder %s23, 0
    %p196 = por %p194, %p195
    %p197 = scmp.ne.s32.totalorder %s185, %s186
    %p198 = scmp.eq.s32.totalorder %s24, 1
    %p199 = por %p197, %p198
    %p201 = scmp.ne.s32.totalorder %s186, %s200
    %p202 = scmp.eq.s32.totalorder %s24, 0
    %p203 = por %p201, %p202
    %s205 = sadd.s32 %s204, 1
    %p208 = scmp.eq.s32.totalorder %s18, 1
    %p209 = scmp.ne.s32.totalorder %s204, %s206
    %p210 = scmp.eq.s32.totalorder %s18, 0
    %p211 = por %p209, %p210
    %p212 = scmp.ne.s32.totalorder %s204, %s206
    %p213 = scmp.eq.s32.totalorder %s23, 1
    %p214 = por %p212, %p213
    %p215 = scmp.ne.s32.totalorder %s206, %s207
    %p216 = scmp.eq.s32.totalorder %s23, 0
    %p217 = por %p215, %p216
    %p218 = scmp.ne.s32.totalorder %s206, %s207
    %p219 = scmp.eq.s32.totalorder %s24, 1
    %p220 = por %p218, %p219
    %p222 = scmp.ne.s32.totalorder %s207, %s221
    %p223 = scmp.eq.s32.totalorder %s24, 0
    %p224 = por %p222, %p223
    %s226 = sadd.s32 %s225, 1
    %p229 = scmp.eq.s32.totalorder %s18, 1
    %p230 = scmp.ne.s32.totalorder %s225, %s227
    %p231 = scmp.eq.s32.totalorder %s18, 0
    %p232 = por %p230, %p231
    %p233 = scmp.ne.s32.totalorder %s225, %s227
    %p234 = scmp.eq.s32.totalorder %s23, 1
    %p235 = por %p233, %p234
    %p236 = scmp.ne.s32.totalorder %s227, %s228
    %p237 = scmp.eq.s32.totalorder %s23, 0
    %p238 = por %p236, %p237
    %p239 = scmp.ne.s32.totalorder %s227, %s228
    %p240 = scmp.eq.s32.totalorder %s24, 1
    %p241 = por %p239, %p240
    %p243 = scmp.ne.s32.totalorder %s228, %s242
    %p244 = scmp.eq.s32.totalorder %s24, 0
    %p245 = por %p243, %p244
    %s247 = sadd.s32 %s246, 1
    %p250 = scmp.eq.s32.totalorder %s18, 1
    %p251 = scmp.ne.s32.totalorder %s246, %s248
    %p252 = scmp.eq.s32.totalorder %s18, 0
    %p253 = por %p251, %p252
    %p254 = scmp.ne.s32.totalorder %s246, %s248
    %p255 = scmp.eq.s32.totalorder %s23, 1
    %p256 = por %p254, %p255
    %p257 = scmp.ne.s32.totalorder %s248, %s249
    %p258 = scmp.eq.s32.totalorder %s23, 0
    %p259 = por %p257, %p258
    %p260 = scmp.ne.s32.totalorder %s248, %s249
    %p261 = scmp.eq.s32.totalorder %s24, 1
    %p262 = por %p260, %p261
    %p264 = scmp.ne.s32.totalorder %s249, %s263
    %p265 = scmp.eq.s32.totalorder %s24, 0
    %p266 = por %p264, %p265
    %s268 = sadd.s32 %s267, 1
    %p271 = scmp.eq.s32.totalorder %s18, 1
    %p272 = scmp.ne.s32.totalorder %s267, %s269
    %p273 = scmp.eq.s32.totalorder %s18, 0
    %p274 = por %p272, %p273
    %p275 = scmp.ne.s32.totalorder %s267, %s269
    %p276 = scmp.eq.s32.totalorder %s23, 1
    %p277 = por %p275, %p276
    %p278 = scmp.ne.s32.totalorder %s269, %s270
    %p279 = scmp.eq.s32.totalorder %s23, 0
    %p280 = por %p278, %p279
    %p281 = scmp.ne.s32.totalorder %s269, %s270
    %p282 = scmp.eq.s32.totalorder %s24, 1
    %p283 = por %p281, %p282
    %p285 = scmp.ne.s32.totalorder %s270, %s284
    %p286 = scmp.eq.s32.totalorder %s24, 0
    %p287 = por %p285, %p286
    %s288 = ssub.s32 %s18, %s25
    %p289 = scmp.eq.s32.totalorder %s288, 0
    %s291 = sadd.s32 %s290, 1
    %s292 = scalar_select %p289, %s290, %s291
    %p295 = pneg %p289
    %p296 = scmp.eq.s32.totalorder %s18, 1
    %p297 = por %p295, %p296
    %p298 = scmp.ne.s32.totalorder %s290, %s293
    %p299 = scmp.eq.s32.totalorder %s18, 0
    %p300 = por %p298, %p299
    %p301 = scmp.ne.s32.totalorder %s290, %s293
    %p302 = scmp.eq.s32.totalorder %s23, 1
    %p303 = por %p301, %p302
    %p304 = scmp.ne.s32.totalorder %s293, %s294
    %p305 = scmp.eq.s32.totalorder %s23, 0
    %p306 = por %p304, %p305
    %p307 = scmp.ne.s32.totalorder %s293, %s294
    %p308 = scmp.eq.s32.totalorder %s24, 1
    %p309 = por %p307, %p308
    %p311 = scmp.ne.s32.totalorder %s294, %s310
    %p312 = scmp.eq.s32.totalorder %s24, 0
    %p313 = por %p311, %p312
    %p314 = scmp.le.s32.totalorder 1, %s18
    %p315 = scmp.lt.s32.totalorder %s18, 3
    %p316 = pnand %p314, %p315
    %p317 = pneg %p316
    // Predicated region
    $region9: #{tpu_custom_call.1} parent=5 // pred_check
      _
    $region10: #{tpu_custom_call.1} parent=5 // pred_check_branch
      %319 = sbr.rel (%p316) target = $region12
    $region11: #{tpu_custom_call.1} parent=5 // pred_region
      %s320 = ssub.s32 %s18, 1
      // Predicated region
      $region13: #{tpu_custom_call.1} parent=11 // pred_check
        %p321 = pneg %p91
      $region14: #{tpu_custom_call.1} parent=11 // pred_check_branch
        %323 = sbr.rel (%p321) target = $region16
      $region15: #{tpu_custom_call.1} parent=11 // pred_region
        _
      $region16: #{tpu_custom_call.1} parent=11 // pred_fallthru
        _
      // Predicated region
      $region17: #{tpu_custom_call.1} parent=11 // pred_check
        %p324 = pneg %p112
      $region18: #{tpu_custom_call.1} parent=11 // pred_check_branch
        %326 = sbr.rel (%p324) target = $region20
      $region19: #{tpu_custom_call.1} parent=11 // pred_region
        _
      $region20: #{tpu_custom_call.1} parent=11 // pred_fallthru
        _
      // Predicated region
      $region21: #{tpu_custom_call.1} parent=11 // pred_check
        %p327 = pneg %p133
      $region22: #{tpu_custom_call.1} parent=11 // pred_check_branch
        %329 = sbr.rel (%p327) target = $region24
      $region23: #{tpu_custom_call.1} parent=11 // pred_region
        _
      $region24: #{tpu_custom_call.1} parent=11 // pred_fallthru
        _
      // Predicated region
      $region25: #{tpu_custom_call.1} parent=11 // pred_check
        %p330 = pneg %p154
      $region26: #{tpu_custom_call.1} parent=11 // pred_check_branch
        %332 = sbr.rel (%p330) target = $region28
      $region27: #{tpu_custom_call.1} parent=11 // pred_region
        _
      $region28: #{tpu_custom_call.1} parent=11 // pred_fallthru
        _
      // Predicated region
      $region29: #{tpu_custom_call.1} parent=11 // pred_check
        %p333 = pneg %p175
      $region30: #{tpu_custom_call.1} parent=11 // pred_check_branch
        %335 = sbr.rel (%p333) target = $region32
      $region31: #{tpu_custom_call.1} parent=11 // pred_region
        _
      $region32: #{tpu_custom_call.1} parent=11 // pred_fallthru
        _
      // Predicated region
      $region33: #{tpu_custom_call.1} parent=11 // pred_check
        %p336 = pneg %p196
      $region34: #{tpu_custom_call.1} parent=11 // pred_check_branch
        %338 = sbr.rel (%p336) target = $region36
      $region35: #{tpu_custom_call.1} parent=11 // pred_region
        _
      $region36: #{tpu_custom_call.1} parent=11 // pred_fallthru
        _
      // Predicated region
      $region37: #{tpu_custom_call.1} parent=11 // pred_check
        %p339 = pneg %p217
      $region38: #{tpu_custom_call.1} parent=11 // pred_check_branch
        %341 = sbr.rel (%p339) target = $region40
      $region39: #{tpu_custom_call.1} parent=11 // pred_region
        _
      $region40: #{tpu_custom_call.1} parent=11 // pred_fallthru
        _
      // Predicated region
      $region41: #{tpu_custom_call.1} parent=11 // pred_check
        %p342 = pneg %p238
      $region42: #{tpu_custom_call.1} parent=11 // pred_check_branch
        %344 = sbr.rel (%p342) target = $region44
      $region43: #{tpu_custom_call.1} parent=11 // pred_region
        _
      $region44: #{tpu_custom_call.1} parent=11 // pred_fallthru
        _
      // Predicated region
      $region45: #{tpu_custom_call.1} parent=11 // pred_check
        %p345 = pneg %p259
      $region46: #{tpu_custom_call.1} parent=11 // pred_check_branch
        %347 = sbr.rel (%p345) target = $region48
      $region47: #{tpu_custom_call.1} parent=11 // pred_region
        _
      $region48: #{tpu_custom_call.1} parent=11 // pred_fallthru
        _
      // Predicated region
      $region49: #{tpu_custom_call.1} parent=11 // pred_check
        %p348 = pneg %p280
      $region50: #{tpu_custom_call.1} parent=11 // pred_check_branch
        %350 = sbr.rel (%p348) target = $region52
      $region51: #{tpu_custom_call.1} parent=11 // pred_region
        _
      $region52: #{tpu_custom_call.1} parent=11 // pred_fallthru
        _
    $region12: #{tpu_custom_call.1} parent=5 // pred_fallthru
      _
    %p351 = scmp.lt.s32.totalorder %s18, 2
    // Predicated region
    $region53: #{tpu_custom_call.1} parent=5 // pred_check
      %p352 = pneg %p351
    $region54: #{tpu_custom_call.1} parent=5 // pred_check_branch
      %354 = sbr.rel (%p352) target = $region56
    $region55: #{tpu_custom_call.1} parent=5 // pred_region
      // Predicated region
      $region57: #{tpu_custom_call.1} parent=55 // pred_check
        %p355 = pneg %p38
      $region58: #{tpu_custom_call.1} parent=55 // pred_check_branch
        %357 = sbr.rel (%p355) target = $region60
      $region59: #{tpu_custom_call.1} parent=55 // pred_region
        %p358 = scmp.lt.s32.totalorder %s18, 1
        %s359 = scalar_select %p358, %s18, 1
        %s360 = smul.addr %s359, 8
        %s361 = smul.addr %s360, 8
        %s362 = scalar_lea.vmem %s0, %s361
      $region60: #{tpu_custom_call.1} parent=55 // pred_fallthru
        _
      // Predicated region
      $region61: #{tpu_custom_call.1} parent=55 // pred_check
        %p363 = pneg %p64
      $region62: #{tpu_custom_call.1} parent=55 // pred_check_branch
        %365 = sbr.rel (%p363) target = $region64
      $region63: #{tpu_custom_call.1} parent=55 // pred_region
        %p366 = scmp.lt.s32.totalorder %s18, 1
        %s367 = scalar_select %p366, %s18, 1
        %s368 = smul.addr %s367, 32
        %s369 = smul.addr %s368, 8
        %s370 = scalar_lea.vmem %s1, %s369
      $region64: #{tpu_custom_call.1} parent=55 // pred_fallthru
        _
    $region56: #{tpu_custom_call.1} parent=5 // pred_fallthru
      _
    %p371 = scmp.le.s32.totalorder 1, %s18
    %p372 = scmp.lt.s32.totalorder %s18, 3
    %p373 = pnand %p371, %p372
    %p374 = pneg %p373
    // Predicated region
    $region65: #{tpu_custom_call.1} parent=5 // pred_check
      _
    $region66: #{tpu_custom_call.1} parent=5 // pred_check_branch
      %376 = sbr.rel (%p373) target = $region68
    $region67: #{tpu_custom_call.1} parent=5 // pred_region
      %s377 = ssub.s32 %s18, 1
      %p378 = scmp.lt.s32.totalorder %s23, 1
      %s379 = scalar_select %p378, %s23, 1
      %s380 = smul.addr %s379, 8
      %s381 = smul.addr %s380, 8
      %s382 = scalar_lea.vmem %s0, %s381
      %p383 = pneg %p44
      %p384 = pneg %p41
      %p385 = scmp.lt.s32.totalorder %s23, 1
      %s386 = scalar_select %p385, %s23, 1
      %s387 = smul.addr %s386, 32
      %s388 = smul.addr %s387, 8
      %s389 = scalar_lea.vmem %s1, %s388
      %p390 = pneg %p70
      %p391 = pneg %p67
      %p392 = pneg %p91
      %p393 = pneg %p88
      %p394 = pneg %p112
      %p395 = pneg %p109
      %p396 = pneg %p133
      %p397 = pneg %p130
      %p398 = pneg %p154
      %p399 = pneg %p151
      %p400 = pneg %p175
      %p401 = pneg %p172
      %p402 = pneg %p196
      %p403 = pneg %p193
      %p404 = pneg %p217
      %p405 = pneg %p214
      %p406 = pneg %p238
      %p407 = pneg %p235
      %p408 = pneg %p259
      %p409 = pneg %p256
      %p410 = pneg %p280
      %p411 = pneg %p277
      %p412 = pneg %p306
      %p413 = pneg %p303
      %p414 = scmp.lt.s32.totalorder %s23, 1
      %s415 = scalar_select %p414, %s23, 1
      %s416 = smul.addr %s415, 32
      %s417 = smul.addr %s416, 8
      %s418 = scalar_lea.vmem %s12, %s417
      %p419 = scmp.lt.s32.totalorder %s23, 1
      %s420 = scalar_select %p419, %s23, 1
      %s421 = smul.addr %s420, 8
      %s422 = smul.addr %s421, 8
      %s423 = scalar_lea.vmem %s0, %s422
      %p424 = scmp.lt.s32.totalorder %s23, 1
      %s425 = scalar_select %p424, %s23, 1
      %s426 = smul.addr %s425, 32
      %s427 = smul.addr %s426, 8
      %s428 = scalar_lea.vmem %s1, %s427
      %p429 = scmp.lt.s32.totalorder %s23, 1
      %s430 = scalar_select %p429, %s23, 1
      %s431 = smul.addr %s430, 32
      %s432 = smul.addr %s431, 8
      %s433 = scalar_lea.vmem %s12, %s432
      %vm434 = vcmask 64512
      %435 = vst.msk [vmem:[#allocation2] sm:$0xff] %vm434, 0.0
      %436 = vst.msk [vmem:[#allocation2 + $0x8] sm:$0xff] %vm434, 0.0
      %vm437 = vcmask 58368
      %438 = vst.msk [vmem:[#allocation2 + $0x10] sm:$0x3] %vm437, 0.0
      %439 = vst.msk [vmem:[#allocation2 + $0x18] sm:$0xff] %vm434, 0.0
      %440 = vst.msk [vmem:[#allocation2 + $0x20] sm:$0xff] %vm434, 0.0
      %441 = vst.msk [vmem:[#allocation2 + $0x28] sm:$0x3] %vm437, 0.0
      %442 = vst.msk [vmem:[#allocation2 + $0x30] sm:$0xff] %vm434, 0.0
      %443 = vst.msk [vmem:[#allocation2 + $0x38] sm:$0xff] %vm434, 0.0
      %444 = vst.msk [vmem:[#allocation2 + $0x40] sm:$0x3] %vm437, 0.0
      %445 = vst.msk [vmem:[#allocation2 + $0x48] sm:$0xff] %vm434, 0.0
      %446 = vst.msk [vmem:[#allocation2 + $0x50] sm:$0xff] %vm434, 0.0
      %447 = vst.msk [vmem:[#allocation2 + $0x58] sm:$0x3] %vm437, 0.0
      %448 = vst.msk [vmem:[#allocation2 + $0x60] sm:$0xff] %vm434, 0.0
      %449 = vst.msk [vmem:[#allocation2 + $0x68] sm:$0xff] %vm434, 0.0
      %450 = vst.msk [vmem:[#allocation2 + $0x70] sm:$0x3] %vm437, 0.0
      %451 = vst.msk [vmem:[#allocation2 + $0x78] sm:$0xff] %vm434, 0.0
      %452 = vst.msk [vmem:[#allocation2 + $0x80] sm:$0xff] %vm434, 0.0
      %453 = vst.msk [vmem:[#allocation2 + $0x88] sm:$0x3] %vm437, 0.0
      %454 = vst.msk [vmem:[#allocation2 + $0x90] sm:$0xff] %vm434, 0.0
      %455 = vst.msk [vmem:[#allocation2 + $0x98] sm:$0xff] %vm434, 0.0
      %456 = vst.msk [vmem:[#allocation2 + $0xa0] sm:$0x3] %vm437, 0.0
      %457 = vst.msk [vmem:[#allocation2 + $0xa8] sm:$0xff] %vm434, 0.0
      %458 = vst.msk [vmem:[#allocation2 + $0xb0] sm:$0xff] %vm434, 0.0
      %459 = vst.msk [vmem:[#allocation2 + $0xb8] sm:$0x3] %vm437, 0.0
      %460 = vst.msk [vmem:[#allocation2 + $0xc0] sm:$0xff] %vm434, 0.0
      %461 = vst.msk [vmem:[#allocation2 + $0xc8] sm:$0xff] %vm434, 0.0
      %462 = vst.msk [vmem:[#allocation2 + $0xd0] sm:$0x3] %vm437, 0.0
      %463 = vst.msk [vmem:[#allocation2 + $0xd8] sm:$0xff] %vm434, 0.0
      %464 = vst.msk [vmem:[#allocation2 + $0xe0] sm:$0xff] %vm434, 0.0
      %465 = vst.msk [vmem:[#allocation2 + $0xe8] sm:$0x3] %vm437, 0.0
      %466 = vst.msk [vmem:[#allocation2 + $0xf0] sm:$0xff] %vm434, 0.0
      %467 = vst.msk [vmem:[#allocation2 + $0xf8] sm:$0xff] %vm434, 0.0
      %468 = vst.msk [vmem:[#allocation2 + $0x100] sm:$0x3] %vm437, 0.0
      %469 = vst.msk [vmem:[#allocation2 + $0x108] sm:$0xff] %vm434, 0.0
      %470 = vst.msk [vmem:[#allocation2 + $0x110] sm:$0xff] %vm434, 0.0
      %471 = vst.msk [vmem:[#allocation2 + $0x118] sm:$0x3] %vm437, 0.0
      %472 = vst.msk [vmem:[#allocation2 + $0x120] sm:$0xff] %vm434, 0.0
      %473 = vst.msk [vmem:[#allocation2 + $0x128] sm:$0xff] %vm434, 0.0
      %474 = vst.msk [vmem:[#allocation2 + $0x130] sm:$0x3] %vm437, 0.0
      %475 = vst.msk [vmem:[#allocation2 + $0x138] sm:$0xff] %vm434, 0.0
      %476 = vst.msk [vmem:[#allocation2 + $0x140] sm:$0xff] %vm434, 0.0
      %477 = vst.msk [vmem:[#allocation2 + $0x148] sm:$0x3] %vm437, 0.0
      %478 = vst.msk [vmem:[#allocation2 + $0x150] sm:$0xff] %vm434, 0.0
      %479 = vst.msk [vmem:[#allocation2 + $0x158] sm:$0xff] %vm434, 0.0
      %480 = vst.msk [vmem:[#allocation2 + $0x160] sm:$0x3] %vm437, 0.0
      %481 = vst.msk [vmem:[#allocation2 + $0x168] sm:$0xff] %vm434, 0.0
      %482 = vst.msk [vmem:[#allocation2 + $0x170] sm:$0xff] %vm434, 0.0
      %483 = vst.msk [vmem:[#allocation2 + $0x178] sm:$0x3] %vm437, 0.0
      %484 = vst.msk [vmem:[#allocation2 + $0x180] sm:$0xff] %vm434, 0.0
      %485 = vst.msk [vmem:[#allocation2 + $0x188] sm:$0xff] %vm434, 0.0
      %486 = vst.msk [vmem:[#allocation2 + $0x190] sm:$0x3] %vm437, 0.0
      %487 = vst.msk [vmem:[#allocation2 + $0x198] sm:$0xff] %vm434, 0.0
      %488 = vst.msk [vmem:[#allocation2 + $0x1a0] sm:$0xff] %vm434, 0.0
      %489 = vst.msk [vmem:[#allocation2 + $0x1a8] sm:$0x3] %vm437, 0.0
      %490 = vst.msk [vmem:[#allocation3] sm:$0xff] %vm434, 0.0
      %491 = vst.msk [vmem:[#allocation3 + $0x8] sm:$0xff] %vm434, 0.0
      %492 = vst.msk [vmem:[#allocation3 + $0x10] sm:$0x3] %vm437, 0.0
      %493 = vst.msk [vmem:[#allocation3 + $0x18] sm:$0xff] %vm434, 0.0
      %494 = vst.msk [vmem:[#allocation3 + $0x20] sm:$0xff] %vm434, 0.0
      %495 = vst.msk [vmem:[#allocation3 + $0x28] sm:$0x3] %vm437, 0.0
      %496 = vst.msk [vmem:[#allocation3 + $0x30] sm:$0xff] %vm434, 0.0
      %497 = vst.msk [vmem:[#allocation3 + $0x38] sm:$0xff] %vm434, 0.0
      %498 = vst.msk [vmem:[#allocation3 + $0x40] sm:$0x3] %vm437, 0.0
      %499 = vst.msk [vmem:[#allocation3 + $0x48] sm:$0xff] %vm434, 0.0
      %500 = vst.msk [vmem:[#allocation3 + $0x50] sm:$0xff] %vm434, 0.0
      %501 = vst.msk [vmem:[#allocation3 + $0x58] sm:$0x3] %vm437, 0.0
      %502 = vst.msk [vmem:[#allocation3 + $0x60] sm:$0xff] %vm434, 0.0
      %503 = vst.msk [vmem:[#allocation3 + $0x68] sm:$0xff] %vm434, 0.0
      %504 = vst.msk [vmem:[#allocation3 + $0x70] sm:$0x3] %vm437, 0.0
      %505 = vst.msk [vmem:[#allocation3 + $0x78] sm:$0xff] %vm434, 0.0
      %506 = vst.msk [vmem:[#allocation3 + $0x80] sm:$0xff] %vm434, 0.0
      %507 = vst.msk [vmem:[#allocation3 + $0x88] sm:$0x3] %vm437, 0.0
      %508 = vst.msk [vmem:[#allocation3 + $0x90] sm:$0xff] %vm434, 0.0
      %509 = vst.msk [vmem:[#allocation3 + $0x98] sm:$0xff] %vm434, 0.0
      %510 = vst.msk [vmem:[#allocation3 + $0xa0] sm:$0x3] %vm437, 0.0
      %511 = vst.msk [vmem:[#allocation3 + $0xa8] sm:$0xff] %vm434, 0.0
      %512 = vst.msk [vmem:[#allocation3 + $0xb0] sm:$0xff] %vm434, 0.0
      %513 = vst.msk [vmem:[#allocation3 + $0xb8] sm:$0x3] %vm437, 0.0
      %514 = vst.msk [vmem:[#allocation3 + $0xc0] sm:$0xff] %vm434, 0.0
      %515 = vst.msk [vmem:[#allocation3 + $0xc8] sm:$0xff] %vm434, 0.0
      %516 = vst.msk [vmem:[#allocation3 + $0xd0] sm:$0x3] %vm437, 0.0
      %517 = vst.msk [vmem:[#allocation3 + $0xd8] sm:$0xff] %vm434, 0.0
      %518 = vst.msk [vmem:[#allocation3 + $0xe0] sm:$0xff] %vm434, 0.0
      %519 = vst.msk [vmem:[#allocation3 + $0xe8] sm:$0x3] %vm437, 0.0
      %520 = vst.msk [vmem:[#allocation3 + $0xf0] sm:$0xff] %vm434, 0.0
      %521 = vst.msk [vmem:[#allocation3 + $0xf8] sm:$0xff] %vm434, 0.0
      %522 = vst.msk [vmem:[#allocation3 + $0x100] sm:$0x3] %vm437, 0.0
      %523 = vst.msk [vmem:[#allocation3 + $0x108] sm:$0xff] %vm434, 0.0
      %524 = vst.msk [vmem:[#allocation3 + $0x110] sm:$0xff] %vm434, 0.0
      %525 = vst.msk [vmem:[#allocation3 + $0x118] sm:$0x3] %vm437, 0.0
      %526 = vst.msk [vmem:[#allocation3 + $0x120] sm:$0xff] %vm434, 0.0
      %527 = vst.msk [vmem:[#allocation3 + $0x128] sm:$0xff] %vm434, 0.0
      %528 = vst.msk [vmem:[#allocation3 + $0x130] sm:$0x3] %vm437, 0.0
      %529 = vst.msk [vmem:[#allocation3 + $0x138] sm:$0xff] %vm434, 0.0
      %530 = vst.msk [vmem:[#allocation3 + $0x140] sm:$0xff] %vm434, 0.0
      %531 = vst.msk [vmem:[#allocation3 + $0x148] sm:$0x3] %vm437, 0.0
      %532 = vst.msk [vmem:[#allocation3 + $0x150] sm:$0xff] %vm434, 0.0
      %533 = vst.msk [vmem:[#allocation3 + $0x158] sm:$0xff] %vm434, 0.0
      %534 = vst.msk [vmem:[#allocation3 + $0x160] sm:$0x3] %vm437, 0.0
      %535 = vst.msk [vmem:[#allocation3 + $0x168] sm:$0xff] %vm434, 0.0
      %536 = vst.msk [vmem:[#allocation3 + $0x170] sm:$0xff] %vm434, 0.0
      %537 = vst.msk [vmem:[#allocation3 + $0x178] sm:$0x3] %vm437, 0.0
      %538 = vst.msk [vmem:[#allocation3 + $0x180] sm:$0xff] %vm434, 0.0
      %539 = vst.msk [vmem:[#allocation3 + $0x188] sm:$0xff] %vm434, 0.0
      %540 = vst.msk [vmem:[#allocation3 + $0x190] sm:$0x3] %vm437, 0.0
      %541 = vst.msk [vmem:[#allocation3 + $0x198] sm:$0xff] %vm434, 0.0
      %542 = vst.msk [vmem:[#allocation3 + $0x1a0] sm:$0xff] %vm434, 0.0
      %543 = vst.msk [vmem:[#allocation3 + $0x1a8] sm:$0x3] %vm437, 0.0
      %544 = vst.msk [vmem:[#allocation4] sm:$0xff] %vm434, 0.0
      %545 = vst.msk [vmem:[#allocation4 + $0x8] sm:$0xff] %vm434, 0.0
      %546 = vst.msk [vmem:[#allocation4 + $0x10] sm:$0x3] %vm437, 0.0
      %547 = vst.msk [vmem:[#allocation4 + $0x18] sm:$0xff] %vm434, 0.0
      %548 = vst.msk [vmem:[#allocation4 + $0x20] sm:$0xff] %vm434, 0.0
      %549 = vst.msk [vmem:[#allocation4 + $0x28] sm:$0x3] %vm437, 0.0
      %550 = vst.msk [vmem:[#allocation4 + $0x30] sm:$0xff] %vm434, 0.0
      %551 = vst.msk [vmem:[#allocation4 + $0x38] sm:$0xff] %vm434, 0.0
      %552 = vst.msk [vmem:[#allocation4 + $0x40] sm:$0x3] %vm437, 0.0
      %553 = vst.msk [vmem:[#allocation4 + $0x48] sm:$0xff] %vm434, 0.0
      %554 = vst.msk [vmem:[#allocation4 + $0x50] sm:$0xff] %vm434, 0.0
      %555 = vst.msk [vmem:[#allocation4 + $0x58] sm:$0x3] %vm437, 0.0
      %556 = vst.msk [vmem:[#allocation4 + $0x60] sm:$0xff] %vm434, 0.0
      %557 = vst.msk [vmem:[#allocation4 + $0x68] sm:$0xff] %vm434, 0.0
      %558 = vst.msk [vmem:[#allocation4 + $0x70] sm:$0x3] %vm437, 0.0
      %559 = vst.msk [vmem:[#allocation4 + $0x78] sm:$0xff] %vm434, 0.0
      %560 = vst.msk [vmem:[#allocation4 + $0x80] sm:$0xff] %vm434, 0.0
      %561 = vst.msk [vmem:[#allocation4 + $0x88] sm:$0x3] %vm437, 0.0
      %562 = vst.msk [vmem:[#allocation4 + $0x90] sm:$0xff] %vm434, 0.0
      %563 = vst.msk [vmem:[#allocation4 + $0x98] sm:$0xff] %vm434, 0.0
      %564 = vst.msk [vmem:[#allocation4 + $0xa0] sm:$0x3] %vm437, 0.0
      %565 = vst.msk [vmem:[#allocation4 + $0xa8] sm:$0xff] %vm434, 0.0
      %566 = vst.msk [vmem:[#allocation4 + $0xb0] sm:$0xff] %vm434, 0.0
      %567 = vst.msk [vmem:[#allocation4 + $0xb8] sm:$0x3] %vm437, 0.0
      %568 = vst.msk [vmem:[#allocation4 + $0xc0] sm:$0xff] %vm434, 0.0
      %569 = vst.msk [vmem:[#allocation4 + $0xc8] sm:$0xff] %vm434, 0.0
      %570 = vst.msk [vmem:[#allocation4 + $0xd0] sm:$0x3] %vm437, 0.0
      %571 = vst.msk [vmem:[#allocation4 + $0xd8] sm:$0xff] %vm434, 0.0
      %572 = vst.msk [vmem:[#allocation4 + $0xe0] sm:$0xff] %vm434, 0.0
      %573 = vst.msk [vmem:[#allocation4 + $0xe8] sm:$0x3] %vm437, 0.0
      %574 = vst.msk [vmem:[#allocation4 + $0xf0] sm:$0xff] %vm434, 0.0
      %575 = vst.msk [vmem:[#allocation4 + $0xf8] sm:$0xff] %vm434, 0.0
      %576 = vst.msk [vmem:[#allocation4 + $0x100] sm:$0x3] %vm437, 0.0
      %577 = vst.msk [vmem:[#allocation4 + $0x108] sm:$0xff] %vm434, 0.0
      %578 = vst.msk [vmem:[#allocation4 + $0x110] sm:$0xff] %vm434, 0.0
      %579 = vst.msk [vmem:[#allocation4 + $0x118] sm:$0x3] %vm437, 0.0
      %580 = vst.msk [vmem:[#allocation4 + $0x120] sm:$0xff] %vm434, 0.0
      %581 = vst.msk [vmem:[#allocation4 + $0x128] sm:$0xff] %vm434, 0.0
      %582 = vst.msk [vmem:[#allocation4 + $0x130] sm:$0x3] %vm437, 0.0
      %583 = vst.msk [vmem:[#allocation4 + $0x138] sm:$0xff] %vm434, 0.0
      %584 = vst.msk [vmem:[#allocation4 + $0x140] sm:$0xff] %vm434, 0.0
      %585 = vst.msk [vmem:[#allocation4 + $0x148] sm:$0x3] %vm437, 0.0
      %586 = vst.msk [vmem:[#allocation4 + $0x150] sm:$0xff] %vm434, 0.0
      %587 = vst.msk [vmem:[#allocation4 + $0x158] sm:$0xff] %vm434, 0.0
      %588 = vst.msk [vmem:[#allocation4 + $0x160] sm:$0x3] %vm437, 0.0
      %589 = vst.msk [vmem:[#allocation4 + $0x168] sm:$0xff] %vm434, 0.0
      %590 = vst.msk [vmem:[#allocation4 + $0x170] sm:$0xff] %vm434, 0.0
      %591 = vst.msk [vmem:[#allocation4 + $0x178] sm:$0x3] %vm437, 0.0
      %592 = vst.msk [vmem:[#allocation4 + $0x180] sm:$0xff] %vm434, 0.0
      %593 = vst.msk [vmem:[#allocation4 + $0x188] sm:$0xff] %vm434, 0.0
      %594 = vst.msk [vmem:[#allocation4 + $0x190] sm:$0x3] %vm437, 0.0
      %595 = vst.msk [vmem:[#allocation4 + $0x198] sm:$0xff] %vm434, 0.0
      %596 = vst.msk [vmem:[#allocation4 + $0x1a0] sm:$0xff] %vm434, 0.0
      %597 = vst.msk [vmem:[#allocation4 + $0x1a8] sm:$0x3] %vm437, 0.0
      %v598 = vld [vmem:[%s423] sm:$0xff]
      %v599 = vld [vmem:[%s423 + $0x8] sm:$0xff]
      %v600 = vld [vmem:[%s423 + $0x10] sm:$0xff]
      %v601 = vld [vmem:[%s423 + $0x18] sm:$0xff]
      %v602 = vld [vmem:[%s423 + $0x20] sm:$0xff]
      %v603 = vld [vmem:[%s423 + $0x28] sm:$0xff]
      %v604 = vld [vmem:[%s423 + $0x30] sm:$0xff]
      %v605 = vld [vmem:[%s423 + $0x38] sm:$0xff]
      %v606 = vld [vmem:[%s2] sm:$0xf]
      %v607 = vld [vmem:[%s3] sm:$0x1]
      %v609 = vperm.slane %v607, 0
      %vm611 = vcmask 31744
      %v613 = vsel %vm611, %v598, 0
      %v616 = vsel %vm611, %v599, 0
      %v619 = vsel %vm611, %v600, 0
      %v622 = vsel %vm611, %v601, 0
      %v625 = vsel %vm611, %v602, 0
      %v628 = vsel %vm611, %v603, 0
      %v631 = vsel %vm611, %v604, 0
      %v634 = vsel %vm611, %v605, 0
      %vm636 = vcmask 1043456
      %v638 = vsel %vm636, %v606, 0
      %640 = vmatpush.msra.mxu0 0.0
      %641 = vmatpush.msra.mxu0 0.0
      %642 = vmatpush.msra.mxu0 0.0
      %643 = vmatpush.msra.mxu0 0.0
      %644 = vmatpush.msra.mxu0 0.0
      %645 = vmatpush.msra.mxu0 0.0
      %646 = vmatpush.msra.mxu0 0.0
      %647 = vmatpush.msra.mxu0 0.0
      %648 = vmatpush.msra.mxu0 0.0
      %649 = vmatpush.msra.mxu0 0.0
      %650 = vmatpush.msra.mxu0 0.0
      %651 = vmatpush.msra.mxu0 0.0
      %652 = vmatpush.msra.mxu0 0.0
      %653 = vmatpush.msra.mxu0 0.0
      %654 = vmatpush.msra.mxu0 0.0
      %655 = vmatpush.msra.mxu0 %v638
      %656 = vmatmul.f32.gmra.mxu0 %v613
      %v657 = vpop.f32.mrf.mxu0
      %v658 = vadd.f32 %v609, %v657
      %659 = vmatmul.f32.gmra.mxu0 %v616
      %v660 = vpop.f32.mrf.mxu0
      %v661 = vadd.f32 %v609, %v660
      %662 = vmatmul.f32.gmra.mxu0 %v619
      %v663 = vpop.f32.mrf.mxu0
      %v664 = vadd.f32 %v609, %v663
      %665 = vmatmul.f32.gmra.mxu0 %v622
      %v666 = vpop.f32.mrf.mxu0
      %v667 = vadd.f32 %v609, %v666
      %668 = vmatmul.f32.gmra.mxu0 %v625
      %v669 = vpop.f32.mrf.mxu0
      %v670 = vadd.f32 %v609, %v669
      %671 = vmatmul.f32.gmra.mxu0 %v628
      %v672 = vpop.f32.mrf.mxu0
      %v673 = vadd.f32 %v609, %v672
      %674 = vmatmul.f32.gmra.mxu0 %v631
      %v675 = vpop.f32.mrf.mxu0
      %v676 = vadd.f32 %v609, %v675
      %677 = vmatmul.f32.gmra.mxu0 %v634
      %v678 = vpop.f32.mrf.mxu0
      %v679 = vadd.f32 %v609, %v678
      %680 = vdwg.mxu0
      %v681 = vmul.f32 %v658, 0.75
      %v682 = vmul.f32 %v661, 0.75
      %v683 = vmul.f32 %v664, 0.75
      %v684 = vmul.f32 %v667, 0.75
      %v685 = vmul.f32 %v670, 0.75
      %v686 = vmul.f32 %v673, 0.75
      %v687 = vmul.f32 %v676, 0.75
      %v688 = vmul.f32 %v679, 0.75
      %v689 = vmul.f32 %v658, 0.25
      %v690 = vmul.f32 %v661, 0.25
      %v691 = vmul.f32 %v664, 0.25
      %v692 = vmul.f32 %v667, 0.25
      %v693 = vmul.f32 %v670, 0.25
      %v694 = vmul.f32 %v673, 0.25
      %v695 = vmul.f32 %v676, 0.25
      %v696 = vadd.f32 %v681, %v689
      %v697 = vadd.f32 %v682, %v689
      %v698 = vadd.f32 %v683, %v690
      %v699 = vadd.f32 %v684, %v691
      %v700 = vadd.f32 %v685, %v692
      %v701 = vadd.f32 %v686, %v693
      %v702 = vadd.f32 %v687, %v694
      %v703 = vadd.f32 %v688, %v695
      %v704 = vmul.f32 %v679, 0.25
      %v705 = vadd.f32 %v681, %v690
      %v706 = vadd.f32 %v682, %v691
      %v707 = vadd.f32 %v683, %v692
      %v708 = vadd.f32 %v684, %v693
      %v709 = vadd.f32 %v685, %v694
      %v710 = vadd.f32 %v686, %v695
      %v711 = vadd.f32 %v687, %v704
      %v712 = vadd.f32 %v688, %v704
      %v713 = vld [vmem:[%s6] sm:$0xff]
      %v714 = vld [vmem:[%s6 + $0x8] sm:$0xff]
      %715 = vxpose.xlu0.b32.start [1/16] %v696, 128
      %716 = vxpose.xlu0.b32.cont [2/16] 0.0, 128
      %717 = vxpose.xlu0.b32.cont [3/16] 0.0, 128
      %718 = vxpose.xlu0.b32.cont [4/16] 0.0, 128
      %719 = vxpose.xlu0.b32.cont [5/16] 0.0, 128
      %720 = vxpose.xlu0.b32.cont [6/16] 0.0, 128
      %721 = vxpose.xlu0.b32.cont [7/16] 0.0, 128
      %722 = vxpose.xlu0.b32.cont [8/16] 0.0, 128
      %723 = vxpose.xlu0.b32.cont [9/16] 0.0, 128
      %724 = vxpose.xlu0.b32.cont [10/16] 0.0, 128
      %725 = vxpose.xlu0.b32.cont [11/16] 0.0, 128
      %726 = vxpose.xlu0.b32.cont [12/16] 0.0, 128
      %727 = vxpose.xlu0.b32.cont [13/16] 0.0, 128
      %728 = vxpose.xlu0.b32.cont [14/16] 0.0, 128
      %729 = vxpose.xlu0.b32.cont [15/16] 0.0, 128
      %730 = vxpose.xlu0.b32.end [16/16] 0.0, 128
      %v731 = vpop.trf.xlu0
      %v732 = vpop.trf.xlu0
      %v733 = vpop.trf.xlu0
      %v734 = vpop.trf.xlu0
      %v735 = vpop.trf.xlu0
      %v736 = vpop.trf.xlu0
      %v737 = vpop.trf.xlu0
      %v738 = vpop.trf.xlu0
      %v739 = vpop.trf.xlu0
      %v740 = vpop.trf.xlu0
      %v741 = vpop.trf.xlu0
      %v742 = vpop.trf.xlu0
      %v743 = vpop.trf.xlu0
      %v744 = vpop.trf.xlu0
      %v745 = vpop.trf.xlu0
      %v746 = vpop.trf.xlu0
      %747 = vxpose.xlu0.b32.start [1/16] %v705, 128
      %748 = vxpose.xlu0.b32.cont [2/16] 0.0, 128
      %749 = vxpose.xlu0.b32.cont [3/16] 0.0, 128
      %750 = vxpose.xlu0.b32.cont [4/16] 0.0, 128
      %751 = vxpose.xlu0.b32.cont [5/16] 0.0, 128
      %752 = vxpose.xlu0.b32.cont [6/16] 0.0, 128
      %753 = vxpose.xlu0.b32.cont [7/16] 0.0, 128
      %754 = vxpose.xlu0.b32.cont [8/16] 0.0, 128
      %755 = vxpose.xlu0.b32.cont [9/16] 0.0, 128
      %756 = vxpose.xlu0.b32.cont [10/16] 0.0, 128
      %757 = vxpose.xlu0.b32.cont [11/16] 0.0, 128
      %758 = vxpose.xlu0.b32.cont [12/16] 0.0, 128
      %759 = vxpose.xlu0.b32.cont [13/16] 0.0, 128
      %760 = vxpose.xlu0.b32.cont [14/16] 0.0, 128
      %761 = vxpose.xlu0.b32.cont [15/16] 0.0, 128
      %762 = vxpose.xlu0.b32.end [16/16] 0.0, 128
      %v763 = vpop.trf.xlu0
      %v764 = vpop.trf.xlu0
      %v765 = vpop.trf.xlu0
      %v766 = vpop.trf.xlu0
      %v767 = vpop.trf.xlu0
      %v768 = vpop.trf.xlu0
      %v769 = vpop.trf.xlu0
      %v770 = vpop.trf.xlu0
      %v771 = vpop.trf.xlu0
      %v772 = vpop.trf.xlu0
      %v773 = vpop.trf.xlu0
      %v774 = vpop.trf.xlu0
      %v775 = vpop.trf.xlu0
      %v776 = vpop.trf.xlu0
      %v777 = vpop.trf.xlu0
      %v778 = vpop.trf.xlu0
      %779 = vxpose.xlu0.b32.start [1/16] %v697, 128
      %780 = vxpose.xlu0.b32.cont [2/16] 0.0, 128
      %781 = vxpose.xlu0.b32.cont [3/16] 0.0, 128
      %782 = vxpose.xlu0.b32.cont [4/16] 0.0, 128
      %783 = vxpose.xlu0.b32.cont [5/16] 0.0, 128
      %784 = vxpose.xlu0.b32.cont [6/16] 0.0, 128
      %785 = vxpose.xlu0.b32.cont [7/16] 0.0, 128
      %786 = vxpose.xlu0.b32.cont [8/16] 0.0, 128
      %787 = vxpose.xlu0.b32.cont [9/16] 0.0, 128
      %788 = vxpose.xlu0.b32.cont [10/16] 0.0, 128
      %789 = vxpose.xlu0.b32.cont [11/16] 0.0, 128
      %790 = vxpose.xlu0.b32.cont [12/16] 0.0, 128
      %791 = vxpose.xlu0.b32.cont [13/16] 0.0, 128
      %792 = vxpose.xlu0.b32.cont [14/16] 0.0, 128
      %793 = vxpose.xlu0.b32.cont [15/16] 0.0, 128
      %794 = vxpose.xlu0.b32.end [16/16] 0.0, 128
      %v795 = vpop.trf.xlu0
      %v796 = vpop.trf.xlu0
      %v797 = vpop.trf.xlu0
      %v798 = vpop.trf.xlu0
      %v799 = vpop.trf.xlu0
      %v800 = vpop.trf.xlu0
      %v801 = vpop.trf.xlu0
      %v802 = vpop.trf.xlu0
      %v803 = vpop.trf.xlu0
      %v804 = vpop.trf.xlu0
      %v805 = vpop.trf.xlu0
      %v806 = vpop.trf.xlu0
      %v807 = vpop.trf.xlu0
      %v808 = vpop.trf.xlu0
      %v809 = vpop.trf.xlu0
      %v810 = vpop.trf.xlu0
      %811 = vxpose.xlu0.b32.start [1/16] %v706, 128
      %812 = vxpose.xlu0.b32.cont [2/16] 0.0, 128
      %813 = vxpose.xlu0.b32.cont [3/16] 0.0, 128
      %814 = vxpose.xlu0.b32.cont [4/16] 0.0, 128
      %815 = vxpose.xlu0.b32.cont [5/16] 0.0, 128
      %816 = vxpose.xlu0.b32.cont [6/16] 0.0, 128
      %817 = vxpose.xlu0.b32.cont [7/16] 0.0, 128
      %818 = vxpose.xlu0.b32.cont [8/16] 0.0, 128
      %819 = vxpose.xlu0.b32.cont [9/16] 0.0, 128
      %820 = vxpose.xlu0.b32.cont [10/16] 0.0, 128
      %821 = vxpose.xlu0.b32.cont [11/16] 0.0, 128
      %822 = vxpose.xlu0.b32.cont [12/16] 0.0, 128
      %823 = vxpose.xlu0.b32.cont [13/16] 0.0, 128
      %824 = vxpose.xlu0.b32.cont [14/16] 0.0, 128
      %825 = vxpose.xlu0.b32.cont [15/16] 0.0, 128
      %826 = vxpose.xlu0.b32.end [16/16] 0.0, 128
      %v827 = vpop.trf.xlu0
      %v828 = vpop.trf.xlu0
      %v829 = vpop.trf.xlu0
      %v830 = vpop.trf.xlu0
      %v831 = vpop.trf.xlu0
      %v832 = vpop.trf.xlu0
      %v833 = vpop.trf.xlu0
      %v834 = vpop.trf.xlu0
      %v835 = vpop.trf.xlu0
      %v836 = vpop.trf.xlu0
      %v837 = vpop.trf.xlu0
      %v838 = vpop.trf.xlu0
      %v839 = vpop.trf.xlu0
      %v840 = vpop.trf.xlu0
      %v841 = vpop.trf.xlu0
      %v842 = vpop.trf.xlu0
      %843 = vxpose.xlu0.b32.start [1/16] %v698, 128
      %844 = vxpose.xlu0.b32.cont [2/16] 0.0, 128
      %845 = vxpose.xlu0.b32.cont [3/16] 0.0, 128
      %846 = vxpose.xlu0.b32.cont [4/16] 0.0, 128
      %847 = vxpose.xlu0.b32.cont [5/16] 0.0, 128
      %848 = vxpose.xlu0.b32.cont [6/16] 0.0, 128
      %849 = vxpose.xlu0.b32.cont [7/16] 0.0, 128
      %850 = vxpose.xlu0.b32.cont [8/16] 0.0, 128
      %851 = vxpose.xlu0.b32.cont [9/16] 0.0, 128
      %852 = vxpose.xlu0.b32.cont [10/16] 0.0, 128
      %853 = vxpose.xlu0.b32.cont [11/16] 0.0, 128
      %854 = vxpose.xlu0.b32.cont [12/16] 0.0, 128
      %855 = vxpose.xlu0.b32.cont [13/16] 0.0, 128
      %856 = vxpose.xlu0.b32.cont [14/16] 0.0, 128
      %857 = vxpose.xlu0.b32.cont [15/16] 0.0, 128
      %858 = vxpose.xlu0.b32.end [16/16] 0.0, 128
      %v859 = vpop.trf.xlu0
      %v860 = vpop.trf.xlu0
      %v861 = vpop.trf.xlu0
      %v862 = vpop.trf.xlu0
      %v863 = vpop.trf.xlu0
      %v864 = vpop.trf.xlu0
      %v865 = vpop.trf.xlu0
      %v866 = vpop.trf.xlu0
      %v867 = vpop.trf.xlu0
      %v868 = vpop.trf.xlu0
      %v869 = vpop.trf.xlu0
      %v870 = vpop.trf.xlu0
      %v871 = vpop.trf.xlu0
      %v872 = vpop.trf.xlu0
      %v873 = vpop.trf.xlu0
      %v874 = vpop.trf.xlu0
      %875 = vxpose.xlu0.b32.start [1/16] %v707, 128
      %876 = vxpose.xlu0.b32.cont [2/16] 0.0, 128
      %877 = vxpose.xlu0.b32.cont [3/16] 0.0, 128
      %878 = vxpose.xlu0.b32.cont [4/16] 0.0, 128
      %879 = vxpose.xlu0.b32.cont [5/16] 0.0, 128
      %880 = vxpose.xlu0.b32.cont [6/16] 0.0, 128
      %881 = vxpose.xlu0.b32.cont [7/16] 0.0, 128
      %882 = vxpose.xlu0.b32.cont [8/16] 0.0, 128
      %883 = vxpose.xlu0.b32.cont [9/16] 0.0, 128
      %884 = vxpose.xlu0.b32.cont [10/16] 0.0, 128
      %885 = vxpose.xlu0.b32.cont [11/16] 0.0, 128
      %886 = vxpose.xlu0.b32.cont [12/16] 0.0, 128
      %887 = vxpose.xlu0.b32.cont [13/16] 0.0, 128
      %888 = vxpose.xlu0.b32.cont [14/16] 0.0, 128
      %889 = vxpose.xlu0.b32.cont [15/16] 0.0, 128
      %890 = vxpose.xlu0.b32.end [16/16] 0.0, 128
      %v891 = vpop.trf.xlu0
      %v892 = vpop.trf.xlu0
      %v893 = vpop.trf.xlu0
      %v894 = vpop.trf.xlu0
      %v895 = vpop.trf.xlu0
      %v896 = vpop.trf.xlu0
      %v897 = vpop.trf.xlu0
      %v898 = vpop.trf.xlu0
      %v899 = vpop.trf.xlu0
      %v900 = vpop.trf.xlu0
      %v901 = vpop.trf.xlu0
      %v902 = vpop.trf.xlu0
      %v903 = vpop.trf.xlu0
      %v904 = vpop.trf.xlu0
      %v905 = vpop.trf.xlu0
      %v906 = vpop.trf.xlu0
      %907 = vxpose.xlu0.b32.start [1/16] %v699, 128
      %908 = vxpose.xlu0.b32.cont [2/16] 0.0, 128
      %909 = vxpose.xlu0.b32.cont [3/16] 0.0, 128
      %910 = vxpose.xlu0.b32.cont [4/16] 0.0, 128
      %911 = vxpose.xlu0.b32.cont [5/16] 0.0, 128
      %912 = vxpose.xlu0.b32.cont [6/16] 0.0, 128
      %913 = vxpose.xlu0.b32.cont [7/16] 0.0, 128
      %914 = vxpose.xlu0.b32.cont [8/16] 0.0, 128
      %915 = vxpose.xlu0.b32.cont [9/16] 0.0, 128
      %916 = vxpose.xlu0.b32.cont [10/16] 0.0, 128
      %917 = vxpose.xlu0.b32.cont [11/16] 0.0, 128
      %918 = vxpose.xlu0.b32.cont [12/16] 0.0, 128
      %919 = vxpose.xlu0.b32.cont [13/16] 0.0, 128
      %920 = vxpose.xlu0.b32.cont [14/16] 0.0, 128
      %921 = vxpose.xlu0.b32.cont [15/16] 0.0, 128
      %922 = vxpose.xlu0.b32.end [16/16] 0.0, 128
      %v923 = vpop.trf.xlu0
      %v924 = vpop.trf.xlu0
      %v925 = vpop.trf.xlu0
      %v926 = vpop.trf.xlu0
      %v927 = vpop.trf.xlu0
      %v928 = vpop.trf.xlu0
      %v929 = vpop.trf.xlu0
      %v930 = vpop.trf.xlu0
      %v931 = vpop.trf.xlu0
      %v932 = vpop.trf.xlu0
      %v933 = vpop.trf.xlu0
      %v934 = vpop.trf.xlu0
      %v935 = vpop.trf.xlu0
      %v936 = vpop.trf.xlu0
      %v937 = vpop.trf.xlu0
      %v938 = vpop.trf.xlu0
      %939 = vxpose.xlu0.b32.start [1/16] %v708, 128
      %940 = vxpose.xlu0.b32.cont [2/16] 0.0, 128
      %941 = vxpose.xlu0.b32.cont [3/16] 0.0, 128
      %942 = vxpose.xlu0.b32.cont [4/16] 0.0, 128
      %943 = vxpose.xlu0.b32.cont [5/16] 0.0, 128
      %944 = vxpose.xlu0.b32.cont [6/16] 0.0, 128
      %945 = vxpose.xlu0.b32.cont [7/16] 0.0, 128
      %946 = vxpose.xlu0.b32.cont [8/16] 0.0, 128
      %947 = vxpose.xlu0.b32.cont [9/16] 0.0, 128
      %948 = vxpose.xlu0.b32.cont [10/16] 0.0, 128
      %949 = vxpose.xlu0.b32.cont [11/16] 0.0, 128
      %950 = vxpose.xlu0.b32.cont [12/16] 0.0, 128
      %951 = vxpose.xlu0.b32.cont [13/16] 0.0, 128
      %952 = vxpose.xlu0.b32.cont [14/16] 0.0, 128
      %953 = vxpose.xlu0.b32.cont [15/16] 0.0, 128
      %954 = vxpose.xlu0.b32.end [16/16] 0.0, 128
      %v955 = vpop.trf.xlu0
      %v956 = vpop.trf.xlu0
      %v957 = vpop.trf.xlu0
      %v958 = vpop.trf.xlu0
      %v959 = vpop.trf.xlu0
      %v960 = vpop.trf.xlu0
      %v961 = vpop.trf.xlu0
      %v962 = vpop.trf.xlu0
      %v963 = vpop.trf.xlu0
      %v964 = vpop.trf.xlu0
      %v965 = vpop.trf.xlu0
      %v966 = vpop.trf.xlu0
      %v967 = vpop.trf.xlu0
      %v968 = vpop.trf.xlu0
      %v969 = vpop.trf.xlu0
      %v970 = vpop.trf.xlu0
      %971 = vxpose.xlu0.b32.start [1/16] %v700, 128
      %972 = vxpose.xlu0.b32.cont [2/16] 0.0, 128
      %973 = vxpose.xlu0.b32.cont [3/16] 0.0, 128
      %974 = vxpose.xlu0.b32.cont [4/16] 0.0, 128
      %975 = vxpose.xlu0.b32.cont [5/16] 0.0, 128
      %976 = vxpose.xlu0.b32.cont [6/16] 0.0, 128
      %977 = vxpose.xlu0.b32.cont [7/16] 0.0, 128
      %978 = vxpose.xlu0.b32.cont [8/16] 0.0, 128
      %979 = vxpose.xlu0.b32.cont [9/16] 0.0, 128
      %980 = vxpose.xlu0.b32.cont [10/16] 0.0, 128
      %981 = vxpose.xlu0.b32.cont [11/16] 0.0, 128
      %982 = vxpose.xlu0.b32.cont [12/16] 0.0, 128
      %983 = vxpose.xlu0.b32.cont [13/16] 0.0, 128
      %984 = vxpose.xlu0.b32.cont [14/16] 0.0, 128
      %985 = vxpose.xlu0.b32.cont [15/16] 0.0, 128
      %986 = vxpose.xlu0.b32.end [16/16] 0.0, 128
      %v987 = vpop.trf.xlu0
      %v988 = vpop.trf.xlu0
      %v989 = vpop.trf.xlu0
      %v990 = vpop.trf.xlu0
      %v991 = vpop.trf.xlu0
      %v992 = vpop.trf.xlu0
      %v993 = vpop.trf.xlu0
      %v994 = vpop.trf.xlu0
      %v995 = vpop.trf.xlu0
      %v996 = vpop.trf.xlu0
      %v997 = vpop.trf.xlu0
      %v998 = vpop.trf.xlu0
      %v999 = vpop.trf.xlu0
      %v1000 = vpop.trf.xlu0
      %v1001 = vpop.trf.xlu0
      %v1002 = vpop.trf.xlu0
      %1003 = vxpose.xlu0.b32.start [1/16] %v709, 128
      %1004 = vxpose.xlu0.b32.cont [2/16] 0.0, 128
      %1005 = vxpose.xlu0.b32.cont [3/16] 0.0, 128
      %1006 = vxpose.xlu0.b32.cont [4/16] 0.0, 128
      %1007 = vxpose.xlu0.b32.cont [5/16] 0.0, 128
      %1008 = vxpose.xlu0.b32.cont [6/16] 0.0, 128
      %1009 = vxpose.xlu0.b32.cont [7/16] 0.0, 128
      %1010 = vxpose.xlu0.b32.cont [8/16] 0.0, 128
      %1011 = vxpose.xlu0.b32.cont [9/16] 0.0, 128
      %1012 = vxpose.xlu0.b32.cont [10/16] 0.0, 128
      %1013 = vxpose.xlu0.b32.cont [11/16] 0.0, 128
      %1014 = vxpose.xlu0.b32.cont [12/16] 0.0, 128
      %1015 = vxpose.xlu0.b32.cont [13/16] 0.0, 128
      %1016 = vxpose.xlu0.b32.cont [14/16] 0.0, 128
      %1017 = vxpose.xlu0.b32.cont [15/16] 0.0, 128
      %1018 = vxpose.xlu0.b32.end [16/16] 0.0, 128
      %v1019 = vpop.trf.xlu0
      %v1020 = vpop.trf.xlu0
      %v1021 = vpop.trf.xlu0
      %v1022 = vpop.trf.xlu0
      %v1023 = vpop.trf.xlu0
      %v1024 = vpop.trf.xlu0
      %v1025 = vpop.trf.xlu0
      %v1026 = vpop.trf.xlu0
      %v1027 = vpop.trf.xlu0
      %v1028 = vpop.trf.xlu0
      %v1029 = vpop.trf.xlu0
      %v1030 = vpop.trf.xlu0
      %v1031 = vpop.trf.xlu0
      %v1032 = vpop.trf.xlu0
      %v1033 = vpop.trf.xlu0
      %v1034 = vpop.trf.xlu0
      %1035 = vxpose.xlu0.b32.start [1/16] %v701, 128
      %1036 = vxpose.xlu0.b32.cont [2/16] 0.0, 128
      %1037 = vxpose.xlu0.b32.cont [3/16] 0.0, 128
      %1038 = vxpose.xlu0.b32.cont [4/16] 0.0, 128
      %1039 = vxpose.xlu0.b32.cont [5/16] 0.0, 128
      %1040 = vxpose.xlu0.b32.cont [6/16] 0.0, 128
      %1041 = vxpose.xlu0.b32.cont [7/16] 0.0, 128
      %1042 = vxpose.xlu0.b32.cont [8/16] 0.0, 128
      %1043 = vxpose.xlu0.b32.cont [9/16] 0.0, 128
      %1044 = vxpose.xlu0.b32.cont [10/16] 0.0, 128
      %1045 = vxpose.xlu0.b32.cont [11/16] 0.0, 128
      %1046 = vxpose.xlu0.b32.cont [12/16] 0.0, 128
      %1047 = vxpose.xlu0.b32.cont [13/16] 0.0, 128
      %1048 = vxpose.xlu0.b32.cont [14/16] 0.0, 128
      %1049 = vxpose.xlu0.b32.cont [15/16] 0.0, 128
      %1050 = vxpose.xlu0.b32.end [16/16] 0.0, 128
      %v1051 = vpop.trf.xlu0
      %v1052 = vpop.trf.xlu0
      %v1053 = vpop.trf.xlu0
      %v1054 = vpop.trf.xlu0
      %v1055 = vpop.trf.xlu0
      %v1056 = vpop.trf.xlu0
      %v1057 = vpop.trf.xlu0
      %v1058 = vpop.trf.xlu0
      %v1059 = vpop.trf.xlu0
      %v1060 = vpop.trf.xlu0
      %v1061 = vpop.trf.xlu0
      %v1062 = vpop.trf.xlu0
      %v1063 = vpop.trf.xlu0
      %v1064 = vpop.trf.xlu0
      %v1065 = vpop.trf.xlu0
      %v1066 = vpop.trf.xlu0
      %1067 = vxpose.xlu0.b32.start [1/16] %v710, 128
      %1068 = vxpose.xlu0.b32.cont [2/16] 0.0, 128
      %1069 = vxpose.xlu0.b32.cont [3/16] 0.0, 128
      %1070 = vxpose.xlu0.b32.cont [4/16] 0.0, 128
      %1071 = vxpose.xlu0.b32.cont [5/16] 0.0, 128
      %1072 = vxpose.xlu0.b32.cont [6/16] 0.0, 128
      %1073 = vxpose.xlu0.b32.cont [7/16] 0.0, 128
      %1074 = vxpose.xlu0.b32.cont [8/16] 0.0, 128
      %1075 = vxpose.xlu0.b32.cont [9/16] 0.0, 128
      %1076 = vxpose.xlu0.b32.cont [10/16] 0.0, 128
      %1077 = vxpose.xlu0.b32.cont [11/16] 0.0, 128
      %1078 = vxpose.xlu0.b32.cont [12/16] 0.0, 128
      %1079 = vxpose.xlu0.b32.cont [13/16] 0.0, 128
      %1080 = vxpose.xlu0.b32.cont [14/16] 0.0, 128
      %1081 = vxpose.xlu0.b32.cont [15/16] 0.0, 128
      %1082 = vxpose.xlu0.b32.end [16/16] 0.0, 128
      %v1083 = vpop.trf.xlu0
      %v1084 = vpop.trf.xlu0
      %v1085 = vpop.trf.xlu0
      %v1086 = vpop.trf.xlu0
      %v1087 = vpop.trf.xlu0
      %v1088 = vpop.trf.xlu0
      %v1089 = vpop.trf.xlu0
      %v1090 = vpop.trf.xlu0
      %v1091 = vpop.trf.xlu0
      %v1092 = vpop.trf.xlu0
      %v1093 = vpop.trf.xlu0
      %v1094 = vpop.trf.xlu0
      %v1095 = vpop.trf.xlu0
      %v1096 = vpop.trf.xlu0
      %v1097 = vpop.trf.xlu0
      %v1098 = vpop.trf.xlu0
      %1099 = vxpose.xlu0.b32.start [1/16] %v702, 128
      %1100 = vxpose.xlu0.b32.cont [2/16] 0.0, 128
      %1101 = vxpose.xlu0.b32.cont [3/16] 0.0, 128
      %1102 = vxpose.xlu0.b32.cont [4/16] 0.0, 128
      %1103 = vxpose.xlu0.b32.cont [5/16] 0.0, 128
      %1104 = vxpose.xlu0.b32.cont [6/16] 0.0, 128
      %1105 = vxpose.xlu0.b32.cont [7/16] 0.0, 128
      %1106 = vxpose.xlu0.b32.cont [8/16] 0.0, 128
      %1107 = vxpose.xlu0.b32.cont [9/16] 0.0, 128
      %1108 = vxpose.xlu0.b32.cont [10/16] 0.0, 128
      %1109 = vxpose.xlu0.b32.cont [11/16] 0.0, 128
      %1110 = vxpose.xlu0.b32.cont [12/16] 0.0, 128
      %1111 = vxpose.xlu0.b32.cont [13/16] 0.0, 128
      %1112 = vxpose.xlu0.b32.cont [14/16] 0.0, 128
      %1113 = vxpose.xlu0.b32.cont [15/16] 0.0, 128
      %1114 = vxpose.xlu0.b32.end [16/16] 0.0, 128
      %v1115 = vpop.trf.xlu0
      %v1116 = vpop.trf.xlu0
      %v1117 = vpop.trf.xlu0
      %v1118 = vpop.trf.xlu0
      %v1119 = vpop.trf.xlu0
      %v1120 = vpop.trf.xlu0
      %v1121 = vpop.trf.xlu0
      %v1122 = vpop.trf.xlu0
      %v1123 = vpop.trf.xlu0
      %v1124 = vpop.trf.xlu0
      %v1125 = vpop.trf.xlu0
      %v1126 = vpop.trf.xlu0
      %v1127 = vpop.trf.xlu0
      %v1128 = vpop.trf.xlu0
      %v1129 = vpop.trf.xlu0
      %v1130 = vpop.trf.xlu0
      %1131 = vxpose.xlu0.b32.start [1/16] %v711, 128
      %1132 = vxpose.xlu0.b32.cont [2/16] 0.0, 128
      %1133 = vxpose.xlu0.b32.cont [3/16] 0.0, 128
      %1134 = vxpose.xlu0.b32.cont [4/16] 0.0, 128
      %1135 = vxpose.xlu0.b32.cont [5/16] 0.0, 128
      %1136 = vxpose.xlu0.b32.cont [6/16] 0.0, 128
      %1137 = vxpose.xlu0.b32.cont [7/16] 0.0, 128
      %1138 = vxpose.xlu0.b32.cont [8/16] 0.0, 128
      %1139 = vxpose.xlu0.b32.cont [9/16] 0.0, 128
      %1140 = vxpose.xlu0.b32.cont [10/16] 0.0, 128
      %1141 = vxpose.xlu0.b32.cont [11/16] 0.0, 128
      %1142 = vxpose.xlu0.b32.cont [12/16] 0.0, 128
      %1143 = vxpose.xlu0.b32.cont [13/16] 0.0, 128
      %1144 = vxpose.xlu0.b32.cont [14/16] 0.0, 128
      %1145 = vxpose.xlu0.b32.cont [15/16] 0.0, 128
      %1146 = vxpose.xlu0.b32.end [16/16] 0.0, 128
      %v1147 = vpop.trf.xlu0
      %v1148 = vpop.trf.xlu0
      %v1149 = vpop.trf.xlu0
      %v1150 = vpop.trf.xlu0
      %v1151 = vpop.trf.xlu0
      %v1152 = vpop.trf.xlu0
      %v1153 = vpop.trf.xlu0
      %v1154 = vpop.trf.xlu0
      %v1155 = vpop.trf.xlu0
      %v1156 = vpop.trf.xlu0
      %v1157 = vpop.trf.xlu0
      %v1158 = vpop.trf.xlu0
      %v1159 = vpop.trf.xlu0
      %v1160 = vpop.trf.xlu0
      %v1161 = vpop.trf.xlu0
      %v1162 = vpop.trf.xlu0
      %1163 = vxpose.xlu0.b32.start [1/16] %v703, 128
      %1164 = vxpose.xlu0.b32.cont [2/16] 0.0, 128
      %1165 = vxpose.xlu0.b32.cont [3/16] 0.0, 128
      %1166 = vxpose.xlu0.b32.cont [4/16] 0.0, 128
      %1167 = vxpose.xlu0.b32.cont [5/16] 0.0, 128
      %1168 = vxpose.xlu0.b32.cont [6/16] 0.0, 128
      %1169 = vxpose.xlu0.b32.cont [7/16] 0.0, 128
      %1170 = vxpose.xlu0.b32.cont [8/16] 0.0, 128
      %1171 = vxpose.xlu0.b32.cont [9/16] 0.0, 128
      %1172 = vxpose.xlu0.b32.cont [10/16] 0.0, 128
      %1173 = vxpose.xlu0.b32.cont [11/16] 0.0, 128
      %1174 = vxpose.xlu0.b32.cont [12/16] 0.0, 128
      %1175 = vxpose.xlu0.b32.cont [13/16] 0.0, 128
      %1176 = vxpose.xlu0.b32.cont [14/16] 0.0, 128
      %1177 = vxpose.xlu0.b32.cont [15/16] 0.0, 128
      %1178 = vxpose.xlu0.b32.end [16/16] 0.0, 128
      %v1179 = vpop.trf.xlu0
      %v1180 = vpop.trf.xlu0
      %v1181 = vpop.trf.xlu0
      %v1182 = vpop.trf.xlu0
      %v1183 = vpop.trf.xlu0
      %v1184 = vpop.trf.xlu0
      %v1185 = vpop.trf.xlu0
      %v1186 = vpop.trf.xlu0
      %v1187 = vpop.trf.xlu0
      %v1188 = vpop.trf.xlu0
      %v1189 = vpop.trf.xlu0
      %v1190 = vpop.trf.xlu0
      %v1191 = vpop.trf.xlu0
      %v1192 = vpop.trf.xlu0
      %v1193 = vpop.trf.xlu0
      %v1194 = vpop.trf.xlu0
      %1195 = vxpose.xlu0.b32.start [1/16] %v712, 128
      %1196 = vxpose.xlu0.b32.cont [2/16] 0.0, 128
      %1197 = vxpose.xlu0.b32.cont [3/16] 0.0, 128
      %1198 = vxpose.xlu0.b32.cont [4/16] 0.0, 128
      %1199 = vxpose.xlu0.b32.cont [5/16] 0.0, 128
      %1200 = vxpose.xlu0.b32.cont [6/16] 0.0, 128
      %1201 = vxpose.xlu0.b32.cont [7/16] 0.0, 128
      %1202 = vxpose.xlu0.b32.cont [8/16] 0.0, 128
      %1203 = vxpose.xlu0.b32.cont [9/16] 0.0, 128
      %1204 = vxpose.xlu0.b32.cont [10/16] 0.0, 128
      %1205 = vxpose.xlu0.b32.cont [11/16] 0.0, 128
      %1206 = vxpose.xlu0.b32.cont [12/16] 0.0, 128
      %1207 = vxpose.xlu0.b32.cont [13/16] 0.0, 128
      %1208 = vxpose.xlu0.b32.cont [14/16] 0.0, 128
      %1209 = vxpose.xlu0.b32.cont [15/16] 0.0, 128
      %1210 = vxpose.xlu0.b32.end [16/16] 0.0, 128
      %v1211 = vpop.trf.xlu0
      %v1212 = vpop.trf.xlu0
      %v1213 = vpop.trf.xlu0
      %v1214 = vpop.trf.xlu0
      %v1215 = vpop.trf.xlu0
      %v1216 = vpop.trf.xlu0
      %v1217 = vpop.trf.xlu0
      %v1218 = vpop.trf.xlu0
      %v1219 = vpop.trf.xlu0
      %v1220 = vpop.trf.xlu0
      %v1221 = vpop.trf.xlu0
      %v1222 = vpop.trf.xlu0
      %v1223 = vpop.trf.xlu0
      %v1224 = vpop.trf.xlu0
      %v1225 = vpop.trf.xlu0
      %v1226 = vpop.trf.xlu0
      %v1228 = vsel %vm434, %v731, 0
      %v1231 = vsel %vm434, %v763, 0
      %v1234 = vsel %vm434, %v795, 0
      %v1237 = vsel %vm434, %v827, 0
      %v1240 = vsel %vm434, %v859, 0
      %v1243 = vsel %vm434, %v891, 0
      %v1246 = vsel %vm434, %v923, 0
      %v1249 = vsel %vm434, %v955, 0
      %v1252 = vsel %vm434, %v987, 0
      %v1255 = vsel %vm434, %v1019, 0
      %v1258 = vsel %vm434, %v1051, 0
      %v1261 = vsel %vm434, %v1083, 0
      %v1264 = vsel %vm434, %v1115, 0
      %v1267 = vsel %vm434, %v1147, 0
      %v1270 = vsel %vm434, %v1179, 0
      %v1273 = vsel %vm434, %v1211, 0
      %v1276 = vsel %vm434, %v713, 0
      %v1279 = vsel %vm434, %v714, 0
      %1281 = vmatpush.xpose.msra.mxu0 0.0
      %1282 = vmatpush.xpose.msra.mxu0 0.0
      %1283 = vmatpush.xpose.msra.mxu0 0.0
      %1284 = vmatpush.xpose.msra.mxu0 0.0
      %1285 = vmatpush.xpose.msra.mxu0 0.0
      %1286 = vmatpush.xpose.msra.mxu0 0.0
      %1287 = vmatpush.xpose.msra.mxu0 0.0
      %1288 = vmatpush.xpose.msra.mxu0 0.0
      %1289 = vmatpush.xpose.msra.mxu0 0.0
      %1290 = vmatpush.xpose.msra.mxu0 0.0
      %1291 = vmatpush.xpose.msra.mxu0 0.0
      %1292 = vmatpush.xpose.msra.mxu0 0.0
      %1293 = vmatpush.xpose.msra.mxu0 0.0
      %1294 = vmatpush.xpose.msra.mxu0 0.0
      %1295 = vmatpush.xpose.msra.mxu0 %v1279
      %1296 = vmatpush.xpose.msra.mxu0 %v1276
      %1297 = vmatmul.f32.gmra.mxu0 %v1228
      %v1298 = vpop.f32.mrf.mxu0
      %v1299 = vadd.f32 0.0, %v1298
      %1300 = vmatmul.f32.gmra.mxu0 %v1231
      %v1301 = vpop.f32.mrf.mxu0
      %v1302 = vadd.f32 0.0, %v1301
      %1303 = vmatmul.f32.gmra.mxu0 %v1234
      %v1304 = vpop.f32.mrf.mxu0
      %v1305 = vadd.f32 0.0, %v1304
      %1306 = vmatmul.f32.gmra.mxu0 %v1237
      %v1307 = vpop.f32.mrf.mxu0
      %v1308 = vadd.f32 0.0, %v1307
      %1309 = vmatmul.f32.gmra.mxu0 %v1240
      %v1310 = vpop.f32.mrf.mxu0
      %v1311 = vadd.f32 0.0, %v1310
      %1312 = vmatmul.f32.gmra.mxu0 %v1243
      %v1313 = vpop.f32.mrf.mxu0
      %v1314 = vadd.f32 0.0, %v1313
      %1315 = vmatmul.f32.gmra.mxu0 %v1246
      %v1316 = vpop.f32.mrf.mxu0
      %v1317 = vadd.f32 0.0, %v1316
      %1318 = vmatmul.f32.gmra.mxu0 %v1249
      %v1319 = vpop.f32.mrf.mxu0
      %v1320 = vadd.f32 0.0, %v1319
      %1321 = vmatmul.f32.gmra.mxu0 %v1252
      %v1322 = vpop.f32.mrf.mxu0
      %v1323 = vadd.f32 0.0, %v1322
      %1324 = vmatmul.f32.gmra.mxu0 %v1255
      %v1325 = vpop.f32.mrf.mxu0
      %v1326 = vadd.f32 0.0, %v1325
      %1327 = vmatmul.f32.gmra.mxu0 %v1258
      %v1328 = vpop.f32.mrf.mxu0
      %v1329 = vadd.f32 0.0, %v1328
      %1330 = vmatmul.f32.gmra.mxu0 %v1261
      %v1331 = vpop.f32.mrf.mxu0
      %v1332 = vadd.f32 0.0, %v1331
      %1333 = vmatmul.f32.gmra.mxu0 %v1264
      %v1334 = vpop.f32.mrf.mxu0
      %v1335 = vadd.f32 0.0, %v1334
      %1336 = vmatmul.f32.gmra.mxu0 %v1267
      %v1337 = vpop.f32.mrf.mxu0
      %v1338 = vadd.f32 0.0, %v1337
      %1339 = vmatmul.f32.gmra.mxu0 %v1270
      %v1340 = vpop.f32.mrf.mxu0
      %v1341 = vadd.f32 0.0, %v1340
      %1342 = vmatmul.f32.gmra.mxu0 %v1273
      %v1343 = vpop.f32.mrf.mxu0
      %v1344 = vadd.f32 0.0, %v1343
      %1345 = vdwg.mxu0
      %1346 = vxpose.xlu0.b32.start [1/16] %v1299, 128
      %1347 = vxpose.xlu0.b32.cont [2/16] 0.0, 128
      %1348 = vxpose.xlu0.b32.cont [3/16] 0.0, 128
      %1349 = vxpose.xlu0.b32.cont [4/16] 0.0, 128
      %1350 = vxpose.xlu0.b32.cont [5/16] 0.0, 128
      %1351 = vxpose.xlu0.b32.cont [6/16] 0.0, 128
      %1352 = vxpose.xlu0.b32.cont [7/16] 0.0, 128
      %1353 = vxpose.xlu0.b32.cont [8/16] 0.0, 128
      %1354 = vxpose.xlu0.b32.cont [9/16] 0.0, 128
      %1355 = vxpose.xlu0.b32.cont [10/16] 0.0, 128
      %1356 = vxpose.xlu0.b32.cont [11/16] 0.0, 128
      %1357 = vxpose.xlu0.b32.cont [12/16] 0.0, 128
      %1358 = vxpose.xlu0.b32.cont [13/16] 0.0, 128
      %1359 = vxpose.xlu0.b32.cont [14/16] 0.0, 128
      %1360 = vxpose.xlu0.b32.cont [15/16] 0.0, 128
      %1361 = vxpose.xlu0.b32.end [16/16] 0.0, 128
      %v1362 = vpop.trf.xlu0
      %v1363 = vpop.trf.xlu0
      %v1364 = vpop.trf.xlu0
      %v1365 = vpop.trf.xlu0
      %v1366 = vpop.trf.xlu0
      %v1367 = vpop.trf.xlu0
      %v1368 = vpop.trf.xlu0
      %v1369 = vpop.trf.xlu0
      %v1370 = vpop.trf.xlu0
      %v1371 = vpop.trf.xlu0
      %v1372 = vpop.trf.xlu0
      %v1373 = vpop.trf.xlu0
      %v1374 = vpop.trf.xlu0
      %v1375 = vpop.trf.xlu0
      %v1376 = vpop.trf.xlu0
      %v1377 = vpop.trf.xlu0
      %1378 = vxpose.xlu0.b32.start [1/16] %v1302, 128
      %1379 = vxpose.xlu0.b32.cont [2/16] 0.0, 128
      %1380 = vxpose.xlu0.b32.cont [3/16] 0.0, 128
      %1381 = vxpose.xlu0.b32.cont [4/16] 0.0, 128
      %1382 = vxpose.xlu0.b32.cont [5/16] 0.0, 128
      %1383 = vxpose.xlu0.b32.cont [6/16] 0.0, 128
      %1384 = vxpose.xlu0.b32.cont [7/16] 0.0, 128
      %1385 = vxpose.xlu0.b32.cont [8/16] 0.0, 128
      %1386 = vxpose.xlu0.b32.cont [9/16] 0.0, 128
      %1387 = vxpose.xlu0.b32.cont [10/16] 0.0, 128
      %1388 = vxpose.xlu0.b32.cont [11/16] 0.0, 128
      %1389 = vxpose.xlu0.b32.cont [12/16] 0.0, 128
      %1390 = vxpose.xlu0.b32.cont [13/16] 0.0, 128
      %1391 = vxpose.xlu0.b32.cont [14/16] 0.0, 128
      %1392 = vxpose.xlu0.b32.cont [15/16] 0.0, 128
      %1393 = vxpose.xlu0.b32.end [16/16] 0.0, 128
      %v1394 = vpop.trf.xlu0
      %v1395 = vpop.trf.xlu0
      %v1396 = vpop.trf.xlu0
      %v1397 = vpop.trf.xlu0
      %v1398 = vpop.trf.xlu0
      %v1399 = vpop.trf.xlu0
      %v1400 = vpop.trf.xlu0
      %v1401 = vpop.trf.xlu0
      %v1402 = vpop.trf.xlu0
      %v1403 = vpop.trf.xlu0
      %v1404 = vpop.trf.xlu0
      %v1405 = vpop.trf.xlu0
      %v1406 = vpop.trf.xlu0
      %v1407 = vpop.trf.xlu0
      %v1408 = vpop.trf.xlu0
      %v1409 = vpop.trf.xlu0
      %1410 = vxpose.xlu0.b32.start [1/16] %v1305, 128
      %1411 = vxpose.xlu0.b32.cont [2/16] 0.0, 128
      %1412 = vxpose.xlu0.b32.cont [3/16] 0.0, 128
      %1413 = vxpose.xlu0.b32.cont [4/16] 0.0, 128
      %1414 = vxpose.xlu0.b32.cont [5/16] 0.0, 128
      %1415 = vxpose.xlu0.b32.cont [6/16] 0.0, 128
      %1416 = vxpose.xlu0.b32.cont [7/16] 0.0, 128
      %1417 = vxpose.xlu0.b32.cont [8/16] 0.0, 128
      %1418 = vxpose.xlu0.b32.cont [9/16] 0.0, 128
      %1419 = vxpose.xlu0.b32.cont [10/16] 0.0, 128
      %1420 = vxpose.xlu0.b32.cont [11/16] 0.0, 128
      %1421 = vxpose.xlu0.b32.cont [12/16] 0.0, 128
      %1422 = vxpose.xlu0.b32.cont [13/16] 0.0, 128
      %1423 = vxpose.xlu0.b32.cont [14/16] 0.0, 128
      %1424 = vxpose.xlu0.b32.cont [15/16] 0.0, 128
      %1425 = vxpose.xlu0.b32.end [16/16] 0.0, 128
      %v1426 = vpop.trf.xlu0
      %v1427 = vpop.trf.xlu0
      %v1428 = vpop.trf.xlu0
      %v1429 = vpop.trf.xlu0
      %v1430 = vpop.trf.xlu0
      %v1431 = vpop.trf.xlu0
      %v1432 = vpop.trf.xlu0
      %v1433 = vpop.trf.xlu0
      %v1434 = vpop.trf.xlu0
      %v1435 = vpop.trf.xlu0
      %v1436 = vpop.trf.xlu0
      %v1437 = vpop.trf.xlu0
      %v1438 = vpop.trf.xlu0
      %v1439 = vpop.trf.xlu0
      %v1440 = vpop.trf.xlu0
      %v1441 = vpop.trf.xlu0
      %1442 = vxpose.xlu0.b32.start [1/16] %v1308, 128
      %1443 = vxpose.xlu0.b32.cont [2/16] 0.0, 128
      %1444 = vxpose.xlu0.b32.cont [3/16] 0.0, 128
      %1445 = vxpose.xlu0.b32.cont [4/16] 0.0, 128
      %1446 = vxpose.xlu0.b32.cont [5/16] 0.0, 128
      %1447 = vxpose.xlu0.b32.cont [6/16] 0.0, 128
      %1448 = vxpose.xlu0.b32.cont [7/16] 0.0, 128
      %1449 = vxpose.xlu0.b32.cont [8/16] 0.0, 128
      %1450 = vxpose.xlu0.b32.cont [9/16] 0.0, 128
      %1451 = vxpose.xlu0.b32.cont [10/16] 0.0, 128
      %1452 = vxpose.xlu0.b32.cont [11/16] 0.0, 128
      %1453 = vxpose.xlu0.b32.cont [12/16] 0.0, 128
      %1454 = vxpose.xlu0.b32.cont [13/16] 0.0, 128
      %1455 = vxpose.xlu0.b32.cont [14/16] 0.0, 128
      %1456 = vxpose.xlu0.b32.cont [15/16] 0.0, 128
      %1457 = vxpose.xlu0.b32.end [16/16] 0.0, 128
      %v1458 = vpop.trf.xlu0
      %v1459 = vpop.trf.xlu0
      %v1460 = vpop.trf.xlu0
      %v1461 = vpop.trf.xlu0
      %v1462 = vpop.trf.xlu0
      %v1463 = vpop.trf.xlu0
      %v1464 = vpop.trf.xlu0
      %v1465 = vpop.trf.xlu0
      %v1466 = vpop.trf.xlu0
      %v1467 = vpop.trf.xlu0
      %v1468 = vpop.trf.xlu0
      %v1469 = vpop.trf.xlu0
      %v1470 = vpop.trf.xlu0
      %v1471 = vpop.trf.xlu0
      %v1472 = vpop.trf.xlu0
      %v1473 = vpop.trf.xlu0
      %1474 = vxpose.xlu0.b32.start [1/16] %v1311, 128
      %1475 = vxpose.xlu0.b32.cont [2/16] 0.0, 128
      %1476 = vxpose.xlu0.b32.cont [3/16] 0.0, 128
      %1477 = vxpose.xlu0.b32.cont [4/16] 0.0, 128
      %1478 = vxpose.xlu0.b32.cont [5/16] 0.0, 128
      %1479 = vxpose.xlu0.b32.cont [6/16] 0.0, 128
      %1480 = vxpose.xlu0.b32.cont [7/16] 0.0, 128
      %1481 = vxpose.xlu0.b32.cont [8/16] 0.0, 128
      %1482 = vxpose.xlu0.b32.cont [9/16] 0.0, 128
      %1483 = vxpose.xlu0.b32.cont [10/16] 0.0, 128
      %1484 = vxpose.xlu0.b32.cont [11/16] 0.0, 128
      %1485 = vxpose.xlu0.b32.cont [12/16] 0.0, 128
      %1486 = vxpose.xlu0.b32.cont [13/16] 0.0, 128
      %1487 = vxpose.xlu0.b32.cont [14/16] 0.0, 128
      %1488 = vxpose.xlu0.b32.cont [15/16] 0.0, 128
      %1489 = vxpose.xlu0.b32.end [16/16] 0.0, 128
      %v1490 = vpop.trf.xlu0
      %v1491 = vpop.trf.xlu0
      %v1492 = vpop.trf.xlu0
      %v1493 = vpop.trf.xlu0
      %v1494 = vpop.trf.xlu0
      %v1495 = vpop.trf.xlu0
      %v1496 = vpop.trf.xlu0
      %v1497 = vpop.trf.xlu0
      %v1498 = vpop.trf.xlu0
      %v1499 = vpop.trf.xlu0
      %v1500 = vpop.trf.xlu0
      %v1501 = vpop.trf.xlu0
      %v1502 = vpop.trf.xlu0
      %v1503 = vpop.trf.xlu0
      %v1504 = vpop.trf.xlu0
      %v1505 = vpop.trf.xlu0
      %1506 = vxpose.xlu0.b32.start [1/16] %v1314, 128
      %1507 = vxpose.xlu0.b32.cont [2/16] 0.0, 128
      %1508 = vxpose.xlu0.b32.cont [3/16] 0.0, 128
      %1509 = vxpose.xlu0.b32.cont [4/16] 0.0, 128
      %1510 = vxpose.xlu0.b32.cont [5/16] 0.0, 128
      %1511 = vxpose.xlu0.b32.cont [6/16] 0.0, 128
      %1512 = vxpose.xlu0.b32.cont [7/16] 0.0, 128
      %1513 = vxpose.xlu0.b32.cont [8/16] 0.0, 128
      %1514 = vxpose.xlu0.b32.cont [9/16] 0.0, 128
      %1515 = vxpose.xlu0.b32.cont [10/16] 0.0, 128
      %1516 = vxpose.xlu0.b32.cont [11/16] 0.0, 128
      %1517 = vxpose.xlu0.b32.cont [12/16] 0.0, 128
      %1518 = vxpose.xlu0.b32.cont [13/16] 0.0, 128
      %1519 = vxpose.xlu0.b32.cont [14/16] 0.0, 128
      %1520 = vxpose.xlu0.b32.cont [15/16] 0.0, 128
      %1521 = vxpose.xlu0.b32.end [16/16] 0.0, 128
      %v1522 = vpop.trf.xlu0
      %v1523 = vpop.trf.xlu0
      %v1524 = vpop.trf.xlu0
      %v1525 = vpop.trf.xlu0
      %v1526 = vpop.trf.xlu0
      %v1527 = vpop.trf.xlu0
      %v1528 = vpop.trf.xlu0
      %v1529 = vpop.trf.xlu0
      %v1530 = vpop.trf.xlu0
      %v1531 = vpop.trf.xlu0
      %v1532 = vpop.trf.xlu0
      %v1533 = vpop.trf.xlu0
      %v1534 = vpop.trf.xlu0
      %v1535 = vpop.trf.xlu0
      %v1536 = vpop.trf.xlu0
      %v1537 = vpop.trf.xlu0
      %1538 = vxpose.xlu0.b32.start [1/16] %v1317, 128
      %1539 = vxpose.xlu0.b32.cont [2/16] 0.0, 128
      %1540 = vxpose.xlu0.b32.cont [3/16] 0.0, 128
      %1541 = vxpose.xlu0.b32.cont [4/16] 0.0, 128
      %1542 = vxpose.xlu0.b32.cont [5/16] 0.0, 128
      %1543 = vxpose.xlu0.b32.cont [6/16] 0.0, 128
      %1544 = vxpose.xlu0.b32.cont [7/16] 0.0, 128
      %1545 = vxpose.xlu0.b32.cont [8/16] 0.0, 128
      %1546 = vxpose.xlu0.b32.cont [9/16] 0.0, 128
      %1547 = vxpose.xlu0.b32.cont [10/16] 0.0, 128
      %1548 = vxpose.xlu0.b32.cont [11/16] 0.0, 128
      %1549 = vxpose.xlu0.b32.cont [12/16] 0.0, 128
      %1550 = vxpose.xlu0.b32.cont [13/16] 0.0, 128
      %1551 = vxpose.xlu0.b32.cont [14/16] 0.0, 128
      %1552 = vxpose.xlu0.b32.cont [15/16] 0.0, 128
      %1553 = vxpose.xlu0.b32.end [16/16] 0.0, 128
      %v1554 = vpop.trf.xlu0
      %v1555 = vpop.trf.xlu0
      %v1556 = vpop.trf.xlu0
      %v1557 = vpop.trf.xlu0
      %v1558 = vpop.trf.xlu0
      %v1559 = vpop.trf.xlu0
      %v1560 = vpop.trf.xlu0
      %v1561 = vpop.trf.xlu0
      %v1562 = vpop.trf.xlu0
      %v1563 = vpop.trf.xlu0
      %v1564 = vpop.trf.xlu0
      %v1565 = vpop.trf.xlu0
      %v1566 = vpop.trf.xlu0
      %v1567 = vpop.trf.xlu0
      %v1568 = vpop.trf.xlu0
      %v1569 = vpop.trf.xlu0
      %1570 = vxpose.xlu0.b32.start [1/16] %v1320, 128
      %1571 = vxpose.xlu0.b32.cont [2/16] 0.0, 128
      %1572 = vxpose.xlu0.b32.cont [3/16] 0.0, 128
      %1573 = vxpose.xlu0.b32.cont [4/16] 0.0, 128
      %1574 = vxpose.xlu0.b32.cont [5/16] 0.0, 128
      %1575 = vxpose.xlu0.b32.cont [6/16] 0.0, 128
      %1576 = vxpose.xlu0.b32.cont [7/16] 0.0, 128
      %1577 = vxpose.xlu0.b32.cont [8/16] 0.0, 128
      %1578 = vxpose.xlu0.b32.cont [9/16] 0.0, 128
      %1579 = vxpose.xlu0.b32.cont [10/16] 0.0, 128
      %1580 = vxpose.xlu0.b32.cont [11/16] 0.0, 128
      %1581 = vxpose.xlu0.b32.cont [12/16] 0.0, 128
      %1582 = vxpose.xlu0.b32.cont [13/16] 0.0, 128
      %1583 = vxpose.xlu0.b32.cont [14/16] 0.0, 128
      %1584 = vxpose.xlu0.b32.cont [15/16] 0.0, 128
      %1585 = vxpose.xlu0.b32.end [16/16] 0.0, 128
      %v1586 = vpop.trf.xlu0
      %v1587 = vpop.trf.xlu0
      %v1588 = vpop.trf.xlu0
      %v1589 = vpop.trf.xlu0
      %v1590 = vpop.trf.xlu0
      %v1591 = vpop.trf.xlu0
      %v1592 = vpop.trf.xlu0
      %v1593 = vpop.trf.xlu0
      %v1594 = vpop.trf.xlu0
      %v1595 = vpop.trf.xlu0
      %v1596 = vpop.trf.xlu0
      %v1597 = vpop.trf.xlu0
      %v1598 = vpop.trf.xlu0
      %v1599 = vpop.trf.xlu0
      %v1600 = vpop.trf.xlu0
      %v1601 = vpop.trf.xlu0
      %1602 = vxpose.xlu0.b32.start [1/16] %v1323, 128
      %1603 = vxpose.xlu0.b32.cont [2/16] 0.0, 128
      %1604 = vxpose.xlu0.b32.cont [3/16] 0.0, 128
      %1605 = vxpose.xlu0.b32.cont [4/16] 0.0, 128
      %1606 = vxpose.xlu0.b32.cont [5/16] 0.0, 128
      %1607 = vxpose.xlu0.b32.cont [6/16] 0.0, 128
      %1608 = vxpose.xlu0.b32.cont [7/16] 0.0, 128
      %1609 = vxpose.xlu0.b32.cont [8/16] 0.0, 128
      %1610 = vxpose.xlu0.b32.cont [9/16] 0.0, 128
      %1611 = vxpose.xlu0.b32.cont [10/16] 0.0, 128
      %1612 = vxpose.xlu0.b32.cont [11/16] 0.0, 128
      %1613 = vxpose.xlu0.b32.cont [12/16] 0.0, 128
      %1614 = vxpose.xlu0.b32.cont [13/16] 0.0, 128
      %1615 = vxpose.xlu0.b32.cont [14/16] 0.0, 128
      %1616 = vxpose.xlu0.b32.cont [15/16] 0.0, 128
      %1617 = vxpose.xlu0.b32.end [16/16] 0.0, 128
      %v1618 = vpop.trf.xlu0
      %v1619 = vpop.trf.xlu0
      %v1620 = vpop.trf.xlu0
      %v1621 = vpop.trf.xlu0
      %v1622 = vpop.trf.xlu0
      %v1623 = vpop.trf.xlu0
      %v1624 = vpop.trf.xlu0
      %v1625 = vpop.trf.xlu0
      %v1626 = vpop.trf.xlu0
      %v1627 = vpop.trf.xlu0
      %v1628 = vpop.trf.xlu0
      %v1629 = vpop.trf.xlu0
      %v1630 = vpop.trf.xlu0
      %v1631 = vpop.trf.xlu0
      %v1632 = vpop.trf.xlu0
      %v1633 = vpop.trf.xlu0
      %1634 = vxpose.xlu0.b32.start [1/16] %v1326, 128
      %1635 = vxpose.xlu0.b32.cont [2/16] 0.0, 128
      %1636 = vxpose.xlu0.b32.cont [3/16] 0.0, 128
      %1637 = vxpose.xlu0.b32.cont [4/16] 0.0, 128
      %1638 = vxpose.xlu0.b32.cont [5/16] 0.0, 128
      %1639 = vxpose.xlu0.b32.cont [6/16] 0.0, 128
      %1640 = vxpose.xlu0.b32.cont [7/16] 0.0, 128
      %1641 = vxpose.xlu0.b32.cont [8/16] 0.0, 128
      %1642 = vxpose.xlu0.b32.cont [9/16] 0.0, 128
      %1643 = vxpose.xlu0.b32.cont [10/16] 0.0, 128
      %1644 = vxpose.xlu0.b32.cont [11/16] 0.0, 128
      %1645 = vxpose.xlu0.b32.cont [12/16] 0.0, 128
      %1646 = vxpose.xlu0.b32.cont [13/16] 0.0, 128
      %1647 = vxpose.xlu0.b32.cont [14/16] 0.0, 128
      %1648 = vxpose.xlu0.b32.cont [15/16] 0.0, 128
      %1649 = vxpose.xlu0.b32.end [16/16] 0.0, 128
      %v1650 = vpop.trf.xlu0
      %v1651 = vpop.trf.xlu0
      %v1652 = vpop.trf.xlu0
      %v1653 = vpop.trf.xlu0
      %v1654 = vpop.trf.xlu0
      %v1655 = vpop.trf.xlu0
      %v1656 = vpop.trf.xlu0
      %v1657 = vpop.trf.xlu0
      %v1658 = vpop.trf.xlu0
      %v1659 = vpop.trf.xlu0
      %v1660 = vpop.trf.xlu0
      %v1661 = vpop.trf.xlu0
      %v1662 = vpop.trf.xlu0
      %v1663 = vpop.trf.xlu0
      %v1664 = vpop.trf.xlu0
      %v1665 = vpop.trf.xlu0
      %1666 = vxpose.xlu0.b32.start [1/16] %v1329, 128
      %1667 = vxpose.xlu0.b32.cont [2/16] 0.0, 128
      %1668 = vxpose.xlu0.b32.cont [3/16] 0.0, 128
      %1669 = vxpose.xlu0.b32.cont [4/16] 0.0, 128
      %1670 = vxpose.xlu0.b32.cont [5/16] 0.0, 128
      %1671 = vxpose.xlu0.b32.cont [6/16] 0.0, 128
      %1672 = vxpose.xlu0.b32.cont [7/16] 0.0, 128
      %1673 = vxpose.xlu0.b32.cont [8/16] 0.0, 128
      %1674 = vxpose.xlu0.b32.cont [9/16] 0.0, 128
      %1675 = vxpose.xlu0.b32.cont [10/16] 0.0, 128
      %1676 = vxpose.xlu0.b32.cont [11/16] 0.0, 128
      %1677 = vxpose.xlu0.b32.cont [12/16] 0.0, 128
      %1678 = vxpose.xlu0.b32.cont [13/16] 0.0, 128
      %1679 = vxpose.xlu0.b32.cont [14/16] 0.0, 128
      %1680 = vxpose.xlu0.b32.cont [15/16] 0.0, 128
      %1681 = vxpose.xlu0.b32.end [16/16] 0.0, 128
      %v1682 = vpop.trf.xlu0
      %v1683 = vpop.trf.xlu0
      %v1684 = vpop.trf.xlu0
      %v1685 = vpop.trf.xlu0
      %v1686 = vpop.trf.xlu0
      %v1687 = vpop.trf.xlu0
      %v1688 = vpop.trf.xlu0
      %v1689 = vpop.trf.xlu0
      %v1690 = vpop.trf.xlu0
      %v1691 = vpop.trf.xlu0
      %v1692 = vpop.trf.xlu0
      %v1693 = vpop.trf.xlu0
      %v1694 = vpop.trf.xlu0
      %v1695 = vpop.trf.xlu0
      %v1696 = vpop.trf.xlu0
      %v1697 = vpop.trf.xlu0
      %1698 = vxpose.xlu0.b32.start [1/16] %v1332, 128
      %1699 = vxpose.xlu0.b32.cont [2/16] 0.0, 128
      %1700 = vxpose.xlu0.b32.cont [3/16] 0.0, 128
      %1701 = vxpose.xlu0.b32.cont [4/16] 0.0, 128
      %1702 = vxpose.xlu0.b32.cont [5/16] 0.0, 128
      %1703 = vxpose.xlu0.b32.cont [6/16] 0.0, 128
      %1704 = vxpose.xlu0.b32.cont [7/16] 0.0, 128
      %1705 = vxpose.xlu0.b32.cont [8/16] 0.0, 128
      %1706 = vxpose.xlu0.b32.cont [9/16] 0.0, 128
      %1707 = vxpose.xlu0.b32.cont [10/16] 0.0, 128
      %1708 = vxpose.xlu0.b32.cont [11/16] 0.0, 128
      %1709 = vxpose.xlu0.b32.cont [12/16] 0.0, 128
      %1710 = vxpose.xlu0.b32.cont [13/16] 0.0, 128
      %1711 = vxpose.xlu0.b32.cont [14/16] 0.0, 128
      %1712 = vxpose.xlu0.b32.cont [15/16] 0.0, 128
      %1713 = vxpose.xlu0.b32.end [16/16] 0.0, 128
      %v1714 = vpop.trf.xlu0
      %v1715 = vpop.trf.xlu0
      %v1716 = vpop.trf.xlu0
      %v1717 = vpop.trf.xlu0
      %v1718 = vpop.trf.xlu0
      %v1719 = vpop.trf.xlu0
      %v1720 = vpop.trf.xlu0
      %v1721 = vpop.trf.xlu0
      %v1722 = vpop.trf.xlu0
      %v1723 = vpop.trf.xlu0
      %v1724 = vpop.trf.xlu0
      %v1725 = vpop.trf.xlu0
      %v1726 = vpop.trf.xlu0
      %v1727 = vpop.trf.xlu0
      %v1728 = vpop.trf.xlu0
      %v1729 = vpop.trf.xlu0
      %1730 = vxpose.xlu0.b32.start [1/16] %v1335, 128
      %1731 = vxpose.xlu0.b32.cont [2/16] 0.0, 128
      %1732 = vxpose.xlu0.b32.cont [3/16] 0.0, 128
      %1733 = vxpose.xlu0.b32.cont [4/16] 0.0, 128
      %1734 = vxpose.xlu0.b32.cont [5/16] 0.0, 128
      %1735 = vxpose.xlu0.b32.cont [6/16] 0.0, 128
      %1736 = vxpose.xlu0.b32.cont [7/16] 0.0, 128
      %1737 = vxpose.xlu0.b32.cont [8/16] 0.0, 128
      %1738 = vxpose.xlu0.b32.cont [9/16] 0.0, 128
      %1739 = vxpose.xlu0.b32.cont [10/16] 0.0, 128
      %1740 = vxpose.xlu0.b32.cont [11/16] 0.0, 128
      %1741 = vxpose.xlu0.b32.cont [12/16] 0.0, 128
      %1742 = vxpose.xlu0.b32.cont [13/16] 0.0, 128
      %1743 = vxpose.xlu0.b32.cont [14/16] 0.0, 128
      %1744 = vxpose.xlu0.b32.cont [15/16] 0.0, 128
      %1745 = vxpose.xlu0.b32.end [16/16] 0.0, 128
      %v1746 = vpop.trf.xlu0
      %v1747 = vpop.trf.xlu0
      %v1748 = vpop.trf.xlu0
      %v1749 = vpop.trf.xlu0
      %v1750 = vpop.trf.xlu0
      %v1751 = vpop.trf.xlu0
      %v1752 = vpop.trf.xlu0
      %v1753 = vpop.trf.xlu0
      %v1754 = vpop.trf.xlu0
      %v1755 = vpop.trf.xlu0
      %v1756 = vpop.trf.xlu0
      %v1757 = vpop.trf.xlu0
      %v1758 = vpop.trf.xlu0
      %v1759 = vpop.trf.xlu0
      %v1760 = vpop.trf.xlu0
      %v1761 = vpop.trf.xlu0
      %1762 = vxpose.xlu0.b32.start [1/16] %v1338, 128
      %1763 = vxpose.xlu0.b32.cont [2/16] 0.0, 128
      %1764 = vxpose.xlu0.b32.cont [3/16] 0.0, 128
      %1765 = vxpose.xlu0.b32.cont [4/16] 0.0, 128
      %1766 = vxpose.xlu0.b32.cont [5/16] 0.0, 128
      %1767 = vxpose.xlu0.b32.cont [6/16] 0.0, 128
      %1768 = vxpose.xlu0.b32.cont [7/16] 0.0, 128
      %1769 = vxpose.xlu0.b32.cont [8/16] 0.0, 128
      %1770 = vxpose.xlu0.b32.cont [9/16] 0.0, 128
      %1771 = vxpose.xlu0.b32.cont [10/16] 0.0, 128
      %1772 = vxpose.xlu0.b32.cont [11/16] 0.0, 128
      %1773 = vxpose.xlu0.b32.cont [12/16] 0.0, 128
      %1774 = vxpose.xlu0.b32.cont [13/16] 0.0, 128
      %1775 = vxpose.xlu0.b32.cont [14/16] 0.0, 128
      %1776 = vxpose.xlu0.b32.cont [15/16] 0.0, 128
      %1777 = vxpose.xlu0.b32.end [16/16] 0.0, 128
      %v1778 = vpop.trf.xlu0
      %v1779 = vpop.trf.xlu0
      %v1780 = vpop.trf.xlu0
      %v1781 = vpop.trf.xlu0
      %v1782 = vpop.trf.xlu0
      %v1783 = vpop.trf.xlu0
      %v1784 = vpop.trf.xlu0
      %v1785 = vpop.trf.xlu0
      %v1786 = vpop.trf.xlu0
      %v1787 = vpop.trf.xlu0
      %v1788 = vpop.trf.xlu0
      %v1789 = vpop.trf.xlu0
      %v1790 = vpop.trf.xlu0
      %v1791 = vpop.trf.xlu0
      %v1792 = vpop.trf.xlu0
      %v1793 = vpop.trf.xlu0
      %1794 = vxpose.xlu0.b32.start [1/16] %v1341, 128
      %1795 = vxpose.xlu0.b32.cont [2/16] 0.0, 128
      %1796 = vxpose.xlu0.b32.cont [3/16] 0.0, 128
      %1797 = vxpose.xlu0.b32.cont [4/16] 0.0, 128
      %1798 = vxpose.xlu0.b32.cont [5/16] 0.0, 128
      %1799 = vxpose.xlu0.b32.cont [6/16] 0.0, 128
      %1800 = vxpose.xlu0.b32.cont [7/16] 0.0, 128
      %1801 = vxpose.xlu0.b32.cont [8/16] 0.0, 128
      %1802 = vxpose.xlu0.b32.cont [9/16] 0.0, 128
      %1803 = vxpose.xlu0.b32.cont [10/16] 0.0, 128
      %1804 = vxpose.xlu0.b32.cont [11/16] 0.0, 128
      %1805 = vxpose.xlu0.b32.cont [12/16] 0.0, 128
      %1806 = vxpose.xlu0.b32.cont [13/16] 0.0, 128
      %1807 = vxpose.xlu0.b32.cont [14/16] 0.0, 128
      %1808 = vxpose.xlu0.b32.cont [15/16] 0.0, 128
      %1809 = vxpose.xlu0.b32.end [16/16] 0.0, 128
      %v1810 = vpop.trf.xlu0
      %v1811 = vpop.trf.xlu0
      %v1812 = vpop.trf.xlu0
      %v1813 = vpop.trf.xlu0
      %v1814 = vpop.trf.xlu0
      %v1815 = vpop.trf.xlu0
      %v1816 = vpop.trf.xlu0
      %v1817 = vpop.trf.xlu0
      %v1818 = vpop.trf.xlu0
      %v1819 = vpop.trf.xlu0
      %v1820 = vpop.trf.xlu0
      %v1821 = vpop.trf.xlu0
      %v1822 = vpop.trf.xlu0
      %v1823 = vpop.trf.xlu0
      %v1824 = vpop.trf.xlu0
      %v1825 = vpop.trf.xlu0
      %1826 = vxpose.xlu0.b32.start [1/16] %v1344, 128
      %1827 = vxpose.xlu0.b32.cont [2/16] 0.0, 128
      %1828 = vxpose.xlu0.b32.cont [3/16] 0.0, 128
      %1829 = vxpose.xlu0.b32.cont [4/16] 0.0, 128
      %1830 = vxpose.xlu0.b32.cont [5/16] 0.0, 128
      %1831 = vxpose.xlu0.b32.cont [6/16] 0.0, 128
      %1832 = vxpose.xlu0.b32.cont [7/16] 0.0, 128
      %1833 = vxpose.xlu0.b32.cont [8/16] 0.0, 128
      %1834 = vxpose.xlu0.b32.cont [9/16] 0.0, 128
      %1835 = vxpose.xlu0.b32.cont [10/16] 0.0, 128
      %1836 = vxpose.xlu0.b32.cont [11/16] 0.0, 128
      %1837 = vxpose.xlu0.b32.cont [12/16] 0.0, 128
      %1838 = vxpose.xlu0.b32.cont [13/16] 0.0, 128
      %1839 = vxpose.xlu0.b32.cont [14/16] 0.0, 128
      %1840 = vxpose.xlu0.b32.cont [15/16] 0.0, 128
      %1841 = vxpose.xlu0.b32.end [16/16] 0.0, 128
      %v1842 = vpop.trf.xlu0
      %v1843 = vpop.trf.xlu0
      %v1844 = vpop.trf.xlu0
      %v1845 = vpop.trf.xlu0
      %v1846 = vpop.trf.xlu0
      %v1847 = vpop.trf.xlu0
      %v1848 = vpop.trf.xlu0
      %v1849 = vpop.trf.xlu0
      %v1850 = vpop.trf.xlu0
      %v1851 = vpop.trf.xlu0
      %v1852 = vpop.trf.xlu0
      %v1853 = vpop.trf.xlu0
      %v1854 = vpop.trf.xlu0
      %v1855 = vpop.trf.xlu0
      %v1856 = vpop.trf.xlu0
      %v1857 = vpop.trf.xlu0
      %s1858 = scalar_lea.vmem [#allocation2], 24
      %1859 = vst.msk [vmem:[%s1858 + $0x1] sm:$0xff] %vm434, %v1362
      %1860 = vst.msk [vmem:[%s1858 + $0x9] sm:$0xff] %vm434, %v1363
      %1861 = vst.msk [vmem:[%s1858 + $0x19] sm:$0xff] %vm434, %v1394
      %1862 = vst.msk [vmem:[%s1858 + $0x21] sm:$0xff] %vm434, %v1395
      %1863 = vst.msk [vmem:[%s1858 + $0x31] sm:$0xff] %vm434, %v1426
      %1864 = vst.msk [vmem:[%s1858 + $0x39] sm:$0xff] %vm434, %v1427
      %1865 = vst.msk [vmem:[%s1858 + $0x49] sm:$0xff] %vm434, %v1458
      %1866 = vst.msk [vmem:[%s1858 + $0x51] sm:$0xff] %vm434, %v1459
      %1867 = vst.msk [vmem:[%s1858 + $0x61] sm:$0xff] %vm434, %v1490
      %1868 = vst.msk [vmem:[%s1858 + $0x69] sm:$0xff] %vm434, %v1491
      %1869 = vst.msk [vmem:[%s1858 + $0x79] sm:$0xff] %vm434, %v1522
      %1870 = vst.msk [vmem:[%s1858 + $0x81] sm:$0xff] %vm434, %v1523
      %1871 = vst.msk [vmem:[%s1858 + $0x91] sm:$0xff] %vm434, %v1554
      %1872 = vst.msk [vmem:[%s1858 + $0x99] sm:$0xff] %vm434, %v1555
      %1873 = vst.msk [vmem:[%s1858 + $0xa9] sm:$0xff] %vm434, %v1586
      %1874 = vst.msk [vmem:[%s1858 + $0xb1] sm:$0xff] %vm434, %v1587
      %1875 = vst.msk [vmem:[%s1858 + $0xc1] sm:$0xff] %vm434, %v1618
      %1876 = vst.msk [vmem:[%s1858 + $0xc9] sm:$0xff] %vm434, %v1619
      %1877 = vst.msk [vmem:[%s1858 + $0xd9] sm:$0xff] %vm434, %v1650
      %1878 = vst.msk [vmem:[%s1858 + $0xe1] sm:$0xff] %vm434, %v1651
      %1879 = vst.msk [vmem:[%s1858 + $0xf1] sm:$0xff] %vm434, %v1682
      %1880 = vst.msk [vmem:[%s1858 + $0xf9] sm:$0xff] %vm434, %v1683
      %1881 = vst.msk [vmem:[%s1858 + $0x109] sm:$0xff] %vm434, %v1714
      %1882 = vst.msk [vmem:[%s1858 + $0x111] sm:$0xff] %vm434, %v1715
      %1883 = vst.msk [vmem:[%s1858 + $0x121] sm:$0xff] %vm434, %v1746
      %1884 = vst.msk [vmem:[%s1858 + $0x129] sm:$0xff] %vm434, %v1747
      %1885 = vst.msk [vmem:[%s1858 + $0x139] sm:$0xff] %vm434, %v1778
      %1886 = vst.msk [vmem:[%s1858 + $0x141] sm:$0xff] %vm434, %v1779
      %1887 = vst.msk [vmem:[%s1858 + $0x151] sm:$0xff] %vm434, %v1810
      %1888 = vst.msk [vmem:[%s1858 + $0x159] sm:$0xff] %vm434, %v1811
      %1889 = vst.msk [vmem:[%s1858 + $0x169] sm:$0xff] %vm434, %v1842
      %1890 = vst.msk [vmem:[%s1858 + $0x171] sm:$0xff] %vm434, %v1843
      %v1891 = vld [vmem:[%s428] sm:$0xff]
      %v1892 = vld [vmem:[%s428 + $0x8] sm:$0xff]
      %v1893 = vld [vmem:[%s428 + $0x10] sm:$0xff]
      %v1894 = vld [vmem:[%s428 + $0x18] sm:$0xff]
      %v1895 = vld [vmem:[%s428 + $0x20] sm:$0xff]
      %v1896 = vld [vmem:[%s428 + $0x28] sm:$0xff]
      %v1897 = vld [vmem:[%s428 + $0x30] sm:$0xff]
      %v1898 = vld [vmem:[%s428 + $0x38] sm:$0xff]
      %v1899 = vld [vmem:[%s428 + $0x40] sm:$0xff]
      %v1900 = vld [vmem:[%s428 + $0x48] sm:$0xff]
      %v1901 = vld [vmem:[%s428 + $0x50] sm:$0xff]
      %v1902 = vld [vmem:[%s428 + $0x58] sm:$0xff]
      %v1903 = vld [vmem:[%s428 + $0x60] sm:$0xff]
      %v1904 = vld [vmem:[%s428 + $0x68] sm:$0xff]
      %v1905 = vld [vmem:[%s428 + $0x70] sm:$0xff]
      %v1906 = vld [vmem:[%s428 + $0x78] sm:$0xff]
      %v1907 = vld [vmem:[%s428 + $0x80] sm:$0xff]
      %v1908 = vld [vmem:[%s428 + $0x88] sm:$0xff]
      %v1909 = vld [vmem:[%s428 + $0x90] sm:$0xff]
      %v1910 = vld [vmem:[%s428 + $0x98] sm:$0xff]
      %v1911 = vld [vmem:[%s428 + $0xa0] sm:$0xff]
      %v1912 = vld [vmem:[%s428 + $0xa8] sm:$0xff]
      %v1913 = vld [vmem:[%s428 + $0xb0] sm:$0xff]
      %v1914 = vld [vmem:[%s428 + $0xb8] sm:$0xff]
      %v1915 = vld [vmem:[%s428 + $0xc0] sm:$0xff]
      %v1916 = vld [vmem:[%s428 + $0xc8] sm:$0xff]
      %v1917 = vld [vmem:[%s428 + $0xd0] sm:$0xff]
      %v1918 = vld [vmem:[%s428 + $0xd8] sm:$0xff]
      %v1919 = vld [vmem:[%s428 + $0xe0] sm:$0xff]
      %v1920 = vld [vmem:[%s428 + $0xe8] sm:$0xff]
      %v1921 = vld [vmem:[%s428 + $0xf0] sm:$0xff]
      %v1922 = vld [vmem:[%s428 + $0xf8] sm:$0xff]
      %v1923 = vld [vmem:[%s4] sm:$0xff]
      %v1924 = vld [vmem:[%s5] sm:$0x1]
      %v1926 = vperm.slane %v1924, 0
      %v1929 = vsel %vm434, %v1891, 0
      %v1932 = vsel %vm434, %v1892, 0
      %v1935 = vsel %vm434, %v1893, 0
      %v1938 = vsel %vm434, %v1894, 0
      %v1941 = vsel %vm434, %v1895, 0
      %v1944 = vsel %vm434, %v1896, 0
      %v1947 = vsel %vm434, %v1897, 0
      %v1950 = vsel %vm434, %v1898, 0
      %v1953 = vsel %vm434, %v1899, 0
      %v1956 = vsel %vm434, %v1900, 0
      %v1959 = vsel %vm434, %v1901, 0
      %v1962 = vsel %vm434, %v1902, 0
      %v1965 = vsel %vm434, %v1903, 0
      %v1968 = vsel %vm434, %v1904, 0
      %v1971 = vsel %vm434, %v1905, 0
      %v1974 = vsel %vm434, %v1906, 0
      %v1977 = vsel %vm434, %v1907, 0
      %v1980 = vsel %vm434, %v1908, 0
      %v1983 = vsel %vm434, %v1909, 0
      %v1986 = vsel %vm434, %v1910, 0
      %v1989 = vsel %vm434, %v1911, 0
      %v1992 = vsel %vm434, %v1912, 0
      %v1995 = vsel %vm434, %v1913, 0
      %v1998 = vsel %vm434, %v1914, 0
      %v2001 = vsel %vm434, %v1915, 0
      %v2004 = vsel %vm434, %v1916, 0
      %v2007 = vsel %vm434, %v1917, 0
      %v2010 = vsel %vm434, %v1918, 0
      %v2013 = vsel %vm434, %v1919, 0
      %v2016 = vsel %vm434, %v1920, 0
      %v2019 = vsel %vm434, %v1921, 0
      %v2022 = vsel %vm434, %v1922, 0
      %2024 = vmatpush.msra.mxu0 0.0
      %2025 = vmatpush.msra.mxu0 0.0
      %2026 = vmatpush.msra.mxu0 0.0
      %2027 = vmatpush.msra.mxu0 0.0
      %2028 = vmatpush.msra.mxu0 0.0
      %2029 = vmatpush.msra.mxu0 0.0
      %2030 = vmatpush.msra.mxu0 0.0
      %2031 = vmatpush.msra.mxu0 0.0
      %2032 = vmatpush.msra.mxu0 0.0
      %2033 = vmatpush.msra.mxu0 0.0
      %2034 = vmatpush.msra.mxu0 0.0
      %2035 = vmatpush.msra.mxu0 0.0
      %2036 = vmatpush.msra.mxu0 0.0
      %2037 = vmatpush.msra.mxu0 0.0
      %2038 = vmatpush.msra.mxu0 0.0
      %2039 = vmatpush.msra.mxu0 %v1923
      %2040 = vmatmul.f32.gmra.mxu0 %v1929
      %v2041 = vpop.f32.mrf.mxu0
      %v2042 = vadd.f32 %v1926, %v2041
      %2043 = vmatmul.f32.gmra.mxu0 %v1932
      %v2044 = vpop.f32.mrf.mxu0
      %v2045 = vadd.f32 %v1926, %v2044
      %2046 = vmatmul.f32.gmra.mxu0 %v1935
      %v2047 = vpop.f32.mrf.mxu0
      %v2048 = vadd.f32 %v1926, %v2047
      %2049 = vmatmul.f32.gmra.mxu0 %v1938
      %v2050 = vpop.f32.mrf.mxu0
      %v2051 = vadd.f32 %v1926, %v2050
      %2052 = vmatmul.f32.gmra.mxu0 %v1941
      %v2053 = vpop.f32.mrf.mxu0
      %v2054 = vadd.f32 %v1926, %v2053
      %2055 = vmatmul.f32.gmra.mxu0 %v1944
      %v2056 = vpop.f32.mrf.mxu0
      %v2057 = vadd.f32 %v1926, %v2056
      %2058 = vmatmul.f32.gmra.mxu0 %v1947
      %v2059 = vpop.f32.mrf.mxu0
      %v2060 = vadd.f32 %v1926, %v2059
      %2061 = vmatmul.f32.gmra.mxu0 %v1950
      %v2062 = vpop.f32.mrf.mxu0
      %v2063 = vadd.f32 %v1926, %v2062
      %2064 = vmatmul.f32.gmra.mxu0 %v1953
      %v2065 = vpop.f32.mrf.mxu0
      %v2066 = vadd.f32 %v1926, %v2065
      %2067 = vmatmul.f32.gmra.mxu0 %v1956
      %v2068 = vpop.f32.mrf.mxu0
      %v2069 = vadd.f32 %v1926, %v2068
      %2070 = vmatmul.f32.gmra.mxu0 %v1959
      %v2071 = vpop.f32.mrf.mxu0
      %v2072 = vadd.f32 %v1926, %v2071
      %2073 = vmatmul.f32.gmra.mxu0 %v1962
      %v2074 = vpop.f32.mrf.mxu0
      %v2075 = vadd.f32 %v1926, %v2074
      %2076 = vmatmul.f32.gmra.mxu0 %v1965
      %v2077 = vpop.f32.mrf.mxu0
      %v2078 = vadd.f32 %v1926, %v2077
      %2079 = vmatmul.f32.gmra.mxu0 %v1968
      %v2080 = vpop.f32.mrf.mxu0
      %v2081 = vadd.f32 %v1926, %v2080
      %2082 = vmatmul.f32.gmra.mxu0 %v1971
      %v2083 = vpop.f32.mrf.mxu0
      %v2084 = vadd.f32 %v1926, %v2083
      %2085 = vmatmul.f32.gmra.mxu0 %v1974
      %v2086 = vpop.f32.mrf.mxu0
      %v2087 = vadd.f32 %v1926, %v2086
      %2088 = vmatmul.f32.gmra.mxu0 %v1977
      %v2089 = vpop.f32.mrf.mxu0
      %v2090 = vadd.f32 %v1926, %v2089
      %2091 = vmatmul.f32.gmra.mxu0 %v1980
      %v2092 = vpop.f32.mrf.mxu0
      %v2093 = vadd.f32 %v1926, %v2092
      %2094 = vmatmul.f32.gmra.mxu0 %v1983
      %v2095 = vpop.f32.mrf.mxu0
      %v2096 = vadd.f32 %v1926, %v2095
      %2097 = vmatmul.f32.gmra.mxu0 %v1986
      %v2098 = vpop.f32.mrf.mxu0
      %v2099 = vadd.f32 %v1926, %v2098
      %2100 = vmatmul.f32.gmra.mxu0 %v1989
      %v2101 = vpop.f32.mrf.mxu0
      %v2102 = vadd.f32 %v1926, %v2101
      %2103 = vmatmul.f32.gmra.mxu0 %v1992
      %v2104 = vpop.f32.mrf.mxu0
      %v2105 = vadd.f32 %v1926, %v2104
      %2106 = vmatmul.f32.gmra.mxu0 %v1995
      %v2107 = vpop.f32.mrf.mxu0
      %v2108 = vadd.f32 %v1926, %v2107
      %2109 = vmatmul.f32.gmra.mxu0 %v1998
      %v2110 = vpop.f32.mrf.mxu0
      %v2111 = vadd.f32 %v1926, %v2110
      %2112 = vmatmul.f32.gmra.mxu0 %v2001
      %v2113 = vpop.f32.mrf.mxu0
      %v2114 = vadd.f32 %v1926, %v2113
      %2115 = vmatmul.f32.gmra.mxu0 %v2004
      %v2116 = vpop.f32.mrf.mxu0
      %v2117 = vadd.f32 %v1926, %v2116
      %2118 = vmatmul.f32.gmra.mxu0 %v2007
      %v2119 = vpop.f32.mrf.mxu0
      %v2120 = vadd.f32 %v1926, %v2119
      %2121 = vmatmul.f32.gmra.mxu0 %v2010
      %v2122 = vpop.f32.mrf.mxu0
      %v2123 = vadd.f32 %v1926, %v2122
      %2124 = vmatmul.f32.gmra.mxu0 %v2013
      %v2125 = vpop.f32.mrf.mxu0
      %v2126 = vadd.f32 %v1926, %v2125
      %2127 = vmatmul.f32.gmra.mxu0 %v2016
      %v2128 = vpop.f32.mrf.mxu0
      %v2129 = vadd.f32 %v1926, %v2128
      %2130 = vmatmul.f32.gmra.mxu0 %v2019
      %v2131 = vpop.f32.mrf.mxu0
      %v2132 = vadd.f32 %v1926, %v2131
      %2133 = vmatmul.f32.gmra.mxu0 %v2022
      %v2134 = vpop.f32.mrf.mxu0
      %v2135 = vadd.f32 %v1926, %v2134
      %2136 = vdwg.mxu0
      %s2137 = scalar_lea.vmem [#allocation3], 24
      %2138 = vst.msk [vmem:[%s2137 + $0x1] sm:$0xff] %vm434, %v2042
      %2139 = vst.msk [vmem:[%s2137 + $0x9] sm:$0xff] %vm434, %v2045
      %2140 = vst.msk [vmem:[%s2137 + $0x19] sm:$0xff] %vm434, %v2048
      %2141 = vst.msk [vmem:[%s2137 + $0x21] sm:$0xff] %vm434, %v2051
      %2142 = vst.msk [vmem:[%s2137 + $0x31] sm:$0xff] %vm434, %v2054
      %2143 = vst.msk [vmem:[%s2137 + $0x39] sm:$0xff] %vm434, %v2057
      %2144 = vst.msk [vmem:[%s2137 + $0x49] sm:$0xff] %vm434, %v2060
      %2145 = vst.msk [vmem:[%s2137 + $0x51] sm:$0xff] %vm434, %v2063
      %2146 = vst.msk [vmem:[%s2137 + $0x61] sm:$0xff] %vm434, %v2066
      %2147 = vst.msk [vmem:[%s2137 + $0x69] sm:$0xff] %vm434, %v2069
      %2148 = vst.msk [vmem:[%s2137 + $0x79] sm:$0xff] %vm434, %v2072
      %2149 = vst.msk [vmem:[%s2137 + $0x81] sm:$0xff] %vm434, %v2075
      %2150 = vst.msk [vmem:[%s2137 + $0x91] sm:$0xff] %vm434, %v2078
      %2151 = vst.msk [vmem:[%s2137 + $0x99] sm:$0xff] %vm434, %v2081
      %2152 = vst.msk [vmem:[%s2137 + $0xa9] sm:$0xff] %vm434, %v2084
      %2153 = vst.msk [vmem:[%s2137 + $0xb1] sm:$0xff] %vm434, %v2087
      %2154 = vst.msk [vmem:[%s2137 + $0xc1] sm:$0xff] %vm434, %v2090
      %2155 = vst.msk [vmem:[%s2137 + $0xc9] sm:$0xff] %vm434, %v2093
      %2156 = vst.msk [vmem:[%s2137 + $0xd9] sm:$0xff] %vm434, %v2096
      %2157 = vst.msk [vmem:[%s2137 + $0xe1] sm:$0xff] %vm434, %v2099
      %2158 = vst.msk [vmem:[%s2137 + $0xf1] sm:$0xff] %vm434, %v2102
      %2159 = vst.msk [vmem:[%s2137 + $0xf9] sm:$0xff] %vm434, %v2105
      %2160 = vst.msk [vmem:[%s2137 + $0x109] sm:$0xff] %vm434, %v2108
      %2161 = vst.msk [vmem:[%s2137 + $0x111] sm:$0xff] %vm434, %v2111
      %2162 = vst.msk [vmem:[%s2137 + $0x121] sm:$0xff] %vm434, %v2114
      %2163 = vst.msk [vmem:[%s2137 + $0x129] sm:$0xff] %vm434, %v2117
      %2164 = vst.msk [vmem:[%s2137 + $0x139] sm:$0xff] %vm434, %v2120
      %2165 = vst.msk [vmem:[%s2137 + $0x141] sm:$0xff] %vm434, %v2123
      %2166 = vst.msk [vmem:[%s2137 + $0x151] sm:$0xff] %vm434, %v2126
      %2167 = vst.msk [vmem:[%s2137 + $0x159] sm:$0xff] %vm434, %v2129
      %2168 = vst.msk [vmem:[%s2137 + $0x169] sm:$0xff] %vm434, %v2132
      %2169 = vst.msk [vmem:[%s2137 + $0x171] sm:$0xff] %vm434, %v2135
      %v2170 = vld [vmem:[#allocation2] sm:$0xff]
      %v2171 = vld [vmem:[#allocation2 + $0x8] sm:$0xff]
      %v2172 = vld [vmem:[#allocation2 + $0x18] sm:$0xff]
      %v2173 = vld [vmem:[#allocation2 + $0x20] sm:$0xff]
      %v2174 = vld [vmem:[#allocation2 + $0x30] sm:$0xff]
      %v2175 = vld [vmem:[#allocation2 + $0x38] sm:$0xff]
      %v2176 = vld [vmem:[#allocation2 + $0x48] sm:$0xff]
      %v2177 = vld [vmem:[#allocation2 + $0x50] sm:$0xff]
      %v2178 = vld [vmem:[#allocation2 + $0x60] sm:$0xff]
      %v2179 = vld [vmem:[#allocation2 + $0x68] sm:$0xff]
      %v2180 = vld [vmem:[#allocation2 + $0x78] sm:$0xff]
      %v2181 = vld [vmem:[#allocation2 + $0x80] sm:$0xff]
      %v2182 = vld [vmem:[#allocation2 + $0x90] sm:$0xff]
      %v2183 = vld [vmem:[#allocation2 + $0x98] sm:$0xff]
      %v2184 = vld [vmem:[#allocation2 + $0xa8] sm:$0xff]
      %v2185 = vld [vmem:[#allocation2 + $0xb0] sm:$0xff]
      %v2186 = vld [vmem:[#allocation2 + $0xc0] sm:$0xff]
      %v2187 = vld [vmem:[#allocation2 + $0xc8] sm:$0xff]
      %v2188 = vld [vmem:[#allocation2 + $0xd8] sm:$0xff]
      %v2189 = vld [vmem:[#allocation2 + $0xe0] sm:$0xff]
      %v2190 = vld [vmem:[#allocation2 + $0xf0] sm:$0xff]
      %v2191 = vld [vmem:[#allocation2 + $0xf8] sm:$0xff]
      %v2192 = vld [vmem:[#allocation2 + $0x108] sm:$0xff]
      %v2193 = vld [vmem:[#allocation2 + $0x110] sm:$0xff]
      %v2194 = vld [vmem:[#allocation2 + $0x120] sm:$0xff]
      %v2195 = vld [vmem:[#allocation2 + $0x128] sm:$0xff]
      %v2196 = vld [vmem:[#allocation2 + $0x138] sm:$0xff]
      %v2197 = vld [vmem:[#allocation2 + $0x140] sm:$0xff]
      %v2198 = vld [vmem:[#allocation2 + $0x150] sm:$0xff]
      %v2199 = vld [vmem:[#allocation2 + $0x158] sm:$0xff]
      %v2200 = vld [vmem:[#allocation2 + $0x168] sm:$0xff]
      %v2201 = vld [vmem:[#allocation2 + $0x170] sm:$0xff]
      %v2202 = vld [vmem:[#allocation2 + $0x1] sm:$0xff]
      %v2203 = vld [vmem:[#allocation2 + $0x9] sm:$0xff]
      %v2204 = vld [vmem:[#allocation2 + $0x19] sm:$0xff]
      %v2205 = vld [vmem:[#allocation2 + $0x21] sm:$0xff]
      %v2206 = vld [vmem:[#allocation2 + $0x31] sm:$0xff]
      %v2207 = vld [vmem:[#allocation2 + $0x39] sm:$0xff]
      %v2208 = vld [vmem:[#allocation2 + $0x49] sm:$0xff]
      %v2209 = vld [vmem:[#allocation2 + $0x51] sm:$0xff]
      %v2210 = vld [vmem:[#allocation2 + $0x61] sm:$0xff]
      %v2211 = vld [vmem:[#allocation2 + $0x69] sm:$0xff]
      %v2212 = vld [vmem:[#allocation2 + $0x79] sm:$0xff]
      %v2213 = vld [vmem:[#allocation2 + $0x81] sm:$0xff]
      %v2214 = vld [vmem:[#allocation2 + $0x91] sm:$0xff]
      %v2215 = vld [vmem:[#allocation2 + $0x99] sm:$0xff]
      %v2216 = vld [vmem:[#allocation2 + $0xa9] sm:$0xff]
      %v2217 = vld [vmem:[#allocation2 + $0xb1] sm:$0xff]
      %v2218 = vld [vmem:[#allocation2 + $0xc1] sm:$0xff]
      %v2219 = vld [vmem:[#allocation2 + $0xc9] sm:$0xff]
      %v2220 = vld [vmem:[#allocation2 + $0xd9] sm:$0xff]
      %v2221 = vld [vmem:[#allocation2 + $0xe1] sm:$0xff]
      %v2222 = vld [vmem:[#allocation2 + $0xf1] sm:$0xff]
      %v2223 = vld [vmem:[#allocation2 + $0xf9] sm:$0xff]
      %v2224 = vld [vmem:[#allocation2 + $0x109] sm:$0xff]
      %v2225 = vld [vmem:[#allocation2 + $0x111] sm:$0xff]
      %v2226 = vld [vmem:[#allocation2 + $0x121] sm:$0xff]
      %v2227 = vld [vmem:[#allocation2 + $0x129] sm:$0xff]
      %v2228 = vld [vmem:[#allocation2 + $0x139] sm:$0xff]
      %v2229 = vld [vmem:[#allocation2 + $0x141] sm:$0xff]
      %v2230 = vld [vmem:[#allocation2 + $0x151] sm:$0xff]
      %v2231 = vld [vmem:[#allocation2 + $0x159] sm:$0xff]
      %v2232 = vld [vmem:[#allocation2 + $0x169] sm:$0xff]
      %v2233 = vld [vmem:[#allocation2 + $0x171] sm:$0xff]
      %v2234 = vld [vmem:[#allocation2 + $0x2] sm:$0xff]
      %v2235 = vld [vmem:[#allocation2 + $0xa] sm:$0xff]
      %v2236 = vld [vmem:[#allocation2 + $0x1a] sm:$0xff]
      %v2237 = vld [vmem:[#allocation2 + $0x22] sm:$0xff]
      %v2238 = vld [vmem:[#allocation2 + $0x32] sm:$0xff]
      %v2239 = vld [vmem:[#allocation2 + $0x3a] sm:$0xff]
      %v2240 = vld [vmem:[#allocation2 + $0x4a] sm:$0xff]
      %v2241 = vld [vmem:[#allocation2 + $0x52] sm:$0xff]
      %v2242 = vld [vmem:[#allocation2 + $0x62] sm:$0xff]
      %v2243 = vld [vmem:[#allocation2 + $0x6a] sm:$0xff]
      %v2244 = vld [vmem:[#allocation2 + $0x7a] sm:$0xff]
      %v2245 = vld [vmem:[#allocation2 + $0x82] sm:$0xff]
      %v2246 = vld [vmem:[#allocation2 + $0x92] sm:$0xff]
      %v2247 = vld [vmem:[#allocation2 + $0x9a] sm:$0xff]
      %v2248 = vld [vmem:[#allocation2 + $0xaa] sm:$0xff]
      %v2249 = vld [vmem:[#allocation2 + $0xb2] sm:$0xff]
      %v2250 = vld [vmem:[#allocation2 + $0xc2] sm:$0xff]
      %v2251 = vld [vmem:[#allocation2 + $0xca] sm:$0xff]
      %v2252 = vld [vmem:[#allocation2 + $0xda] sm:$0xff]
      %v2253 = vld [vmem:[#allocation2 + $0xe2] sm:$0xff]
      %v2254 = vld [vmem:[#allocation2 + $0xf2] sm:$0xff]
      %v2255 = vld [vmem:[#allocation2 + $0xfa] sm:$0xff]
      %v2256 = vld [vmem:[#allocation2 + $0x10a] sm:$0xff]
      %v2257 = vld [vmem:[#allocation2 + $0x112] sm:$0xff]
      %v2258 = vld [vmem:[#allocation2 + $0x122] sm:$0xff]
      %v2259 = vld [vmem:[#allocation2 + $0x12a] sm:$0xff]
      %v2260 = vld [vmem:[#allocation2 + $0x13a] sm:$0xff]
      %v2261 = vld [vmem:[#allocation2 + $0x142] sm:$0xff]
      %v2262 = vld [vmem:[#allocation2 + $0x152] sm:$0xff]
      %v2263 = vld [vmem:[#allocation2 + $0x15a] sm:$0xff]
      %v2264 = vld [vmem:[#allocation2 + $0x16a] sm:$0xff]
      %v2265 = vld [vmem:[#allocation2 + $0x172] sm:$0xff]
      %v2266 = vld [vmem:[%s1858] sm:$0xff]
      %v2267 = vld [vmem:[%s1858 + $0x8] sm:$0xff]
      %v2268 = vld [vmem:[%s1858 + $0x18] sm:$0xff]
      %v2269 = vld [vmem:[%s1858 + $0x20] sm:$0xff]
      %v2270 = vld [vmem:[%s1858 + $0x30] sm:$0xff]
      %v2271 = vld [vmem:[%s1858 + $0x38] sm:$0xff]
      %v2272 = vld [vmem:[%s1858 + $0x48] sm:$0xff]
      %v2273 = vld [vmem:[%s1858 + $0x50] sm:$0xff]
      %v2274 = vld [vmem:[%s1858 + $0x60] sm:$0xff]
      %v2275 = vld [vmem:[%s1858 + $0x68] sm:$0xff]
      %v2276 = vld [vmem:[%s1858 + $0x78] sm:$0xff]
      %v2277 = vld [vmem:[%s1858 + $0x80] sm:$0xff]
      %v2278 = vld [vmem:[%s1858 + $0x90] sm:$0xff]
      %v2279 = vld [vmem:[%s1858 + $0x98] sm:$0xff]
      %v2280 = vld [vmem:[%s1858 + $0xa8] sm:$0xff]
      %v2281 = vld [vmem:[%s1858 + $0xb0] sm:$0xff]
      %v2282 = vld [vmem:[%s1858 + $0xc0] sm:$0xff]
      %v2283 = vld [vmem:[%s1858 + $0xc8] sm:$0xff]
      %v2284 = vld [vmem:[%s1858 + $0xd8] sm:$0xff]
      %v2285 = vld [vmem:[%s1858 + $0xe0] sm:$0xff]
      %v2286 = vld [vmem:[%s1858 + $0xf0] sm:$0xff]
      %v2287 = vld [vmem:[%s1858 + $0xf8] sm:$0xff]
      %v2288 = vld [vmem:[%s1858 + $0x108] sm:$0xff]
      %v2289 = vld [vmem:[%s1858 + $0x110] sm:$0xff]
      %v2290 = vld [vmem:[%s1858 + $0x120] sm:$0xff]
      %v2291 = vld [vmem:[%s1858 + $0x128] sm:$0xff]
      %v2292 = vld [vmem:[%s1858 + $0x138] sm:$0xff]
      %v2293 = vld [vmem:[%s1858 + $0x140] sm:$0xff]
      %v2294 = vld [vmem:[%s1858 + $0x150] sm:$0xff]
      %v2295 = vld [vmem:[%s1858 + $0x158] sm:$0xff]
      %v2296 = vld [vmem:[%s1858 + $0x168] sm:$0xff]
      %v2297 = vld [vmem:[%s1858 + $0x170] sm:$0xff]
      %v2298 = vld [vmem:[%s1858 + $0x1] sm:$0xff]
      %v2299 = vld [vmem:[%s1858 + $0x9] sm:$0xff]
      %v2300 = vld [vmem:[%s1858 + $0x19] sm:$0xff]
      %v2301 = vld [vmem:[%s1858 + $0x21] sm:$0xff]
      %v2302 = vld [vmem:[%s1858 + $0x31] sm:$0xff]
      %v2303 = vld [vmem:[%s1858 + $0x39] sm:$0xff]
      %v2304 = vld [vmem:[%s1858 + $0x49] sm:$0xff]
      %v2305 = vld [vmem:[%s1858 + $0x51] sm:$0xff]
      %v2306 = vld [vmem:[%s1858 + $0x61] sm:$0xff]
      %v2307 = vld [vmem:[%s1858 + $0x69] sm:$0xff]
      %v2308 = vld [vmem:[%s1858 + $0x79] sm:$0xff]
      %v2309 = vld [vmem:[%s1858 + $0x81] sm:$0xff]
      %v2310 = vld [vmem:[%s1858 + $0x91] sm:$0xff]
      %v2311 = vld [vmem:[%s1858 + $0x99] sm:$0xff]
      %v2312 = vld [vmem:[%s1858 + $0xa9] sm:$0xff]
      %v2313 = vld [vmem:[%s1858 + $0xb1] sm:$0xff]
      %v2314 = vld [vmem:[%s1858 + $0xc1] sm:$0xff]
      %v2315 = vld [vmem:[%s1858 + $0xc9] sm:$0xff]
      %v2316 = vld [vmem:[%s1858 + $0xd9] sm:$0xff]
      %v2317 = vld [vmem:[%s1858 + $0xe1] sm:$0xff]
      %v2318 = vld [vmem:[%s1858 + $0xf1] sm:$0xff]
      %v2319 = vld [vmem:[%s1858 + $0xf9] sm:$0xff]
      %v2320 = vld [vmem:[%s1858 + $0x109] sm:$0xff]
      %v2321 = vld [vmem:[%s1858 + $0x111] sm:$0xff]
      %v2322 = vld [vmem:[%s1858 + $0x121] sm:$0xff]
      %v2323 = vld [vmem:[%s1858 + $0x129] sm:$0xff]
      %v2324 = vld [vmem:[%s1858 + $0x139] sm:$0xff]
      %v2325 = vld [vmem:[%s1858 + $0x141] sm:$0xff]
      %v2326 = vld [vmem:[%s1858 + $0x151] sm:$0xff]
      %v2327 = vld [vmem:[%s1858 + $0x159] sm:$0xff]
      %v2328 = vld [vmem:[%s1858 + $0x169] sm:$0xff]
      %v2329 = vld [vmem:[%s1858 + $0x171] sm:$0xff]
      %v2330 = vld [vmem:[%s1858 + $0x2] sm:$0xff]
      %v2331 = vld [vmem:[%s1858 + $0xa] sm:$0xff]
      %v2332 = vld [vmem:[%s1858 + $0x1a] sm:$0xff]
      %v2333 = vld [vmem:[%s1858 + $0x22] sm:$0xff]
      %v2334 = vld [vmem:[%s1858 + $0x32] sm:$0xff]
      %v2335 = vld [vmem:[%s1858 + $0x3a] sm:$0xff]
      %v2336 = vld [vmem:[%s1858 + $0x4a] sm:$0xff]
      %v2337 = vld [vmem:[%s1858 + $0x52] sm:$0xff]
      %v2338 = vld [vmem:[%s1858 + $0x62] sm:$0xff]
      %v2339 = vld [vmem:[%s1858 + $0x6a] sm:$0xff]
      %v2340 = vld [vmem:[%s1858 + $0x7a] sm:$0xff]
      %v2341 = vld [vmem:[%s1858 + $0x82] sm:$0xff]
      %v2342 = vld [vmem:[%s1858 + $0x92] sm:$0xff]
      %v2343 = vld [vmem:[%s1858 + $0x9a] sm:$0xff]
      %v2344 = vld [vmem:[%s1858 + $0xaa] sm:$0xff]
      %v2345 = vld [vmem:[%s1858 + $0xb2] sm:$0xff]
      %v2346 = vld [vmem:[%s1858 + $0xc2] sm:$0xff]
      %v2347 = vld [vmem:[%s1858 + $0xca] sm:$0xff]
      %v2348 = vld [vmem:[%s1858 + $0xda] sm:$0xff]
      %v2349 = vld [vmem:[%s1858 + $0xe2] sm:$0xff]
      %v2350 = vld [vmem:[%s1858 + $0xf2] sm:$0xff]
      %v2351 = vld [vmem:[%s1858 + $0xfa] sm:$0xff]
      %v2352 = vld [vmem:[%s1858 + $0x10a] sm:$0xff]
      %v2353 = vld [vmem:[%s1858 + $0x112] sm:$0xff]
      %v2354 = vld [vmem:[%s1858 + $0x122] sm:$0xff]
      %v2355 = vld [vmem:[%s1858 + $0x12a] sm:$0xff]
      %v2356 = vld [vmem:[%s1858 + $0x13a] sm:$0xff]
      %v2357 = vld [vmem:[%s1858 + $0x142] sm:$0xff]
      %v2358 = vld [vmem:[%s1858 + $0x152] sm:$0xff]
      %v2359 = vld [vmem:[%s1858 + $0x15a] sm:$0xff]
      %v2360 = vld [vmem:[%s1858 + $0x16a] sm:$0xff]
      %v2361 = vld [vmem:[%s1858 + $0x172] sm:$0xff]
      %s2362 = scalar_lea.vmem [#allocation2], 48
      %v2363 = vld [vmem:[%s2362] sm:$0xff]
      %v2364 = vld [vmem:[%s2362 + $0x8] sm:$0xff]
      %v2365 = vld [vmem:[%s2362 + $0x18] sm:$0xff]
      %v2366 = vld [vmem:[%s2362 + $0x20] sm:$0xff]
      %v2367 = vld [vmem:[%s2362 + $0x30] sm:$0xff]
      %v2368 = vld [vmem:[%s2362 + $0x38] sm:$0xff]
      %v2369 = vld [vmem:[%s2362 + $0x48] sm:$0xff]
      %v2370 = vld [vmem:[%s2362 + $0x50] sm:$0xff]
      %v2371 = vld [vmem:[%s2362 + $0x60] sm:$0xff]
      %v2372 = vld [vmem:[%s2362 + $0x68] sm:$0xff]
      %v2373 = vld [vmem:[%s2362 + $0x78] sm:$0xff]
      %v2374 = vld [vmem:[%s2362 + $0x80] sm:$0xff]
      %v2375 = vld [vmem:[%s2362 + $0x90] sm:$0xff]
      %v2376 = vld [vmem:[%s2362 + $0x98] sm:$0xff]
      %v2377 = vld [vmem:[%s2362 + $0xa8] sm:$0xff]
      %v2378 = vld [vmem:[%s2362 + $0xb0] sm:$0xff]
      %v2379 = vld [vmem:[%s2362 + $0xc0] sm:$0xff]
      %v2380 = vld [vmem:[%s2362 + $0xc8] sm:$0xff]
      %v2381 = vld [vmem:[%s2362 + $0xd8] sm:$0xff]
      %v2382 = vld [vmem:[%s2362 + $0xe0] sm:$0xff]
      %v2383 = vld [vmem:[%s2362 + $0xf0] sm:$0xff]
      %v2384 = vld [vmem:[%s2362 + $0xf8] sm:$0xff]
      %v2385 = vld [vmem:[%s2362 + $0x108] sm:$0xff]
      %v2386 = vld [vmem:[%s2362 + $0x110] sm:$0xff]
      %v2387 = vld [vmem:[%s2362 + $0x120] sm:$0xff]
      %v2388 = vld [vmem:[%s2362 + $0x128] sm:$0xff]
      %v2389 = vld [vmem:[%s2362 + $0x138] sm:$0xff]
      %v2390 = vld [vmem:[%s2362 + $0x140] sm:$0xff]
      %v2391 = vld [vmem:[%s2362 + $0x150] sm:$0xff]
      %v2392 = vld [vmem:[%s2362 + $0x158] sm:$0xff]
      %v2393 = vld [vmem:[%s2362 + $0x168] sm:$0xff]
      %v2394 = vld [vmem:[%s2362 + $0x170] sm:$0xff]
      %v2395 = vld [vmem:[%s2362 + $0x1] sm:$0xff]
      %v2396 = vld [vmem:[%s2362 + $0x9] sm:$0xff]
      %v2397 = vld [vmem:[%s2362 + $0x19] sm:$0xff]
      %v2398 = vld [vmem:[%s2362 + $0x21] sm:$0xff]
      %v2399 = vld [vmem:[%s2362 + $0x31] sm:$0xff]
      %v2400 = vld [vmem:[%s2362 + $0x39] sm:$0xff]
      %v2401 = vld [vmem:[%s2362 + $0x49] sm:$0xff]
      %v2402 = vld [vmem:[%s2362 + $0x51] sm:$0xff]
      %v2403 = vld [vmem:[%s2362 + $0x61] sm:$0xff]
      %v2404 = vld [vmem:[%s2362 + $0x69] sm:$0xff]
      %v2405 = vld [vmem:[%s2362 + $0x79] sm:$0xff]
      %v2406 = vld [vmem:[%s2362 + $0x81] sm:$0xff]
      %v2407 = vld [vmem:[%s2362 + $0x91] sm:$0xff]
      %v2408 = vld [vmem:[%s2362 + $0x99] sm:$0xff]
      %v2409 = vld [vmem:[%s2362 + $0xa9] sm:$0xff]
      %v2410 = vld [vmem:[%s2362 + $0xb1] sm:$0xff]
      %v2411 = vld [vmem:[%s2362 + $0xc1] sm:$0xff]
      %v2412 = vld [vmem:[%s2362 + $0xc9] sm:$0xff]
      %v2413 = vld [vmem:[%s2362 + $0xd9] sm:$0xff]
      %v2414 = vld [vmem:[%s2362 + $0xe1] sm:$0xff]
      %v2415 = vld [vmem:[%s2362 + $0xf1] sm:$0xff]
      %v2416 = vld [vmem:[%s2362 + $0xf9] sm:$0xff]
      %v2417 = vld [vmem:[%s2362 + $0x109] sm:$0xff]
      %v2418 = vld [vmem:[%s2362 + $0x111] sm:$0xff]
      %v2419 = vld [vmem:[%s2362 + $0x121] sm:$0xff]
      %v2420 = vld [vmem:[%s2362 + $0x129] sm:$0xff]
      %v2421 = vld [vmem:[%s2362 + $0x139] sm:$0xff]
      %v2422 = vld [vmem:[%s2362 + $0x141] sm:$0xff]
      %v2423 = vld [vmem:[%s2362 + $0x151] sm:$0xff]
      %v2424 = vld [vmem:[%s2362 + $0x159] sm:$0xff]
      %v2425 = vld [vmem:[%s2362 + $0x169] sm:$0xff]
      %v2426 = vld [vmem:[%s2362 + $0x171] sm:$0xff]
      %v2427 = vld [vmem:[%s2362 + $0x2] sm:$0xff]
      %v2428 = vld [vmem:[%s2362 + $0xa] sm:$0xff]
      %v2429 = vld [vmem:[%s2362 + $0x1a] sm:$0xff]
      %v2430 = vld [vmem:[%s2362 + $0x22] sm:$0xff]
      %v2431 = vld [vmem:[%s2362 + $0x32] sm:$0xff]
      %v2432 = vld [vmem:[%s2362 + $0x3a] sm:$0xff]
      %v2433 = vld [vmem:[%s2362 + $0x4a] sm:$0xff]
      %v2434 = vld [vmem:[%s2362 + $0x52] sm:$0xff]
      %v2435 = vld [vmem:[%s2362 + $0x62] sm:$0xff]
      %v2436 = vld [vmem:[%s2362 + $0x6a] sm:$0xff]
      %v2437 = vld [vmem:[%s2362 + $0x7a] sm:$0xff]
      %v2438 = vld [vmem:[%s2362 + $0x82] sm:$0xff]
      %v2439 = vld [vmem:[%s2362 + $0x92] sm:$0xff]
      %v2440 = vld [vmem:[%s2362 + $0x9a] sm:$0xff]
      %v2441 = vld [vmem:[%s2362 + $0xaa] sm:$0xff]
      %v2442 = vld [vmem:[%s2362 + $0xb2] sm:$0xff]
      %v2443 = vld [vmem:[%s2362 + $0xc2] sm:$0xff]
      %v2444 = vld [vmem:[%s2362 + $0xca] sm:$0xff]
      %v2445 = vld [vmem:[%s2362 + $0xda] sm:$0xff]
      %v2446 = vld [vmem:[%s2362 + $0xe2] sm:$0xff]
      %v2447 = vld [vmem:[%s2362 + $0xf2] sm:$0xff]
      %v2448 = vld [vmem:[%s2362 + $0xfa] sm:$0xff]
      %v2449 = vld [vmem:[%s2362 + $0x10a] sm:$0xff]
      %v2450 = vld [vmem:[%s2362 + $0x112] sm:$0xff]
      %v2451 = vld [vmem:[%s2362 + $0x122] sm:$0xff]
      %v2452 = vld [vmem:[%s2362 + $0x12a] sm:$0xff]
      %v2453 = vld [vmem:[%s2362 + $0x13a] sm:$0xff]
      %v2454 = vld [vmem:[%s2362 + $0x142] sm:$0xff]
      %v2455 = vld [vmem:[%s2362 + $0x152] sm:$0xff]
      %v2456 = vld [vmem:[%s2362 + $0x15a] sm:$0xff]
      %v2457 = vld [vmem:[%s2362 + $0x16a] sm:$0xff]
      %v2458 = vld [vmem:[%s2362 + $0x172] sm:$0xff]
      %2491 = vrot.lane.b32.xlu0 %v2202, 8
      %v2492 = vpop.permute.xlu0 %2491
      %2493 = vrot.lane.b32.xlu0 %v2203, 8
      %v2494 = vpop.permute.xlu0 %2493
      %2495 = vrot.lane.b32.xlu0 %v2204, 8
      %v2496 = vpop.permute.xlu0 %2495
      %2497 = vrot.lane.b32.xlu0 %v2205, 8
      %v2498 = vpop.permute.xlu0 %2497
      %2499 = vrot.lane.b32.xlu0 %v2206, 8
      %v2500 = vpop.permute.xlu0 %2499
      %2501 = vrot.lane.b32.xlu0 %v2207, 8
      %v2502 = vpop.permute.xlu0 %2501
      %2503 = vrot.lane.b32.xlu0 %v2208, 8
      %v2504 = vpop.permute.xlu0 %2503
      %2505 = vrot.lane.b32.xlu0 %v2209, 8
      %v2506 = vpop.permute.xlu0 %2505
      %2507 = vrot.lane.b32.xlu0 %v2210, 8
      %v2508 = vpop.permute.xlu0 %2507
      %2509 = vrot.lane.b32.xlu0 %v2211, 8
      %v2510 = vpop.permute.xlu0 %2509
      %2511 = vrot.lane.b32.xlu0 %v2212, 8
      %v2512 = vpop.permute.xlu0 %2511
      %2513 = vrot.lane.b32.xlu0 %v2213, 8
      %v2514 = vpop.permute.xlu0 %2513
      %2515 = vrot.lane.b32.xlu0 %v2214, 8
      %v2516 = vpop.permute.xlu0 %2515
      %2517 = vrot.lane.b32.xlu0 %v2215, 8
      %v2518 = vpop.permute.xlu0 %2517
      %2519 = vrot.lane.b32.xlu0 %v2216, 8
      %v2520 = vpop.permute.xlu0 %2519
      %2521 = vrot.lane.b32.xlu0 %v2217, 8
      %v2522 = vpop.permute.xlu0 %2521
      %2523 = vrot.lane.b32.xlu0 %v2218, 8
      %v2524 = vpop.permute.xlu0 %2523
      %2525 = vrot.lane.b32.xlu0 %v2219, 8
      %v2526 = vpop.permute.xlu0 %2525
      %2527 = vrot.lane.b32.xlu0 %v2220, 8
      %v2528 = vpop.permute.xlu0 %2527
      %2529 = vrot.lane.b32.xlu0 %v2221, 8
      %v2530 = vpop.permute.xlu0 %2529
      %2531 = vrot.lane.b32.xlu0 %v2222, 8
      %v2532 = vpop.permute.xlu0 %2531
      %2533 = vrot.lane.b32.xlu0 %v2223, 8
      %v2534 = vpop.permute.xlu0 %2533
      %2535 = vrot.lane.b32.xlu0 %v2224, 8
      %v2536 = vpop.permute.xlu0 %2535
      %2537 = vrot.lane.b32.xlu0 %v2225, 8
      %v2538 = vpop.permute.xlu0 %2537
      %2539 = vrot.lane.b32.xlu0 %v2226, 8
      %v2540 = vpop.permute.xlu0 %2539
      %2541 = vrot.lane.b32.xlu0 %v2227, 8
      %v2542 = vpop.permute.xlu0 %2541
      %2543 = vrot.lane.b32.xlu0 %v2228, 8
      %v2544 = vpop.permute.xlu0 %2543
      %2545 = vrot.lane.b32.xlu0 %v2229, 8
      %v2546 = vpop.permute.xlu0 %2545
      %2547 = vrot.lane.b32.xlu0 %v2230, 8
      %v2548 = vpop.permute.xlu0 %2547
      %2549 = vrot.lane.b32.xlu0 %v2231, 8
      %v2550 = vpop.permute.xlu0 %2549
      %2551 = vrot.lane.b32.xlu0 %v2232, 8
      %v2552 = vpop.permute.xlu0 %2551
      %2553 = vrot.lane.b32.xlu0 %v2233, 8
      %v2554 = vpop.permute.xlu0 %2553
      %2619 = vrot.lane.b32.xlu0 %v2234, 16
      %v2620 = vpop.permute.xlu0 %2619
      %2621 = vrot.lane.b32.xlu0 %v2235, 16
      %v2622 = vpop.permute.xlu0 %2621
      %2623 = vrot.lane.b32.xlu0 %v2236, 16
      %v2624 = vpop.permute.xlu0 %2623
      %2625 = vrot.lane.b32.xlu0 %v2237, 16
      %v2626 = vpop.permute.xlu0 %2625
      %2627 = vrot.lane.b32.xlu0 %v2238, 16
      %v2628 = vpop.permute.xlu0 %2627
      %2629 = vrot.lane.b32.xlu0 %v2239, 16
      %v2630 = vpop.permute.xlu0 %2629
      %2631 = vrot.lane.b32.xlu0 %v2240, 16
      %v2632 = vpop.permute.xlu0 %2631
      %2633 = vrot.lane.b32.xlu0 %v2241, 16
      %v2634 = vpop.permute.xlu0 %2633
      %2635 = vrot.lane.b32.xlu0 %v2242, 16
      %v2636 = vpop.permute.xlu0 %2635
      %2637 = vrot.lane.b32.xlu0 %v2243, 16
      %v2638 = vpop.permute.xlu0 %2637
      %2639 = vrot.lane.b32.xlu0 %v2244, 16
      %v2640 = vpop.permute.xlu0 %2639
      %2641 = vrot.lane.b32.xlu0 %v2245, 16
      %v2642 = vpop.permute.xlu0 %2641
      %2643 = vrot.lane.b32.xlu0 %v2246, 16
      %v2644 = vpop.permute.xlu0 %2643
      %2645 = vrot.lane.b32.xlu0 %v2247, 16
      %v2646 = vpop.permute.xlu0 %2645
      %2647 = vrot.lane.b32.xlu0 %v2248, 16
      %v2648 = vpop.permute.xlu0 %2647
      %2649 = vrot.lane.b32.xlu0 %v2249, 16
      %v2650 = vpop.permute.xlu0 %2649
      %2651 = vrot.lane.b32.xlu0 %v2250, 16
      %v2652 = vpop.permute.xlu0 %2651
      %2653 = vrot.lane.b32.xlu0 %v2251, 16
      %v2654 = vpop.permute.xlu0 %2653
      %2655 = vrot.lane.b32.xlu0 %v2252, 16
      %v2656 = vpop.permute.xlu0 %2655
      %2657 = vrot.lane.b32.xlu0 %v2253, 16
      %v2658 = vpop.permute.xlu0 %2657
      %2659 = vrot.lane.b32.xlu0 %v2254, 16
      %v2660 = vpop.permute.xlu0 %2659
      %2661 = vrot.lane.b32.xlu0 %v2255, 16
      %v2662 = vpop.permute.xlu0 %2661
      %2663 = vrot.lane.b32.xlu0 %v2256, 16
      %v2664 = vpop.permute.xlu0 %2663
      %2665 = vrot.lane.b32.xlu0 %v2257, 16
      %v2666 = vpop.permute.xlu0 %2665
      %2667 = vrot.lane.b32.xlu0 %v2258, 16
      %v2668 = vpop.permute.xlu0 %2667
      %2669 = vrot.lane.b32.xlu0 %v2259, 16
      %v2670 = vpop.permute.xlu0 %2669
      %2671 = vrot.lane.b32.xlu0 %v2260, 16
      %v2672 = vpop.permute.xlu0 %2671
      %2673 = vrot.lane.b32.xlu0 %v2261, 16
      %v2674 = vpop.permute.xlu0 %2673
      %2675 = vrot.lane.b32.xlu0 %v2262, 16
      %v2676 = vpop.permute.xlu0 %2675
      %2677 = vrot.lane.b32.xlu0 %v2263, 16
      %v2678 = vpop.permute.xlu0 %2677
      %2679 = vrot.lane.b32.xlu0 %v2264, 16
      %v2680 = vpop.permute.xlu0 %2679
      %2681 = vrot.lane.b32.xlu0 %v2265, 16
      %v2682 = vpop.permute.xlu0 %2681
      %2747 = vrot.lane.b32.xlu0 %v2266, 24
      %v2748 = vpop.permute.xlu0 %2747
      %2749 = vrot.lane.b32.xlu0 %v2267, 24
      %v2750 = vpop.permute.xlu0 %2749
      %2751 = vrot.lane.b32.xlu0 %v2268, 24
      %v2752 = vpop.permute.xlu0 %2751
      %2753 = vrot.lane.b32.xlu0 %v2269, 24
      %v2754 = vpop.permute.xlu0 %2753
      %2755 = vrot.lane.b32.xlu0 %v2270, 24
      %v2756 = vpop.permute.xlu0 %2755
      %2757 = vrot.lane.b32.xlu0 %v2271, 24
      %v2758 = vpop.permute.xlu0 %2757
      %2759 = vrot.lane.b32.xlu0 %v2272, 24
      %v2760 = vpop.permute.xlu0 %2759
      %2761 = vrot.lane.b32.xlu0 %v2273, 24
      %v2762 = vpop.permute.xlu0 %2761
      %2763 = vrot.lane.b32.xlu0 %v2274, 24
      %v2764 = vpop.permute.xlu0 %2763
      %2765 = vrot.lane.b32.xlu0 %v2275, 24
      %v2766 = vpop.permute.xlu0 %2765
      %2767 = vrot.lane.b32.xlu0 %v2276, 24
      %v2768 = vpop.permute.xlu0 %2767
      %2769 = vrot.lane.b32.xlu0 %v2277, 24
      %v2770 = vpop.permute.xlu0 %2769
      %2771 = vrot.lane.b32.xlu0 %v2278, 24
      %v2772 = vpop.permute.xlu0 %2771
      %2773 = vrot.lane.b32.xlu0 %v2279, 24
      %v2774 = vpop.permute.xlu0 %2773
      %2775 = vrot.lane.b32.xlu0 %v2280, 24
      %v2776 = vpop.permute.xlu0 %2775
      %2777 = vrot.lane.b32.xlu0 %v2281, 24
      %v2778 = vpop.permute.xlu0 %2777
      %2779 = vrot.lane.b32.xlu0 %v2282, 24
      %v2780 = vpop.permute.xlu0 %2779
      %2781 = vrot.lane.b32.xlu0 %v2283, 24
      %v2782 = vpop.permute.xlu0 %2781
      %2783 = vrot.lane.b32.xlu0 %v2284, 24
      %v2784 = vpop.permute.xlu0 %2783
      %2785 = vrot.lane.b32.xlu0 %v2285, 24
      %v2786 = vpop.permute.xlu0 %2785
      %2787 = vrot.lane.b32.xlu0 %v2286, 24
      %v2788 = vpop.permute.xlu0 %2787
      %2789 = vrot.lane.b32.xlu0 %v2287, 24
      %v2790 = vpop.permute.xlu0 %2789
      %2791 = vrot.lane.b32.xlu0 %v2288, 24
      %v2792 = vpop.permute.xlu0 %2791
      %2793 = vrot.lane.b32.xlu0 %v2289, 24
      %v2794 = vpop.permute.xlu0 %2793
      %2795 = vrot.lane.b32.xlu0 %v2290, 24
      %v2796 = vpop.permute.xlu0 %2795
      %2797 = vrot.lane.b32.xlu0 %v2291, 24
      %v2798 = vpop.permute.xlu0 %2797
      %2799 = vrot.lane.b32.xlu0 %v2292, 24
      %v2800 = vpop.permute.xlu0 %2799
      %2801 = vrot.lane.b32.xlu0 %v2293, 24
      %v2802 = vpop.permute.xlu0 %2801
      %2803 = vrot.lane.b32.xlu0 %v2294, 24
      %v2804 = vpop.permute.xlu0 %2803
      %2805 = vrot.lane.b32.xlu0 %v2295, 24
      %v2806 = vpop.permute.xlu0 %2805
      %2807 = vrot.lane.b32.xlu0 %v2296, 24
      %v2808 = vpop.permute.xlu0 %2807
      %2809 = vrot.lane.b32.xlu0 %v2297, 24
      %v2810 = vpop.permute.xlu0 %2809
      %2875 = vrot.lane.b32.xlu0 %v2298, 32
      %v2876 = vpop.permute.xlu0 %2875
      %2877 = vrot.lane.b32.xlu0 %v2299, 32
      %v2878 = vpop.permute.xlu0 %2877
      %2879 = vrot.lane.b32.xlu0 %v2300, 32
      %v2880 = vpop.permute.xlu0 %2879
      %2881 = vrot.lane.b32.xlu0 %v2301, 32
      %v2882 = vpop.permute.xlu0 %2881
      %2883 = vrot.lane.b32.xlu0 %v2302, 32
      %v2884 = vpop.permute.xlu0 %2883
      %2885 = vrot.lane.b32.xlu0 %v2303, 32
      %v2886 = vpop.permute.xlu0 %2885
      %2887 = vrot.lane.b32.xlu0 %v2304, 32
      %v2888 = vpop.permute.xlu0 %2887
      %2889 = vrot.lane.b32.xlu0 %v2305, 32
      %v2890 = vpop.permute.xlu0 %2889
      %2891 = vrot.lane.b32.xlu0 %v2306, 32
      %v2892 = vpop.permute.xlu0 %2891
      %2893 = vrot.lane.b32.xlu0 %v2307, 32
      %v2894 = vpop.permute.xlu0 %2893
      %2895 = vrot.lane.b32.xlu0 %v2308, 32
      %v2896 = vpop.permute.xlu0 %2895
      %2897 = vrot.lane.b32.xlu0 %v2309, 32
      %v2898 = vpop.permute.xlu0 %2897
      %2899 = vrot.lane.b32.xlu0 %v2310, 32
      %v2900 = vpop.permute.xlu0 %2899
      %2901 = vrot.lane.b32.xlu0 %v2311, 32
      %v2902 = vpop.permute.xlu0 %2901
      %2903 = vrot.lane.b32.xlu0 %v2312, 32
      %v2904 = vpop.permute.xlu0 %2903
      %2905 = vrot.lane.b32.xlu0 %v2313, 32
      %v2906 = vpop.permute.xlu0 %2905
      %2907 = vrot.lane.b32.xlu0 %v2314, 32
      %v2908 = vpop.permute.xlu0 %2907
      %2909 = vrot.lane.b32.xlu0 %v2315, 32
      %v2910 = vpop.permute.xlu0 %2909
      %2911 = vrot.lane.b32.xlu0 %v2316, 32
      %v2912 = vpop.permute.xlu0 %2911
      %2913 = vrot.lane.b32.xlu0 %v2317, 32
      %v2914 = vpop.permute.xlu0 %2913
      %2915 = vrot.lane.b32.xlu0 %v2318, 32
      %v2916 = vpop.permute.xlu0 %2915
      %2917 = vrot.lane.b32.xlu0 %v2319, 32
      %v2918 = vpop.permute.xlu0 %2917
      %2919 = vrot.lane.b32.xlu0 %v2320, 32
      %v2920 = vpop.permute.xlu0 %2919
      %2921 = vrot.lane.b32.xlu0 %v2321, 32
      %v2922 = vpop.permute.xlu0 %2921
      %2923 = vrot.lane.b32.xlu0 %v2322, 32
      %v2924 = vpop.permute.xlu0 %2923
      %2925 = vrot.lane.b32.xlu0 %v2323, 32
      %v2926 = vpop.permute.xlu0 %2925
      %2927 = vrot.lane.b32.xlu0 %v2324, 32
      %v2928 = vpop.permute.xlu0 %2927
      %2929 = vrot.lane.b32.xlu0 %v2325, 32
      %v2930 = vpop.permute.xlu0 %2929
      %2931 = vrot.lane.b32.xlu0 %v2326, 32
      %v2932 = vpop.permute.xlu0 %2931
      %2933 = vrot.lane.b32.xlu0 %v2327, 32
      %v2934 = vpop.permute.xlu0 %2933
      %2935 = vrot.lane.b32.xlu0 %v2328, 32
      %v2936 = vpop.permute.xlu0 %2935
      %2937 = vrot.lane.b32.xlu0 %v2329, 32
      %v2938 = vpop.permute.xlu0 %2937
      %3003 = vrot.lane.b32.xlu0 %v2330, 40
      %v3004 = vpop.permute.xlu0 %3003
      %3005 = vrot.lane.b32.xlu0 %v2331, 40
      %v3006 = vpop.permute.xlu0 %3005
      %3007 = vrot.lane.b32.xlu0 %v2332, 40
      %v3008 = vpop.permute.xlu0 %3007
      %3009 = vrot.lane.b32.xlu0 %v2333, 40
      %v3010 = vpop.permute.xlu0 %3009
      %3011 = vrot.lane.b32.xlu0 %v2334, 40
      %v3012 = vpop.permute.xlu0 %3011
      %3013 = vrot.lane.b32.xlu0 %v2335, 40
      %v3014 = vpop.permute.xlu0 %3013
      %3015 = vrot.lane.b32.xlu0 %v2336, 40
      %v3016 = vpop.permute.xlu0 %3015
      %3017 = vrot.lane.b32.xlu0 %v2337, 40
      %v3018 = vpop.permute.xlu0 %3017
      %3019 = vrot.lane.b32.xlu0 %v2338, 40
      %v3020 = vpop.permute.xlu0 %3019
      %3021 = vrot.lane.b32.xlu0 %v2339, 40
      %v3022 = vpop.permute.xlu0 %3021
      %3023 = vrot.lane.b32.xlu0 %v2340, 40
      %v3024 = vpop.permute.xlu0 %3023
      %3025 = vrot.lane.b32.xlu0 %v2341, 40
      %v3026 = vpop.permute.xlu0 %3025
      %3027 = vrot.lane.b32.xlu0 %v2342, 40
      %v3028 = vpop.permute.xlu0 %3027
      %3029 = vrot.lane.b32.xlu0 %v2343, 40
      %v3030 = vpop.permute.xlu0 %3029
      %3031 = vrot.lane.b32.xlu0 %v2344, 40
      %v3032 = vpop.permute.xlu0 %3031
      %3033 = vrot.lane.b32.xlu0 %v2345, 40
      %v3034 = vpop.permute.xlu0 %3033
      %3035 = vrot.lane.b32.xlu0 %v2346, 40
      %v3036 = vpop.permute.xlu0 %3035
      %3037 = vrot.lane.b32.xlu0 %v2347, 40
      %v3038 = vpop.permute.xlu0 %3037
      %3039 = vrot.lane.b32.xlu0 %v2348, 40
      %v3040 = vpop.permute.xlu0 %3039
      %3041 = vrot.lane.b32.xlu0 %v2349, 40
      %v3042 = vpop.permute.xlu0 %3041
      %3043 = vrot.lane.b32.xlu0 %v2350, 40
      %v3044 = vpop.permute.xlu0 %3043
      %3045 = vrot.lane.b32.xlu0 %v2351, 40
      %v3046 = vpop.permute.xlu0 %3045
      %3047 = vrot.lane.b32.xlu0 %v2352, 40
      %v3048 = vpop.permute.xlu0 %3047
      %3049 = vrot.lane.b32.xlu0 %v2353, 40
      %v3050 = vpop.permute.xlu0 %3049
      %3051 = vrot.lane.b32.xlu0 %v2354, 40
      %v3052 = vpop.permute.xlu0 %3051
      %3053 = vrot.lane.b32.xlu0 %v2355, 40
      %v3054 = vpop.permute.xlu0 %3053
      %3055 = vrot.lane.b32.xlu0 %v2356, 40
      %v3056 = vpop.permute.xlu0 %3055
      %3057 = vrot.lane.b32.xlu0 %v2357, 40
      %v3058 = vpop.permute.xlu0 %3057
      %3059 = vrot.lane.b32.xlu0 %v2358, 40
      %v3060 = vpop.permute.xlu0 %3059
      %3061 = vrot.lane.b32.xlu0 %v2359, 40
      %v3062 = vpop.permute.xlu0 %3061
      %3063 = vrot.lane.b32.xlu0 %v2360, 40
      %v3064 = vpop.permute.xlu0 %3063
      %3065 = vrot.lane.b32.xlu0 %v2361, 40
      %v3066 = vpop.permute.xlu0 %3065
      %3131 = vrot.lane.b32.xlu0 %v2363, 48
      %v3132 = vpop.permute.xlu0 %3131
      %3133 = vrot.lane.b32.xlu0 %v2364, 48
      %v3134 = vpop.permute.xlu0 %3133
      %3135 = vrot.lane.b32.xlu0 %v2365, 48
      %v3136 = vpop.permute.xlu0 %3135
      %3137 = vrot.lane.b32.xlu0 %v2366, 48
      %v3138 = vpop.permute.xlu0 %3137
      %3139 = vrot.lane.b32.xlu0 %v2367, 48
      %v3140 = vpop.permute.xlu0 %3139
      %3141 = vrot.lane.b32.xlu0 %v2368, 48
      %v3142 = vpop.permute.xlu0 %3141
      %3143 = vrot.lane.b32.xlu0 %v2369, 48
      %v3144 = vpop.permute.xlu0 %3143
      %3145 = vrot.lane.b32.xlu0 %v2370, 48
      %v3146 = vpop.permute.xlu0 %3145
      %3147 = vrot.lane.b32.xlu0 %v2371, 48
      %v3148 = vpop.permute.xlu0 %3147
      %3149 = vrot.lane.b32.xlu0 %v2372, 48
      %v3150 = vpop.permute.xlu0 %3149
      %3151 = vrot.lane.b32.xlu0 %v2373, 48
      %v3152 = vpop.permute.xlu0 %3151
      %3153 = vrot.lane.b32.xlu0 %v2374, 48
      %v3154 = vpop.permute.xlu0 %3153
      %3155 = vrot.lane.b32.xlu0 %v2375, 48
      %v3156 = vpop.permute.xlu0 %3155
      %3157 = vrot.lane.b32.xlu0 %v2376, 48
      %v3158 = vpop.permute.xlu0 %3157
      %3159 = vrot.lane.b32.xlu0 %v2377, 48
      %v3160 = vpop.permute.xlu0 %3159
      %3161 = vrot.lane.b32.xlu0 %v2378, 48
      %v3162 = vpop.permute.xlu0 %3161
      %3163 = vrot.lane.b32.xlu0 %v2379, 48
      %v3164 = vpop.permute.xlu0 %3163
      %3165 = vrot.lane.b32.xlu0 %v2380, 48
      %v3166 = vpop.permute.xlu0 %3165
      %3167 = vrot.lane.b32.xlu0 %v2381, 48
      %v3168 = vpop.permute.xlu0 %3167
      %3169 = vrot.lane.b32.xlu0 %v2382, 48
      %v3170 = vpop.permute.xlu0 %3169
      %3171 = vrot.lane.b32.xlu0 %v2383, 48
      %v3172 = vpop.permute.xlu0 %3171
      %3173 = vrot.lane.b32.xlu0 %v2384, 48
      %v3174 = vpop.permute.xlu0 %3173
      %3175 = vrot.lane.b32.xlu0 %v2385, 48
      %v3176 = vpop.permute.xlu0 %3175
      %3177 = vrot.lane.b32.xlu0 %v2386, 48
      %v3178 = vpop.permute.xlu0 %3177
      %3179 = vrot.lane.b32.xlu0 %v2387, 48
      %v3180 = vpop.permute.xlu0 %3179
      %3181 = vrot.lane.b32.xlu0 %v2388, 48
      %v3182 = vpop.permute.xlu0 %3181
      %3183 = vrot.lane.b32.xlu0 %v2389, 48
      %v3184 = vpop.permute.xlu0 %3183
      %3185 = vrot.lane.b32.xlu0 %v2390, 48
      %v3186 = vpop.permute.xlu0 %3185
      %3187 = vrot.lane.b32.xlu0 %v2391, 48
      %v3188 = vpop.permute.xlu0 %3187
      %3189 = vrot.lane.b32.xlu0 %v2392, 48
      %v3190 = vpop.permute.xlu0 %3189
      %3191 = vrot.lane.b32.xlu0 %v2393, 48
      %v3192 = vpop.permute.xlu0 %3191
      %3193 = vrot.lane.b32.xlu0 %v2394, 48
      %v3194 = vpop.permute.xlu0 %3193
      %3259 = vrot.lane.b32.xlu0 %v2395, 56
      %v3260 = vpop.permute.xlu0 %3259
      %3261 = vrot.lane.b32.xlu0 %v2396, 56
      %v3262 = vpop.permute.xlu0 %3261
      %3263 = vrot.lane.b32.xlu0 %v2397, 56
      %v3264 = vpop.permute.xlu0 %3263
      %3265 = vrot.lane.b32.xlu0 %v2398, 56
      %v3266 = vpop.permute.xlu0 %3265
      %3267 = vrot.lane.b32.xlu0 %v2399, 56
      %v3268 = vpop.permute.xlu0 %3267
      %3269 = vrot.lane.b32.xlu0 %v2400, 56
      %v3270 = vpop.permute.xlu0 %3269
      %3271 = vrot.lane.b32.xlu0 %v2401, 56
      %v3272 = vpop.permute.xlu0 %3271
      %3273 = vrot.lane.b32.xlu0 %v2402, 56
      %v3274 = vpop.permute.xlu0 %3273
      %3275 = vrot.lane.b32.xlu0 %v2403, 56
      %v3276 = vpop.permute.xlu0 %3275
      %3277 = vrot.lane.b32.xlu0 %v2404, 56
      %v3278 = vpop.permute.xlu0 %3277
      %3279 = vrot.lane.b32.xlu0 %v2405, 56
      %v3280 = vpop.permute.xlu0 %3279
      %3281 = vrot.lane.b32.xlu0 %v2406, 56
      %v3282 = vpop.permute.xlu0 %3281
      %3283 = vrot.lane.b32.xlu0 %v2407, 56
      %v3284 = vpop.permute.xlu0 %3283
      %3285 = vrot.lane.b32.xlu0 %v2408, 56
      %v3286 = vpop.permute.xlu0 %3285
      %3287 = vrot.lane.b32.xlu0 %v2409, 56
      %v3288 = vpop.permute.xlu0 %3287
      %3289 = vrot.lane.b32.xlu0 %v2410, 56
      %v3290 = vpop.permute.xlu0 %3289
      %3291 = vrot.lane.b32.xlu0 %v2411, 56
      %v3292 = vpop.permute.xlu0 %3291
      %3293 = vrot.lane.b32.xlu0 %v2412, 56
      %v3294 = vpop.permute.xlu0 %3293
      %3295 = vrot.lane.b32.xlu0 %v2413, 56
      %v3296 = vpop.permute.xlu0 %3295
      %3297 = vrot.lane.b32.xlu0 %v2414, 56
      %v3298 = vpop.permute.xlu0 %3297
      %3299 = vrot.lane.b32.xlu0 %v2415, 56
      %v3300 = vpop.permute.xlu0 %3299
      %3301 = vrot.lane.b32.xlu0 %v2416, 56
      %v3302 = vpop.permute.xlu0 %3301
      %3303 = vrot.lane.b32.xlu0 %v2417, 56
      %v3304 = vpop.permute.xlu0 %3303
      %3305 = vrot.lane.b32.xlu0 %v2418, 56
      %v3306 = vpop.permute.xlu0 %3305
      %3307 = vrot.lane.b32.xlu0 %v2419, 56
      %v3308 = vpop.permute.xlu0 %3307
      %3309 = vrot.lane.b32.xlu0 %v2420, 56
      %v3310 = vpop.permute.xlu0 %3309
      %3311 = vrot.lane.b32.xlu0 %v2421, 56
      %v3312 = vpop.permute.xlu0 %3311
      %3313 = vrot.lane.b32.xlu0 %v2422, 56
      %v3314 = vpop.permute.xlu0 %3313
      %3315 = vrot.lane.b32.xlu0 %v2423, 56
      %v3316 = vpop.permute.xlu0 %3315
      %3317 = vrot.lane.b32.xlu0 %v2424, 56
      %v3318 = vpop.permute.xlu0 %3317
      %3319 = vrot.lane.b32.xlu0 %v2425, 56
      %v3320 = vpop.permute.xlu0 %3319
      %3321 = vrot.lane.b32.xlu0 %v2426, 56
      %v3322 = vpop.permute.xlu0 %3321
      %3387 = vrot.lane.b32.xlu0 %v2427, 64
      %v3388 = vpop.permute.xlu0 %3387
      %3389 = vrot.lane.b32.xlu0 %v2428, 64
      %v3390 = vpop.permute.xlu0 %3389
      %3391 = vrot.lane.b32.xlu0 %v2429, 64
      %v3392 = vpop.permute.xlu0 %3391
      %3393 = vrot.lane.b32.xlu0 %v2430, 64
      %v3394 = vpop.permute.xlu0 %3393
      %3395 = vrot.lane.b32.xlu0 %v2431, 64
      %v3396 = vpop.permute.xlu0 %3395
      %3397 = vrot.lane.b32.xlu0 %v2432, 64
      %v3398 = vpop.permute.xlu0 %3397
      %3399 = vrot.lane.b32.xlu0 %v2433, 64
      %v3400 = vpop.permute.xlu0 %3399
      %3401 = vrot.lane.b32.xlu0 %v2434, 64
      %v3402 = vpop.permute.xlu0 %3401
      %3403 = vrot.lane.b32.xlu0 %v2435, 64
      %v3404 = vpop.permute.xlu0 %3403
      %3405 = vrot.lane.b32.xlu0 %v2436, 64
      %v3406 = vpop.permute.xlu0 %3405
      %3407 = vrot.lane.b32.xlu0 %v2437, 64
      %v3408 = vpop.permute.xlu0 %3407
      %3409 = vrot.lane.b32.xlu0 %v2438, 64
      %v3410 = vpop.permute.xlu0 %3409
      %3411 = vrot.lane.b32.xlu0 %v2439, 64
      %v3412 = vpop.permute.xlu0 %3411
      %3413 = vrot.lane.b32.xlu0 %v2440, 64
      %v3414 = vpop.permute.xlu0 %3413
      %3415 = vrot.lane.b32.xlu0 %v2441, 64
      %v3416 = vpop.permute.xlu0 %3415
      %3417 = vrot.lane.b32.xlu0 %v2442, 64
      %v3418 = vpop.permute.xlu0 %3417
      %3419 = vrot.lane.b32.xlu0 %v2443, 64
      %v3420 = vpop.permute.xlu0 %3419
      %3421 = vrot.lane.b32.xlu0 %v2444, 64
      %v3422 = vpop.permute.xlu0 %3421
      %3423 = vrot.lane.b32.xlu0 %v2445, 64
      %v3424 = vpop.permute.xlu0 %3423
      %3425 = vrot.lane.b32.xlu0 %v2446, 64
      %v3426 = vpop.permute.xlu0 %3425
      %3427 = vrot.lane.b32.xlu0 %v2447, 64
      %v3428 = vpop.permute.xlu0 %3427
      %3429 = vrot.lane.b32.xlu0 %v2448, 64
      %v3430 = vpop.permute.xlu0 %3429
      %3431 = vrot.lane.b32.xlu0 %v2449, 64
      %v3432 = vpop.permute.xlu0 %3431
      %3433 = vrot.lane.b32.xlu0 %v2450, 64
      %v3434 = vpop.permute.xlu0 %3433
      %3435 = vrot.lane.b32.xlu0 %v2451, 64
      %v3436 = vpop.permute.xlu0 %3435
      %3437 = vrot.lane.b32.xlu0 %v2452, 64
      %v3438 = vpop.permute.xlu0 %3437
      %3439 = vrot.lane.b32.xlu0 %v2453, 64
      %v3440 = vpop.permute.xlu0 %3439
      %3441 = vrot.lane.b32.xlu0 %v2454, 64
      %v3442 = vpop.permute.xlu0 %3441
      %3443 = vrot.lane.b32.xlu0 %v2455, 64
      %v3444 = vpop.permute.xlu0 %3443
      %3445 = vrot.lane.b32.xlu0 %v2456, 64
      %v3446 = vpop.permute.xlu0 %3445
      %3447 = vrot.lane.b32.xlu0 %v2457, 64
      %v3448 = vpop.permute.xlu0 %3447
      %3449 = vrot.lane.b32.xlu0 %v2458, 64
      %v3450 = vpop.permute.xlu0 %3449
      %v3483 = vsel %vm434, %v2170, %v2492
      %v3484 = vsel %vm434, %v2171, %v2494
      %v3485 = vsel %vm434, %v2172, %v2496
      %v3486 = vsel %vm434, %v2173, %v2498
      %v3487 = vsel %vm434, %v2174, %v2500
      %v3488 = vsel %vm434, %v2175, %v2502
      %v3489 = vsel %vm434, %v2176, %v2504
      %v3490 = vsel %vm434, %v2177, %v2506
      %v3491 = vsel %vm434, %v2178, %v2508
      %v3492 = vsel %vm434, %v2179, %v2510
      %v3493 = vsel %vm434, %v2180, %v2512
      %v3494 = vsel %vm434, %v2181, %v2514
      %v3495 = vsel %vm434, %v2182, %v2516
      %v3496 = vsel %vm434, %v2183, %v2518
      %v3497 = vsel %vm434, %v2184, %v2520
      %v3498 = vsel %vm434, %v2185, %v2522
      %v3499 = vsel %vm434, %v2186, %v2524
      %v3500 = vsel %vm434, %v2187, %v2526
      %v3501 = vsel %vm434, %v2188, %v2528
      %v3502 = vsel %vm434, %v2189, %v2530
      %v3503 = vsel %vm434, %v2190, %v2532
      %v3504 = vsel %vm434, %v2191, %v2534
      %v3505 = vsel %vm434, %v2192, %v2536
      %v3506 = vsel %vm434, %v2193, %v2538
      %v3507 = vsel %vm434, %v2194, %v2540
      %v3508 = vsel %vm434, %v2195, %v2542
      %v3509 = vsel %vm434, %v2196, %v2544
      %v3510 = vsel %vm434, %v2197, %v2546
      %v3511 = vsel %vm434, %v2198, %v2548
      %v3512 = vsel %vm434, %v2199, %v2550
      %v3513 = vsel %vm434, %v2200, %v2552
      %v3514 = vsel %vm434, %v2201, %v2554
      %vm3515 = vcmask 130048
      %v3516 = vsel %vm3515, %v3483, %v2620
      %v3517 = vsel %vm3515, %v3484, %v2622
      %v3518 = vsel %vm3515, %v3485, %v2624
      %v3519 = vsel %vm3515, %v3486, %v2626
      %v3520 = vsel %vm3515, %v3487, %v2628
      %v3521 = vsel %vm3515, %v3488, %v2630
      %v3522 = vsel %vm3515, %v3489, %v2632
      %v3523 = vsel %vm3515, %v3490, %v2634
      %v3524 = vsel %vm3515, %v3491, %v2636
      %v3525 = vsel %vm3515, %v3492, %v2638
      %v3526 = vsel %vm3515, %v3493, %v2640
      %v3527 = vsel %vm3515, %v3494, %v2642
      %v3528 = vsel %vm3515, %v3495, %v2644
      %v3529 = vsel %vm3515, %v3496, %v2646
      %v3530 = vsel %vm3515, %v3497, %v2648
      %v3531 = vsel %vm3515, %v3498, %v2650
      %v3532 = vsel %vm3515, %v3499, %v2652
      %v3533 = vsel %vm3515, %v3500, %v2654
      %v3534 = vsel %vm3515, %v3501, %v2656
      %v3535 = vsel %vm3515, %v3502, %v2658
      %v3536 = vsel %vm3515, %v3503, %v2660
      %v3537 = vsel %vm3515, %v3504, %v2662
      %v3538 = vsel %vm3515, %v3505, %v2664
      %v3539 = vsel %vm3515, %v3506, %v2666
      %v3540 = vsel %vm3515, %v3507, %v2668
      %v3541 = vsel %vm3515, %v3508, %v2670
      %v3542 = vsel %vm3515, %v3509, %v2672
      %v3543 = vsel %vm3515, %v3510, %v2674
      %v3544 = vsel %vm3515, %v3511, %v2676
      %v3545 = vsel %vm3515, %v3512, %v2678
      %v3546 = vsel %vm3515, %v3513, %v2680
      %v3547 = vsel %vm3515, %v3514, %v2682
      %vm3548 = vcmask 195584
      %v3549 = vsel %vm3548, %v3516, %v2748
      %v3550 = vsel %vm3548, %v3517, %v2750
      %v3551 = vsel %vm3548, %v3518, %v2752
      %v3552 = vsel %vm3548, %v3519, %v2754
      %v3553 = vsel %vm3548, %v3520, %v2756
      %v3554 = vsel %vm3548, %v3521, %v2758
      %v3555 = vsel %vm3548, %v3522, %v2760
      %v3556 = vsel %vm3548, %v3523, %v2762
      %v3557 = vsel %vm3548, %v3524, %v2764
      %v3558 = vsel %vm3548, %v3525, %v2766
      %v3559 = vsel %vm3548, %v3526, %v2768
      %v3560 = vsel %vm3548, %v3527, %v2770
      %v3561 = vsel %vm3548, %v3528, %v2772
      %v3562 = vsel %vm3548, %v3529, %v2774
      %v3563 = vsel %vm3548, %v3530, %v2776
      %v3564 = vsel %vm3548, %v3531, %v2778
      %v3565 = vsel %vm3548, %v3532, %v2780
      %v3566 = vsel %vm3548, %v3533, %v2782
      %v3567 = vsel %vm3548, %v3534, %v2784
      %v3568 = vsel %vm3548, %v3535, %v2786
      %v3569 = vsel %vm3548, %v3536, %v2788
      %v3570 = vsel %vm3548, %v3537, %v2790
      %v3571 = vsel %vm3548, %v3538, %v2792
      %v3572 = vsel %vm3548, %v3539, %v2794
      %v3573 = vsel %vm3548, %v3540, %v2796
      %v3574 = vsel %vm3548, %v3541, %v2798
      %v3575 = vsel %vm3548, %v3542, %v2800
      %v3576 = vsel %vm3548, %v3543, %v2802
      %v3577 = vsel %vm3548, %v3544, %v2804
      %v3578 = vsel %vm3548, %v3545, %v2806
      %v3579 = vsel %vm3548, %v3546, %v2808
      %v3580 = vsel %vm3548, %v3547, %v2810
      %vm3581 = vcmask 261120
      %v3582 = vsel %vm3581, %v3549, %v2876
      %v3583 = vsel %vm3581, %v3550, %v2878
      %v3584 = vsel %vm3581, %v3551, %v2880
      %v3585 = vsel %vm3581, %v3552, %v2882
      %v3586 = vsel %vm3581, %v3553, %v2884
      %v3587 = vsel %vm3581, %v3554, %v2886
      %v3588 = vsel %vm3581, %v3555, %v2888
      %v3589 = vsel %vm3581, %v3556, %v2890
      %v3590 = vsel %vm3581, %v3557, %v2892
      %v3591 = vsel %vm3581, %v3558, %v2894
      %v3592 = vsel %vm3581, %v3559, %v2896
      %v3593 = vsel %vm3581, %v3560, %v2898
      %v3594 = vsel %vm3581, %v3561, %v2900
      %v3595 = vsel %vm3581, %v3562, %v2902
      %v3596 = vsel %vm3581, %v3563, %v2904
      %v3597 = vsel %vm3581, %v3564, %v2906
      %v3598 = vsel %vm3581, %v3565, %v2908
      %v3599 = vsel %vm3581, %v3566, %v2910
      %v3600 = vsel %vm3581, %v3567, %v2912
      %v3601 = vsel %vm3581, %v3568, %v2914
      %v3602 = vsel %vm3581, %v3569, %v2916
      %v3603 = vsel %vm3581, %v3570, %v2918
      %v3604 = vsel %vm3581, %v3571, %v2920
      %v3605 = vsel %vm3581, %v3572, %v2922
      %v3606 = vsel %vm3581, %v3573, %v2924
      %v3607 = vsel %vm3581, %v3574, %v2926
      %v3608 = vsel %vm3581, %v3575, %v2928
      %v3609 = vsel %vm3581, %v3576, %v2930
      %v3610 = vsel %vm3581, %v3577, %v2932
      %v3611 = vsel %vm3581, %v3578, %v2934
      %v3612 = vsel %vm3581, %v3579, %v2936
      %v3613 = vsel %vm3581, %v3580, %v2938
      %vm3614 = vcmask 326656
      %v3615 = vsel %vm3614, %v3582, %v3004
      %v3616 = vsel %vm3614, %v3583, %v3006
      %v3617 = vsel %vm3614, %v3584, %v3008
      %v3618 = vsel %vm3614, %v3585, %v3010
      %v3619 = vsel %vm3614, %v3586, %v3012
      %v3620 = vsel %vm3614, %v3587, %v3014
      %v3621 = vsel %vm3614, %v3588, %v3016
      %v3622 = vsel %vm3614, %v3589, %v3018
      %v3623 = vsel %vm3614, %v3590, %v3020
      %v3624 = vsel %vm3614, %v3591, %v3022
      %v3625 = vsel %vm3614, %v3592, %v3024
      %v3626 = vsel %vm3614, %v3593, %v3026
      %v3627 = vsel %vm3614, %v3594, %v3028
      %v3628 = vsel %vm3614, %v3595, %v3030
      %v3629 = vsel %vm3614, %v3596, %v3032
      %v3630 = vsel %vm3614, %v3597, %v3034
      %v3631 = vsel %vm3614, %v3598, %v3036
      %v3632 = vsel %vm3614, %v3599, %v3038
      %v3633 = vsel %vm3614, %v3600, %v3040
      %v3634 = vsel %vm3614, %v3601, %v3042
      %v3635 = vsel %vm3614, %v3602, %v3044
      %v3636 = vsel %vm3614, %v3603, %v3046
      %v3637 = vsel %vm3614, %v3604, %v3048
      %v3638 = vsel %vm3614, %v3605, %v3050
      %v3639 = vsel %vm3614, %v3606, %v3052
      %v3640 = vsel %vm3614, %v3607, %v3054
      %v3641 = vsel %vm3614, %v3608, %v3056
      %v3642 = vsel %vm3614, %v3609, %v3058
      %v3643 = vsel %vm3614, %v3610, %v3060
      %v3644 = vsel %vm3614, %v3611, %v3062
      %v3645 = vsel %vm3614, %v3612, %v3064
      %v3646 = vsel %vm3614, %v3613, %v3066
      %vm3647 = vcmask 392192
      %v3648 = vsel %vm3647, %v3615, %v3132
      %v3649 = vsel %vm3647, %v3616, %v3134
      %v3650 = vsel %vm3647, %v3617, %v3136
      %v3651 = vsel %vm3647, %v3618, %v3138
      %v3652 = vsel %vm3647, %v3619, %v3140
      %v3653 = vsel %vm3647, %v3620, %v3142
      %v3654 = vsel %vm3647, %v3621, %v3144
      %v3655 = vsel %vm3647, %v3622, %v3146
      %v3656 = vsel %vm3647, %v3623, %v3148
      %v3657 = vsel %vm3647, %v3624, %v3150
      %v3658 = vsel %vm3647, %v3625, %v3152
      %v3659 = vsel %vm3647, %v3626, %v3154
      %v3660 = vsel %vm3647, %v3627, %v3156
      %v3661 = vsel %vm3647, %v3628, %v3158
      %v3662 = vsel %vm3647, %v3629, %v3160
      %v3663 = vsel %vm3647, %v3630, %v3162
      %v3664 = vsel %vm3647, %v3631, %v3164
      %v3665 = vsel %vm3647, %v3632, %v3166
      %v3666 = vsel %vm3647, %v3633, %v3168
      %v3667 = vsel %vm3647, %v3634, %v3170
      %v3668 = vsel %vm3647, %v3635, %v3172
      %v3669 = vsel %vm3647, %v3636, %v3174
      %v3670 = vsel %vm3647, %v3637, %v3176
      %v3671 = vsel %vm3647, %v3638, %v3178
      %v3672 = vsel %vm3647, %v3639, %v3180
      %v3673 = vsel %vm3647, %v3640, %v3182
      %v3674 = vsel %vm3647, %v3641, %v3184
      %v3675 = vsel %vm3647, %v3642, %v3186
      %v3676 = vsel %vm3647, %v3643, %v3188
      %v3677 = vsel %vm3647, %v3644, %v3190
      %v3678 = vsel %vm3647, %v3645, %v3192
      %v3679 = vsel %vm3647, %v3646, %v3194
      %vm3680 = vcmask 457728
      %v3681 = vsel %vm3680, %v3648, %v3260
      %v3682 = vsel %vm3680, %v3649, %v3262
      %v3683 = vsel %vm3680, %v3650, %v3264
      %v3684 = vsel %vm3680, %v3651, %v3266
      %v3685 = vsel %vm3680, %v3652, %v3268
      %v3686 = vsel %vm3680, %v3653, %v3270
      %v3687 = vsel %vm3680, %v3654, %v3272
      %v3688 = vsel %vm3680, %v3655, %v3274
      %v3689 = vsel %vm3680, %v3656, %v3276
      %v3690 = vsel %vm3680, %v3657, %v3278
      %v3691 = vsel %vm3680, %v3658, %v3280
      %v3692 = vsel %vm3680, %v3659, %v3282
      %v3693 = vsel %vm3680, %v3660, %v3284
      %v3694 = vsel %vm3680, %v3661, %v3286
      %v3695 = vsel %vm3680, %v3662, %v3288
      %v3696 = vsel %vm3680, %v3663, %v3290
      %v3697 = vsel %vm3680, %v3664, %v3292
      %v3698 = vsel %vm3680, %v3665, %v3294
      %v3699 = vsel %vm3680, %v3666, %v3296
      %v3700 = vsel %vm3680, %v3667, %v3298
      %v3701 = vsel %vm3680, %v3668, %v3300
      %v3702 = vsel %vm3680, %v3669, %v3302
      %v3703 = vsel %vm3680, %v3670, %v3304
      %v3704 = vsel %vm3680, %v3671, %v3306
      %v3705 = vsel %vm3680, %v3672, %v3308
      %v3706 = vsel %vm3680, %v3673, %v3310
      %v3707 = vsel %vm3680, %v3674, %v3312
      %v3708 = vsel %vm3680, %v3675, %v3314
      %v3709 = vsel %vm3680, %v3676, %v3316
      %v3710 = vsel %vm3680, %v3677, %v3318
      %v3711 = vsel %vm3680, %v3678, %v3320
      %v3712 = vsel %vm3680, %v3679, %v3322
      %vm3713 = vcmask 523264
      %v3714 = vsel %vm3713, %v3681, %v3388
      %v3715 = vsel %vm3713, %v3682, %v3390
      %v3716 = vsel %vm3713, %v3683, %v3392
      %v3717 = vsel %vm3713, %v3684, %v3394
      %v3718 = vsel %vm3713, %v3685, %v3396
      %v3719 = vsel %vm3713, %v3686, %v3398
      %v3720 = vsel %vm3713, %v3687, %v3400
      %v3721 = vsel %vm3713, %v3688, %v3402
      %v3722 = vsel %vm3713, %v3689, %v3404
      %v3723 = vsel %vm3713, %v3690, %v3406
      %v3724 = vsel %vm3713, %v3691, %v3408
      %v3725 = vsel %vm3713, %v3692, %v3410
      %v3726 = vsel %vm3713, %v3693, %v3412
      %v3727 = vsel %vm3713, %v3694, %v3414
      %v3728 = vsel %vm3713, %v3695, %v3416
      %v3729 = vsel %vm3713, %v3696, %v3418
      %v3730 = vsel %vm3713, %v3697, %v3420
      %v3731 = vsel %vm3713, %v3698, %v3422
      %v3732 = vsel %vm3713, %v3699, %v3424
      %v3733 = vsel %vm3713, %v3700, %v3426
      %v3734 = vsel %vm3713, %v3701, %v3428
      %v3735 = vsel %vm3713, %v3702, %v3430
      %v3736 = vsel %vm3713, %v3703, %v3432
      %v3737 = vsel %vm3713, %v3704, %v3434
      %v3738 = vsel %vm3713, %v3705, %v3436
      %v3739 = vsel %vm3713, %v3706, %v3438
      %v3740 = vsel %vm3713, %v3707, %v3440
      %v3741 = vsel %vm3713, %v3708, %v3442
      %v3742 = vsel %vm3713, %v3709, %v3444
      %v3743 = vsel %vm3713, %v3710, %v3446
      %v3744 = vsel %vm3713, %v3711, %v3448
      %v3745 = vsel %vm3713, %v3712, %v3450
      %v3746 = vld [vmem:[#allocation3] sm:$0xff]
      %v3747 = vld [vmem:[#allocation3 + $0x8] sm:$0xff]
      %v3748 = vld [vmem:[#allocation3 + $0x18] sm:$0xff]
      %v3749 = vld [vmem:[#allocation3 + $0x20] sm:$0xff]
      %v3750 = vld [vmem:[#allocation3 + $0x30] sm:$0xff]
      %v3751 = vld [vmem:[#allocation3 + $0x38] sm:$0xff]
      %v3752 = vld [vmem:[#allocation3 + $0x48] sm:$0xff]
      %v3753 = vld [vmem:[#allocation3 + $0x50] sm:$0xff]
      %v3754 = vld [vmem:[#allocation3 + $0x60] sm:$0xff]
      %v3755 = vld [vmem:[#allocation3 + $0x68] sm:$0xff]
      %v3756 = vld [vmem:[#allocation3 + $0x78] sm:$0xff]
      %v3757 = vld [vmem:[#allocation3 + $0x80] sm:$0xff]
      %v3758 = vld [vmem:[#allocation3 + $0x90] sm:$0xff]
      %v3759 = vld [vmem:[#allocation3 + $0x98] sm:$0xff]
      %v3760 = vld [vmem:[#allocation3 + $0xa8] sm:$0xff]
      %v3761 = vld [vmem:[#allocation3 + $0xb0] sm:$0xff]
      %v3762 = vld [vmem:[#allocation3 + $0xc0] sm:$0xff]
      %v3763 = vld [vmem:[#allocation3 + $0xc8] sm:$0xff]
      %v3764 = vld [vmem:[#allocation3 + $0xd8] sm:$0xff]
      %v3765 = vld [vmem:[#allocation3 + $0xe0] sm:$0xff]
      %v3766 = vld [vmem:[#allocation3 + $0xf0] sm:$0xff]
      %v3767 = vld [vmem:[#allocation3 + $0xf8] sm:$0xff]
      %v3768 = vld [vmem:[#allocation3 + $0x108] sm:$0xff]
      %v3769 = vld [vmem:[#allocation3 + $0x110] sm:$0xff]
      %v3770 = vld [vmem:[#allocation3 + $0x120] sm:$0xff]
      %v3771 = vld [vmem:[#allocation3 + $0x128] sm:$0xff]
      %v3772 = vld [vmem:[#allocation3 + $0x138] sm:$0xff]
      %v3773 = vld [vmem:[#allocation3 + $0x140] sm:$0xff]
      %v3774 = vld [vmem:[#allocation3 + $0x150] sm:$0xff]
      %v3775 = vld [vmem:[#allocation3 + $0x158] sm:$0xff]
      %v3776 = vld [vmem:[#allocation3 + $0x168] sm:$0xff]
      %v3777 = vld [vmem:[#allocation3 + $0x170] sm:$0xff]
      %v3778 = vld [vmem:[#allocation3 + $0x1] sm:$0xff]
      %v3779 = vld [vmem:[#allocation3 + $0x9] sm:$0xff]
      %v3780 = vld [vmem:[#allocation3 + $0x19] sm:$0xff]
      %v3781 = vld [vmem:[#allocation3 + $0x21] sm:$0xff]
      %v3782 = vld [vmem:[#allocation3 + $0x31] sm:$0xff]
      %v3783 = vld [vmem:[#allocation3 + $0x39] sm:$0xff]
      %v3784 = vld [vmem:[#allocation3 + $0x49] sm:$0xff]
      %v3785 = vld [vmem:[#allocation3 + $0x51] sm:$0xff]
      %v3786 = vld [vmem:[#allocation3 + $0x61] sm:$0xff]
      %v3787 = vld [vmem:[#allocation3 + $0x69] sm:$0xff]
      %v3788 = vld [vmem:[#allocation3 + $0x79] sm:$0xff]
      %v3789 = vld [vmem:[#allocation3 + $0x81] sm:$0xff]
      %v3790 = vld [vmem:[#allocation3 + $0x91] sm:$0xff]
      %v3791 = vld [vmem:[#allocation3 + $0x99] sm:$0xff]
      %v3792 = vld [vmem:[#allocation3 + $0xa9] sm:$0xff]
      %v3793 = vld [vmem:[#allocation3 + $0xb1] sm:$0xff]
      %v3794 = vld [vmem:[#allocation3 + $0xc1] sm:$0xff]
      %v3795 = vld [vmem:[#allocation3 + $0xc9] sm:$0xff]
      %v3796 = vld [vmem:[#allocation3 + $0xd9] sm:$0xff]
      %v3797 = vld [vmem:[#allocation3 + $0xe1] sm:$0xff]
      %v3798 = vld [vmem:[#allocation3 + $0xf1] sm:$0xff]
      %v3799 = vld [vmem:[#allocation3 + $0xf9] sm:$0xff]
      %v3800 = vld [vmem:[#allocation3 + $0x109] sm:$0xff]
      %v3801 = vld [vmem:[#allocation3 + $0x111] sm:$0xff]
      %v3802 = vld [vmem:[#allocation3 + $0x121] sm:$0xff]
      %v3803 = vld [vmem:[#allocation3 + $0x129] sm:$0xff]
      %v3804 = vld [vmem:[#allocation3 + $0x139] sm:$0xff]
      %v3805 = vld [vmem:[#allocation3 + $0x141] sm:$0xff]
      %v3806 = vld [vmem:[#allocation3 + $0x151] sm:$0xff]
      %v3807 = vld [vmem:[#allocation3 + $0x159] sm:$0xff]
      %v3808 = vld [vmem:[#allocation3 + $0x169] sm:$0xff]
      %v3809 = vld [vmem:[#allocation3 + $0x171] sm:$0xff]
      %v3810 = vld [vmem:[#allocation3 + $0x2] sm:$0xff]
      %v3811 = vld [vmem:[#allocation3 + $0xa] sm:$0xff]
      %v3812 = vld [vmem:[#allocation3 + $0x1a] sm:$0xff]
      %v3813 = vld [vmem:[#allocation3 + $0x22] sm:$0xff]
      %v3814 = vld [vmem:[#allocation3 + $0x32] sm:$0xff]
      %v3815 = vld [vmem:[#allocation3 + $0x3a] sm:$0xff]
      %v3816 = vld [vmem:[#allocation3 + $0x4a] sm:$0xff]
      %v3817 = vld [vmem:[#allocation3 + $0x52] sm:$0xff]
      %v3818 = vld [vmem:[#allocation3 + $0x62] sm:$0xff]
      %v3819 = vld [vmem:[#allocation3 + $0x6a] sm:$0xff]
      %v3820 = vld [vmem:[#allocation3 + $0x7a] sm:$0xff]
      %v3821 = vld [vmem:[#allocation3 + $0x82] sm:$0xff]
      %v3822 = vld [vmem:[#allocation3 + $0x92] sm:$0xff]
      %v3823 = vld [vmem:[#allocation3 + $0x9a] sm:$0xff]
      %v3824 = vld [vmem:[#allocation3 + $0xaa] sm:$0xff]
      %v3825 = vld [vmem:[#allocation3 + $0xb2] sm:$0xff]
      %v3826 = vld [vmem:[#allocation3 + $0xc2] sm:$0xff]
      %v3827 = vld [vmem:[#allocation3 + $0xca] sm:$0xff]
      %v3828 = vld [vmem:[#allocation3 + $0xda] sm:$0xff]
      %v3829 = vld [vmem:[#allocation3 + $0xe2] sm:$0xff]
      %v3830 = vld [vmem:[#allocation3 + $0xf2] sm:$0xff]
      %v3831 = vld [vmem:[#allocation3 + $0xfa] sm:$0xff]
      %v3832 = vld [vmem:[#allocation3 + $0x10a] sm:$0xff]
      %v3833 = vld [vmem:[#allocation3 + $0x112] sm:$0xff]
      %v3834 = vld [vmem:[#allocation3 + $0x122] sm:$0xff]
      %v3835 = vld [vmem:[#allocation3 + $0x12a] sm:$0xff]
      %v3836 = vld [vmem:[#allocation3 + $0x13a] sm:$0xff]
      %v3837 = vld [vmem:[#allocation3 + $0x142] sm:$0xff]
      %v3838 = vld [vmem:[#allocation3 + $0x152] sm:$0xff]
      %v3839 = vld [vmem:[#allocation3 + $0x15a] sm:$0xff]
      %v3840 = vld [vmem:[#allocation3 + $0x16a] sm:$0xff]
      %v3841 = vld [vmem:[#allocation3 + $0x172] sm:$0xff]
      %v3842 = vld [vmem:[%s2137] sm:$0xff]
      %v3843 = vld [vmem:[%s2137 + $0x8] sm:$0xff]
      %v3844 = vld [vmem:[%s2137 + $0x18] sm:$0xff]
      %v3845 = vld [vmem:[%s2137 + $0x20] sm:$0xff]
      %v3846 = vld [vmem:[%s2137 + $0x30] sm:$0xff]
      %v3847 = vld [vmem:[%s2137 + $0x38] sm:$0xff]
      %v3848 = vld [vmem:[%s2137 + $0x48] sm:$0xff]
      %v3849 = vld [vmem:[%s2137 + $0x50] sm:$0xff]
      %v3850 = vld [vmem:[%s2137 + $0x60] sm:$0xff]
      %v3851 = vld [vmem:[%s2137 + $0x68] sm:$0xff]
      %v3852 = vld [vmem:[%s2137 + $0x78] sm:$0xff]
      %v3853 = vld [vmem:[%s2137 + $0x80] sm:$0xff]
      %v3854 = vld [vmem:[%s2137 + $0x90] sm:$0xff]
      %v3855 = vld [vmem:[%s2137 + $0x98] sm:$0xff]
      %v3856 = vld [vmem:[%s2137 + $0xa8] sm:$0xff]
      %v3857 = vld [vmem:[%s2137 + $0xb0] sm:$0xff]
      %v3858 = vld [vmem:[%s2137 + $0xc0] sm:$0xff]
      %v3859 = vld [vmem:[%s2137 + $0xc8] sm:$0xff]
      %v3860 = vld [vmem:[%s2137 + $0xd8] sm:$0xff]
      %v3861 = vld [vmem:[%s2137 + $0xe0] sm:$0xff]
      %v3862 = vld [vmem:[%s2137 + $0xf0] sm:$0xff]
      %v3863 = vld [vmem:[%s2137 + $0xf8] sm:$0xff]
      %v3864 = vld [vmem:[%s2137 + $0x108] sm:$0xff]
      %v3865 = vld [vmem:[%s2137 + $0x110] sm:$0xff]
      %v3866 = vld [vmem:[%s2137 + $0x120] sm:$0xff]
      %v3867 = vld [vmem:[%s2137 + $0x128] sm:$0xff]
      %v3868 = vld [vmem:[%s2137 + $0x138] sm:$0xff]
      %v3869 = vld [vmem:[%s2137 + $0x140] sm:$0xff]
      %v3870 = vld [vmem:[%s2137 + $0x150] sm:$0xff]
      %v3871 = vld [vmem:[%s2137 + $0x158] sm:$0xff]
      %v3872 = vld [vmem:[%s2137 + $0x168] sm:$0xff]
      %v3873 = vld [vmem:[%s2137 + $0x170] sm:$0xff]
      %v3874 = vld [vmem:[%s2137 + $0x1] sm:$0xff]
      %v3875 = vld [vmem:[%s2137 + $0x9] sm:$0xff]
      %v3876 = vld [vmem:[%s2137 + $0x19] sm:$0xff]
      %v3877 = vld [vmem:[%s2137 + $0x21] sm:$0xff]
      %v3878 = vld [vmem:[%s2137 + $0x31] sm:$0xff]
      %v3879 = vld [vmem:[%s2137 + $0x39] sm:$0xff]
      %v3880 = vld [vmem:[%s2137 + $0x49] sm:$0xff]
      %v3881 = vld [vmem:[%s2137 + $0x51] sm:$0xff]
      %v3882 = vld [vmem:[%s2137 + $0x61] sm:$0xff]
      %v3883 = vld [vmem:[%s2137 + $0x69] sm:$0xff]
      %v3884 = vld [vmem:[%s2137 + $0x79] sm:$0xff]
      %v3885 = vld [vmem:[%s2137 + $0x81] sm:$0xff]
      %v3886 = vld [vmem:[%s2137 + $0x91] sm:$0xff]
      %v3887 = vld [vmem:[%s2137 + $0x99] sm:$0xff]
      %v3888 = vld [vmem:[%s2137 + $0xa9] sm:$0xff]
      %v3889 = vld [vmem:[%s2137 + $0xb1] sm:$0xff]
      %v3890 = vld [vmem:[%s2137 + $0xc1] sm:$0xff]
      %v3891 = vld [vmem:[%s2137 + $0xc9] sm:$0xff]
      %v3892 = vld [vmem:[%s2137 + $0xd9] sm:$0xff]
      %v3893 = vld [vmem:[%s2137 + $0xe1] sm:$0xff]
      %v3894 = vld [vmem:[%s2137 + $0xf1] sm:$0xff]
      %v3895 = vld [vmem:[%s2137 + $0xf9] sm:$0xff]
      %v3896 = vld [vmem:[%s2137 + $0x109] sm:$0xff]
      %v3897 = vld [vmem:[%s2137 + $0x111] sm:$0xff]
      %v3898 = vld [vmem:[%s2137 + $0x121] sm:$0xff]
      %v3899 = vld [vmem:[%s2137 + $0x129] sm:$0xff]
      %v3900 = vld [vmem:[%s2137 + $0x139] sm:$0xff]
      %v3901 = vld [vmem:[%s2137 + $0x141] sm:$0xff]
      %v3902 = vld [vmem:[%s2137 + $0x151] sm:$0xff]
      %v3903 = vld [vmem:[%s2137 + $0x159] sm:$0xff]
      %v3904 = vld [vmem:[%s2137 + $0x169] sm:$0xff]
      %v3905 = vld [vmem:[%s2137 + $0x171] sm:$0xff]
      %v3906 = vld [vmem:[%s2137 + $0x2] sm:$0xff]
      %v3907 = vld [vmem:[%s2137 + $0xa] sm:$0xff]
      %v3908 = vld [vmem:[%s2137 + $0x1a] sm:$0xff]
      %v3909 = vld [vmem:[%s2137 + $0x22] sm:$0xff]
      %v3910 = vld [vmem:[%s2137 + $0x32] sm:$0xff]
      %v3911 = vld [vmem:[%s2137 + $0x3a] sm:$0xff]
      %v3912 = vld [vmem:[%s2137 + $0x4a] sm:$0xff]
      %v3913 = vld [vmem:[%s2137 + $0x52] sm:$0xff]
      %v3914 = vld [vmem:[%s2137 + $0x62] sm:$0xff]
      %v3915 = vld [vmem:[%s2137 + $0x6a] sm:$0xff]
      %v3916 = vld [vmem:[%s2137 + $0x7a] sm:$0xff]
      %v3917 = vld [vmem:[%s2137 + $0x82] sm:$0xff]
      %v3918 = vld [vmem:[%s2137 + $0x92] sm:$0xff]
      %v3919 = vld [vmem:[%s2137 + $0x9a] sm:$0xff]
      %v3920 = vld [vmem:[%s2137 + $0xaa] sm:$0xff]
      %v3921 = vld [vmem:[%s2137 + $0xb2] sm:$0xff]
      %v3922 = vld [vmem:[%s2137 + $0xc2] sm:$0xff]
      %v3923 = vld [vmem:[%s2137 + $0xca] sm:$0xff]
      %v3924 = vld [vmem:[%s2137 + $0xda] sm:$0xff]
      %v3925 = vld [vmem:[%s2137 + $0xe2] sm:$0xff]
      %v3926 = vld [vmem:[%s2137 + $0xf2] sm:$0xff]
      %v3927 = vld [vmem:[%s2137 + $0xfa] sm:$0xff]
      %v3928 = vld [vmem:[%s2137 + $0x10a] sm:$0xff]
      %v3929 = vld [vmem:[%s2137 + $0x112] sm:$0xff]
      %v3930 = vld [vmem:[%s2137 + $0x122] sm:$0xff]
      %v3931 = vld [vmem:[%s2137 + $0x12a] sm:$0xff]
      %v3932 = vld [vmem:[%s2137 + $0x13a] sm:$0xff]
      %v3933 = vld [vmem:[%s2137 + $0x142] sm:$0xff]
      %v3934 = vld [vmem:[%s2137 + $0x152] sm:$0xff]
      %v3935 = vld [vmem:[%s2137 + $0x15a] sm:$0xff]
      %v3936 = vld [vmem:[%s2137 + $0x16a] sm:$0xff]
      %v3937 = vld [vmem:[%s2137 + $0x172] sm:$0xff]
      %s3938 = scalar_lea.vmem [#allocation3], 48
      %v3939 = vld [vmem:[%s3938] sm:$0xff]
      %v3940 = vld [vmem:[%s3938 + $0x8] sm:$0xff]
      %v3941 = vld [vmem:[%s3938 + $0x18] sm:$0xff]
      %v3942 = vld [vmem:[%s3938 + $0x20] sm:$0xff]
      %v3943 = vld [vmem:[%s3938 + $0x30] sm:$0xff]
      %v3944 = vld [vmem:[%s3938 + $0x38] sm:$0xff]
      %v3945 = vld [vmem:[%s3938 + $0x48] sm:$0xff]
      %v3946 = vld [vmem:[%s3938 + $0x50] sm:$0xff]
      %v3947 = vld [vmem:[%s3938 + $0x60] sm:$0xff]
      %v3948 = vld [vmem:[%s3938 + $0x68] sm:$0xff]
      %v3949 = vld [vmem:[%s3938 + $0x78] sm:$0xff]
      %v3950 = vld [vmem:[%s3938 + $0x80] sm:$0xff]
      %v3951 = vld [vmem:[%s3938 + $0x90] sm:$0xff]
      %v3952 = vld [vmem:[%s3938 + $0x98] sm:$0xff]
      %v3953 = vld [vmem:[%s3938 + $0xa8] sm:$0xff]
      %v3954 = vld [vmem:[%s3938 + $0xb0] sm:$0xff]
      %v3955 = vld [vmem:[%s3938 + $0xc0] sm:$0xff]
      %v3956 = vld [vmem:[%s3938 + $0xc8] sm:$0xff]
      %v3957 = vld [vmem:[%s3938 + $0xd8] sm:$0xff]
      %v3958 = vld [vmem:[%s3938 + $0xe0] sm:$0xff]
      %v3959 = vld [vmem:[%s3938 + $0xf0] sm:$0xff]
      %v3960 = vld [vmem:[%s3938 + $0xf8] sm:$0xff]
      %v3961 = vld [vmem:[%s3938 + $0x108] sm:$0xff]
      %v3962 = vld [vmem:[%s3938 + $0x110] sm:$0xff]
      %v3963 = vld [vmem:[%s3938 + $0x120] sm:$0xff]
      %v3964 = vld [vmem:[%s3938 + $0x128] sm:$0xff]
      %v3965 = vld [vmem:[%s3938 + $0x138] sm:$0xff]
      %v3966 = vld [vmem:[%s3938 + $0x140] sm:$0xff]
      %v3967 = vld [vmem:[%s3938 + $0x150] sm:$0xff]
      %v3968 = vld [vmem:[%s3938 + $0x158] sm:$0xff]
      %v3969 = vld [vmem:[%s3938 + $0x168] sm:$0xff]
      %v3970 = vld [vmem:[%s3938 + $0x170] sm:$0xff]
      %v3971 = vld [vmem:[%s3938 + $0x1] sm:$0xff]
      %v3972 = vld [vmem:[%s3938 + $0x9] sm:$0xff]
      %v3973 = vld [vmem:[%s3938 + $0x19] sm:$0xff]
      %v3974 = vld [vmem:[%s3938 + $0x21] sm:$0xff]
      %v3975 = vld [vmem:[%s3938 + $0x31] sm:$0xff]
      %v3976 = vld [vmem:[%s3938 + $0x39] sm:$0xff]
      %v3977 = vld [vmem:[%s3938 + $0x49] sm:$0xff]
      %v3978 = vld [vmem:[%s3938 + $0x51] sm:$0xff]
      %v3979 = vld [vmem:[%s3938 + $0x61] sm:$0xff]
      %v3980 = vld [vmem:[%s3938 + $0x69] sm:$0xff]
      %v3981 = vld [vmem:[%s3938 + $0x79] sm:$0xff]
      %v3982 = vld [vmem:[%s3938 + $0x81] sm:$0xff]
      %v3983 = vld [vmem:[%s3938 + $0x91] sm:$0xff]
      %v3984 = vld [vmem:[%s3938 + $0x99] sm:$0xff]
      %v3985 = vld [vmem:[%s3938 + $0xa9] sm:$0xff]
      %v3986 = vld [vmem:[%s3938 + $0xb1] sm:$0xff]
      %v3987 = vld [vmem:[%s3938 + $0xc1] sm:$0xff]
      %v3988 = vld [vmem:[%s3938 + $0xc9] sm:$0xff]
      %v3989 = vld [vmem:[%s3938 + $0xd9] sm:$0xff]
      %v3990 = vld [vmem:[%s3938 + $0xe1] sm:$0xff]
      %v3991 = vld [vmem:[%s3938 + $0xf1] sm:$0xff]
      %v3992 = vld [vmem:[%s3938 + $0xf9] sm:$0xff]
      %v3993 = vld [vmem:[%s3938 + $0x109] sm:$0xff]
      %v3994 = vld [vmem:[%s3938 + $0x111] sm:$0xff]
      %v3995 = vld [vmem:[%s3938 + $0x121] sm:$0xff]
      %v3996 = vld [vmem:[%s3938 + $0x129] sm:$0xff]
      %v3997 = vld [vmem:[%s3938 + $0x139] sm:$0xff]
      %v3998 = vld [vmem:[%s3938 + $0x141] sm:$0xff]
      %v3999 = vld [vmem:[%s3938 + $0x151] sm:$0xff]
      %v4000 = vld [vmem:[%s3938 + $0x159] sm:$0xff]
      %v4001 = vld [vmem:[%s3938 + $0x169] sm:$0xff]
      %v4002 = vld [vmem:[%s3938 + $0x171] sm:$0xff]
      %v4003 = vld [vmem:[%s3938 + $0x2] sm:$0xff]
      %v4004 = vld [vmem:[%s3938 + $0xa] sm:$0xff]
      %v4005 = vld [vmem:[%s3938 + $0x1a] sm:$0xff]
      %v4006 = vld [vmem:[%s3938 + $0x22] sm:$0xff]
      %v4007 = vld [vmem:[%s3938 + $0x32] sm:$0xff]
      %v4008 = vld [vmem:[%s3938 + $0x3a] sm:$0xff]
      %v4009 = vld [vmem:[%s3938 + $0x4a] sm:$0xff]
      %v4010 = vld [vmem:[%s3938 + $0x52] sm:$0xff]
      %v4011 = vld [vmem:[%s3938 + $0x62] sm:$0xff]
      %v4012 = vld [vmem:[%s3938 + $0x6a] sm:$0xff]
      %v4013 = vld [vmem:[%s3938 + $0x7a] sm:$0xff]
      %v4014 = vld [vmem:[%s3938 + $0x82] sm:$0xff]
      %v4015 = vld [vmem:[%s3938 + $0x92] sm:$0xff]
      %v4016 = vld [vmem:[%s3938 + $0x9a] sm:$0xff]
      %v4017 = vld [vmem:[%s3938 + $0xaa] sm:$0xff]
      %v4018 = vld [vmem:[%s3938 + $0xb2] sm:$0xff]
      %v4019 = vld [vmem:[%s3938 + $0xc2] sm:$0xff]
      %v4020 = vld [vmem:[%s3938 + $0xca] sm:$0xff]
      %v4021 = vld [vmem:[%s3938 + $0xda] sm:$0xff]
      %v4022 = vld [vmem:[%s3938 + $0xe2] sm:$0xff]
      %v4023 = vld [vmem:[%s3938 + $0xf2] sm:$0xff]
      %v4024 = vld [vmem:[%s3938 + $0xfa] sm:$0xff]
      %v4025 = vld [vmem:[%s3938 + $0x10a] sm:$0xff]
      %v4026 = vld [vmem:[%s3938 + $0x112] sm:$0xff]
      %v4027 = vld [vmem:[%s3938 + $0x122] sm:$0xff]
      %v4028 = vld [vmem:[%s3938 + $0x12a] sm:$0xff]
      %v4029 = vld [vmem:[%s3938 + $0x13a] sm:$0xff]
      %v4030 = vld [vmem:[%s3938 + $0x142] sm:$0xff]
      %v4031 = vld [vmem:[%s3938 + $0x152] sm:$0xff]
      %v4032 = vld [vmem:[%s3938 + $0x15a] sm:$0xff]
      %v4033 = vld [vmem:[%s3938 + $0x16a] sm:$0xff]
      %v4034 = vld [vmem:[%s3938 + $0x172] sm:$0xff]
      %4067 = vrot.lane.b32.xlu0 %v3778, 8
      %v4068 = vpop.permute.xlu0 %4067
      %4069 = vrot.lane.b32.xlu0 %v3779, 8
      %v4070 = vpop.permute.xlu0 %4069
      %4071 = vrot.lane.b32.xlu0 %v3780, 8
      %v4072 = vpop.permute.xlu0 %4071
      %4073 = vrot.lane.b32.xlu0 %v3781, 8
      %v4074 = vpop.permute.xlu0 %4073
      %4075 = vrot.lane.b32.xlu0 %v3782, 8
      %v4076 = vpop.permute.xlu0 %4075
      %4077 = vrot.lane.b32.xlu0 %v3783, 8
      %v4078 = vpop.permute.xlu0 %4077
      %4079 = vrot.lane.b32.xlu0 %v3784, 8
      %v4080 = vpop.permute.xlu0 %4079
      %4081 = vrot.lane.b32.xlu0 %v3785, 8
      %v4082 = vpop.permute.xlu0 %4081
      %4083 = vrot.lane.b32.xlu0 %v3786, 8
      %v4084 = vpop.permute.xlu0 %4083
      %4085 = vrot.lane.b32.xlu0 %v3787, 8
      %v4086 = vpop.permute.xlu0 %4085
      %4087 = vrot.lane.b32.xlu0 %v3788, 8
      %v4088 = vpop.permute.xlu0 %4087
      %4089 = vrot.lane.b32.xlu0 %v3789, 8
      %v4090 = vpop.permute.xlu0 %4089
      %4091 = vrot.lane.b32.xlu0 %v3790, 8
      %v4092 = vpop.permute.xlu0 %4091
      %4093 = vrot.lane.b32.xlu0 %v3791, 8
      %v4094 = vpop.permute.xlu0 %4093
      %4095 = vrot.lane.b32.xlu0 %v3792, 8
      %v4096 = vpop.permute.xlu0 %4095
      %4097 = vrot.lane.b32.xlu0 %v3793, 8
      %v4098 = vpop.permute.xlu0 %4097
      %4099 = vrot.lane.b32.xlu0 %v3794, 8
      %v4100 = vpop.permute.xlu0 %4099
      %4101 = vrot.lane.b32.xlu0 %v3795, 8
      %v4102 = vpop.permute.xlu0 %4101
      %4103 = vrot.lane.b32.xlu0 %v3796, 8
      %v4104 = vpop.permute.xlu0 %4103
      %4105 = vrot.lane.b32.xlu0 %v3797, 8
      %v4106 = vpop.permute.xlu0 %4105
      %4107 = vrot.lane.b32.xlu0 %v3798, 8
      %v4108 = vpop.permute.xlu0 %4107
      %4109 = vrot.lane.b32.xlu0 %v3799, 8
      %v4110 = vpop.permute.xlu0 %4109
      %4111 = vrot.lane.b32.xlu0 %v3800, 8
      %v4112 = vpop.permute.xlu0 %4111
      %4113 = vrot.lane.b32.xlu0 %v3801, 8
      %v4114 = vpop.permute.xlu0 %4113
      %4115 = vrot.lane.b32.xlu0 %v3802, 8
      %v4116 = vpop.permute.xlu0 %4115
      %4117 = vrot.lane.b32.xlu0 %v3803, 8
      %v4118 = vpop.permute.xlu0 %4117
      %4119 = vrot.lane.b32.xlu0 %v3804, 8
      %v4120 = vpop.permute.xlu0 %4119
      %4121 = vrot.lane.b32.xlu0 %v3805, 8
      %v4122 = vpop.permute.xlu0 %4121
      %4123 = vrot.lane.b32.xlu0 %v3806, 8
      %v4124 = vpop.permute.xlu0 %4123
      %4125 = vrot.lane.b32.xlu0 %v3807, 8
      %v4126 = vpop.permute.xlu0 %4125
      %4127 = vrot.lane.b32.xlu0 %v3808, 8
      %v4128 = vpop.permute.xlu0 %4127
      %4129 = vrot.lane.b32.xlu0 %v3809, 8
      %v4130 = vpop.permute.xlu0 %4129
      %4195 = vrot.lane.b32.xlu0 %v3810, 16
      %v4196 = vpop.permute.xlu0 %4195
      %4197 = vrot.lane.b32.xlu0 %v3811, 16
      %v4198 = vpop.permute.xlu0 %4197
      %4199 = vrot.lane.b32.xlu0 %v3812, 16
      %v4200 = vpop.permute.xlu0 %4199
      %4201 = vrot.lane.b32.xlu0 %v3813, 16
      %v4202 = vpop.permute.xlu0 %4201
      %4203 = vrot.lane.b32.xlu0 %v3814, 16
      %v4204 = vpop.permute.xlu0 %4203
      %4205 = vrot.lane.b32.xlu0 %v3815, 16
      %v4206 = vpop.permute.xlu0 %4205
      %4207 = vrot.lane.b32.xlu0 %v3816, 16
      %v4208 = vpop.permute.xlu0 %4207
      %4209 = vrot.lane.b32.xlu0 %v3817, 16
      %v4210 = vpop.permute.xlu0 %4209
      %4211 = vrot.lane.b32.xlu0 %v3818, 16
      %v4212 = vpop.permute.xlu0 %4211
      %4213 = vrot.lane.b32.xlu0 %v3819, 16
      %v4214 = vpop.permute.xlu0 %4213
      %4215 = vrot.lane.b32.xlu0 %v3820, 16
      %v4216 = vpop.permute.xlu0 %4215
      %4217 = vrot.lane.b32.xlu0 %v3821, 16
      %v4218 = vpop.permute.xlu0 %4217
      %4219 = vrot.lane.b32.xlu0 %v3822, 16
      %v4220 = vpop.permute.xlu0 %4219
      %4221 = vrot.lane.b32.xlu0 %v3823, 16
      %v4222 = vpop.permute.xlu0 %4221
      %4223 = vrot.lane.b32.xlu0 %v3824, 16
      %v4224 = vpop.permute.xlu0 %4223
      %4225 = vrot.lane.b32.xlu0 %v3825, 16
      %v4226 = vpop.permute.xlu0 %4225
      %4227 = vrot.lane.b32.xlu0 %v3826, 16
      %v4228 = vpop.permute.xlu0 %4227
      %4229 = vrot.lane.b32.xlu0 %v3827, 16
      %v4230 = vpop.permute.xlu0 %4229
      %4231 = vrot.lane.b32.xlu0 %v3828, 16
      %v4232 = vpop.permute.xlu0 %4231
      %4233 = vrot.lane.b32.xlu0 %v3829, 16
      %v4234 = vpop.permute.xlu0 %4233
      %4235 = vrot.lane.b32.xlu0 %v3830, 16
      %v4236 = vpop.permute.xlu0 %4235
      %4237 = vrot.lane.b32.xlu0 %v3831, 16
      %v4238 = vpop.permute.xlu0 %4237
      %4239 = vrot.lane.b32.xlu0 %v3832, 16
      %v4240 = vpop.permute.xlu0 %4239
      %4241 = vrot.lane.b32.xlu0 %v3833, 16
      %v4242 = vpop.permute.xlu0 %4241
      %4243 = vrot.lane.b32.xlu0 %v3834, 16
      %v4244 = vpop.permute.xlu0 %4243
      %4245 = vrot.lane.b32.xlu0 %v3835, 16
      %v4246 = vpop.permute.xlu0 %4245
      %4247 = vrot.lane.b32.xlu0 %v3836, 16
      %v4248 = vpop.permute.xlu0 %4247
      %4249 = vrot.lane.b32.xlu0 %v3837, 16
      %v4250 = vpop.permute.xlu0 %4249
      %4251 = vrot.lane.b32.xlu0 %v3838, 16
      %v4252 = vpop.permute.xlu0 %4251
      %4253 = vrot.lane.b32.xlu0 %v3839, 16
      %v4254 = vpop.permute.xlu0 %4253
      %4255 = vrot.lane.b32.xlu0 %v3840, 16
      %v4256 = vpop.permute.xlu0 %4255
      %4257 = vrot.lane.b32.xlu0 %v3841, 16
      %v4258 = vpop.permute.xlu0 %4257
      %4323 = vrot.lane.b32.xlu0 %v3842, 24
      %v4324 = vpop.permute.xlu0 %4323
      %4325 = vrot.lane.b32.xlu0 %v3843, 24
      %v4326 = vpop.permute.xlu0 %4325
      %4327 = vrot.lane.b32.xlu0 %v3844, 24
      %v4328 = vpop.permute.xlu0 %4327
      %4329 = vrot.lane.b32.xlu0 %v3845, 24
      %v4330 = vpop.permute.xlu0 %4329
      %4331 = vrot.lane.b32.xlu0 %v3846, 24
      %v4332 = vpop.permute.xlu0 %4331
      %4333 = vrot.lane.b32.xlu0 %v3847, 24
      %v4334 = vpop.permute.xlu0 %4333
      %4335 = vrot.lane.b32.xlu0 %v3848, 24
      %v4336 = vpop.permute.xlu0 %4335
      %4337 = vrot.lane.b32.xlu0 %v3849, 24
      %v4338 = vpop.permute.xlu0 %4337
      %4339 = vrot.lane.b32.xlu0 %v3850, 24
      %v4340 = vpop.permute.xlu0 %4339
      %4341 = vrot.lane.b32.xlu0 %v3851, 24
      %v4342 = vpop.permute.xlu0 %4341
      %4343 = vrot.lane.b32.xlu0 %v3852, 24
      %v4344 = vpop.permute.xlu0 %4343
      %4345 = vrot.lane.b32.xlu0 %v3853, 24
      %v4346 = vpop.permute.xlu0 %4345
      %4347 = vrot.lane.b32.xlu0 %v3854, 24
      %v4348 = vpop.permute.xlu0 %4347
      %4349 = vrot.lane.b32.xlu0 %v3855, 24
      %v4350 = vpop.permute.xlu0 %4349
      %4351 = vrot.lane.b32.xlu0 %v3856, 24
      %v4352 = vpop.permute.xlu0 %4351
      %4353 = vrot.lane.b32.xlu0 %v3857, 24
      %v4354 = vpop.permute.xlu0 %4353
      %4355 = vrot.lane.b32.xlu0 %v3858, 24
      %v4356 = vpop.permute.xlu0 %4355
      %4357 = vrot.lane.b32.xlu0 %v3859, 24
      %v4358 = vpop.permute.xlu0 %4357
      %4359 = vrot.lane.b32.xlu0 %v3860, 24
      %v4360 = vpop.permute.xlu0 %4359
      %4361 = vrot.lane.b32.xlu0 %v3861, 24
      %v4362 = vpop.permute.xlu0 %4361
      %4363 = vrot.lane.b32.xlu0 %v3862, 24
      %v4364 = vpop.permute.xlu0 %4363
      %4365 = vrot.lane.b32.xlu0 %v3863, 24
      %v4366 = vpop.permute.xlu0 %4365
      %4367 = vrot.lane.b32.xlu0 %v3864, 24
      %v4368 = vpop.permute.xlu0 %4367
      %4369 = vrot.lane.b32.xlu0 %v3865, 24
      %v4370 = vpop.permute.xlu0 %4369
      %4371 = vrot.lane.b32.xlu0 %v3866, 24
      %v4372 = vpop.permute.xlu0 %4371
      %4373 = vrot.lane.b32.xlu0 %v3867, 24
      %v4374 = vpop.permute.xlu0 %4373
      %4375 = vrot.lane.b32.xlu0 %v3868, 24
      %v4376 = vpop.permute.xlu0 %4375
      %4377 = vrot.lane.b32.xlu0 %v3869, 24
      %v4378 = vpop.permute.xlu0 %4377
      %4379 = vrot.lane.b32.xlu0 %v3870, 24
      %v4380 = vpop.permute.xlu0 %4379
      %4381 = vrot.lane.b32.xlu0 %v3871, 24
      %v4382 = vpop.permute.xlu0 %4381
      %4383 = vrot.lane.b32.xlu0 %v3872, 24
      %v4384 = vpop.permute.xlu0 %4383
      %4385 = vrot.lane.b32.xlu0 %v3873, 24
      %v4386 = vpop.permute.xlu0 %4385
      %4451 = vrot.lane.b32.xlu0 %v3874, 32
      %v4452 = vpop.permute.xlu0 %4451
      %4453 = vrot.lane.b32.xlu0 %v3875, 32
      %v4454 = vpop.permute.xlu0 %4453
      %4455 = vrot.lane.b32.xlu0 %v3876, 32
      %v4456 = vpop.permute.xlu0 %4455
      %4457 = vrot.lane.b32.xlu0 %v3877, 32
      %v4458 = vpop.permute.xlu0 %4457
      %4459 = vrot.lane.b32.xlu0 %v3878, 32
      %v4460 = vpop.permute.xlu0 %4459
      %4461 = vrot.lane.b32.xlu0 %v3879, 32
      %v4462 = vpop.permute.xlu0 %4461
      %4463 = vrot.lane.b32.xlu0 %v3880, 32
      %v4464 = vpop.permute.xlu0 %4463
      %4465 = vrot.lane.b32.xlu0 %v3881, 32
      %v4466 = vpop.permute.xlu0 %4465
      %4467 = vrot.lane.b32.xlu0 %v3882, 32
      %v4468 = vpop.permute.xlu0 %4467
      %4469 = vrot.lane.b32.xlu0 %v3883, 32
      %v4470 = vpop.permute.xlu0 %4469
      %4471 = vrot.lane.b32.xlu0 %v3884, 32
      %v4472 = vpop.permute.xlu0 %4471
      %4473 = vrot.lane.b32.xlu0 %v3885, 32
      %v4474 = vpop.permute.xlu0 %4473
      %4475 = vrot.lane.b32.xlu0 %v3886, 32
      %v4476 = vpop.permute.xlu0 %4475
      %4477 = vrot.lane.b32.xlu0 %v3887, 32
      %v4478 = vpop.permute.xlu0 %4477
      %4479 = vrot.lane.b32.xlu0 %v3888, 32
      %v4480 = vpop.permute.xlu0 %4479
      %4481 = vrot.lane.b32.xlu0 %v3889, 32
      %v4482 = vpop.permute.xlu0 %4481
      %4483 = vrot.lane.b32.xlu0 %v3890, 32
      %v4484 = vpop.permute.xlu0 %4483
      %4485 = vrot.lane.b32.xlu0 %v3891, 32
      %v4486 = vpop.permute.xlu0 %4485
      %4487 = vrot.lane.b32.xlu0 %v3892, 32
      %v4488 = vpop.permute.xlu0 %4487
      %4489 = vrot.lane.b32.xlu0 %v3893, 32
      %v4490 = vpop.permute.xlu0 %4489
      %4491 = vrot.lane.b32.xlu0 %v3894, 32
      %v4492 = vpop.permute.xlu0 %4491
      %4493 = vrot.lane.b32.xlu0 %v3895, 32
      %v4494 = vpop.permute.xlu0 %4493
      %4495 = vrot.lane.b32.xlu0 %v3896, 32
      %v4496 = vpop.permute.xlu0 %4495
      %4497 = vrot.lane.b32.xlu0 %v3897, 32
      %v4498 = vpop.permute.xlu0 %4497
      %4499 = vrot.lane.b32.xlu0 %v3898, 32
      %v4500 = vpop.permute.xlu0 %4499
      %4501 = vrot.lane.b32.xlu0 %v3899, 32
      %v4502 = vpop.permute.xlu0 %4501
      %4503 = vrot.lane.b32.xlu0 %v3900, 32
      %v4504 = vpop.permute.xlu0 %4503
      %4505 = vrot.lane.b32.xlu0 %v3901, 32
      %v4506 = vpop.permute.xlu0 %4505
      %4507 = vrot.lane.b32.xlu0 %v3902, 32
      %v4508 = vpop.permute.xlu0 %4507
      %4509 = vrot.lane.b32.xlu0 %v3903, 32
      %v4510 = vpop.permute.xlu0 %4509
      %4511 = vrot.lane.b32.xlu0 %v3904, 32
      %v4512 = vpop.permute.xlu0 %4511
      %4513 = vrot.lane.b32.xlu0 %v3905, 32
      %v4514 = vpop.permute.xlu0 %4513
      %4579 = vrot.lane.b32.xlu0 %v3906, 40
      %v4580 = vpop.permute.xlu0 %4579
      %4581 = vrot.lane.b32.xlu0 %v3907, 40
      %v4582 = vpop.permute.xlu0 %4581
      %4583 = vrot.lane.b32.xlu0 %v3908, 40
      %v4584 = vpop.permute.xlu0 %4583
      %4585 = vrot.lane.b32.xlu0 %v3909, 40
      %v4586 = vpop.permute.xlu0 %4585
      %4587 = vrot.lane.b32.xlu0 %v3910, 40
      %v4588 = vpop.permute.xlu0 %4587
      %4589 = vrot.lane.b32.xlu0 %v3911, 40
      %v4590 = vpop.permute.xlu0 %4589
      %4591 = vrot.lane.b32.xlu0 %v3912, 40
      %v4592 = vpop.permute.xlu0 %4591
      %4593 = vrot.lane.b32.xlu0 %v3913, 40
      %v4594 = vpop.permute.xlu0 %4593
      %4595 = vrot.lane.b32.xlu0 %v3914, 40
      %v4596 = vpop.permute.xlu0 %4595
      %4597 = vrot.lane.b32.xlu0 %v3915, 40
      %v4598 = vpop.permute.xlu0 %4597
      %4599 = vrot.lane.b32.xlu0 %v3916, 40
      %v4600 = vpop.permute.xlu0 %4599
      %4601 = vrot.lane.b32.xlu0 %v3917, 40
      %v4602 = vpop.permute.xlu0 %4601
      %4603 = vrot.lane.b32.xlu0 %v3918, 40
      %v4604 = vpop.permute.xlu0 %4603
      %4605 = vrot.lane.b32.xlu0 %v3919, 40
      %v4606 = vpop.permute.xlu0 %4605
      %4607 = vrot.lane.b32.xlu0 %v3920, 40
      %v4608 = vpop.permute.xlu0 %4607
      %4609 = vrot.lane.b32.xlu0 %v3921, 40
      %v4610 = vpop.permute.xlu0 %4609
      %4611 = vrot.lane.b32.xlu0 %v3922, 40
      %v4612 = vpop.permute.xlu0 %4611
      %4613 = vrot.lane.b32.xlu0 %v3923, 40
      %v4614 = vpop.permute.xlu0 %4613
      %4615 = vrot.lane.b32.xlu0 %v3924, 40
      %v4616 = vpop.permute.xlu0 %4615
      %4617 = vrot.lane.b32.xlu0 %v3925, 40
      %v4618 = vpop.permute.xlu0 %4617
      %4619 = vrot.lane.b32.xlu0 %v3926, 40
      %v4620 = vpop.permute.xlu0 %4619
      %4621 = vrot.lane.b32.xlu0 %v3927, 40
      %v4622 = vpop.permute.xlu0 %4621
      %4623 = vrot.lane.b32.xlu0 %v3928, 40
      %v4624 = vpop.permute.xlu0 %4623
      %4625 = vrot.lane.b32.xlu0 %v3929, 40
      %v4626 = vpop.permute.xlu0 %4625
      %4627 = vrot.lane.b32.xlu0 %v3930, 40
      %v4628 = vpop.permute.xlu0 %4627
      %4629 = vrot.lane.b32.xlu0 %v3931, 40
      %v4630 = vpop.permute.xlu0 %4629
      %4631 = vrot.lane.b32.xlu0 %v3932, 40
      %v4632 = vpop.permute.xlu0 %4631
      %4633 = vrot.lane.b32.xlu0 %v3933, 40
      %v4634 = vpop.permute.xlu0 %4633
      %4635 = vrot.lane.b32.xlu0 %v3934, 40
      %v4636 = vpop.permute.xlu0 %4635
      %4637 = vrot.lane.b32.xlu0 %v3935, 40
      %v4638 = vpop.permute.xlu0 %4637
      %4639 = vrot.lane.b32.xlu0 %v3936, 40
      %v4640 = vpop.permute.xlu0 %4639
      %4641 = vrot.lane.b32.xlu0 %v3937, 40
      %v4642 = vpop.permute.xlu0 %4641
      %4707 = vrot.lane.b32.xlu0 %v3939, 48
      %v4708 = vpop.permute.xlu0 %4707
      %4709 = vrot.lane.b32.xlu0 %v3940, 48
      %v4710 = vpop.permute.xlu0 %4709
      %4711 = vrot.lane.b32.xlu0 %v3941, 48
      %v4712 = vpop.permute.xlu0 %4711
      %4713 = vrot.lane.b32.xlu0 %v3942, 48
      %v4714 = vpop.permute.xlu0 %4713
      %4715 = vrot.lane.b32.xlu0 %v3943, 48
      %v4716 = vpop.permute.xlu0 %4715
      %4717 = vrot.lane.b32.xlu0 %v3944, 48
      %v4718 = vpop.permute.xlu0 %4717
      %4719 = vrot.lane.b32.xlu0 %v3945, 48
      %v4720 = vpop.permute.xlu0 %4719
      %4721 = vrot.lane.b32.xlu0 %v3946, 48
      %v4722 = vpop.permute.xlu0 %4721
      %4723 = vrot.lane.b32.xlu0 %v3947, 48
      %v4724 = vpop.permute.xlu0 %4723
      %4725 = vrot.lane.b32.xlu0 %v3948, 48
      %v4726 = vpop.permute.xlu0 %4725
      %4727 = vrot.lane.b32.xlu0 %v3949, 48
      %v4728 = vpop.permute.xlu0 %4727
      %4729 = vrot.lane.b32.xlu0 %v3950, 48
      %v4730 = vpop.permute.xlu0 %4729
      %4731 = vrot.lane.b32.xlu0 %v3951, 48
      %v4732 = vpop.permute.xlu0 %4731
      %4733 = vrot.lane.b32.xlu0 %v3952, 48
      %v4734 = vpop.permute.xlu0 %4733
      %4735 = vrot.lane.b32.xlu0 %v3953, 48
      %v4736 = vpop.permute.xlu0 %4735
      %4737 = vrot.lane.b32.xlu0 %v3954, 48
      %v4738 = vpop.permute.xlu0 %4737
      %4739 = vrot.lane.b32.xlu0 %v3955, 48
      %v4740 = vpop.permute.xlu0 %4739
      %4741 = vrot.lane.b32.xlu0 %v3956, 48
      %v4742 = vpop.permute.xlu0 %4741
      %4743 = vrot.lane.b32.xlu0 %v3957, 48
      %v4744 = vpop.permute.xlu0 %4743
      %4745 = vrot.lane.b32.xlu0 %v3958, 48
      %v4746 = vpop.permute.xlu0 %4745
      %4747 = vrot.lane.b32.xlu0 %v3959, 48
      %v4748 = vpop.permute.xlu0 %4747
      %4749 = vrot.lane.b32.xlu0 %v3960, 48
      %v4750 = vpop.permute.xlu0 %4749
      %4751 = vrot.lane.b32.xlu0 %v3961, 48
      %v4752 = vpop.permute.xlu0 %4751
      %4753 = vrot.lane.b32.xlu0 %v3962, 48
      %v4754 = vpop.permute.xlu0 %4753
      %4755 = vrot.lane.b32.xlu0 %v3963, 48
      %v4756 = vpop.permute.xlu0 %4755
      %4757 = vrot.lane.b32.xlu0 %v3964, 48
      %v4758 = vpop.permute.xlu0 %4757
      %4759 = vrot.lane.b32.xlu0 %v3965, 48
      %v4760 = vpop.permute.xlu0 %4759
      %4761 = vrot.lane.b32.xlu0 %v3966, 48
      %v4762 = vpop.permute.xlu0 %4761
      %4763 = vrot.lane.b32.xlu0 %v3967, 48
      %v4764 = vpop.permute.xlu0 %4763
      %4765 = vrot.lane.b32.xlu0 %v3968, 48
      %v4766 = vpop.permute.xlu0 %4765
      %4767 = vrot.lane.b32.xlu0 %v3969, 48
      %v4768 = vpop.permute.xlu0 %4767
      %4769 = vrot.lane.b32.xlu0 %v3970, 48
      %v4770 = vpop.permute.xlu0 %4769
      %4835 = vrot.lane.b32.xlu0 %v3971, 56
      %v4836 = vpop.permute.xlu0 %4835
      %4837 = vrot.lane.b32.xlu0 %v3972, 56
      %v4838 = vpop.permute.xlu0 %4837
      %4839 = vrot.lane.b32.xlu0 %v3973, 56
      %v4840 = vpop.permute.xlu0 %4839
      %4841 = vrot.lane.b32.xlu0 %v3974, 56
      %v4842 = vpop.permute.xlu0 %4841
      %4843 = vrot.lane.b32.xlu0 %v3975, 56
      %v4844 = vpop.permute.xlu0 %4843
      %4845 = vrot.lane.b32.xlu0 %v3976, 56
      %v4846 = vpop.permute.xlu0 %4845
      %4847 = vrot.lane.b32.xlu0 %v3977, 56
      %v4848 = vpop.permute.xlu0 %4847
      %4849 = vrot.lane.b32.xlu0 %v3978, 56
      %v4850 = vpop.permute.xlu0 %4849
      %4851 = vrot.lane.b32.xlu0 %v3979, 56
      %v4852 = vpop.permute.xlu0 %4851
      %4853 = vrot.lane.b32.xlu0 %v3980, 56
      %v4854 = vpop.permute.xlu0 %4853
      %4855 = vrot.lane.b32.xlu0 %v3981, 56
      %v4856 = vpop.permute.xlu0 %4855
      %4857 = vrot.lane.b32.xlu0 %v3982, 56
      %v4858 = vpop.permute.xlu0 %4857
      %4859 = vrot.lane.b32.xlu0 %v3983, 56
      %v4860 = vpop.permute.xlu0 %4859
      %4861 = vrot.lane.b32.xlu0 %v3984, 56
      %v4862 = vpop.permute.xlu0 %4861
      %4863 = vrot.lane.b32.xlu0 %v3985, 56
      %v4864 = vpop.permute.xlu0 %4863
      %4865 = vrot.lane.b32.xlu0 %v3986, 56
      %v4866 = vpop.permute.xlu0 %4865
      %4867 = vrot.lane.b32.xlu0 %v3987, 56
      %v4868 = vpop.permute.xlu0 %4867
      %4869 = vrot.lane.b32.xlu0 %v3988, 56
      %v4870 = vpop.permute.xlu0 %4869
      %4871 = vrot.lane.b32.xlu0 %v3989, 56
      %v4872 = vpop.permute.xlu0 %4871
      %4873 = vrot.lane.b32.xlu0 %v3990, 56
      %v4874 = vpop.permute.xlu0 %4873
      %4875 = vrot.lane.b32.xlu0 %v3991, 56
      %v4876 = vpop.permute.xlu0 %4875
      %4877 = vrot.lane.b32.xlu0 %v3992, 56
      %v4878 = vpop.permute.xlu0 %4877
      %4879 = vrot.lane.b32.xlu0 %v3993, 56
      %v4880 = vpop.permute.xlu0 %4879
      %4881 = vrot.lane.b32.xlu0 %v3994, 56
      %v4882 = vpop.permute.xlu0 %4881
      %4883 = vrot.lane.b32.xlu0 %v3995, 56
      %v4884 = vpop.permute.xlu0 %4883
      %4885 = vrot.lane.b32.xlu0 %v3996, 56
      %v4886 = vpop.permute.xlu0 %4885
      %4887 = vrot.lane.b32.xlu0 %v3997, 56
      %v4888 = vpop.permute.xlu0 %4887
      %4889 = vrot.lane.b32.xlu0 %v3998, 56
      %v4890 = vpop.permute.xlu0 %4889
      %4891 = vrot.lane.b32.xlu0 %v3999, 56
      %v4892 = vpop.permute.xlu0 %4891
      %4893 = vrot.lane.b32.xlu0 %v4000, 56
      %v4894 = vpop.permute.xlu0 %4893
      %4895 = vrot.lane.b32.xlu0 %v4001, 56
      %v4896 = vpop.permute.xlu0 %4895
      %4897 = vrot.lane.b32.xlu0 %v4002, 56
      %v4898 = vpop.permute.xlu0 %4897
      %4963 = vrot.lane.b32.xlu0 %v4003, 64
      %v4964 = vpop.permute.xlu0 %4963
      %4965 = vrot.lane.b32.xlu0 %v4004, 64
      %v4966 = vpop.permute.xlu0 %4965
      %4967 = vrot.lane.b32.xlu0 %v4005, 64
      %v4968 = vpop.permute.xlu0 %4967
      %4969 = vrot.lane.b32.xlu0 %v4006, 64
      %v4970 = vpop.permute.xlu0 %4969
      %4971 = vrot.lane.b32.xlu0 %v4007, 64
      %v4972 = vpop.permute.xlu0 %4971
      %4973 = vrot.lane.b32.xlu0 %v4008, 64
      %v4974 = vpop.permute.xlu0 %4973
      %4975 = vrot.lane.b32.xlu0 %v4009, 64
      %v4976 = vpop.permute.xlu0 %4975
      %4977 = vrot.lane.b32.xlu0 %v4010, 64
      %v4978 = vpop.permute.xlu0 %4977
      %4979 = vrot.lane.b32.xlu0 %v4011, 64
      %v4980 = vpop.permute.xlu0 %4979
      %4981 = vrot.lane.b32.xlu0 %v4012, 64
      %v4982 = vpop.permute.xlu0 %4981
      %4983 = vrot.lane.b32.xlu0 %v4013, 64
      %v4984 = vpop.permute.xlu0 %4983
      %4985 = vrot.lane.b32.xlu0 %v4014, 64
      %v4986 = vpop.permute.xlu0 %4985
      %4987 = vrot.lane.b32.xlu0 %v4015, 64
      %v4988 = vpop.permute.xlu0 %4987
      %4989 = vrot.lane.b32.xlu0 %v4016, 64
      %v4990 = vpop.permute.xlu0 %4989
      %4991 = vrot.lane.b32.xlu0 %v4017, 64
      %v4992 = vpop.permute.xlu0 %4991
      %4993 = vrot.lane.b32.xlu0 %v4018, 64
      %v4994 = vpop.permute.xlu0 %4993
      %4995 = vrot.lane.b32.xlu0 %v4019, 64
      %v4996 = vpop.permute.xlu0 %4995
      %4997 = vrot.lane.b32.xlu0 %v4020, 64
      %v4998 = vpop.permute.xlu0 %4997
      %4999 = vrot.lane.b32.xlu0 %v4021, 64
      %v5000 = vpop.permute.xlu0 %4999
      %5001 = vrot.lane.b32.xlu0 %v4022, 64
      %v5002 = vpop.permute.xlu0 %5001
      %5003 = vrot.lane.b32.xlu0 %v4023, 64
      %v5004 = vpop.permute.xlu0 %5003
      %5005 = vrot.lane.b32.xlu0 %v4024, 64
      %v5006 = vpop.permute.xlu0 %5005
      %5007 = vrot.lane.b32.xlu0 %v4025, 64
      %v5008 = vpop.permute.xlu0 %5007
      %5009 = vrot.lane.b32.xlu0 %v4026, 64
      %v5010 = vpop.permute.xlu0 %5009
      %5011 = vrot.lane.b32.xlu0 %v4027, 64
      %v5012 = vpop.permute.xlu0 %5011
      %5013 = vrot.lane.b32.xlu0 %v4028, 64
      %v5014 = vpop.permute.xlu0 %5013
      %5015 = vrot.lane.b32.xlu0 %v4029, 64
      %v5016 = vpop.permute.xlu0 %5015
      %5017 = vrot.lane.b32.xlu0 %v4030, 64
      %v5018 = vpop.permute.xlu0 %5017
      %5019 = vrot.lane.b32.xlu0 %v4031, 64
      %v5020 = vpop.permute.xlu0 %5019
      %5021 = vrot.lane.b32.xlu0 %v4032, 64
      %v5022 = vpop.permute.xlu0 %5021
      %5023 = vrot.lane.b32.xlu0 %v4033, 64
      %v5024 = vpop.permute.xlu0 %5023
      %5025 = vrot.lane.b32.xlu0 %v4034, 64
      %v5026 = vpop.permute.xlu0 %5025
      %v5059 = vsel %vm434, %v3746, %v4068
      %v5060 = vsel %vm434, %v3747, %v4070
      %v5061 = vsel %vm434, %v3748, %v4072
      %v5062 = vsel %vm434, %v3749, %v4074
      %v5063 = vsel %vm434, %v3750, %v4076
      %v5064 = vsel %vm434, %v3751, %v4078
      %v5065 = vsel %vm434, %v3752, %v4080
      %v5066 = vsel %vm434, %v3753, %v4082
      %v5067 = vsel %vm434, %v3754, %v4084
      %v5068 = vsel %vm434, %v3755, %v4086
      %v5069 = vsel %vm434, %v3756, %v4088
      %v5070 = vsel %vm434, %v3757, %v4090
      %v5071 = vsel %vm434, %v3758, %v4092
      %v5072 = vsel %vm434, %v3759, %v4094
      %v5073 = vsel %vm434, %v3760, %v4096
      %v5074 = vsel %vm434, %v3761, %v4098
      %v5075 = vsel %vm434, %v3762, %v4100
      %v5076 = vsel %vm434, %v3763, %v4102
      %v5077 = vsel %vm434, %v3764, %v4104
      %v5078 = vsel %vm434, %v3765, %v4106
      %v5079 = vsel %vm434, %v3766, %v4108
      %v5080 = vsel %vm434, %v3767, %v4110
      %v5081 = vsel %vm434, %v3768, %v4112
      %v5082 = vsel %vm434, %v3769, %v4114
      %v5083 = vsel %vm434, %v3770, %v4116
      %v5084 = vsel %vm434, %v3771, %v4118
      %v5085 = vsel %vm434, %v3772, %v4120
      %v5086 = vsel %vm434, %v3773, %v4122
      %v5087 = vsel %vm434, %v3774, %v4124
      %v5088 = vsel %vm434, %v3775, %v4126
      %v5089 = vsel %vm434, %v3776, %v4128
      %v5090 = vsel %vm434, %v3777, %v4130
      %v5091 = vsel %vm3515, %v5059, %v4196
      %v5092 = vsel %vm3515, %v5060, %v4198
      %v5093 = vsel %vm3515, %v5061, %v4200
      %v5094 = vsel %vm3515, %v5062, %v4202
      %v5095 = vsel %vm3515, %v5063, %v4204
      %v5096 = vsel %vm3515, %v5064, %v4206
      %v5097 = vsel %vm3515, %v5065, %v4208
      %v5098 = vsel %vm3515, %v5066, %v4210
      %v5099 = vsel %vm3515, %v5067, %v4212
      %v5100 = vsel %vm3515, %v5068, %v4214
      %v5101 = vsel %vm3515, %v5069, %v4216
      %v5102 = vsel %vm3515, %v5070, %v4218
      %v5103 = vsel %vm3515, %v5071, %v4220
      %v5104 = vsel %vm3515, %v5072, %v4222
      %v5105 = vsel %vm3515, %v5073, %v4224
      %v5106 = vsel %vm3515, %v5074, %v4226
      %v5107 = vsel %vm3515, %v5075, %v4228
      %v5108 = vsel %vm3515, %v5076, %v4230
      %v5109 = vsel %vm3515, %v5077, %v4232
      %v5110 = vsel %vm3515, %v5078, %v4234
      %v5111 = vsel %vm3515, %v5079, %v4236
      %v5112 = vsel %vm3515, %v5080, %v4238
      %v5113 = vsel %vm3515, %v5081, %v4240
      %v5114 = vsel %vm3515, %v5082, %v4242
      %v5115 = vsel %vm3515, %v5083, %v4244
      %v5116 = vsel %vm3515, %v5084, %v4246
      %v5117 = vsel %vm3515, %v5085, %v4248
      %v5118 = vsel %vm3515, %v5086, %v4250
      %v5119 = vsel %vm3515, %v5087, %v4252
      %v5120 = vsel %vm3515, %v5088, %v4254
      %v5121 = vsel %vm3515, %v5089, %v4256
      %v5122 = vsel %vm3515, %v5090, %v4258
      %v5123 = vsel %vm3548, %v5091, %v4324
      %v5124 = vsel %vm3548, %v5092, %v4326
      %v5125 = vsel %vm3548, %v5093, %v4328
      %v5126 = vsel %vm3548, %v5094, %v4330
      %v5127 = vsel %vm3548, %v5095, %v4332
      %v5128 = vsel %vm3548, %v5096, %v4334
      %v5129 = vsel %vm3548, %v5097, %v4336
      %v5130 = vsel %vm3548, %v5098, %v4338
      %v5131 = vsel %vm3548, %v5099, %v4340
      %v5132 = vsel %vm3548, %v5100, %v4342
      %v5133 = vsel %vm3548, %v5101, %v4344
      %v5134 = vsel %vm3548, %v5102, %v4346
      %v5135 = vsel %vm3548, %v5103, %v4348
      %v5136 = vsel %vm3548, %v5104, %v4350
      %v5137 = vsel %vm3548, %v5105, %v4352
      %v5138 = vsel %vm3548, %v5106, %v4354
      %v5139 = vsel %vm3548, %v5107, %v4356
      %v5140 = vsel %vm3548, %v5108, %v4358
      %v5141 = vsel %vm3548, %v5109, %v4360
      %v5142 = vsel %vm3548, %v5110, %v4362
      %v5143 = vsel %vm3548, %v5111, %v4364
      %v5144 = vsel %vm3548, %v5112, %v4366
      %v5145 = vsel %vm3548, %v5113, %v4368
      %v5146 = vsel %vm3548, %v5114, %v4370
      %v5147 = vsel %vm3548, %v5115, %v4372
      %v5148 = vsel %vm3548, %v5116, %v4374
      %v5149 = vsel %vm3548, %v5117, %v4376
      %v5150 = vsel %vm3548, %v5118, %v4378
      %v5151 = vsel %vm3548, %v5119, %v4380
      %v5152 = vsel %vm3548, %v5120, %v4382
      %v5153 = vsel %vm3548, %v5121, %v4384
      %v5154 = vsel %vm3548, %v5122, %v4386
      %v5155 = vsel %vm3581, %v5123, %v4452
      %v5156 = vsel %vm3581, %v5124, %v4454
      %v5157 = vsel %vm3581, %v5125, %v4456
      %v5158 = vsel %vm3581, %v5126, %v4458
      %v5159 = vsel %vm3581, %v5127, %v4460
      %v5160 = vsel %vm3581, %v5128, %v4462
      %v5161 = vsel %vm3581, %v5129, %v4464
      %v5162 = vsel %vm3581, %v5130, %v4466
      %v5163 = vsel %vm3581, %v5131, %v4468
      %v5164 = vsel %vm3581, %v5132, %v4470
      %v5165 = vsel %vm3581, %v5133, %v4472
      %v5166 = vsel %vm3581, %v5134, %v4474
      %v5167 = vsel %vm3581, %v5135, %v4476
      %v5168 = vsel %vm3581, %v5136, %v4478
      %v5169 = vsel %vm3581, %v5137, %v4480
      %v5170 = vsel %vm3581, %v5138, %v4482
      %v5171 = vsel %vm3581, %v5139, %v4484
      %v5172 = vsel %vm3581, %v5140, %v4486
      %v5173 = vsel %vm3581, %v5141, %v4488
      %v5174 = vsel %vm3581, %v5142, %v4490
      %v5175 = vsel %vm3581, %v5143, %v4492
      %v5176 = vsel %vm3581, %v5144, %v4494
      %v5177 = vsel %vm3581, %v5145, %v4496
      %v5178 = vsel %vm3581, %v5146, %v4498
      %v5179 = vsel %vm3581, %v5147, %v4500
      %v5180 = vsel %vm3581, %v5148, %v4502
      %v5181 = vsel %vm3581, %v5149, %v4504
      %v5182 = vsel %vm3581, %v5150, %v4506
      %v5183 = vsel %vm3581, %v5151, %v4508
      %v5184 = vsel %vm3581, %v5152, %v4510
      %v5185 = vsel %vm3581, %v5153, %v4512
      %v5186 = vsel %vm3581, %v5154, %v4514
      %v5187 = vsel %vm3614, %v5155, %v4580
      %v5188 = vsel %vm3614, %v5156, %v4582
      %v5189 = vsel %vm3614, %v5157, %v4584
      %v5190 = vsel %vm3614, %v5158, %v4586
      %v5191 = vsel %vm3614, %v5159, %v4588
      %v5192 = vsel %vm3614, %v5160, %v4590
      %v5193 = vsel %vm3614, %v5161, %v4592
      %v5194 = vsel %vm3614, %v5162, %v4594
      %v5195 = vsel %vm3614, %v5163, %v4596
      %v5196 = vsel %vm3614, %v5164, %v4598
      %v5197 = vsel %vm3614, %v5165, %v4600
      %v5198 = vsel %vm3614, %v5166, %v4602
      %v5199 = vsel %vm3614, %v5167, %v4604
      %v5200 = vsel %vm3614, %v5168, %v4606
      %v5201 = vsel %vm3614, %v5169, %v4608
      %v5202 = vsel %vm3614, %v5170, %v4610
      %v5203 = vsel %vm3614, %v5171, %v4612
      %v5204 = vsel %vm3614, %v5172, %v4614
      %v5205 = vsel %vm3614, %v5173, %v4616
      %v5206 = vsel %vm3614, %v5174, %v4618
      %v5207 = vsel %vm3614, %v5175, %v4620
      %v5208 = vsel %vm3614, %v5176, %v4622
      %v5209 = vsel %vm3614, %v5177, %v4624
      %v5210 = vsel %vm3614, %v5178, %v4626
      %v5211 = vsel %vm3614, %v5179, %v4628
      %v5212 = vsel %vm3614, %v5180, %v4630
      %v5213 = vsel %vm3614, %v5181, %v4632
      %v5214 = vsel %vm3614, %v5182, %v4634
      %v5215 = vsel %vm3614, %v5183, %v4636
      %v5216 = vsel %vm3614, %v5184, %v4638
      %v5217 = vsel %vm3614, %v5185, %v4640
      %v5218 = vsel %vm3614, %v5186, %v4642
      %v5219 = vsel %vm3647, %v5187, %v4708
      %v5220 = vsel %vm3647, %v5188, %v4710
      %v5221 = vsel %vm3647, %v5189, %v4712
      %v5222 = vsel %vm3647, %v5190, %v4714
      %v5223 = vsel %vm3647, %v5191, %v4716
      %v5224 = vsel %vm3647, %v5192, %v4718
      %v5225 = vsel %vm3647, %v5193, %v4720
      %v5226 = vsel %vm3647, %v5194, %v4722
      %v5227 = vsel %vm3647, %v5195, %v4724
      %v5228 = vsel %vm3647, %v5196, %v4726
      %v5229 = vsel %vm3647, %v5197, %v4728
      %v5230 = vsel %vm3647, %v5198, %v4730
      %v5231 = vsel %vm3647, %v5199, %v4732
      %v5232 = vsel %vm3647, %v5200, %v4734
      %v5233 = vsel %vm3647, %v5201, %v4736
      %v5234 = vsel %vm3647, %v5202, %v4738
      %v5235 = vsel %vm3647, %v5203, %v4740
      %v5236 = vsel %vm3647, %v5204, %v4742
      %v5237 = vsel %vm3647, %v5205, %v4744
      %v5238 = vsel %vm3647, %v5206, %v4746
      %v5239 = vsel %vm3647, %v5207, %v4748
      %v5240 = vsel %vm3647, %v5208, %v4750
      %v5241 = vsel %vm3647, %v5209, %v4752
      %v5242 = vsel %vm3647, %v5210, %v4754
      %v5243 = vsel %vm3647, %v5211, %v4756
      %v5244 = vsel %vm3647, %v5212, %v4758
      %v5245 = vsel %vm3647, %v5213, %v4760
      %v5246 = vsel %vm3647, %v5214, %v4762
      %v5247 = vsel %vm3647, %v5215, %v4764
      %v5248 = vsel %vm3647, %v5216, %v4766
      %v5249 = vsel %vm3647, %v5217, %v4768
      %v5250 = vsel %vm3647, %v5218, %v4770
      %v5251 = vsel %vm3680, %v5219, %v4836
      %v5252 = vsel %vm3680, %v5220, %v4838
      %v5253 = vsel %vm3680, %v5221, %v4840
      %v5254 = vsel %vm3680, %v5222, %v4842
      %v5255 = vsel %vm3680, %v5223, %v4844
      %v5256 = vsel %vm3680, %v5224, %v4846
      %v5257 = vsel %vm3680, %v5225, %v4848
      %v5258 = vsel %vm3680, %v5226, %v4850
      %v5259 = vsel %vm3680, %v5227, %v4852
      %v5260 = vsel %vm3680, %v5228, %v4854
      %v5261 = vsel %vm3680, %v5229, %v4856
      %v5262 = vsel %vm3680, %v5230, %v4858
      %v5263 = vsel %vm3680, %v5231, %v4860
      %v5264 = vsel %vm3680, %v5232, %v4862
      %v5265 = vsel %vm3680, %v5233, %v4864
      %v5266 = vsel %vm3680, %v5234, %v4866
      %v5267 = vsel %vm3680, %v5235, %v4868
      %v5268 = vsel %vm3680, %v5236, %v4870
      %v5269 = vsel %vm3680, %v5237, %v4872
      %v5270 = vsel %vm3680, %v5238, %v4874
      %v5271 = vsel %vm3680, %v5239, %v4876
      %v5272 = vsel %vm3680, %v5240, %v4878
      %v5273 = vsel %vm3680, %v5241, %v4880
      %v5274 = vsel %vm3680, %v5242, %v4882
      %v5275 = vsel %vm3680, %v5243, %v4884
      %v5276 = vsel %vm3680, %v5244, %v4886
      %v5277 = vsel %vm3680, %v5245, %v4888
      %v5278 = vsel %vm3680, %v5246, %v4890
      %v5279 = vsel %vm3680, %v5247, %v4892
      %v5280 = vsel %vm3680, %v5248, %v4894
      %v5281 = vsel %vm3680, %v5249, %v4896
      %v5282 = vsel %vm3680, %v5250, %v4898
      %v5283 = vsel %vm3713, %v5251, %v4964
      %v5284 = vsel %vm3713, %v5252, %v4966
      %v5285 = vsel %vm3713, %v5253, %v4968
      %v5286 = vsel %vm3713, %v5254, %v4970
      %v5287 = vsel %vm3713, %v5255, %v4972
      %v5288 = vsel %vm3713, %v5256, %v4974
      %v5289 = vsel %vm3713, %v5257, %v4976
      %v5290 = vsel %vm3713, %v5258, %v4978
      %v5291 = vsel %vm3713, %v5259, %v4980
      %v5292 = vsel %vm3713, %v5260, %v4982
      %v5293 = vsel %vm3713, %v5261, %v4984
      %v5294 = vsel %vm3713, %v5262, %v4986
      %v5295 = vsel %vm3713, %v5263, %v4988
      %v5296 = vsel %vm3713, %v5264, %v4990
      %v5297 = vsel %vm3713, %v5265, %v4992
      %v5298 = vsel %vm3713, %v5266, %v4994
      %v5299 = vsel %vm3713, %v5267, %v4996
      %v5300 = vsel %vm3713, %v5268, %v4998
      %v5301 = vsel %vm3713, %v5269, %v5000
      %v5302 = vsel %vm3713, %v5270, %v5002
      %v5303 = vsel %vm3713, %v5271, %v5004
      %v5304 = vsel %vm3713, %v5272, %v5006
      %v5305 = vsel %vm3713, %v5273, %v5008
      %v5306 = vsel %vm3713, %v5274, %v5010
      %v5307 = vsel %vm3713, %v5275, %v5012
      %v5308 = vsel %vm3713, %v5276, %v5014
      %v5309 = vsel %vm3713, %v5277, %v5016
      %v5310 = vsel %vm3713, %v5278, %v5018
      %v5311 = vsel %vm3713, %v5279, %v5020
      %v5312 = vsel %vm3713, %v5280, %v5022
      %v5313 = vsel %vm3713, %v5281, %v5024
      %v5314 = vsel %vm3713, %v5282, %v5026
      %v5315 = vld [vmem:[%s7] sm:$0xff]
      %v5316 = vld [vmem:[%s7 + $0x8] sm:$0xff]
      %v5317 = vld [vmem:[%s7 + $0x10] sm:$0xff]
      %v5318 = vld [vmem:[%s7 + $0x18] sm:$0xff]
      %v5319 = vld [vmem:[%s7 + $0x20] sm:$0xff]
      %v5320 = vld [vmem:[%s7 + $0x28] sm:$0xff]
      %v5321 = vld [vmem:[%s7 + $0x30] sm:$0xff]
      %v5322 = vld [vmem:[%s7 + $0x38] sm:$0xff]
      %v5323 = vld [vmem:[%s7 + $0x40] sm:$0xff]
      %v5324 = vld [vmem:[%s8] sm:$0xff]
      %v5325 = vld [vmem:[%s8 + $0x8] sm:$0xff]
      %v5326 = vld [vmem:[%s8 + $0x10] sm:$0xff]
      %v5327 = vld [vmem:[%s8 + $0x18] sm:$0xff]
      %v5328 = vld [vmem:[%s8 + $0x20] sm:$0xff]
      %v5329 = vld [vmem:[%s8 + $0x28] sm:$0xff]
      %v5330 = vld [vmem:[%s8 + $0x30] sm:$0xff]
      %v5331 = vld [vmem:[%s8 + $0x38] sm:$0xff]
      %v5332 = vld [vmem:[%s8 + $0x40] sm:$0xff]
      %vm5333 = vcmask 588800
      %v5335 = vsel %vm5333, %v5283, 0
      %v5338 = vsel %vm5333, %v5284, 0
      %v5341 = vsel %vm5333, %v5285, 0
      %v5344 = vsel %vm5333, %v5286, 0
      %v5347 = vsel %vm5333, %v5287, 0
      %v5350 = vsel %vm5333, %v5288, 0
      %v5353 = vsel %vm5333, %v5289, 0
      %v5356 = vsel %vm5333, %v5290, 0
      %v5359 = vsel %vm5333, %v5291, 0
      %v5362 = vsel %vm5333, %v5292, 0
      %v5365 = vsel %vm5333, %v5293, 0
      %v5368 = vsel %vm5333, %v5294, 0
      %v5371 = vsel %vm5333, %v5295, 0
      %v5374 = vsel %vm5333, %v5296, 0
      %v5377 = vsel %vm5333, %v5297, 0
      %v5380 = vsel %vm5333, %v5298, 0
      %v5383 = vsel %vm5333, %v5299, 0
      %v5386 = vsel %vm5333, %v5300, 0
      %v5389 = vsel %vm5333, %v5301, 0
      %v5392 = vsel %vm5333, %v5302, 0
      %v5395 = vsel %vm5333, %v5303, 0
      %v5398 = vsel %vm5333, %v5304, 0
      %v5401 = vsel %vm5333, %v5305, 0
      %v5404 = vsel %vm5333, %v5306, 0
      %v5407 = vsel %vm5333, %v5307, 0
      %v5410 = vsel %vm5333, %v5308, 0
      %v5413 = vsel %vm5333, %v5309, 0
      %v5416 = vsel %vm5333, %v5310, 0
      %v5419 = vsel %vm5333, %v5311, 0
      %v5422 = vsel %vm5333, %v5312, 0
      %v5425 = vsel %vm5333, %v5313, 0
      %v5428 = vsel %vm5333, %v5314, 0
      %5430 = vmatpush.msra.mxu0 0.0
      %5431 = vmatpush.msra.mxu0 0.0
      %5432 = vmatpush.msra.mxu0 0.0
      %5433 = vmatpush.msra.mxu0 0.0
      %5434 = vmatpush.msra.mxu0 0.0
      %5435 = vmatpush.msra.mxu0 0.0
      %5436 = vmatpush.msra.mxu0 0.0
      %5437 = vmatpush.msra.mxu0 %v5332
      %5438 = vmatpush.msra.mxu0 %v5331
      %5439 = vmatpush.msra.mxu0 %v5330
      %5440 = vmatpush.msra.mxu0 %v5329
      %5441 = vmatpush.msra.mxu0 %v5328
      %5442 = vmatpush.msra.mxu0 %v5327
      %5443 = vmatpush.msra.mxu0 %v5326
      %5444 = vmatpush.msra.mxu0 %v5325
      %5445 = vmatpush.msra.mxu0 %v5324
      %5446 = vmatmul.f32.gmra.mxu0 %v5335
      %v5447 = vpop.f32.mrf.mxu0
      %v5448 = vadd.f32 0.0, %v5447
      %5449 = vmatmul.f32.gmra.mxu0 %v5338
      %v5450 = vpop.f32.mrf.mxu0
      %v5451 = vadd.f32 0.0, %v5450
      %5452 = vmatmul.f32.gmra.mxu0 %v5341
      %v5453 = vpop.f32.mrf.mxu0
      %v5454 = vadd.f32 0.0, %v5453
      %5455 = vmatmul.f32.gmra.mxu0 %v5344
      %v5456 = vpop.f32.mrf.mxu0
      %v5457 = vadd.f32 0.0, %v5456
      %5458 = vmatmul.f32.gmra.mxu0 %v5347
      %v5459 = vpop.f32.mrf.mxu0
      %v5460 = vadd.f32 0.0, %v5459
      %5461 = vmatmul.f32.gmra.mxu0 %v5350
      %v5462 = vpop.f32.mrf.mxu0
      %v5463 = vadd.f32 0.0, %v5462
      %5464 = vmatmul.f32.gmra.mxu0 %v5353
      %v5465 = vpop.f32.mrf.mxu0
      %v5466 = vadd.f32 0.0, %v5465
      %5467 = vmatmul.f32.gmra.mxu0 %v5356
      %v5468 = vpop.f32.mrf.mxu0
      %v5469 = vadd.f32 0.0, %v5468
      %5470 = vmatmul.f32.gmra.mxu0 %v5359
      %v5471 = vpop.f32.mrf.mxu0
      %v5472 = vadd.f32 0.0, %v5471
      %5473 = vmatmul.f32.gmra.mxu0 %v5362
      %v5474 = vpop.f32.mrf.mxu0
      %v5475 = vadd.f32 0.0, %v5474
      %5476 = vmatmul.f32.gmra.mxu0 %v5365
      %v5477 = vpop.f32.mrf.mxu0
      %v5478 = vadd.f32 0.0, %v5477
      %5479 = vmatmul.f32.gmra.mxu0 %v5368
      %v5480 = vpop.f32.mrf.mxu0
      %v5481 = vadd.f32 0.0, %v5480
      %5482 = vmatmul.f32.gmra.mxu0 %v5371
      %v5483 = vpop.f32.mrf.mxu0
      %v5484 = vadd.f32 0.0, %v5483
      %5485 = vmatmul.f32.gmra.mxu0 %v5374
      %v5486 = vpop.f32.mrf.mxu0
      %v5487 = vadd.f32 0.0, %v5486
      %5488 = vmatmul.f32.gmra.mxu0 %v5377
      %v5489 = vpop.f32.mrf.mxu0
      %v5490 = vadd.f32 0.0, %v5489
      %5491 = vmatmul.f32.gmra.mxu0 %v5380
      %v5492 = vpop.f32.mrf.mxu0
      %v5493 = vadd.f32 0.0, %v5492
      %5494 = vmatmul.f32.gmra.mxu0 %v5383
      %v5495 = vpop.f32.mrf.mxu0
      %v5496 = vadd.f32 0.0, %v5495
      %5497 = vmatmul.f32.gmra.mxu0 %v5386
      %v5498 = vpop.f32.mrf.mxu0
      %v5499 = vadd.f32 0.0, %v5498
      %5500 = vmatmul.f32.gmra.mxu0 %v5389
      %v5501 = vpop.f32.mrf.mxu0
      %v5502 = vadd.f32 0.0, %v5501
      %5503 = vmatmul.f32.gmra.mxu0 %v5392
      %v5504 = vpop.f32.mrf.mxu0
      %v5505 = vadd.f32 0.0, %v5504
      %5506 = vmatmul.f32.gmra.mxu0 %v5395
      %v5507 = vpop.f32.mrf.mxu0
      %v5508 = vadd.f32 0.0, %v5507
      %5509 = vmatmul.f32.gmra.mxu0 %v5398
      %v5510 = vpop.f32.mrf.mxu0
      %v5511 = vadd.f32 0.0, %v5510
      %5512 = vmatmul.f32.gmra.mxu0 %v5401
      %v5513 = vpop.f32.mrf.mxu0
      %v5514 = vadd.f32 0.0, %v5513
      %5515 = vmatmul.f32.gmra.mxu0 %v5404
      %v5516 = vpop.f32.mrf.mxu0
      %v5517 = vadd.f32 0.0, %v5516
      %5518 = vmatmul.f32.gmra.mxu0 %v5407
      %v5519 = vpop.f32.mrf.mxu0
      %v5520 = vadd.f32 0.0, %v5519
      %5521 = vmatmul.f32.gmra.mxu0 %v5410
      %v5522 = vpop.f32.mrf.mxu0
      %v5523 = vadd.f32 0.0, %v5522
      %5524 = vmatmul.f32.gmra.mxu0 %v5413
      %v5525 = vpop.f32.mrf.mxu0
      %v5526 = vadd.f32 0.0, %v5525
      %5527 = vmatmul.f32.gmra.mxu0 %v5416
      %v5528 = vpop.f32.mrf.mxu0
      %v5529 = vadd.f32 0.0, %v5528
      %5530 = vmatmul.f32.gmra.mxu0 %v5419
      %v5531 = vpop.f32.mrf.mxu0
      %v5532 = vadd.f32 0.0, %v5531
      %5533 = vmatmul.f32.gmra.mxu0 %v5422
      %v5534 = vpop.f32.mrf.mxu0
      %v5535 = vadd.f32 0.0, %v5534
      %5536 = vmatmul.f32.gmra.mxu0 %v5425
      %v5537 = vpop.f32.mrf.mxu0
      %v5538 = vadd.f32 0.0, %v5537
      %5539 = vmatmul.f32.gmra.mxu0 %v5428
      %v5540 = vpop.f32.mrf.mxu0
      %v5541 = vadd.f32 0.0, %v5540
      %5542 = vdwg.mxu0
      %v5544 = vsel %vm5333, %v3714, 0
      %v5547 = vsel %vm5333, %v3715, 0
      %v5550 = vsel %vm5333, %v3716, 0
      %v5553 = vsel %vm5333, %v3717, 0
      %v5556 = vsel %vm5333, %v3718, 0
      %v5559 = vsel %vm5333, %v3719, 0
      %v5562 = vsel %vm5333, %v3720, 0
      %v5565 = vsel %vm5333, %v3721, 0
      %v5568 = vsel %vm5333, %v3722, 0
      %v5571 = vsel %vm5333, %v3723, 0
      %v5574 = vsel %vm5333, %v3724, 0
      %v5577 = vsel %vm5333, %v3725, 0
      %v5580 = vsel %vm5333, %v3726, 0
      %v5583 = vsel %vm5333, %v3727, 0
      %v5586 = vsel %vm5333, %v3728, 0
      %v5589 = vsel %vm5333, %v3729, 0
      %v5592 = vsel %vm5333, %v3730, 0
      %v5595 = vsel %vm5333, %v3731, 0
      %v5598 = vsel %vm5333, %v3732, 0
      %v5601 = vsel %vm5333, %v3733, 0
      %v5604 = vsel %vm5333, %v3734, 0
      %v5607 = vsel %vm5333, %v3735, 0
      %v5610 = vsel %vm5333, %v3736, 0
      %v5613 = vsel %vm5333, %v3737, 0
      %v5616 = vsel %vm5333, %v3738, 0
      %v5619 = vsel %vm5333, %v3739, 0
      %v5622 = vsel %vm5333, %v3740, 0
      %v5625 = vsel %vm5333, %v3741, 0
      %v5628 = vsel %vm5333, %v3742, 0
      %v5631 = vsel %vm5333, %v3743, 0
      %v5634 = vsel %vm5333, %v3744, 0
      %v5637 = vsel %vm5333, %v3745, 0
      %5639 = vmatpush.msra.mxu0 0.0
      %5640 = vmatpush.msra.mxu0 0.0
      %5641 = vmatpush.msra.mxu0 0.0
      %5642 = vmatpush.msra.mxu0 0.0
      %5643 = vmatpush.msra.mxu0 0.0
      %5644 = vmatpush.msra.mxu0 0.0
      %5645 = vmatpush.msra.mxu0 0.0
      %5646 = vmatpush.msra.mxu0 %v5323
      %5647 = vmatpush.msra.mxu0 %v5322
      %5648 = vmatpush.msra.mxu0 %v5321
      %5649 = vmatpush.msra.mxu0 %v5320
      %5650 = vmatpush.msra.mxu0 %v5319
      %5651 = vmatpush.msra.mxu0 %v5318
      %5652 = vmatpush.msra.mxu0 %v5317
      %5653 = vmatpush.msra.mxu0 %v5316
      %5654 = vmatpush.msra.mxu0 %v5315
      %5655 = vmatmul.f32.gmra.mxu0 %v5544
      %v5656 = vpop.f32.mrf.mxu0
      %v5657 = vadd.f32 %v5448, %v5656
      %5658 = vmatmul.f32.gmra.mxu0 %v5547
      %v5659 = vpop.f32.mrf.mxu0
      %v5660 = vadd.f32 %v5451, %v5659
      %5661 = vmatmul.f32.gmra.mxu0 %v5550
      %v5662 = vpop.f32.mrf.mxu0
      %v5663 = vadd.f32 %v5454, %v5662
      %5664 = vmatmul.f32.gmra.mxu0 %v5553
      %v5665 = vpop.f32.mrf.mxu0
      %v5666 = vadd.f32 %v5457, %v5665
      %5667 = vmatmul.f32.gmra.mxu0 %v5556
      %v5668 = vpop.f32.mrf.mxu0
      %v5669 = vadd.f32 %v5460, %v5668
      %5670 = vmatmul.f32.gmra.mxu0 %v5559
      %v5671 = vpop.f32.mrf.mxu0
      %v5672 = vadd.f32 %v5463, %v5671
      %5673 = vmatmul.f32.gmra.mxu0 %v5562
      %v5674 = vpop.f32.mrf.mxu0
      %v5675 = vadd.f32 %v5466, %v5674
      %5676 = vmatmul.f32.gmra.mxu0 %v5565
      %v5677 = vpop.f32.mrf.mxu0
      %v5678 = vadd.f32 %v5469, %v5677
      %5679 = vmatmul.f32.gmra.mxu0 %v5568
      %v5680 = vpop.f32.mrf.mxu0
      %v5681 = vadd.f32 %v5472, %v5680
      %5682 = vmatmul.f32.gmra.mxu0 %v5571
      %v5683 = vpop.f32.mrf.mxu0
      %v5684 = vadd.f32 %v5475, %v5683
      %5685 = vmatmul.f32.gmra.mxu0 %v5574
      %v5686 = vpop.f32.mrf.mxu0
      %v5687 = vadd.f32 %v5478, %v5686
      %5688 = vmatmul.f32.gmra.mxu0 %v5577
      %v5689 = vpop.f32.mrf.mxu0
      %v5690 = vadd.f32 %v5481, %v5689
      %5691 = vmatmul.f32.gmra.mxu0 %v5580
      %v5692 = vpop.f32.mrf.mxu0
      %v5693 = vadd.f32 %v5484, %v5692
      %5694 = vmatmul.f32.gmra.mxu0 %v5583
      %v5695 = vpop.f32.mrf.mxu0
      %v5696 = vadd.f32 %v5487, %v5695
      %5697 = vmatmul.f32.gmra.mxu0 %v5586
      %v5698 = vpop.f32.mrf.mxu0
      %v5699 = vadd.f32 %v5490, %v5698
      %5700 = vmatmul.f32.gmra.mxu0 %v5589
      %v5701 = vpop.f32.mrf.mxu0
      %v5702 = vadd.f32 %v5493, %v5701
      %5703 = vmatmul.f32.gmra.mxu0 %v5592
      %v5704 = vpop.f32.mrf.mxu0
      %v5705 = vadd.f32 %v5496, %v5704
      %5706 = vmatmul.f32.gmra.mxu0 %v5595
      %v5707 = vpop.f32.mrf.mxu0
      %v5708 = vadd.f32 %v5499, %v5707
      %5709 = vmatmul.f32.gmra.mxu0 %v5598
      %v5710 = vpop.f32.mrf.mxu0
      %v5711 = vadd.f32 %v5502, %v5710
      %5712 = vmatmul.f32.gmra.mxu0 %v5601
      %v5713 = vpop.f32.mrf.mxu0
      %v5714 = vadd.f32 %v5505, %v5713
      %5715 = vmatmul.f32.gmra.mxu0 %v5604
      %v5716 = vpop.f32.mrf.mxu0
      %v5717 = vadd.f32 %v5508, %v5716
      %5718 = vmatmul.f32.gmra.mxu0 %v5607
      %v5719 = vpop.f32.mrf.mxu0
      %v5720 = vadd.f32 %v5511, %v5719
      %5721 = vmatmul.f32.gmra.mxu0 %v5610
      %v5722 = vpop.f32.mrf.mxu0
      %v5723 = vadd.f32 %v5514, %v5722
      %5724 = vmatmul.f32.gmra.mxu0 %v5613
      %v5725 = vpop.f32.mrf.mxu0
      %v5726 = vadd.f32 %v5517, %v5725
      %5727 = vmatmul.f32.gmra.mxu0 %v5616
      %v5728 = vpop.f32.mrf.mxu0
      %v5729 = vadd.f32 %v5520, %v5728
      %5730 = vmatmul.f32.gmra.mxu0 %v5619
      %v5731 = vpop.f32.mrf.mxu0
      %v5732 = vadd.f32 %v5523, %v5731
      %5733 = vmatmul.f32.gmra.mxu0 %v5622
      %v5734 = vpop.f32.mrf.mxu0
      %v5735 = vadd.f32 %v5526, %v5734
      %5736 = vmatmul.f32.gmra.mxu0 %v5625
      %v5737 = vpop.f32.mrf.mxu0
      %v5738 = vadd.f32 %v5529, %v5737
      %5739 = vmatmul.f32.gmra.mxu0 %v5628
      %v5740 = vpop.f32.mrf.mxu0
      %v5741 = vadd.f32 %v5532, %v5740
      %5742 = vmatmul.f32.gmra.mxu0 %v5631
      %v5743 = vpop.f32.mrf.mxu0
      %v5744 = vadd.f32 %v5535, %v5743
      %5745 = vmatmul.f32.gmra.mxu0 %v5634
      %v5746 = vpop.f32.mrf.mxu0
      %v5747 = vadd.f32 %v5538, %v5746
      %5748 = vmatmul.f32.gmra.mxu0 %v5637
      %v5749 = vpop.f32.mrf.mxu0
      %v5750 = vadd.f32 %v5541, %v5749
      %5751 = vdwg.mxu0
      %v5752 = vld [vmem:[%s9] sm:$0x1]
      %v5754 = vperm.slane %v5752, 0
      %v5756 = vadd.f32 %v5657, %v5754
      %v5757 = vadd.f32 %v5660, %v5754
      %v5758 = vadd.f32 %v5663, %v5754
      %v5759 = vadd.f32 %v5666, %v5754
      %v5760 = vadd.f32 %v5669, %v5754
      %v5761 = vadd.f32 %v5672, %v5754
      %v5762 = vadd.f32 %v5675, %v5754
      %v5763 = vadd.f32 %v5678, %v5754
      %v5764 = vadd.f32 %v5681, %v5754
      %v5765 = vadd.f32 %v5684, %v5754
      %v5766 = vadd.f32 %v5687, %v5754
      %v5767 = vadd.f32 %v5690, %v5754
      %v5768 = vadd.f32 %v5693, %v5754
      %v5769 = vadd.f32 %v5696, %v5754
      %v5770 = vadd.f32 %v5699, %v5754
      %v5771 = vadd.f32 %v5702, %v5754
      %v5772 = vadd.f32 %v5705, %v5754
      %v5773 = vadd.f32 %v5708, %v5754
      %v5774 = vadd.f32 %v5711, %v5754
      %v5775 = vadd.f32 %v5714, %v5754
      %v5776 = vadd.f32 %v5717, %v5754
      %v5777 = vadd.f32 %v5720, %v5754
      %v5778 = vadd.f32 %v5723, %v5754
      %v5779 = vadd.f32 %v5726, %v5754
      %v5780 = vadd.f32 %v5729, %v5754
      %v5781 = vadd.f32 %v5732, %v5754
      %v5782 = vadd.f32 %v5735, %v5754
      %v5783 = vadd.f32 %v5738, %v5754
      %v5784 = vadd.f32 %v5741, %v5754
      %v5785 = vadd.f32 %v5744, %v5754
      %v5786 = vadd.f32 %v5747, %v5754
      %v5787 = vadd.f32 %v5750, %v5754
      %s5788 = scalar_lea.vmem [#allocation4], 24
      %5789 = vst.msk [vmem:[%s5788 + $0x1] sm:$0xff] %vm434, %v5756
      %5790 = vst.msk [vmem:[%s5788 + $0x9] sm:$0xff] %vm434, %v5757
      %5791 = vst.msk [vmem:[%s5788 + $0x19] sm:$0xff] %vm434, %v5758
      %5792 = vst.msk [vmem:[%s5788 + $0x21] sm:$0xff] %vm434, %v5759
      %5793 = vst.msk [vmem:[%s5788 + $0x31] sm:$0xff] %vm434, %v5760
      %5794 = vst.msk [vmem:[%s5788 + $0x39] sm:$0xff] %vm434, %v5761
      %5795 = vst.msk [vmem:[%s5788 + $0x49] sm:$0xff] %vm434, %v5762
      %5796 = vst.msk [vmem:[%s5788 + $0x51] sm:$0xff] %vm434, %v5763
      %5797 = vst.msk [vmem:[%s5788 + $0x61] sm:$0xff] %vm434, %v5764
      %5798 = vst.msk [vmem:[%s5788 + $0x69] sm:$0xff] %vm434, %v5765
      %5799 = vst.msk [vmem:[%s5788 + $0x79] sm:$0xff] %vm434, %v5766
      %5800 = vst.msk [vmem:[%s5788 + $0x81] sm:$0xff] %vm434, %v5767
      %5801 = vst.msk [vmem:[%s5788 + $0x91] sm:$0xff] %vm434, %v5768
      %5802 = vst.msk [vmem:[%s5788 + $0x99] sm:$0xff] %vm434, %v5769
      %5803 = vst.msk [vmem:[%s5788 + $0xa9] sm:$0xff] %vm434, %v5770
      %5804 = vst.msk [vmem:[%s5788 + $0xb1] sm:$0xff] %vm434, %v5771
      %5805 = vst.msk [vmem:[%s5788 + $0xc1] sm:$0xff] %vm434, %v5772
      %5806 = vst.msk [vmem:[%s5788 + $0xc9] sm:$0xff] %vm434, %v5773
      %5807 = vst.msk [vmem:[%s5788 + $0xd9] sm:$0xff] %vm434, %v5774
      %5808 = vst.msk [vmem:[%s5788 + $0xe1] sm:$0xff] %vm434, %v5775
      %5809 = vst.msk [vmem:[%s5788 + $0xf1] sm:$0xff] %vm434, %v5776
      %5810 = vst.msk [vmem:[%s5788 + $0xf9] sm:$0xff] %vm434, %v5777
      %5811 = vst.msk [vmem:[%s5788 + $0x109] sm:$0xff] %vm434, %v5778
      %5812 = vst.msk [vmem:[%s5788 + $0x111] sm:$0xff] %vm434, %v5779
      %5813 = vst.msk [vmem:[%s5788 + $0x121] sm:$0xff] %vm434, %v5780
      %5814 = vst.msk [vmem:[%s5788 + $0x129] sm:$0xff] %vm434, %v5781
      %5815 = vst.msk [vmem:[%s5788 + $0x139] sm:$0xff] %vm434, %v5782
      %5816 = vst.msk [vmem:[%s5788 + $0x141] sm:$0xff] %vm434, %v5783
      %5817 = vst.msk [vmem:[%s5788 + $0x151] sm:$0xff] %vm434, %v5784
      %5818 = vst.msk [vmem:[%s5788 + $0x159] sm:$0xff] %vm434, %v5785
      %5819 = vst.msk [vmem:[%s5788 + $0x169] sm:$0xff] %vm434, %v5786
      %5820 = vst.msk [vmem:[%s5788 + $0x171] sm:$0xff] %vm434, %v5787
      %v5821 = vld [vmem:[#allocation4] sm:$0xff]
      %v5822 = vld [vmem:[#allocation4 + $0x8] sm:$0xff]
      %v5823 = vld [vmem:[#allocation4 + $0x18] sm:$0xff]
      %v5824 = vld [vmem:[#allocation4 + $0x20] sm:$0xff]
      %v5825 = vld [vmem:[#allocation4 + $0x30] sm:$0xff]
      %v5826 = vld [vmem:[#allocation4 + $0x38] sm:$0xff]
      %v5827 = vld [vmem:[#allocation4 + $0x48] sm:$0xff]
      %v5828 = vld [vmem:[#allocation4 + $0x50] sm:$0xff]
      %v5829 = vld [vmem:[#allocation4 + $0x60] sm:$0xff]
      %v5830 = vld [vmem:[#allocation4 + $0x68] sm:$0xff]
      %v5831 = vld [vmem:[#allocation4 + $0x78] sm:$0xff]
      %v5832 = vld [vmem:[#allocation4 + $0x80] sm:$0xff]
      %v5833 = vld [vmem:[#allocation4 + $0x90] sm:$0xff]
      %v5834 = vld [vmem:[#allocation4 + $0x98] sm:$0xff]
      %v5835 = vld [vmem:[#allocation4 + $0xa8] sm:$0xff]
      %v5836 = vld [vmem:[#allocation4 + $0xb0] sm:$0xff]
      %v5837 = vld [vmem:[#allocation4 + $0xc0] sm:$0xff]
      %v5838 = vld [vmem:[#allocation4 + $0xc8] sm:$0xff]
      %v5839 = vld [vmem:[#allocation4 + $0xd8] sm:$0xff]
      %v5840 = vld [vmem:[#allocation4 + $0xe0] sm:$0xff]
      %v5841 = vld [vmem:[#allocation4 + $0xf0] sm:$0xff]
      %v5842 = vld [vmem:[#allocation4 + $0xf8] sm:$0xff]
      %v5843 = vld [vmem:[#allocation4 + $0x108] sm:$0xff]
      %v5844 = vld [vmem:[#allocation4 + $0x110] sm:$0xff]
      %v5845 = vld [vmem:[#allocation4 + $0x120] sm:$0xff]
      %v5846 = vld [vmem:[#allocation4 + $0x128] sm:$0xff]
      %v5847 = vld [vmem:[#allocation4 + $0x138] sm:$0xff]
      %v5848 = vld [vmem:[#allocation4 + $0x140] sm:$0xff]
      %v5849 = vld [vmem:[#allocation4 + $0x150] sm:$0xff]
      %v5850 = vld [vmem:[#allocation4 + $0x158] sm:$0xff]
      %v5851 = vld [vmem:[#allocation4 + $0x168] sm:$0xff]
      %v5852 = vld [vmem:[#allocation4 + $0x170] sm:$0xff]
      %v5853 = vld [vmem:[#allocation4 + $0x1] sm:$0xff]
      %v5854 = vld [vmem:[#allocation4 + $0x9] sm:$0xff]
      %v5855 = vld [vmem:[#allocation4 + $0x19] sm:$0xff]
      %v5856 = vld [vmem:[#allocation4 + $0x21] sm:$0xff]
      %v5857 = vld [vmem:[#allocation4 + $0x31] sm:$0xff]
      %v5858 = vld [vmem:[#allocation4 + $0x39] sm:$0xff]
      %v5859 = vld [vmem:[#allocation4 + $0x49] sm:$0xff]
      %v5860 = vld [vmem:[#allocation4 + $0x51] sm:$0xff]
      %v5861 = vld [vmem:[#allocation4 + $0x61] sm:$0xff]
      %v5862 = vld [vmem:[#allocation4 + $0x69] sm:$0xff]
      %v5863 = vld [vmem:[#allocation4 + $0x79] sm:$0xff]
      %v5864 = vld [vmem:[#allocation4 + $0x81] sm:$0xff]
      %v5865 = vld [vmem:[#allocation4 + $0x91] sm:$0xff]
      %v5866 = vld [vmem:[#allocation4 + $0x99] sm:$0xff]
      %v5867 = vld [vmem:[#allocation4 + $0xa9] sm:$0xff]
      %v5868 = vld [vmem:[#allocation4 + $0xb1] sm:$0xff]
      %v5869 = vld [vmem:[#allocation4 + $0xc1] sm:$0xff]
      %v5870 = vld [vmem:[#allocation4 + $0xc9] sm:$0xff]
      %v5871 = vld [vmem:[#allocation4 + $0xd9] sm:$0xff]
      %v5872 = vld [vmem:[#allocation4 + $0xe1] sm:$0xff]
      %v5873 = vld [vmem:[#allocation4 + $0xf1] sm:$0xff]
      %v5874 = vld [vmem:[#allocation4 + $0xf9] sm:$0xff]
      %v5875 = vld [vmem:[#allocation4 + $0x109] sm:$0xff]
      %v5876 = vld [vmem:[#allocation4 + $0x111] sm:$0xff]
      %v5877 = vld [vmem:[#allocation4 + $0x121] sm:$0xff]
      %v5878 = vld [vmem:[#allocation4 + $0x129] sm:$0xff]
      %v5879 = vld [vmem:[#allocation4 + $0x139] sm:$0xff]
      %v5880 = vld [vmem:[#allocation4 + $0x141] sm:$0xff]
      %v5881 = vld [vmem:[#allocation4 + $0x151] sm:$0xff]
      %v5882 = vld [vmem:[#allocation4 + $0x159] sm:$0xff]
      %v5883 = vld [vmem:[#allocation4 + $0x169] sm:$0xff]
      %v5884 = vld [vmem:[#allocation4 + $0x171] sm:$0xff]
      %v5885 = vld [vmem:[#allocation4 + $0x2] sm:$0xff]
      %v5886 = vld [vmem:[#allocation4 + $0xa] sm:$0xff]
      %v5887 = vld [vmem:[#allocation4 + $0x1a] sm:$0xff]
      %v5888 = vld [vmem:[#allocation4 + $0x22] sm:$0xff]
      %v5889 = vld [vmem:[#allocation4 + $0x32] sm:$0xff]
      %v5890 = vld [vmem:[#allocation4 + $0x3a] sm:$0xff]
      %v5891 = vld [vmem:[#allocation4 + $0x4a] sm:$0xff]
      %v5892 = vld [vmem:[#allocation4 + $0x52] sm:$0xff]
      %v5893 = vld [vmem:[#allocation4 + $0x62] sm:$0xff]
      %v5894 = vld [vmem:[#allocation4 + $0x6a] sm:$0xff]
      %v5895 = vld [vmem:[#allocation4 + $0x7a] sm:$0xff]
      %v5896 = vld [vmem:[#allocation4 + $0x82] sm:$0xff]
      %v5897 = vld [vmem:[#allocation4 + $0x92] sm:$0xff]
      %v5898 = vld [vmem:[#allocation4 + $0x9a] sm:$0xff]
      %v5899 = vld [vmem:[#allocation4 + $0xaa] sm:$0xff]
      %v5900 = vld [vmem:[#allocation4 + $0xb2] sm:$0xff]
      %v5901 = vld [vmem:[#allocation4 + $0xc2] sm:$0xff]
      %v5902 = vld [vmem:[#allocation4 + $0xca] sm:$0xff]
      %v5903 = vld [vmem:[#allocation4 + $0xda] sm:$0xff]
      %v5904 = vld [vmem:[#allocation4 + $0xe2] sm:$0xff]
      %v5905 = vld [vmem:[#allocation4 + $0xf2] sm:$0xff]
      %v5906 = vld [vmem:[#allocation4 + $0xfa] sm:$0xff]
      %v5907 = vld [vmem:[#allocation4 + $0x10a] sm:$0xff]
      %v5908 = vld [vmem:[#allocation4 + $0x112] sm:$0xff]
      %v5909 = vld [vmem:[#allocation4 + $0x122] sm:$0xff]
      %v5910 = vld [vmem:[#allocation4 + $0x12a] sm:$0xff]
      %v5911 = vld [vmem:[#allocation4 + $0x13a] sm:$0xff]
      %v5912 = vld [vmem:[#allocation4 + $0x142] sm:$0xff]
      %v5913 = vld [vmem:[#allocation4 + $0x152] sm:$0xff]
      %v5914 = vld [vmem:[#allocation4 + $0x15a] sm:$0xff]
      %v5915 = vld [vmem:[#allocation4 + $0x16a] sm:$0xff]
      %v5916 = vld [vmem:[#allocation4 + $0x172] sm:$0xff]
      %v5917 = vld [vmem:[%s5788] sm:$0xff]
      %v5918 = vld [vmem:[%s5788 + $0x8] sm:$0xff]
      %v5919 = vld [vmem:[%s5788 + $0x18] sm:$0xff]
      %v5920 = vld [vmem:[%s5788 + $0x20] sm:$0xff]
      %v5921 = vld [vmem:[%s5788 + $0x30] sm:$0xff]
      %v5922 = vld [vmem:[%s5788 + $0x38] sm:$0xff]
      %v5923 = vld [vmem:[%s5788 + $0x48] sm:$0xff]
      %v5924 = vld [vmem:[%s5788 + $0x50] sm:$0xff]
      %v5925 = vld [vmem:[%s5788 + $0x60] sm:$0xff]
      %v5926 = vld [vmem:[%s5788 + $0x68] sm:$0xff]
      %v5927 = vld [vmem:[%s5788 + $0x78] sm:$0xff]
      %v5928 = vld [vmem:[%s5788 + $0x80] sm:$0xff]
      %v5929 = vld [vmem:[%s5788 + $0x90] sm:$0xff]
      %v5930 = vld [vmem:[%s5788 + $0x98] sm:$0xff]
      %v5931 = vld [vmem:[%s5788 + $0xa8] sm:$0xff]
      %v5932 = vld [vmem:[%s5788 + $0xb0] sm:$0xff]
      %v5933 = vld [vmem:[%s5788 + $0xc0] sm:$0xff]
      %v5934 = vld [vmem:[%s5788 + $0xc8] sm:$0xff]
      %v5935 = vld [vmem:[%s5788 + $0xd8] sm:$0xff]
      %v5936 = vld [vmem:[%s5788 + $0xe0] sm:$0xff]
      %v5937 = vld [vmem:[%s5788 + $0xf0] sm:$0xff]
      %v5938 = vld [vmem:[%s5788 + $0xf8] sm:$0xff]
      %v5939 = vld [vmem:[%s5788 + $0x108] sm:$0xff]
      %v5940 = vld [vmem:[%s5788 + $0x110] sm:$0xff]
      %v5941 = vld [vmem:[%s5788 + $0x120] sm:$0xff]
      %v5942 = vld [vmem:[%s5788 + $0x128] sm:$0xff]
      %v5943 = vld [vmem:[%s5788 + $0x138] sm:$0xff]
      %v5944 = vld [vmem:[%s5788 + $0x140] sm:$0xff]
      %v5945 = vld [vmem:[%s5788 + $0x150] sm:$0xff]
      %v5946 = vld [vmem:[%s5788 + $0x158] sm:$0xff]
      %v5947 = vld [vmem:[%s5788 + $0x168] sm:$0xff]
      %v5948 = vld [vmem:[%s5788 + $0x170] sm:$0xff]
      %v5949 = vld [vmem:[%s5788 + $0x1] sm:$0xff]
      %v5950 = vld [vmem:[%s5788 + $0x9] sm:$0xff]
      %v5951 = vld [vmem:[%s5788 + $0x19] sm:$0xff]
      %v5952 = vld [vmem:[%s5788 + $0x21] sm:$0xff]
      %v5953 = vld [vmem:[%s5788 + $0x31] sm:$0xff]
      %v5954 = vld [vmem:[%s5788 + $0x39] sm:$0xff]
      %v5955 = vld [vmem:[%s5788 + $0x49] sm:$0xff]
      %v5956 = vld [vmem:[%s5788 + $0x51] sm:$0xff]
      %v5957 = vld [vmem:[%s5788 + $0x61] sm:$0xff]
      %v5958 = vld [vmem:[%s5788 + $0x69] sm:$0xff]
      %v5959 = vld [vmem:[%s5788 + $0x79] sm:$0xff]
      %v5960 = vld [vmem:[%s5788 + $0x81] sm:$0xff]
      %v5961 = vld [vmem:[%s5788 + $0x91] sm:$0xff]
      %v5962 = vld [vmem:[%s5788 + $0x99] sm:$0xff]
      %v5963 = vld [vmem:[%s5788 + $0xa9] sm:$0xff]
      %v5964 = vld [vmem:[%s5788 + $0xb1] sm:$0xff]
      %v5965 = vld [vmem:[%s5788 + $0xc1] sm:$0xff]
      %v5966 = vld [vmem:[%s5788 + $0xc9] sm:$0xff]
      %v5967 = vld [vmem:[%s5788 + $0xd9] sm:$0xff]
      %v5968 = vld [vmem:[%s5788 + $0xe1] sm:$0xff]
      %v5969 = vld [vmem:[%s5788 + $0xf1] sm:$0xff]
      %v5970 = vld [vmem:[%s5788 + $0xf9] sm:$0xff]
      %v5971 = vld [vmem:[%s5788 + $0x109] sm:$0xff]
      %v5972 = vld [vmem:[%s5788 + $0x111] sm:$0xff]
      %v5973 = vld [vmem:[%s5788 + $0x121] sm:$0xff]
      %v5974 = vld [vmem:[%s5788 + $0x129] sm:$0xff]
      %v5975 = vld [vmem:[%s5788 + $0x139] sm:$0xff]
      %v5976 = vld [vmem:[%s5788 + $0x141] sm:$0xff]
      %v5977 = vld [vmem:[%s5788 + $0x151] sm:$0xff]
      %v5978 = vld [vmem:[%s5788 + $0x159] sm:$0xff]
      %v5979 = vld [vmem:[%s5788 + $0x169] sm:$0xff]
      %v5980 = vld [vmem:[%s5788 + $0x171] sm:$0xff]
      %v5981 = vld [vmem:[%s5788 + $0x2] sm:$0xff]
      %v5982 = vld [vmem:[%s5788 + $0xa] sm:$0xff]
      %v5983 = vld [vmem:[%s5788 + $0x1a] sm:$0xff]
      %v5984 = vld [vmem:[%s5788 + $0x22] sm:$0xff]
      %v5985 = vld [vmem:[%s5788 + $0x32] sm:$0xff]
      %v5986 = vld [vmem:[%s5788 + $0x3a] sm:$0xff]
      %v5987 = vld [vmem:[%s5788 + $0x4a] sm:$0xff]
      %v5988 = vld [vmem:[%s5788 + $0x52] sm:$0xff]
      %v5989 = vld [vmem:[%s5788 + $0x62] sm:$0xff]
      %v5990 = vld [vmem:[%s5788 + $0x6a] sm:$0xff]
      %v5991 = vld [vmem:[%s5788 + $0x7a] sm:$0xff]
      %v5992 = vld [vmem:[%s5788 + $0x82] sm:$0xff]
      %v5993 = vld [vmem:[%s5788 + $0x92] sm:$0xff]
      %v5994 = vld [vmem:[%s5788 + $0x9a] sm:$0xff]
      %v5995 = vld [vmem:[%s5788 + $0xaa] sm:$0xff]
      %v5996 = vld [vmem:[%s5788 + $0xb2] sm:$0xff]
      %v5997 = vld [vmem:[%s5788 + $0xc2] sm:$0xff]
      %v5998 = vld [vmem:[%s5788 + $0xca] sm:$0xff]
      %v5999 = vld [vmem:[%s5788 + $0xda] sm:$0xff]
      %v6000 = vld [vmem:[%s5788 + $0xe2] sm:$0xff]
      %v6001 = vld [vmem:[%s5788 + $0xf2] sm:$0xff]
      %v6002 = vld [vmem:[%s5788 + $0xfa] sm:$0xff]
      %v6003 = vld [vmem:[%s5788 + $0x10a] sm:$0xff]
      %v6004 = vld [vmem:[%s5788 + $0x112] sm:$0xff]
      %v6005 = vld [vmem:[%s5788 + $0x122] sm:$0xff]
      %v6006 = vld [vmem:[%s5788 + $0x12a] sm:$0xff]
      %v6007 = vld [vmem:[%s5788 + $0x13a] sm:$0xff]
      %v6008 = vld [vmem:[%s5788 + $0x142] sm:$0xff]
      %v6009 = vld [vmem:[%s5788 + $0x152] sm:$0xff]
      %v6010 = vld [vmem:[%s5788 + $0x15a] sm:$0xff]
      %v6011 = vld [vmem:[%s5788 + $0x16a] sm:$0xff]
      %v6012 = vld [vmem:[%s5788 + $0x172] sm:$0xff]
      %s6013 = scalar_lea.vmem [#allocation4], 48
      %v6014 = vld [vmem:[%s6013] sm:$0xff]
      %v6015 = vld [vmem:[%s6013 + $0x8] sm:$0xff]
      %v6016 = vld [vmem:[%s6013 + $0x18] sm:$0xff]
      %v6017 = vld [vmem:[%s6013 + $0x20] sm:$0xff]
      %v6018 = vld [vmem:[%s6013 + $0x30] sm:$0xff]
      %v6019 = vld [vmem:[%s6013 + $0x38] sm:$0xff]
      %v6020 = vld [vmem:[%s6013 + $0x48] sm:$0xff]
      %v6021 = vld [vmem:[%s6013 + $0x50] sm:$0xff]
      %v6022 = vld [vmem:[%s6013 + $0x60] sm:$0xff]
      %v6023 = vld [vmem:[%s6013 + $0x68] sm:$0xff]
      %v6024 = vld [vmem:[%s6013 + $0x78] sm:$0xff]
      %v6025 = vld [vmem:[%s6013 + $0x80] sm:$0xff]
      %v6026 = vld [vmem:[%s6013 + $0x90] sm:$0xff]
      %v6027 = vld [vmem:[%s6013 + $0x98] sm:$0xff]
      %v6028 = vld [vmem:[%s6013 + $0xa8] sm:$0xff]
      %v6029 = vld [vmem:[%s6013 + $0xb0] sm:$0xff]
      %v6030 = vld [vmem:[%s6013 + $0xc0] sm:$0xff]
      %v6031 = vld [vmem:[%s6013 + $0xc8] sm:$0xff]
      %v6032 = vld [vmem:[%s6013 + $0xd8] sm:$0xff]
      %v6033 = vld [vmem:[%s6013 + $0xe0] sm:$0xff]
      %v6034 = vld [vmem:[%s6013 + $0xf0] sm:$0xff]
      %v6035 = vld [vmem:[%s6013 + $0xf8] sm:$0xff]
      %v6036 = vld [vmem:[%s6013 + $0x108] sm:$0xff]
      %v6037 = vld [vmem:[%s6013 + $0x110] sm:$0xff]
      %v6038 = vld [vmem:[%s6013 + $0x120] sm:$0xff]
      %v6039 = vld [vmem:[%s6013 + $0x128] sm:$0xff]
      %v6040 = vld [vmem:[%s6013 + $0x138] sm:$0xff]
      %v6041 = vld [vmem:[%s6013 + $0x140] sm:$0xff]
      %v6042 = vld [vmem:[%s6013 + $0x150] sm:$0xff]
      %v6043 = vld [vmem:[%s6013 + $0x158] sm:$0xff]
      %v6044 = vld [vmem:[%s6013 + $0x168] sm:$0xff]
      %v6045 = vld [vmem:[%s6013 + $0x170] sm:$0xff]
      %v6046 = vld [vmem:[%s6013 + $0x1] sm:$0xff]
      %v6047 = vld [vmem:[%s6013 + $0x9] sm:$0xff]
      %v6048 = vld [vmem:[%s6013 + $0x19] sm:$0xff]
      %v6049 = vld [vmem:[%s6013 + $0x21] sm:$0xff]
      %v6050 = vld [vmem:[%s6013 + $0x31] sm:$0xff]
      %v6051 = vld [vmem:[%s6013 + $0x39] sm:$0xff]
      %v6052 = vld [vmem:[%s6013 + $0x49] sm:$0xff]
      %v6053 = vld [vmem:[%s6013 + $0x51] sm:$0xff]
      %v6054 = vld [vmem:[%s6013 + $0x61] sm:$0xff]
      %v6055 = vld [vmem:[%s6013 + $0x69] sm:$0xff]
      %v6056 = vld [vmem:[%s6013 + $0x79] sm:$0xff]
      %v6057 = vld [vmem:[%s6013 + $0x81] sm:$0xff]
      %v6058 = vld [vmem:[%s6013 + $0x91] sm:$0xff]
      %v6059 = vld [vmem:[%s6013 + $0x99] sm:$0xff]
      %v6060 = vld [vmem:[%s6013 + $0xa9] sm:$0xff]
      %v6061 = vld [vmem:[%s6013 + $0xb1] sm:$0xff]
      %v6062 = vld [vmem:[%s6013 + $0xc1] sm:$0xff]
      %v6063 = vld [vmem:[%s6013 + $0xc9] sm:$0xff]
      %v6064 = vld [vmem:[%s6013 + $0xd9] sm:$0xff]
      %v6065 = vld [vmem:[%s6013 + $0xe1] sm:$0xff]
      %v6066 = vld [vmem:[%s6013 + $0xf1] sm:$0xff]
      %v6067 = vld [vmem:[%s6013 + $0xf9] sm:$0xff]
      %v6068 = vld [vmem:[%s6013 + $0x109] sm:$0xff]
      %v6069 = vld [vmem:[%s6013 + $0x111] sm:$0xff]
      %v6070 = vld [vmem:[%s6013 + $0x121] sm:$0xff]
      %v6071 = vld [vmem:[%s6013 + $0x129] sm:$0xff]
      %v6072 = vld [vmem:[%s6013 + $0x139] sm:$0xff]
      %v6073 = vld [vmem:[%s6013 + $0x141] sm:$0xff]
      %v6074 = vld [vmem:[%s6013 + $0x151] sm:$0xff]
      %v6075 = vld [vmem:[%s6013 + $0x159] sm:$0xff]
      %v6076 = vld [vmem:[%s6013 + $0x169] sm:$0xff]
      %v6077 = vld [vmem:[%s6013 + $0x171] sm:$0xff]
      %v6078 = vld [vmem:[%s6013 + $0x2] sm:$0xff]
      %v6079 = vld [vmem:[%s6013 + $0xa] sm:$0xff]
      %v6080 = vld [vmem:[%s6013 + $0x1a] sm:$0xff]
      %v6081 = vld [vmem:[%s6013 + $0x22] sm:$0xff]
      %v6082 = vld [vmem:[%s6013 + $0x32] sm:$0xff]
      %v6083 = vld [vmem:[%s6013 + $0x3a] sm:$0xff]
      %v6084 = vld [vmem:[%s6013 + $0x4a] sm:$0xff]
      %v6085 = vld [vmem:[%s6013 + $0x52] sm:$0xff]
      %v6086 = vld [vmem:[%s6013 + $0x62] sm:$0xff]
      %v6087 = vld [vmem:[%s6013 + $0x6a] sm:$0xff]
      %v6088 = vld [vmem:[%s6013 + $0x7a] sm:$0xff]
      %v6089 = vld [vmem:[%s6013 + $0x82] sm:$0xff]
      %v6090 = vld [vmem:[%s6013 + $0x92] sm:$0xff]
      %v6091 = vld [vmem:[%s6013 + $0x9a] sm:$0xff]
      %v6092 = vld [vmem:[%s6013 + $0xaa] sm:$0xff]
      %v6093 = vld [vmem:[%s6013 + $0xb2] sm:$0xff]
      %v6094 = vld [vmem:[%s6013 + $0xc2] sm:$0xff]
      %v6095 = vld [vmem:[%s6013 + $0xca] sm:$0xff]
      %v6096 = vld [vmem:[%s6013 + $0xda] sm:$0xff]
      %v6097 = vld [vmem:[%s6013 + $0xe2] sm:$0xff]
      %v6098 = vld [vmem:[%s6013 + $0xf2] sm:$0xff]
      %v6099 = vld [vmem:[%s6013 + $0xfa] sm:$0xff]
      %v6100 = vld [vmem:[%s6013 + $0x10a] sm:$0xff]
      %v6101 = vld [vmem:[%s6013 + $0x112] sm:$0xff]
      %v6102 = vld [vmem:[%s6013 + $0x122] sm:$0xff]
      %v6103 = vld [vmem:[%s6013 + $0x12a] sm:$0xff]
      %v6104 = vld [vmem:[%s6013 + $0x13a] sm:$0xff]
      %v6105 = vld [vmem:[%s6013 + $0x142] sm:$0xff]
      %v6106 = vld [vmem:[%s6013 + $0x152] sm:$0xff]
      %v6107 = vld [vmem:[%s6013 + $0x15a] sm:$0xff]
      %v6108 = vld [vmem:[%s6013 + $0x16a] sm:$0xff]
      %v6109 = vld [vmem:[%s6013 + $0x172] sm:$0xff]
      %6142 = vrot.lane.b32.xlu0 %v5853, 8
      %v6143 = vpop.permute.xlu0 %6142
      %6144 = vrot.lane.b32.xlu0 %v5854, 8
      %v6145 = vpop.permute.xlu0 %6144
      %6146 = vrot.lane.b32.xlu0 %v5855, 8
      %v6147 = vpop.permute.xlu0 %6146
      %6148 = vrot.lane.b32.xlu0 %v5856, 8
      %v6149 = vpop.permute.xlu0 %6148
      %6150 = vrot.lane.b32.xlu0 %v5857, 8
      %v6151 = vpop.permute.xlu0 %6150
      %6152 = vrot.lane.b32.xlu0 %v5858, 8
      %v6153 = vpop.permute.xlu0 %6152
      %6154 = vrot.lane.b32.xlu0 %v5859, 8
      %v6155 = vpop.permute.xlu0 %6154
      %6156 = vrot.lane.b32.xlu0 %v5860, 8
      %v6157 = vpop.permute.xlu0 %6156
      %6158 = vrot.lane.b32.xlu0 %v5861, 8
      %v6159 = vpop.permute.xlu0 %6158
      %6160 = vrot.lane.b32.xlu0 %v5862, 8
      %v6161 = vpop.permute.xlu0 %6160
      %6162 = vrot.lane.b32.xlu0 %v5863, 8
      %v6163 = vpop.permute.xlu0 %6162
      %6164 = vrot.lane.b32.xlu0 %v5864, 8
      %v6165 = vpop.permute.xlu0 %6164
      %6166 = vrot.lane.b32.xlu0 %v5865, 8
      %v6167 = vpop.permute.xlu0 %6166
      %6168 = vrot.lane.b32.xlu0 %v5866, 8
      %v6169 = vpop.permute.xlu0 %6168
      %6170 = vrot.lane.b32.xlu0 %v5867, 8
      %v6171 = vpop.permute.xlu0 %6170
      %6172 = vrot.lane.b32.xlu0 %v5868, 8
      %v6173 = vpop.permute.xlu0 %6172
      %6174 = vrot.lane.b32.xlu0 %v5869, 8
      %v6175 = vpop.permute.xlu0 %6174
      %6176 = vrot.lane.b32.xlu0 %v5870, 8
      %v6177 = vpop.permute.xlu0 %6176
      %6178 = vrot.lane.b32.xlu0 %v5871, 8
      %v6179 = vpop.permute.xlu0 %6178
      %6180 = vrot.lane.b32.xlu0 %v5872, 8
      %v6181 = vpop.permute.xlu0 %6180
      %6182 = vrot.lane.b32.xlu0 %v5873, 8
      %v6183 = vpop.permute.xlu0 %6182
      %6184 = vrot.lane.b32.xlu0 %v5874, 8
      %v6185 = vpop.permute.xlu0 %6184
      %6186 = vrot.lane.b32.xlu0 %v5875, 8
      %v6187 = vpop.permute.xlu0 %6186
      %6188 = vrot.lane.b32.xlu0 %v5876, 8
      %v6189 = vpop.permute.xlu0 %6188
      %6190 = vrot.lane.b32.xlu0 %v5877, 8
      %v6191 = vpop.permute.xlu0 %6190
      %6192 = vrot.lane.b32.xlu0 %v5878, 8
      %v6193 = vpop.permute.xlu0 %6192
      %6194 = vrot.lane.b32.xlu0 %v5879, 8
      %v6195 = vpop.permute.xlu0 %6194
      %6196 = vrot.lane.b32.xlu0 %v5880, 8
      %v6197 = vpop.permute.xlu0 %6196
      %6198 = vrot.lane.b32.xlu0 %v5881, 8
      %v6199 = vpop.permute.xlu0 %6198
      %6200 = vrot.lane.b32.xlu0 %v5882, 8
      %v6201 = vpop.permute.xlu0 %6200
      %6202 = vrot.lane.b32.xlu0 %v5883, 8
      %v6203 = vpop.permute.xlu0 %6202
      %6204 = vrot.lane.b32.xlu0 %v5884, 8
      %v6205 = vpop.permute.xlu0 %6204
      %6270 = vrot.lane.b32.xlu0 %v5885, 16
      %v6271 = vpop.permute.xlu0 %6270
      %6272 = vrot.lane.b32.xlu0 %v5886, 16
      %v6273 = vpop.permute.xlu0 %6272
      %6274 = vrot.lane.b32.xlu0 %v5887, 16
      %v6275 = vpop.permute.xlu0 %6274
      %6276 = vrot.lane.b32.xlu0 %v5888, 16
      %v6277 = vpop.permute.xlu0 %6276
      %6278 = vrot.lane.b32.xlu0 %v5889, 16
      %v6279 = vpop.permute.xlu0 %6278
      %6280 = vrot.lane.b32.xlu0 %v5890, 16
      %v6281 = vpop.permute.xlu0 %6280
      %6282 = vrot.lane.b32.xlu0 %v5891, 16
      %v6283 = vpop.permute.xlu0 %6282
      %6284 = vrot.lane.b32.xlu0 %v5892, 16
      %v6285 = vpop.permute.xlu0 %6284
      %6286 = vrot.lane.b32.xlu0 %v5893, 16
      %v6287 = vpop.permute.xlu0 %6286
      %6288 = vrot.lane.b32.xlu0 %v5894, 16
      %v6289 = vpop.permute.xlu0 %6288
      %6290 = vrot.lane.b32.xlu0 %v5895, 16
      %v6291 = vpop.permute.xlu0 %6290
      %6292 = vrot.lane.b32.xlu0 %v5896, 16
      %v6293 = vpop.permute.xlu0 %6292
      %6294 = vrot.lane.b32.xlu0 %v5897, 16
      %v6295 = vpop.permute.xlu0 %6294
      %6296 = vrot.lane.b32.xlu0 %v5898, 16
      %v6297 = vpop.permute.xlu0 %6296
      %6298 = vrot.lane.b32.xlu0 %v5899, 16
      %v6299 = vpop.permute.xlu0 %6298
      %6300 = vrot.lane.b32.xlu0 %v5900, 16
      %v6301 = vpop.permute.xlu0 %6300
      %6302 = vrot.lane.b32.xlu0 %v5901, 16
      %v6303 = vpop.permute.xlu0 %6302
      %6304 = vrot.lane.b32.xlu0 %v5902, 16
      %v6305 = vpop.permute.xlu0 %6304
      %6306 = vrot.lane.b32.xlu0 %v5903, 16
      %v6307 = vpop.permute.xlu0 %6306
      %6308 = vrot.lane.b32.xlu0 %v5904, 16
      %v6309 = vpop.permute.xlu0 %6308
      %6310 = vrot.lane.b32.xlu0 %v5905, 16
      %v6311 = vpop.permute.xlu0 %6310
      %6312 = vrot.lane.b32.xlu0 %v5906, 16
      %v6313 = vpop.permute.xlu0 %6312
      %6314 = vrot.lane.b32.xlu0 %v5907, 16
      %v6315 = vpop.permute.xlu0 %6314
      %6316 = vrot.lane.b32.xlu0 %v5908, 16
      %v6317 = vpop.permute.xlu0 %6316
      %6318 = vrot.lane.b32.xlu0 %v5909, 16
      %v6319 = vpop.permute.xlu0 %6318
      %6320 = vrot.lane.b32.xlu0 %v5910, 16
      %v6321 = vpop.permute.xlu0 %6320
      %6322 = vrot.lane.b32.xlu0 %v5911, 16
      %v6323 = vpop.permute.xlu0 %6322
      %6324 = vrot.lane.b32.xlu0 %v5912, 16
      %v6325 = vpop.permute.xlu0 %6324
      %6326 = vrot.lane.b32.xlu0 %v5913, 16
      %v6327 = vpop.permute.xlu0 %6326
      %6328 = vrot.lane.b32.xlu0 %v5914, 16
      %v6329 = vpop.permute.xlu0 %6328
      %6330 = vrot.lane.b32.xlu0 %v5915, 16
      %v6331 = vpop.permute.xlu0 %6330
      %6332 = vrot.lane.b32.xlu0 %v5916, 16
      %v6333 = vpop.permute.xlu0 %6332
      %6398 = vrot.lane.b32.xlu0 %v5917, 24
      %v6399 = vpop.permute.xlu0 %6398
      %6400 = vrot.lane.b32.xlu0 %v5918, 24
      %v6401 = vpop.permute.xlu0 %6400
      %6402 = vrot.lane.b32.xlu0 %v5919, 24
      %v6403 = vpop.permute.xlu0 %6402
      %6404 = vrot.lane.b32.xlu0 %v5920, 24
      %v6405 = vpop.permute.xlu0 %6404
      %6406 = vrot.lane.b32.xlu0 %v5921, 24
      %v6407 = vpop.permute.xlu0 %6406
      %6408 = vrot.lane.b32.xlu0 %v5922, 24
      %v6409 = vpop.permute.xlu0 %6408
      %6410 = vrot.lane.b32.xlu0 %v5923, 24
      %v6411 = vpop.permute.xlu0 %6410
      %6412 = vrot.lane.b32.xlu0 %v5924, 24
      %v6413 = vpop.permute.xlu0 %6412
      %6414 = vrot.lane.b32.xlu0 %v5925, 24
      %v6415 = vpop.permute.xlu0 %6414
      %6416 = vrot.lane.b32.xlu0 %v5926, 24
      %v6417 = vpop.permute.xlu0 %6416
      %6418 = vrot.lane.b32.xlu0 %v5927, 24
      %v6419 = vpop.permute.xlu0 %6418
      %6420 = vrot.lane.b32.xlu0 %v5928, 24
      %v6421 = vpop.permute.xlu0 %6420
      %6422 = vrot.lane.b32.xlu0 %v5929, 24
      %v6423 = vpop.permute.xlu0 %6422
      %6424 = vrot.lane.b32.xlu0 %v5930, 24
      %v6425 = vpop.permute.xlu0 %6424
      %6426 = vrot.lane.b32.xlu0 %v5931, 24
      %v6427 = vpop.permute.xlu0 %6426
      %6428 = vrot.lane.b32.xlu0 %v5932, 24
      %v6429 = vpop.permute.xlu0 %6428
      %6430 = vrot.lane.b32.xlu0 %v5933, 24
      %v6431 = vpop.permute.xlu0 %6430
      %6432 = vrot.lane.b32.xlu0 %v5934, 24
      %v6433 = vpop.permute.xlu0 %6432
      %6434 = vrot.lane.b32.xlu0 %v5935, 24
      %v6435 = vpop.permute.xlu0 %6434
      %6436 = vrot.lane.b32.xlu0 %v5936, 24
      %v6437 = vpop.permute.xlu0 %6436
      %6438 = vrot.lane.b32.xlu0 %v5937, 24
      %v6439 = vpop.permute.xlu0 %6438
      %6440 = vrot.lane.b32.xlu0 %v5938, 24
      %v6441 = vpop.permute.xlu0 %6440
      %6442 = vrot.lane.b32.xlu0 %v5939, 24
      %v6443 = vpop.permute.xlu0 %6442
      %6444 = vrot.lane.b32.xlu0 %v5940, 24
      %v6445 = vpop.permute.xlu0 %6444
      %6446 = vrot.lane.b32.xlu0 %v5941, 24
      %v6447 = vpop.permute.xlu0 %6446
      %6448 = vrot.lane.b32.xlu0 %v5942, 24
      %v6449 = vpop.permute.xlu0 %6448
      %6450 = vrot.lane.b32.xlu0 %v5943, 24
      %v6451 = vpop.permute.xlu0 %6450
      %6452 = vrot.lane.b32.xlu0 %v5944, 24
      %v6453 = vpop.permute.xlu0 %6452
      %6454 = vrot.lane.b32.xlu0 %v5945, 24
      %v6455 = vpop.permute.xlu0 %6454
      %6456 = vrot.lane.b32.xlu0 %v5946, 24
      %v6457 = vpop.permute.xlu0 %6456
      %6458 = vrot.lane.b32.xlu0 %v5947, 24
      %v6459 = vpop.permute.xlu0 %6458
      %6460 = vrot.lane.b32.xlu0 %v5948, 24
      %v6461 = vpop.permute.xlu0 %6460
      %6526 = vrot.lane.b32.xlu0 %v5949, 32
      %v6527 = vpop.permute.xlu0 %6526
      %6528 = vrot.lane.b32.xlu0 %v5950, 32
      %v6529 = vpop.permute.xlu0 %6528
      %6530 = vrot.lane.b32.xlu0 %v5951, 32
      %v6531 = vpop.permute.xlu0 %6530
      %6532 = vrot.lane.b32.xlu0 %v5952, 32
      %v6533 = vpop.permute.xlu0 %6532
      %6534 = vrot.lane.b32.xlu0 %v5953, 32
      %v6535 = vpop.permute.xlu0 %6534
      %6536 = vrot.lane.b32.xlu0 %v5954, 32
      %v6537 = vpop.permute.xlu0 %6536
      %6538 = vrot.lane.b32.xlu0 %v5955, 32
      %v6539 = vpop.permute.xlu0 %6538
      %6540 = vrot.lane.b32.xlu0 %v5956, 32
      %v6541 = vpop.permute.xlu0 %6540
      %6542 = vrot.lane.b32.xlu0 %v5957, 32
      %v6543 = vpop.permute.xlu0 %6542
      %6544 = vrot.lane.b32.xlu0 %v5958, 32
      %v6545 = vpop.permute.xlu0 %6544
      %6546 = vrot.lane.b32.xlu0 %v5959, 32
      %v6547 = vpop.permute.xlu0 %6546
      %6548 = vrot.lane.b32.xlu0 %v5960, 32
      %v6549 = vpop.permute.xlu0 %6548
      %6550 = vrot.lane.b32.xlu0 %v5961, 32
      %v6551 = vpop.permute.xlu0 %6550
      %6552 = vrot.lane.b32.xlu0 %v5962, 32
      %v6553 = vpop.permute.xlu0 %6552
      %6554 = vrot.lane.b32.xlu0 %v5963, 32
      %v6555 = vpop.permute.xlu0 %6554
      %6556 = vrot.lane.b32.xlu0 %v5964, 32
      %v6557 = vpop.permute.xlu0 %6556
      %6558 = vrot.lane.b32.xlu0 %v5965, 32
      %v6559 = vpop.permute.xlu0 %6558
      %6560 = vrot.lane.b32.xlu0 %v5966, 32
      %v6561 = vpop.permute.xlu0 %6560
      %6562 = vrot.lane.b32.xlu0 %v5967, 32
      %v6563 = vpop.permute.xlu0 %6562
      %6564 = vrot.lane.b32.xlu0 %v5968, 32
      %v6565 = vpop.permute.xlu0 %6564
      %6566 = vrot.lane.b32.xlu0 %v5969, 32
      %v6567 = vpop.permute.xlu0 %6566
      %6568 = vrot.lane.b32.xlu0 %v5970, 32
      %v6569 = vpop.permute.xlu0 %6568
      %6570 = vrot.lane.b32.xlu0 %v5971, 32
      %v6571 = vpop.permute.xlu0 %6570
      %6572 = vrot.lane.b32.xlu0 %v5972, 32
      %v6573 = vpop.permute.xlu0 %6572
      %6574 = vrot.lane.b32.xlu0 %v5973, 32
      %v6575 = vpop.permute.xlu0 %6574
      %6576 = vrot.lane.b32.xlu0 %v5974, 32
      %v6577 = vpop.permute.xlu0 %6576
      %6578 = vrot.lane.b32.xlu0 %v5975, 32
      %v6579 = vpop.permute.xlu0 %6578
      %6580 = vrot.lane.b32.xlu0 %v5976, 32
      %v6581 = vpop.permute.xlu0 %6580
      %6582 = vrot.lane.b32.xlu0 %v5977, 32
      %v6583 = vpop.permute.xlu0 %6582
      %6584 = vrot.lane.b32.xlu0 %v5978, 32
      %v6585 = vpop.permute.xlu0 %6584
      %6586 = vrot.lane.b32.xlu0 %v5979, 32
      %v6587 = vpop.permute.xlu0 %6586
      %6588 = vrot.lane.b32.xlu0 %v5980, 32
      %v6589 = vpop.permute.xlu0 %6588
      %6654 = vrot.lane.b32.xlu0 %v5981, 40
      %v6655 = vpop.permute.xlu0 %6654
      %6656 = vrot.lane.b32.xlu0 %v5982, 40
      %v6657 = vpop.permute.xlu0 %6656
      %6658 = vrot.lane.b32.xlu0 %v5983, 40
      %v6659 = vpop.permute.xlu0 %6658
      %6660 = vrot.lane.b32.xlu0 %v5984, 40
      %v6661 = vpop.permute.xlu0 %6660
      %6662 = vrot.lane.b32.xlu0 %v5985, 40
      %v6663 = vpop.permute.xlu0 %6662
      %6664 = vrot.lane.b32.xlu0 %v5986, 40
      %v6665 = vpop.permute.xlu0 %6664
      %6666 = vrot.lane.b32.xlu0 %v5987, 40
      %v6667 = vpop.permute.xlu0 %6666
      %6668 = vrot.lane.b32.xlu0 %v5988, 40
      %v6669 = vpop.permute.xlu0 %6668
      %6670 = vrot.lane.b32.xlu0 %v5989, 40
      %v6671 = vpop.permute.xlu0 %6670
      %6672 = vrot.lane.b32.xlu0 %v5990, 40
      %v6673 = vpop.permute.xlu0 %6672
      %6674 = vrot.lane.b32.xlu0 %v5991, 40
      %v6675 = vpop.permute.xlu0 %6674
      %6676 = vrot.lane.b32.xlu0 %v5992, 40
      %v6677 = vpop.permute.xlu0 %6676
      %6678 = vrot.lane.b32.xlu0 %v5993, 40
      %v6679 = vpop.permute.xlu0 %6678
      %6680 = vrot.lane.b32.xlu0 %v5994, 40
      %v6681 = vpop.permute.xlu0 %6680
      %6682 = vrot.lane.b32.xlu0 %v5995, 40
      %v6683 = vpop.permute.xlu0 %6682
      %6684 = vrot.lane.b32.xlu0 %v5996, 40
      %v6685 = vpop.permute.xlu0 %6684
      %6686 = vrot.lane.b32.xlu0 %v5997, 40
      %v6687 = vpop.permute.xlu0 %6686
      %6688 = vrot.lane.b32.xlu0 %v5998, 40
      %v6689 = vpop.permute.xlu0 %6688
      %6690 = vrot.lane.b32.xlu0 %v5999, 40
      %v6691 = vpop.permute.xlu0 %6690
      %6692 = vrot.lane.b32.xlu0 %v6000, 40
      %v6693 = vpop.permute.xlu0 %6692
      %6694 = vrot.lane.b32.xlu0 %v6001, 40
      %v6695 = vpop.permute.xlu0 %6694
      %6696 = vrot.lane.b32.xlu0 %v6002, 40
      %v6697 = vpop.permute.xlu0 %6696
      %6698 = vrot.lane.b32.xlu0 %v6003, 40
      %v6699 = vpop.permute.xlu0 %6698
      %6700 = vrot.lane.b32.xlu0 %v6004, 40
      %v6701 = vpop.permute.xlu0 %6700
      %6702 = vrot.lane.b32.xlu0 %v6005, 40
      %v6703 = vpop.permute.xlu0 %6702
      %6704 = vrot.lane.b32.xlu0 %v6006, 40
      %v6705 = vpop.permute.xlu0 %6704
      %6706 = vrot.lane.b32.xlu0 %v6007, 40
      %v6707 = vpop.permute.xlu0 %6706
      %6708 = vrot.lane.b32.xlu0 %v6008, 40
      %v6709 = vpop.permute.xlu0 %6708
      %6710 = vrot.lane.b32.xlu0 %v6009, 40
      %v6711 = vpop.permute.xlu0 %6710
      %6712 = vrot.lane.b32.xlu0 %v6010, 40
      %v6713 = vpop.permute.xlu0 %6712
      %6714 = vrot.lane.b32.xlu0 %v6011, 40
      %v6715 = vpop.permute.xlu0 %6714
      %6716 = vrot.lane.b32.xlu0 %v6012, 40
      %v6717 = vpop.permute.xlu0 %6716
      %6782 = vrot.lane.b32.xlu0 %v6014, 48
      %v6783 = vpop.permute.xlu0 %6782
      %6784 = vrot.lane.b32.xlu0 %v6015, 48
      %v6785 = vpop.permute.xlu0 %6784
      %6786 = vrot.lane.b32.xlu0 %v6016, 48
      %v6787 = vpop.permute.xlu0 %6786
      %6788 = vrot.lane.b32.xlu0 %v6017, 48
      %v6789 = vpop.permute.xlu0 %6788
      %6790 = vrot.lane.b32.xlu0 %v6018, 48
      %v6791 = vpop.permute.xlu0 %6790
      %6792 = vrot.lane.b32.xlu0 %v6019, 48
      %v6793 = vpop.permute.xlu0 %6792
      %6794 = vrot.lane.b32.xlu0 %v6020, 48
      %v6795 = vpop.permute.xlu0 %6794
      %6796 = vrot.lane.b32.xlu0 %v6021, 48
      %v6797 = vpop.permute.xlu0 %6796
      %6798 = vrot.lane.b32.xlu0 %v6022, 48
      %v6799 = vpop.permute.xlu0 %6798
      %6800 = vrot.lane.b32.xlu0 %v6023, 48
      %v6801 = vpop.permute.xlu0 %6800
      %6802 = vrot.lane.b32.xlu0 %v6024, 48
      %v6803 = vpop.permute.xlu0 %6802
      %6804 = vrot.lane.b32.xlu0 %v6025, 48
      %v6805 = vpop.permute.xlu0 %6804
      %6806 = vrot.lane.b32.xlu0 %v6026, 48
      %v6807 = vpop.permute.xlu0 %6806
      %6808 = vrot.lane.b32.xlu0 %v6027, 48
      %v6809 = vpop.permute.xlu0 %6808
      %6810 = vrot.lane.b32.xlu0 %v6028, 48
      %v6811 = vpop.permute.xlu0 %6810
      %6812 = vrot.lane.b32.xlu0 %v6029, 48
      %v6813 = vpop.permute.xlu0 %6812
      %6814 = vrot.lane.b32.xlu0 %v6030, 48
      %v6815 = vpop.permute.xlu0 %6814
      %6816 = vrot.lane.b32.xlu0 %v6031, 48
      %v6817 = vpop.permute.xlu0 %6816
      %6818 = vrot.lane.b32.xlu0 %v6032, 48
      %v6819 = vpop.permute.xlu0 %6818
      %6820 = vrot.lane.b32.xlu0 %v6033, 48
      %v6821 = vpop.permute.xlu0 %6820
      %6822 = vrot.lane.b32.xlu0 %v6034, 48
      %v6823 = vpop.permute.xlu0 %6822
      %6824 = vrot.lane.b32.xlu0 %v6035, 48
      %v6825 = vpop.permute.xlu0 %6824
      %6826 = vrot.lane.b32.xlu0 %v6036, 48
      %v6827 = vpop.permute.xlu0 %6826
      %6828 = vrot.lane.b32.xlu0 %v6037, 48
      %v6829 = vpop.permute.xlu0 %6828
      %6830 = vrot.lane.b32.xlu0 %v6038, 48
      %v6831 = vpop.permute.xlu0 %6830
      %6832 = vrot.lane.b32.xlu0 %v6039, 48
      %v6833 = vpop.permute.xlu0 %6832
      %6834 = vrot.lane.b32.xlu0 %v6040, 48
      %v6835 = vpop.permute.xlu0 %6834
      %6836 = vrot.lane.b32.xlu0 %v6041, 48
      %v6837 = vpop.permute.xlu0 %6836
      %6838 = vrot.lane.b32.xlu0 %v6042, 48
      %v6839 = vpop.permute.xlu0 %6838
      %6840 = vrot.lane.b32.xlu0 %v6043, 48
      %v6841 = vpop.permute.xlu0 %6840
      %6842 = vrot.lane.b32.xlu0 %v6044, 48
      %v6843 = vpop.permute.xlu0 %6842
      %6844 = vrot.lane.b32.xlu0 %v6045, 48
      %v6845 = vpop.permute.xlu0 %6844
      %6910 = vrot.lane.b32.xlu0 %v6046, 56
      %v6911 = vpop.permute.xlu0 %6910
      %6912 = vrot.lane.b32.xlu0 %v6047, 56
      %v6913 = vpop.permute.xlu0 %6912
      %6914 = vrot.lane.b32.xlu0 %v6048, 56
      %v6915 = vpop.permute.xlu0 %6914
      %6916 = vrot.lane.b32.xlu0 %v6049, 56
      %v6917 = vpop.permute.xlu0 %6916
      %6918 = vrot.lane.b32.xlu0 %v6050, 56
      %v6919 = vpop.permute.xlu0 %6918
      %6920 = vrot.lane.b32.xlu0 %v6051, 56
      %v6921 = vpop.permute.xlu0 %6920
      %6922 = vrot.lane.b32.xlu0 %v6052, 56
      %v6923 = vpop.permute.xlu0 %6922
      %6924 = vrot.lane.b32.xlu0 %v6053, 56
      %v6925 = vpop.permute.xlu0 %6924
      %6926 = vrot.lane.b32.xlu0 %v6054, 56
      %v6927 = vpop.permute.xlu0 %6926
      %6928 = vrot.lane.b32.xlu0 %v6055, 56
      %v6929 = vpop.permute.xlu0 %6928
      %6930 = vrot.lane.b32.xlu0 %v6056, 56
      %v6931 = vpop.permute.xlu0 %6930
      %6932 = vrot.lane.b32.xlu0 %v6057, 56
      %v6933 = vpop.permute.xlu0 %6932
      %6934 = vrot.lane.b32.xlu0 %v6058, 56
      %v6935 = vpop.permute.xlu0 %6934
      %6936 = vrot.lane.b32.xlu0 %v6059, 56
      %v6937 = vpop.permute.xlu0 %6936
      %6938 = vrot.lane.b32.xlu0 %v6060, 56
      %v6939 = vpop.permute.xlu0 %6938
      %6940 = vrot.lane.b32.xlu0 %v6061, 56
      %v6941 = vpop.permute.xlu0 %6940
      %6942 = vrot.lane.b32.xlu0 %v6062, 56
      %v6943 = vpop.permute.xlu0 %6942
      %6944 = vrot.lane.b32.xlu0 %v6063, 56
      %v6945 = vpop.permute.xlu0 %6944
      %6946 = vrot.lane.b32.xlu0 %v6064, 56
      %v6947 = vpop.permute.xlu0 %6946
      %6948 = vrot.lane.b32.xlu0 %v6065, 56
      %v6949 = vpop.permute.xlu0 %6948
      %6950 = vrot.lane.b32.xlu0 %v6066, 56
      %v6951 = vpop.permute.xlu0 %6950
      %6952 = vrot.lane.b32.xlu0 %v6067, 56
      %v6953 = vpop.permute.xlu0 %6952
      %6954 = vrot.lane.b32.xlu0 %v6068, 56
      %v6955 = vpop.permute.xlu0 %6954
      %6956 = vrot.lane.b32.xlu0 %v6069, 56
      %v6957 = vpop.permute.xlu0 %6956
      %6958 = vrot.lane.b32.xlu0 %v6070, 56
      %v6959 = vpop.permute.xlu0 %6958
      %6960 = vrot.lane.b32.xlu0 %v6071, 56
      %v6961 = vpop.permute.xlu0 %6960
      %6962 = vrot.lane.b32.xlu0 %v6072, 56
      %v6963 = vpop.permute.xlu0 %6962
      %6964 = vrot.lane.b32.xlu0 %v6073, 56
      %v6965 = vpop.permute.xlu0 %6964
      %6966 = vrot.lane.b32.xlu0 %v6074, 56
      %v6967 = vpop.permute.xlu0 %6966
      %6968 = vrot.lane.b32.xlu0 %v6075, 56
      %v6969 = vpop.permute.xlu0 %6968
      %6970 = vrot.lane.b32.xlu0 %v6076, 56
      %v6971 = vpop.permute.xlu0 %6970
      %6972 = vrot.lane.b32.xlu0 %v6077, 56
      %v6973 = vpop.permute.xlu0 %6972
      %7038 = vrot.lane.b32.xlu0 %v6078, 64
      %v7039 = vpop.permute.xlu0 %7038
      %7040 = vrot.lane.b32.xlu0 %v6079, 64
      %v7041 = vpop.permute.xlu0 %7040
      %7042 = vrot.lane.b32.xlu0 %v6080, 64
      %v7043 = vpop.permute.xlu0 %7042
      %7044 = vrot.lane.b32.xlu0 %v6081, 64
      %v7045 = vpop.permute.xlu0 %7044
      %7046 = vrot.lane.b32.xlu0 %v6082, 64
      %v7047 = vpop.permute.xlu0 %7046
      %7048 = vrot.lane.b32.xlu0 %v6083, 64
      %v7049 = vpop.permute.xlu0 %7048
      %7050 = vrot.lane.b32.xlu0 %v6084, 64
      %v7051 = vpop.permute.xlu0 %7050
      %7052 = vrot.lane.b32.xlu0 %v6085, 64
      %v7053 = vpop.permute.xlu0 %7052
      %7054 = vrot.lane.b32.xlu0 %v6086, 64
      %v7055 = vpop.permute.xlu0 %7054
      %7056 = vrot.lane.b32.xlu0 %v6087, 64
      %v7057 = vpop.permute.xlu0 %7056
      %7058 = vrot.lane.b32.xlu0 %v6088, 64
      %v7059 = vpop.permute.xlu0 %7058
      %7060 = vrot.lane.b32.xlu0 %v6089, 64
      %v7061 = vpop.permute.xlu0 %7060
      %7062 = vrot.lane.b32.xlu0 %v6090, 64
      %v7063 = vpop.permute.xlu0 %7062
      %7064 = vrot.lane.b32.xlu0 %v6091, 64
      %v7065 = vpop.permute.xlu0 %7064
      %7066 = vrot.lane.b32.xlu0 %v6092, 64
      %v7067 = vpop.permute.xlu0 %7066
      %7068 = vrot.lane.b32.xlu0 %v6093, 64
      %v7069 = vpop.permute.xlu0 %7068
      %7070 = vrot.lane.b32.xlu0 %v6094, 64
      %v7071 = vpop.permute.xlu0 %7070
      %7072 = vrot.lane.b32.xlu0 %v6095, 64
      %v7073 = vpop.permute.xlu0 %7072
      %7074 = vrot.lane.b32.xlu0 %v6096, 64
      %v7075 = vpop.permute.xlu0 %7074
      %7076 = vrot.lane.b32.xlu0 %v6097, 64
      %v7077 = vpop.permute.xlu0 %7076
      %7078 = vrot.lane.b32.xlu0 %v6098, 64
      %v7079 = vpop.permute.xlu0 %7078
      %7080 = vrot.lane.b32.xlu0 %v6099, 64
      %v7081 = vpop.permute.xlu0 %7080
      %7082 = vrot.lane.b32.xlu0 %v6100, 64
      %v7083 = vpop.permute.xlu0 %7082
      %7084 = vrot.lane.b32.xlu0 %v6101, 64
      %v7085 = vpop.permute.xlu0 %7084
      %7086 = vrot.lane.b32.xlu0 %v6102, 64
      %v7087 = vpop.permute.xlu0 %7086
      %7088 = vrot.lane.b32.xlu0 %v6103, 64
      %v7089 = vpop.permute.xlu0 %7088
      %7090 = vrot.lane.b32.xlu0 %v6104, 64
      %v7091 = vpop.permute.xlu0 %7090
      %7092 = vrot.lane.b32.xlu0 %v6105, 64
      %v7093 = vpop.permute.xlu0 %7092
      %7094 = vrot.lane.b32.xlu0 %v6106, 64
      %v7095 = vpop.permute.xlu0 %7094
      %7096 = vrot.lane.b32.xlu0 %v6107, 64
      %v7097 = vpop.permute.xlu0 %7096
      %7098 = vrot.lane.b32.xlu0 %v6108, 64
      %v7099 = vpop.permute.xlu0 %7098
      %7100 = vrot.lane.b32.xlu0 %v6109, 64
      %v7101 = vpop.permute.xlu0 %7100
      %v7134 = vsel %vm434, %v5821, %v6143
      %v7135 = vsel %vm434, %v5822, %v6145
      %v7136 = vsel %vm434, %v5823, %v6147
      %v7137 = vsel %vm434, %v5824, %v6149
      %v7138 = vsel %vm434, %v5825, %v6151
      %v7139 = vsel %vm434, %v5826, %v6153
      %v7140 = vsel %vm434, %v5827, %v6155
      %v7141 = vsel %vm434, %v5828, %v6157
      %v7142 = vsel %vm434, %v5829, %v6159
      %v7143 = vsel %vm434, %v5830, %v6161
      %v7144 = vsel %vm434, %v5831, %v6163
      %v7145 = vsel %vm434, %v5832, %v6165
      %v7146 = vsel %vm434, %v5833, %v6167
      %v7147 = vsel %vm434, %v5834, %v6169
      %v7148 = vsel %vm434, %v5835, %v6171
      %v7149 = vsel %vm434, %v5836, %v6173
      %v7150 = vsel %vm434, %v5837, %v6175
      %v7151 = vsel %vm434, %v5838, %v6177
      %v7152 = vsel %vm434, %v5839, %v6179
      %v7153 = vsel %vm434, %v5840, %v6181
      %v7154 = vsel %vm434, %v5841, %v6183
      %v7155 = vsel %vm434, %v5842, %v6185
      %v7156 = vsel %vm434, %v5843, %v6187
      %v7157 = vsel %vm434, %v5844, %v6189
      %v7158 = vsel %vm434, %v5845, %v6191
      %v7159 = vsel %vm434, %v5846, %v6193
      %v7160 = vsel %vm434, %v5847, %v6195
      %v7161 = vsel %vm434, %v5848, %v6197
      %v7162 = vsel %vm434, %v5849, %v6199
      %v7163 = vsel %vm434, %v5850, %v6201
      %v7164 = vsel %vm434, %v5851, %v6203
      %v7165 = vsel %vm434, %v5852, %v6205
      %v7166 = vsel %vm3515, %v7134, %v6271
      %v7167 = vsel %vm3515, %v7135, %v6273
      %v7168 = vsel %vm3515, %v7136, %v6275
      %v7169 = vsel %vm3515, %v7137, %v6277
      %v7170 = vsel %vm3515, %v7138, %v6279
      %v7171 = vsel %vm3515, %v7139, %v6281
      %v7172 = vsel %vm3515, %v7140, %v6283
      %v7173 = vsel %vm3515, %v7141, %v6285
      %v7174 = vsel %vm3515, %v7142, %v6287
      %v7175 = vsel %vm3515, %v7143, %v6289
      %v7176 = vsel %vm3515, %v7144, %v6291
      %v7177 = vsel %vm3515, %v7145, %v6293
      %v7178 = vsel %vm3515, %v7146, %v6295
      %v7179 = vsel %vm3515, %v7147, %v6297
      %v7180 = vsel %vm3515, %v7148, %v6299
      %v7181 = vsel %vm3515, %v7149, %v6301
      %v7182 = vsel %vm3515, %v7150, %v6303
      %v7183 = vsel %vm3515, %v7151, %v6305
      %v7184 = vsel %vm3515, %v7152, %v6307
      %v7185 = vsel %vm3515, %v7153, %v6309
      %v7186 = vsel %vm3515, %v7154, %v6311
      %v7187 = vsel %vm3515, %v7155, %v6313
      %v7188 = vsel %vm3515, %v7156, %v6315
      %v7189 = vsel %vm3515, %v7157, %v6317
      %v7190 = vsel %vm3515, %v7158, %v6319
      %v7191 = vsel %vm3515, %v7159, %v6321
      %v7192 = vsel %vm3515, %v7160, %v6323
      %v7193 = vsel %vm3515, %v7161, %v6325
      %v7194 = vsel %vm3515, %v7162, %v6327
      %v7195 = vsel %vm3515, %v7163, %v6329
      %v7196 = vsel %vm3515, %v7164, %v6331
      %v7197 = vsel %vm3515, %v7165, %v6333
      %v7198 = vsel %vm3548, %v7166, %v6399
      %v7199 = vsel %vm3548, %v7167, %v6401
      %v7200 = vsel %vm3548, %v7168, %v6403
      %v7201 = vsel %vm3548, %v7169, %v6405
      %v7202 = vsel %vm3548, %v7170, %v6407
      %v7203 = vsel %vm3548, %v7171, %v6409
      %v7204 = vsel %vm3548, %v7172, %v6411
      %v7205 = vsel %vm3548, %v7173, %v6413
      %v7206 = vsel %vm3548, %v7174, %v6415
      %v7207 = vsel %vm3548, %v7175, %v6417
      %v7208 = vsel %vm3548, %v7176, %v6419
      %v7209 = vsel %vm3548, %v7177, %v6421
      %v7210 = vsel %vm3548, %v7178, %v6423
      %v7211 = vsel %vm3548, %v7179, %v6425
      %v7212 = vsel %vm3548, %v7180, %v6427
      %v7213 = vsel %vm3548, %v7181, %v6429
      %v7214 = vsel %vm3548, %v7182, %v6431
      %v7215 = vsel %vm3548, %v7183, %v6433
      %v7216 = vsel %vm3548, %v7184, %v6435
      %v7217 = vsel %vm3548, %v7185, %v6437
      %v7218 = vsel %vm3548, %v7186, %v6439
      %v7219 = vsel %vm3548, %v7187, %v6441
      %v7220 = vsel %vm3548, %v7188, %v6443
      %v7221 = vsel %vm3548, %v7189, %v6445
      %v7222 = vsel %vm3548, %v7190, %v6447
      %v7223 = vsel %vm3548, %v7191, %v6449
      %v7224 = vsel %vm3548, %v7192, %v6451
      %v7225 = vsel %vm3548, %v7193, %v6453
      %v7226 = vsel %vm3548, %v7194, %v6455
      %v7227 = vsel %vm3548, %v7195, %v6457
      %v7228 = vsel %vm3548, %v7196, %v6459
      %v7229 = vsel %vm3548, %v7197, %v6461
      %v7230 = vsel %vm3581, %v7198, %v6527
      %v7231 = vsel %vm3581, %v7199, %v6529
      %v7232 = vsel %vm3581, %v7200, %v6531
      %v7233 = vsel %vm3581, %v7201, %v6533
      %v7234 = vsel %vm3581, %v7202, %v6535
      %v7235 = vsel %vm3581, %v7203, %v6537
      %v7236 = vsel %vm3581, %v7204, %v6539
      %v7237 = vsel %vm3581, %v7205, %v6541
      %v7238 = vsel %vm3581, %v7206, %v6543
      %v7239 = vsel %vm3581, %v7207, %v6545
      %v7240 = vsel %vm3581, %v7208, %v6547
      %v7241 = vsel %vm3581, %v7209, %v6549
      %v7242 = vsel %vm3581, %v7210, %v6551
      %v7243 = vsel %vm3581, %v7211, %v6553
      %v7244 = vsel %vm3581, %v7212, %v6555
      %v7245 = vsel %vm3581, %v7213, %v6557
      %v7246 = vsel %vm3581, %v7214, %v6559
      %v7247 = vsel %vm3581, %v7215, %v6561
      %v7248 = vsel %vm3581, %v7216, %v6563
      %v7249 = vsel %vm3581, %v7217, %v6565
      %v7250 = vsel %vm3581, %v7218, %v6567
      %v7251 = vsel %vm3581, %v7219, %v6569
      %v7252 = vsel %vm3581, %v7220, %v6571
      %v7253 = vsel %vm3581, %v7221, %v6573
      %v7254 = vsel %vm3581, %v7222, %v6575
      %v7255 = vsel %vm3581, %v7223, %v6577
      %v7256 = vsel %vm3581, %v7224, %v6579
      %v7257 = vsel %vm3581, %v7225, %v6581
      %v7258 = vsel %vm3581, %v7226, %v6583
      %v7259 = vsel %vm3581, %v7227, %v6585
      %v7260 = vsel %vm3581, %v7228, %v6587
      %v7261 = vsel %vm3581, %v7229, %v6589
      %v7262 = vsel %vm3614, %v7230, %v6655
      %v7263 = vsel %vm3614, %v7231, %v6657
      %v7264 = vsel %vm3614, %v7232, %v6659
      %v7265 = vsel %vm3614, %v7233, %v6661
      %v7266 = vsel %vm3614, %v7234, %v6663
      %v7267 = vsel %vm3614, %v7235, %v6665
      %v7268 = vsel %vm3614, %v7236, %v6667
      %v7269 = vsel %vm3614, %v7237, %v6669
      %v7270 = vsel %vm3614, %v7238, %v6671
      %v7271 = vsel %vm3614, %v7239, %v6673
      %v7272 = vsel %vm3614, %v7240, %v6675
      %v7273 = vsel %vm3614, %v7241, %v6677
      %v7274 = vsel %vm3614, %v7242, %v6679
      %v7275 = vsel %vm3614, %v7243, %v6681
      %v7276 = vsel %vm3614, %v7244, %v6683
      %v7277 = vsel %vm3614, %v7245, %v6685
      %v7278 = vsel %vm3614, %v7246, %v6687
      %v7279 = vsel %vm3614, %v7247, %v6689
      %v7280 = vsel %vm3614, %v7248, %v6691
      %v7281 = vsel %vm3614, %v7249, %v6693
      %v7282 = vsel %vm3614, %v7250, %v6695
      %v7283 = vsel %vm3614, %v7251, %v6697
      %v7284 = vsel %vm3614, %v7252, %v6699
      %v7285 = vsel %vm3614, %v7253, %v6701
      %v7286 = vsel %vm3614, %v7254, %v6703
      %v7287 = vsel %vm3614, %v7255, %v6705
      %v7288 = vsel %vm3614, %v7256, %v6707
      %v7289 = vsel %vm3614, %v7257, %v6709
      %v7290 = vsel %vm3614, %v7258, %v6711
      %v7291 = vsel %vm3614, %v7259, %v6713
      %v7292 = vsel %vm3614, %v7260, %v6715
      %v7293 = vsel %vm3614, %v7261, %v6717
      %v7294 = vsel %vm3647, %v7262, %v6783
      %v7295 = vsel %vm3647, %v7263, %v6785
      %v7296 = vsel %vm3647, %v7264, %v6787
      %v7297 = vsel %vm3647, %v7265, %v6789
      %v7298 = vsel %vm3647, %v7266, %v6791
      %v7299 = vsel %vm3647, %v7267, %v6793
      %v7300 = vsel %vm3647, %v7268, %v6795
      %v7301 = vsel %vm3647, %v7269, %v6797
      %v7302 = vsel %vm3647, %v7270, %v6799
      %v7303 = vsel %vm3647, %v7271, %v6801
      %v7304 = vsel %vm3647, %v7272, %v6803
      %v7305 = vsel %vm3647, %v7273, %v6805
      %v7306 = vsel %vm3647, %v7274, %v6807
      %v7307 = vsel %vm3647, %v7275, %v6809
      %v7308 = vsel %vm3647, %v7276, %v6811
      %v7309 = vsel %vm3647, %v7277, %v6813
      %v7310 = vsel %vm3647, %v7278, %v6815
      %v7311 = vsel %vm3647, %v7279, %v6817
      %v7312 = vsel %vm3647, %v7280, %v6819
      %v7313 = vsel %vm3647, %v7281, %v6821
      %v7314 = vsel %vm3647, %v7282, %v6823
      %v7315 = vsel %vm3647, %v7283, %v6825
      %v7316 = vsel %vm3647, %v7284, %v6827
      %v7317 = vsel %vm3647, %v7285, %v6829
      %v7318 = vsel %vm3647, %v7286, %v6831
      %v7319 = vsel %vm3647, %v7287, %v6833
      %v7320 = vsel %vm3647, %v7288, %v6835
      %v7321 = vsel %vm3647, %v7289, %v6837
      %v7322 = vsel %vm3647, %v7290, %v6839
      %v7323 = vsel %vm3647, %v7291, %v6841
      %v7324 = vsel %vm3647, %v7292, %v6843
      %v7325 = vsel %vm3647, %v7293, %v6845
      %v7326 = vsel %vm3680, %v7294, %v6911
      %v7327 = vsel %vm3680, %v7295, %v6913
      %v7328 = vsel %vm3680, %v7296, %v6915
      %v7329 = vsel %vm3680, %v7297, %v6917
      %v7330 = vsel %vm3680, %v7298, %v6919
      %v7331 = vsel %vm3680, %v7299, %v6921
      %v7332 = vsel %vm3680, %v7300, %v6923
      %v7333 = vsel %vm3680, %v7301, %v6925
      %v7334 = vsel %vm3680, %v7302, %v6927
      %v7335 = vsel %vm3680, %v7303, %v6929
      %v7336 = vsel %vm3680, %v7304, %v6931
      %v7337 = vsel %vm3680, %v7305, %v6933
      %v7338 = vsel %vm3680, %v7306, %v6935
      %v7339 = vsel %vm3680, %v7307, %v6937
      %v7340 = vsel %vm3680, %v7308, %v6939
      %v7341 = vsel %vm3680, %v7309, %v6941
      %v7342 = vsel %vm3680, %v7310, %v6943
      %v7343 = vsel %vm3680, %v7311, %v6945
      %v7344 = vsel %vm3680, %v7312, %v6947
      %v7345 = vsel %vm3680, %v7313, %v6949
      %v7346 = vsel %vm3680, %v7314, %v6951
      %v7347 = vsel %vm3680, %v7315, %v6953
      %v7348 = vsel %vm3680, %v7316, %v6955
      %v7349 = vsel %vm3680, %v7317, %v6957
      %v7350 = vsel %vm3680, %v7318, %v6959
      %v7351 = vsel %vm3680, %v7319, %v6961
      %v7352 = vsel %vm3680, %v7320, %v6963
      %v7353 = vsel %vm3680, %v7321, %v6965
      %v7354 = vsel %vm3680, %v7322, %v6967
      %v7355 = vsel %vm3680, %v7323, %v6969
      %v7356 = vsel %vm3680, %v7324, %v6971
      %v7357 = vsel %vm3680, %v7325, %v6973
      %v7358 = vsel %vm3713, %v7326, %v7039
      %v7359 = vsel %vm3713, %v7327, %v7041
      %v7360 = vsel %vm3713, %v7328, %v7043
      %v7361 = vsel %vm3713, %v7329, %v7045
      %v7362 = vsel %vm3713, %v7330, %v7047
      %v7363 = vsel %vm3713, %v7331, %v7049
      %v7364 = vsel %vm3713, %v7332, %v7051
      %v7365 = vsel %vm3713, %v7333, %v7053
      %v7366 = vsel %vm3713, %v7334, %v7055
      %v7367 = vsel %vm3713, %v7335, %v7057
      %v7368 = vsel %vm3713, %v7336, %v7059
      %v7369 = vsel %vm3713, %v7337, %v7061
      %v7370 = vsel %vm3713, %v7338, %v7063
      %v7371 = vsel %vm3713, %v7339, %v7065
      %v7372 = vsel %vm3713, %v7340, %v7067
      %v7373 = vsel %vm3713, %v7341, %v7069
      %v7374 = vsel %vm3713, %v7342, %v7071
      %v7375 = vsel %vm3713, %v7343, %v7073
      %v7376 = vsel %vm3713, %v7344, %v7075
      %v7377 = vsel %vm3713, %v7345, %v7077
      %v7378 = vsel %vm3713, %v7346, %v7079
      %v7379 = vsel %vm3713, %v7347, %v7081
      %v7380 = vsel %vm3713, %v7348, %v7083
      %v7381 = vsel %vm3713, %v7349, %v7085
      %v7382 = vsel %vm3713, %v7350, %v7087
      %v7383 = vsel %vm3713, %v7351, %v7089
      %v7384 = vsel %vm3713, %v7352, %v7091
      %v7385 = vsel %vm3713, %v7353, %v7093
      %v7386 = vsel %vm3713, %v7354, %v7095
      %v7387 = vsel %vm3713, %v7355, %v7097
      %v7388 = vsel %vm3713, %v7356, %v7099
      %v7389 = vsel %vm3713, %v7357, %v7101
      %v7390 = vld [vmem:[%s10] sm:$0xff]
      %v7391 = vld [vmem:[%s10 + $0x8] sm:$0xff]
      %v7392 = vld [vmem:[%s10 + $0x10] sm:$0xff]
      %v7393 = vld [vmem:[%s10 + $0x18] sm:$0xff]
      %v7394 = vld [vmem:[%s10 + $0x20] sm:$0xff]
      %v7395 = vld [vmem:[%s10 + $0x28] sm:$0xff]
      %v7396 = vld [vmem:[%s10 + $0x30] sm:$0xff]
      %v7397 = vld [vmem:[%s10 + $0x38] sm:$0xff]
      %v7398 = vld [vmem:[%s10 + $0x40] sm:$0xff]
      %v7399 = vld [vmem:[%s11] sm:$0x1]
      %v7401 = vperm.slane %v7399, 0
      %v7404 = vsel %vm5333, %v7358, 0
      %v7407 = vsel %vm5333, %v7359, 0
      %v7410 = vsel %vm5333, %v7360, 0
      %v7413 = vsel %vm5333, %v7361, 0
      %v7416 = vsel %vm5333, %v7362, 0
      %v7419 = vsel %vm5333, %v7363, 0
      %v7422 = vsel %vm5333, %v7364, 0
      %v7425 = vsel %vm5333, %v7365, 0
      %v7428 = vsel %vm5333, %v7366, 0
      %v7431 = vsel %vm5333, %v7367, 0
      %v7434 = vsel %vm5333, %v7368, 0
      %v7437 = vsel %vm5333, %v7369, 0
      %v7440 = vsel %vm5333, %v7370, 0
      %v7443 = vsel %vm5333, %v7371, 0
      %v7446 = vsel %vm5333, %v7372, 0
      %v7449 = vsel %vm5333, %v7373, 0
      %v7452 = vsel %vm5333, %v7374, 0
      %v7455 = vsel %vm5333, %v7375, 0
      %v7458 = vsel %vm5333, %v7376, 0
      %v7461 = vsel %vm5333, %v7377, 0
      %v7464 = vsel %vm5333, %v7378, 0
      %v7467 = vsel %vm5333, %v7379, 0
      %v7470 = vsel %vm5333, %v7380, 0
      %v7473 = vsel %vm5333, %v7381, 0
      %v7476 = vsel %vm5333, %v7382, 0
      %v7479 = vsel %vm5333, %v7383, 0
      %v7482 = vsel %vm5333, %v7384, 0
      %v7485 = vsel %vm5333, %v7385, 0
      %v7488 = vsel %vm5333, %v7386, 0
      %v7491 = vsel %vm5333, %v7387, 0
      %v7494 = vsel %vm5333, %v7388, 0
      %v7497 = vsel %vm5333, %v7389, 0
      %7499 = vmatpush.msra.mxu0 0.0
      %7500 = vmatpush.msra.mxu0 0.0
      %7501 = vmatpush.msra.mxu0 0.0
      %7502 = vmatpush.msra.mxu0 0.0
      %7503 = vmatpush.msra.mxu0 0.0
      %7504 = vmatpush.msra.mxu0 0.0
      %7505 = vmatpush.msra.mxu0 0.0
      %7506 = vmatpush.msra.mxu0 %v7398
      %7507 = vmatpush.msra.mxu0 %v7397
      %7508 = vmatpush.msra.mxu0 %v7396
      %7509 = vmatpush.msra.mxu0 %v7395
      %7510 = vmatpush.msra.mxu0 %v7394
      %7511 = vmatpush.msra.mxu0 %v7393
      %7512 = vmatpush.msra.mxu0 %v7392
      %7513 = vmatpush.msra.mxu0 %v7391
      %7514 = vmatpush.msra.mxu0 %v7390
      %7515 = vmatmul.f32.gmra.mxu0 %v7404
      %v7516 = vpop.f32.mrf.mxu0
      %v7517 = vadd.f32 %v7401, %v7516
      %7518 = vmatmul.f32.gmra.mxu0 %v7407
      %v7519 = vpop.f32.mrf.mxu0
      %v7520 = vadd.f32 %v7401, %v7519
      %7521 = vmatmul.f32.gmra.mxu0 %v7410
      %v7522 = vpop.f32.mrf.mxu0
      %v7523 = vadd.f32 %v7401, %v7522
      %7524 = vmatmul.f32.gmra.mxu0 %v7413
      %v7525 = vpop.f32.mrf.mxu0
      %v7526 = vadd.f32 %v7401, %v7525
      %7527 = vmatmul.f32.gmra.mxu0 %v7416
      %v7528 = vpop.f32.mrf.mxu0
      %v7529 = vadd.f32 %v7401, %v7528
      %7530 = vmatmul.f32.gmra.mxu0 %v7419
      %v7531 = vpop.f32.mrf.mxu0
      %v7532 = vadd.f32 %v7401, %v7531
      %7533 = vmatmul.f32.gmra.mxu0 %v7422
      %v7534 = vpop.f32.mrf.mxu0
      %v7535 = vadd.f32 %v7401, %v7534
      %7536 = vmatmul.f32.gmra.mxu0 %v7425
      %v7537 = vpop.f32.mrf.mxu0
      %v7538 = vadd.f32 %v7401, %v7537
      %7539 = vmatmul.f32.gmra.mxu0 %v7428
      %v7540 = vpop.f32.mrf.mxu0
      %v7541 = vadd.f32 %v7401, %v7540
      %7542 = vmatmul.f32.gmra.mxu0 %v7431
      %v7543 = vpop.f32.mrf.mxu0
      %v7544 = vadd.f32 %v7401, %v7543
      %7545 = vmatmul.f32.gmra.mxu0 %v7434
      %v7546 = vpop.f32.mrf.mxu0
      %v7547 = vadd.f32 %v7401, %v7546
      %7548 = vmatmul.f32.gmra.mxu0 %v7437
      %v7549 = vpop.f32.mrf.mxu0
      %v7550 = vadd.f32 %v7401, %v7549
      %7551 = vmatmul.f32.gmra.mxu0 %v7440
      %v7552 = vpop.f32.mrf.mxu0
      %v7553 = vadd.f32 %v7401, %v7552
      %7554 = vmatmul.f32.gmra.mxu0 %v7443
      %v7555 = vpop.f32.mrf.mxu0
      %v7556 = vadd.f32 %v7401, %v7555
      %7557 = vmatmul.f32.gmra.mxu0 %v7446
      %v7558 = vpop.f32.mrf.mxu0
      %v7559 = vadd.f32 %v7401, %v7558
      %7560 = vmatmul.f32.gmra.mxu0 %v7449
      %v7561 = vpop.f32.mrf.mxu0
      %v7562 = vadd.f32 %v7401, %v7561
      %7563 = vmatmul.f32.gmra.mxu0 %v7452
      %v7564 = vpop.f32.mrf.mxu0
      %v7565 = vadd.f32 %v7401, %v7564
      %7566 = vmatmul.f32.gmra.mxu0 %v7455
      %v7567 = vpop.f32.mrf.mxu0
      %v7568 = vadd.f32 %v7401, %v7567
      %7569 = vmatmul.f32.gmra.mxu0 %v7458
      %v7570 = vpop.f32.mrf.mxu0
      %v7571 = vadd.f32 %v7401, %v7570
      %7572 = vmatmul.f32.gmra.mxu0 %v7461
      %v7573 = vpop.f32.mrf.mxu0
      %v7574 = vadd.f32 %v7401, %v7573
      %7575 = vmatmul.f32.gmra.mxu0 %v7464
      %v7576 = vpop.f32.mrf.mxu0
      %v7577 = vadd.f32 %v7401, %v7576
      %7578 = vmatmul.f32.gmra.mxu0 %v7467
      %v7579 = vpop.f32.mrf.mxu0
      %v7580 = vadd.f32 %v7401, %v7579
      %7581 = vmatmul.f32.gmra.mxu0 %v7470
      %v7582 = vpop.f32.mrf.mxu0
      %v7583 = vadd.f32 %v7401, %v7582
      %7584 = vmatmul.f32.gmra.mxu0 %v7473
      %v7585 = vpop.f32.mrf.mxu0
      %v7586 = vadd.f32 %v7401, %v7585
      %7587 = vmatmul.f32.gmra.mxu0 %v7476
      %v7588 = vpop.f32.mrf.mxu0
      %v7589 = vadd.f32 %v7401, %v7588
      %7590 = vmatmul.f32.gmra.mxu0 %v7479
      %v7591 = vpop.f32.mrf.mxu0
      %v7592 = vadd.f32 %v7401, %v7591
      %7593 = vmatmul.f32.gmra.mxu0 %v7482
      %v7594 = vpop.f32.mrf.mxu0
      %v7595 = vadd.f32 %v7401, %v7594
      %7596 = vmatmul.f32.gmra.mxu0 %v7485
      %v7597 = vpop.f32.mrf.mxu0
      %v7598 = vadd.f32 %v7401, %v7597
      %7599 = vmatmul.f32.gmra.mxu0 %v7488
      %v7600 = vpop.f32.mrf.mxu0
      %v7601 = vadd.f32 %v7401, %v7600
      %7602 = vmatmul.f32.gmra.mxu0 %v7491
      %v7603 = vpop.f32.mrf.mxu0
      %v7604 = vadd.f32 %v7401, %v7603
      %7605 = vmatmul.f32.gmra.mxu0 %v7494
      %v7606 = vpop.f32.mrf.mxu0
      %v7607 = vadd.f32 %v7401, %v7606
      %7608 = vmatmul.f32.gmra.mxu0 %v7497
      %v7609 = vpop.f32.mrf.mxu0
      %v7610 = vadd.f32 %v7401, %v7609
      %7611 = vdwg.mxu0
      %7612 = vst.msk [vmem:[%s433] sm:$0xff] %vm434, %v7517
      %7613 = vst.msk [vmem:[%s433 + $0x8] sm:$0xff] %vm434, %v7520
      %7614 = vst.msk [vmem:[%s433 + $0x10] sm:$0xff] %vm434, %v7523
      %7615 = vst.msk [vmem:[%s433 + $0x18] sm:$0xff] %vm434, %v7526
      %7616 = vst.msk [vmem:[%s433 + $0x20] sm:$0xff] %vm434, %v7529
      %7617 = vst.msk [vmem:[%s433 + $0x28] sm:$0xff] %vm434, %v7532
      %7618 = vst.msk [vmem:[%s433 + $0x30] sm:$0xff] %vm434, %v7535
      %7619 = vst.msk [vmem:[%s433 + $0x38] sm:$0xff] %vm434, %v7538
      %7620 = vst.msk [vmem:[%s433 + $0x40] sm:$0xff] %vm434, %v7541
      %7621 = vst.msk [vmem:[%s433 + $0x48] sm:$0xff] %vm434, %v7544
      %7622 = vst.msk [vmem:[%s433 + $0x50] sm:$0xff] %vm434, %v7547
      %7623 = vst.msk [vmem:[%s433 + $0x58] sm:$0xff] %vm434, %v7550
      %7624 = vst.msk [vmem:[%s433 + $0x60] sm:$0xff] %vm434, %v7553
      %7625 = vst.msk [vmem:[%s433 + $0x68] sm:$0xff] %vm434, %v7556
      %7626 = vst.msk [vmem:[%s433 + $0x70] sm:$0xff] %vm434, %v7559
      %7627 = vst.msk [vmem:[%s433 + $0x78] sm:$0xff] %vm434, %v7562
      %7628 = vst.msk [vmem:[%s433 + $0x80] sm:$0xff] %vm434, %v7565
      %7629 = vst.msk [vmem:[%s433 + $0x88] sm:$0xff] %vm434, %v7568
      %7630 = vst.msk [vmem:[%s433 + $0x90] sm:$0xff] %vm434, %v7571
      %7631 = vst.msk [vmem:[%s433 + $0x98] sm:$0xff] %vm434, %v7574
      %7632 = vst.msk [vmem:[%s433 + $0xa0] sm:$0xff] %vm434, %v7577
      %7633 = vst.msk [vmem:[%s433 + $0xa8] sm:$0xff] %vm434, %v7580
      %7634 = vst.msk [vmem:[%s433 + $0xb0] sm:$0xff] %vm434, %v7583
      %7635 = vst.msk [vmem:[%s433 + $0xb8] sm:$0xff] %vm434, %v7586
      %7636 = vst.msk [vmem:[%s433 + $0xc0] sm:$0xff] %vm434, %v7589
      %7637 = vst.msk [vmem:[%s433 + $0xc8] sm:$0xff] %vm434, %v7592
      %7638 = vst.msk [vmem:[%s433 + $0xd0] sm:$0xff] %vm434, %v7595
      %7639 = vst.msk [vmem:[%s433 + $0xd8] sm:$0xff] %vm434, %v7598
      %7640 = vst.msk [vmem:[%s433 + $0xe0] sm:$0xff] %vm434, %v7601
      %7641 = vst.msk [vmem:[%s433 + $0xe8] sm:$0xff] %vm434, %v7604
      %7642 = vst.msk [vmem:[%s433 + $0xf0] sm:$0xff] %vm434, %v7607
      %7643 = vst.msk [vmem:[%s433 + $0xf8] sm:$0xff] %vm434, %v7610
      %p7644 = scmp.lt.s32.totalorder %s23, 1
      %s7645 = scalar_select %p7644, %s23, 1
      %s7646 = smul.addr %s7645, 32
      %s7647 = smul.addr %s7646, 8
      %s7648 = scalar_lea.vmem %s12, %s7647
      // Predicated region
      $region69: #{tpu_custom_call.1} parent=67 // pred_check
        %p7649 = pneg %p303
      $region70: #{tpu_custom_call.1} parent=67 // pred_check_branch
        %7651 = sbr.rel (%p7649) target = $region72
      $region71: #{tpu_custom_call.1} parent=67 // pred_region
        _
      $region72: #{tpu_custom_call.1} parent=67 // pred_fallthru
        _
    $region68: #{tpu_custom_call.1} parent=5 // pred_fallthru
      _
    %p7652 = scmp.le.s32.totalorder 2, %s18
    // Predicated region
    $region73: #{tpu_custom_call.1} parent=5 // pred_check
      %p7653 = pneg %p7652
    $region74: #{tpu_custom_call.1} parent=5 // pred_check_branch
      %7655 = sbr.rel (%p7653) target = $region76
    $region75: #{tpu_custom_call.1} parent=5 // pred_region
      %s7656 = ssub.s32 %s18, 2
      // Predicated region
      $region77: #{tpu_custom_call.1} parent=75 // pred_check
        %p7657 = pneg %p309
      $region78: #{tpu_custom_call.1} parent=75 // pred_check_branch
        %7659 = sbr.rel (%p7657) target = $region80
      $region79: #{tpu_custom_call.1} parent=75 // pred_region
        %p7660 = scmp.lt.s32.totalorder %s24, 1
        %s7661 = scalar_select %p7660, %s24, 1
        %s7662 = smul.addr %s7661, 32
        %s7663 = smul.addr %s7662, 8
        %s7664 = scalar_lea.vmem %s12, %s7663
      $region80: #{tpu_custom_call.1} parent=75 // pred_fallthru
        _
    $region76: #{tpu_custom_call.1} parent=5 // pred_fallthru
      _
  $region6: #{tpu_custom_call.1} parent=0 // loop_footer
    %s22 = sadd.s32 1, %s18
  $region7: #{tpu_custom_call.1} parent=0 // loop_footer_branch
    %17 = sbr.rel target = $region3
  $region8: #{tpu_custom_call.1} parent=0 // loop_exit
    _

</llo_original>
